<compile_context>
chip_gen: v7x
topology: tpu7x:2x2x1
jax: 0.10.0
libtpu: 0.0.40
codegen_flags: <defaults>
</compile_context>

<pallas_src>
import jax
import jax.numpy as jnp
from jax import lax
from jax.experimental import pallas as pl
from jax.experimental.pallas import tpu as pltpu

D_IN = 3072   # intermediate size
D_OUT = 768   # hidden size
EPS = 1e-12


def _round_up(x, m):
    return (x + m - 1) // m * m


def bert_output_kernel(x_ref, w_ref, b_ref, res_ref, gamma_ref, beta_ref, o_ref):
    # One full-K matmul per M tile: bf16 operands, f32 accumulation on the MXU.
    acc = jnp.dot(x_ref[...], w_ref[...], preferred_element_type=jnp.float32)

    # dense bias + (dropout == identity) + residual add
    h = acc + b_ref[...] + res_ref[...].astype(jnp.float32)

    # BertLayerNorm (TF style: eps inside the sqrt), gamma folded into the rsqrt scale.
    u = jnp.mean(h, axis=-1, keepdims=True)
    d = h - u
    s = jnp.mean(d * d, axis=-1, keepdims=True)
    scale = gamma_ref[...] * lax.rsqrt(s + EPS)          # (1,D)*(tm,1) -> (tm,D)
    o_ref[...] = (d * scale + beta_ref[...]).astype(o_ref.dtype)


def bert_output(hidden_states, input_tensor, w, b, gamma, beta, *,
                tm=256, out_dtype=None, vmem_limit_bytes=48 * 1024 * 1024):
    """hidden_states: [T, 3072], input_tensor: [T, 768] -> [T, 768].

    w is stored already transposed: [3072, 768].
    tm: row (token) tile; 256 is a good default for v6e/v7x, use 128 on v5e.
    """
    T, K = hidden_states.shape
    assert K == D_IN and input_tensor.shape == (T, D_OUT)
    out_dtype = out_dtype or hidden_states.dtype

    # bf16 matmul operands (f32 accumulation inside the kernel).
    x = hidden_states.astype(jnp.bfloat16)
    w_bf = w.astype(jnp.bfloat16)
    res = input_tensor

    # Clamp the row tile for tiny inputs, then pad T to a multiple of it (>= 8 sublanes).
    tm = max(8, min(tm, _round_up(T, 8)))
    T_pad = _round_up(T, tm)
    if T_pad != T:
        x = jnp.pad(x, ((0, T_pad - T), (0, 0)))
        res = jnp.pad(res, ((0, T_pad - T), (0, 0)))

    b2 = b.reshape(1, D_OUT).astype(jnp.float32)
    g2 = gamma.reshape(1, D_OUT).astype(jnp.float32)
    be2 = beta.reshape(1, D_OUT).astype(jnp.float32)

    grid_m = T_pad // tm

    cost = pl.CostEstimate(
        flops=2 * T_pad * D_IN * D_OUT,
        transcendentals=T_pad,  # one rsqrt per row
        bytes_accessed=(x.size * 2 + w_bf.size * 2
                        + res.size * res.dtype.itemsize
                        + T_pad * D_OUT * jnp.dtype(out_dtype).itemsize),
    )

    out = pl.pallas_call(
        bert_output_kernel,
        out_shape=jax.ShapeDtypeStruct((T_pad, D_OUT), out_dtype),
        grid_spec=pltpu.PrefetchScalarGridSpec(
            num_scalar_prefetch=0,
            grid=(grid_m,),
            in_specs=[
                pl.BlockSpec((tm, D_IN), lambda i: (i, 0)),      # activation tile (bf16)
                pl.BlockSpec((D_IN, D_OUT), lambda i: (0, 0)),   # full weight, VMEM-resident
                pl.BlockSpec((1, D_OUT), lambda i: (0, 0)),      # dense bias
                pl.BlockSpec((tm, D_OUT), lambda i: (i, 0)),     # residual tile
                pl.BlockSpec((1, D_OUT), lambda i: (0, 0)),      # LN gamma
                pl.BlockSpec((1, D_OUT), lambda i: (0, 0)),      # LN beta
            ],
            out_specs=pl.BlockSpec((tm, D_OUT), lambda i: (i, 0)),
        ),
        compiler_params=pltpu.CompilerParams(
            dimension_semantics=("parallel",),
            vmem_limit_bytes=vmem_limit_bytes,
        ),
        cost_estimate=cost,
    )(x, w_bf, b2, res, g2, be2)

    return out[:T] if T_pad != T else out


def reference(hidden_states, input_tensor, w, b, gamma, beta):
    # Same bf16 matmul / f32 accumulation as the kernel so the check is tight.
    h = jnp.dot(hidden_states.astype(jnp.bfloat16), w.astype(jnp.bfloat16),
                preferred_element_type=jnp.float32) + b
    h = h + input_tensor
    u = jnp.mean(h, axis=-1, keepdims=True)
    s = jnp.mean((h - u) ** 2, axis=-1, keepdims=True)
    xn = (h - u) / jnp.sqrt(s + EPS)
    return gamma * xn + beta


if __name__ == "__main__":
    key = jax.random.PRNGKey(0)
    k1, k2, k3, k4 = jax.random.split(key, 4)

    batch, seq = 2, 8
    T = batch * seq  # 16 rows (multiple of 8 sublanes)

    hidden_states = jax.random.normal(k1, (T, D_IN), dtype=jnp.float32)
    input_tensor = jax.random.normal(k2, (T, D_OUT), dtype=jnp.float32)

    # Deterministic parameter init (w stored already transposed: [3072, 768]).
    w = jax.random.normal(k3, (D_IN, D_OUT), dtype=jnp.float32) * 0.02
    b = jax.random.normal(k4, (D_OUT,), dtype=jnp.float32) * 0.02
    gamma = jnp.ones((D_OUT,), dtype=jnp.float32)
    beta = jnp.zeros((D_OUT,), dtype=jnp.float32)

    out = bert_output(hidden_states, input_tensor, w, b, gamma, beta)
    out = jax.block_until_ready(out)

    ref = reference(hidden_states, input_tensor, w, b, gamma, beta)
    assert out.shape == (T, D_OUT)
    assert bool(jnp.all(jnp.isfinite(out))), "non-finite output"
    assert jnp.allclose(out, ref, atol=2e-2, rtol=2e-2), "mismatch vs reference"

    print("KERNEL_OK")
</pallas_src>

<mosaic_0001>
module attributes {stable_mosaic.version = 11 : i64} {
  func.func @bert_output_kernel(%arg0: i32, %arg1: memref<16x3072xbf16, #tpu.memory_space<vmem>>, %arg2: memref<3072x768xbf16, #tpu.memory_space<vmem>>, %arg3: memref<1x768xf32, #tpu.memory_space<vmem>>, %arg4: memref<16x768xf32, #tpu.memory_space<vmem>>, %arg5: memref<1x768xf32, #tpu.memory_space<vmem>>, %arg6: memref<1x768xf32, #tpu.memory_space<vmem>>, %arg7: memref<16x768xf32, #tpu.memory_space<vmem>>) attributes {dimension_semantics = [#tpu.dimension_semantics<parallel>], iteration_bounds = array<i64: 1>, scalar_prefetch = 0 : i64, scratch_operands = 0 : i64, tpu.core_type = #tpu.core_type<tc>, window_params = [{transform_indices = @transform_0, window_bounds = array<i64: 16, 3072>}, {pipeline_mode = #tpu.pipeline_mode<synchronous>, transform_indices = @transform_1, window_bounds = array<i64: 3072, 768>}, {pipeline_mode = #tpu.pipeline_mode<synchronous>, transform_indices = @transform_2, window_bounds = array<i64: 1, 768>}, {transform_indices = @transform_3, window_bounds = array<i64: 16, 768>}, {pipeline_mode = #tpu.pipeline_mode<synchronous>, transform_indices = @transform_4, window_bounds = array<i64: 1, 768>}, {pipeline_mode = #tpu.pipeline_mode<synchronous>, transform_indices = @transform_5, window_bounds = array<i64: 1, 768>}, {transform_indices = @transform_6, window_bounds = array<i64: 16, 768>}]} {
    %c0 = arith.constant 0 : index
    %c0_0 = arith.constant 0 : index
    %0 = vector.load %arg1[%c0, %c0_0] : memref<16x3072xbf16, #tpu.memory_space<vmem>>, vector<16x3072xbf16>
    %c0_1 = arith.constant 0 : index
    %c0_2 = arith.constant 0 : index
    %1 = vector.load %arg2[%c0_1, %c0_2] : memref<3072x768xbf16, #tpu.memory_space<vmem>>, vector<3072x768xbf16>
    %cst = arith.constant dense<0.000000e+00> : vector<16x768xf32>
    %2 = tpu.matmul %0, %1, %cst {dimension_numbers = #tpu.dot_dimension_numbers<[1], [0], [0], [1], [0, 0, 1, 1], [], []>} : vector<16x3072xbf16>, vector<3072x768xbf16>, vector<16x768xf32> -> vector<16x768xf32>
    %c0_3 = arith.constant 0 : index
    %c0_4 = arith.constant 0 : index
    %3 = vector.load %arg3[%c0_3, %c0_4] : memref<1x768xf32, #tpu.memory_space<vmem>>, vector<1x768xf32>
    %4 = vector.broadcast %3 : vector<1x768xf32> to vector<16x768xf32>
    %5 = arith.addf %2, %4 : vector<16x768xf32>
    %c0_5 = arith.constant 0 : index
    %c0_6 = arith.constant 0 : index
    %6 = vector.load %arg4[%c0_5, %c0_6] : memref<16x768xf32, #tpu.memory_space<vmem>>, vector<16x768xf32>
    %7 = arith.addf %5, %6 : vector<16x768xf32>
    %cst_7 = arith.constant dense<0.000000e+00> : vector<16xf32>
    %8 = vector.multi_reduction <add>, %7, %cst_7 [1] : vector<16x768xf32> to vector<16xf32>
    %9 = vector.shape_cast %8 : vector<16xf32> to vector<16x1xf32>
    %cst_8 = arith.constant 7.680000e+02 : f32
    %10 = vector.broadcast %cst_8 : f32 to vector<16x1xf32>
    %11 = arith.divf %9, %10 : vector<16x1xf32>
    %12 = vector.broadcast %11 : vector<16x1xf32> to vector<16x768xf32>
    %13 = arith.subf %7, %12 : vector<16x768xf32>
    %14 = arith.mulf %13, %13 : vector<16x768xf32>
    %cst_9 = arith.constant dense<0.000000e+00> : vector<16xf32>
    %15 = vector.multi_reduction <add>, %14, %cst_9 [1] : vector<16x768xf32> to vector<16xf32>
    %16 = vector.shape_cast %15 : vector<16xf32> to vector<16x1xf32>
    %cst_10 = arith.constant 7.680000e+02 : f32
    %17 = vector.broadcast %cst_10 : f32 to vector<16x1xf32>
    %18 = arith.divf %16, %17 : vector<16x1xf32>
    %c0_11 = arith.constant 0 : index
    %c0_12 = arith.constant 0 : index
    %19 = vector.load %arg5[%c0_11, %c0_12] : memref<1x768xf32, #tpu.memory_space<vmem>>, vector<1x768xf32>
    %cst_13 = arith.constant 9.99999996E-13 : f32
    %20 = vector.broadcast %cst_13 : f32 to vector<16x1xf32>
    %21 = arith.addf %18, %20 : vector<16x1xf32>
    %22 = math.rsqrt %21 : vector<16x1xf32>
    %23 = vector.broadcast %19 : vector<1x768xf32> to vector<16x768xf32>
    %24 = vector.broadcast %22 : vector<16x1xf32> to vector<16x768xf32>
    %25 = arith.mulf %23, %24 : vector<16x768xf32>
    %26 = arith.mulf %13, %25 : vector<16x768xf32>
    %c0_14 = arith.constant 0 : index
    %c0_15 = arith.constant 0 : index
    %27 = vector.load %arg6[%c0_14, %c0_15] : memref<1x768xf32, #tpu.memory_space<vmem>>, vector<1x768xf32>
    %28 = vector.broadcast %27 : vector<1x768xf32> to vector<16x768xf32>
    %29 = arith.addf %26, %28 : vector<16x768xf32>
    %c0_16 = arith.constant 0 : index
    %c0_17 = arith.constant 0 : index
    %30 = vector.load %arg7[%c0_16, %c0_17] : memref<16x768xf32, #tpu.memory_space<vmem>>, vector<16x768xf32>
    tpu.vector_store %arg7[%c0_16, %c0_17], %29 {strides = array<i32>} : memref<16x768xf32, #tpu.memory_space<vmem>>, vector<16x768xf32>,
    return
  }
  func.func @transform_0(%arg0: i32) -> (i32, i32) {
    %c0_i32 = arith.constant 0 : i32
    %c0_i32_0 = arith.constant 0 : i32
    return %arg0, %c0_i32 : i32, i32
  }
  func.func @transform_1(%arg0: i32) -> (i32, i32) {
    %c0_i32 = arith.constant 0 : i32
    %c0_i32_0 = arith.constant 0 : i32
    %c0_i32_1 = arith.constant 0 : i32
    return %c0_i32, %c0_i32_0 : i32, i32
  }
  func.func @transform_2(%arg0: i32) -> (i32, i32) {
    %c0_i32 = arith.constant 0 : i32
    %c0_i32_0 = arith.constant 0 : i32
    %c0_i32_1 = arith.constant 0 : i32
    return %c0_i32, %c0_i32_0 : i32, i32
  }
  func.func @transform_3(%arg0: i32) -> (i32, i32) {
    %c0_i32 = arith.constant 0 : i32
    %c0_i32_0 = arith.constant 0 : i32
    return %arg0, %c0_i32 : i32, i32
  }
  func.func @transform_4(%arg0: i32) -> (i32, i32) {
    %c0_i32 = arith.constant 0 : i32
    %c0_i32_0 = arith.constant 0 : i32
    %c0_i32_1 = arith.constant 0 : i32
    return %c0_i32, %c0_i32_0 : i32, i32
  }
  func.func @transform_5(%arg0: i32) -> (i32, i32) {
    %c0_i32 = arith.constant 0 : i32
    %c0_i32_0 = arith.constant 0 : i32
    %c0_i32_1 = arith.constant 0 : i32
    return %c0_i32, %c0_i32_0 : i32, i32
  }
  func.func @transform_6(%arg0: i32) -> (i32, i32) {
    %c0_i32 = arith.constant 0 : i32
    %c0_i32_0 = arith.constant 0 : i32
    return %arg0, %c0_i32 : i32, i32
  }
}

</mosaic_0001>

<llo_original>
// kernel: tpu_custom_call.1
$region0: #{tpu_custom_call.1}
  #allocation0 [shape = 'u32[]', space=smem, size = 0x4, offset = 0x4, fixed_abs, tag = 'smem constant byte address 0x4 - core index']
  #allocation1 [shape = 'u32[144,128]{1,0:T(1,128)}', space=vmem, size = 0x12000, scoped, tag = 'internal scratch']
  %s0 = inlined_call_operand.hbm [shape: bf16[16,3072], index: 0, kind: input, shape index: {}]
  %s1 = inlined_call_operand.hbm [shape: bf16[3072,768], index: 1, kind: input, shape index: {}]
  %s2 = inlined_call_operand.hbm [shape: f32[1,768], index: 2, kind: input, shape index: {}]
  %s3 = inlined_call_operand.hbm [shape: f32[16,768], index: 3, kind: input, shape index: {}]
  %s4 = inlined_call_operand.hbm [shape: f32[1,768], index: 4, kind: input, shape index: {}]
  %s5 = inlined_call_operand.hbm [shape: f32[1,768], index: 5, kind: input, shape index: {}]
  %s6 = inlined_call_operand.hbm [shape: f32[16,768], index: 6, kind: output, shape index: {}]
  %s7 = sld [smem:[#allocation0]]
  $region58: #{tpu_custom_call.1} parent=0
    _
  %s9 = ssub.s32 1, %s7
  %s10 = scalar_select 0, %s9, %s7
  $region1: #{tpu_custom_call.1} parent=0
    #allocation2 [shape = 'u8[98304]{0}', space=vmem, size = 0x18000, scoped, tag = 'input window, operand 0, single buffered']
    #allocation3 [shape = 's32[1]{0}', space=sflag, size = 0x4, scoped, tag = 'scoped memory for tpu_custom_call.1']
    #allocation4 [shape = 's32[1]{0}', space=sflag, size = 0x4, scoped, tag = 'scoped memory for tpu_custom_call.1']
    #allocation5 [shape = 'u8[4718592]{0}', space=vmem, size = 0x480000, scoped, tag = 'input window, operand 1, single buffered']
    #allocation6 [shape = 's32[1]{0}', space=sflag, size = 0x4, scoped, tag = 'scoped memory for tpu_custom_call.1']
    #allocation7 [shape = 'u8[3072]{0}', space=vmem, size = 0xc00, scoped, tag = 'input window, operand 2, single buffered']
    #allocation8 [shape = 'u8[49152]{0}', space=vmem, size = 0xc000, scoped, tag = 'input window, operand 3, single buffered']
    #allocation9 [shape = 's32[1]{0}', space=sflag, size = 0x4, scoped, tag = 'scoped memory for tpu_custom_call.1']
    #allocation10 [shape = 'u8[3072]{0}', space=vmem, size = 0xc00, scoped, tag = 'input window, operand 4, single buffered']
    #allocation11 [shape = 'u8[3072]{0}', space=vmem, size = 0xc00, scoped, tag = 'input window, operand 5, single buffered']
    #allocation12 [shape = 's32[1]{0}', space=sflag, size = 0x4, scoped, tag = 'scoped memory for tpu_custom_call.1']
    #allocation13 [shape = 'u8[49152]{0}', space=vmem, size = 0xc000, scoped, tag = 'output window, operand 0, single buffered']
    %11 = vsyncpa [#allocation3], 0
    %12 = vsyncpa [#allocation6], 0
    %13 = vsyncpa [#allocation9], 0
    %14 = vsyncpa [#allocation12], 0
    %15 = vsyncpa [#allocation4], 0
    // Predicated region
    $region2: #{tpu_custom_call.1} parent=1 // pred_check
      _
    $region3: #{tpu_custom_call.1} parent=1 // pred_check_branch
      %17 = sbr.rel (0) target = $region5
    $region4: #{tpu_custom_call.1} parent=1 // pred_region
      %s19 = ssub.s32 3072, 3072
      %20 = vsyncadd [#allocation3], %s19
      %s21 = sshll.u32 [#allocation2], 4
      %s22 = int_to_ptr.vmem [resolvable:$true] %s21
      %27 = dma.hbm_to_vmem [thread:$0]  %s0, 3072, %s22, [#allocation3], 1536, 1536, 96
    $region5: #{tpu_custom_call.1} parent=1 // pred_fallthru
      _
    // Predicated region
    $region6: #{tpu_custom_call.1} parent=1 // pred_check
      _
    $region7: #{tpu_custom_call.1} parent=1 // pred_check_branch
      %29 = sbr.rel (0) target = $region9
    $region8: #{tpu_custom_call.1} parent=1 // pred_region
      %s31 = ssub.s32 147456, 147456
      %32 = vsyncadd [#allocation6], %s31
      %s33 = sshll.u32 [#allocation5], 4
      %s34 = int_to_ptr.vmem [resolvable:$true] %s33
      %39 = dma.hbm_to_vmem [thread:$0]  %s1, 147456, %s34, [#allocation6], 384, 384, 24
    $region9: #{tpu_custom_call.1} parent=1 // pred_fallthru
      _
    // Predicated region
    $region10: #{tpu_custom_call.1} parent=1 // pred_check
      _
    $region11: #{tpu_custom_call.1} parent=1 // pred_check_branch
      %41 = sbr.rel (0) target = $region13
    $region12: #{tpu_custom_call.1} parent=1 // pred_region
      %s43 = ssub.s32 96, 96
      %44 = vsyncadd [#allocation6], %s43
      %s46 = sshll.u32 [#allocation7], 4
      %s47 = int_to_ptr.vmem [resolvable:$true] %s46
      %49 = dma.hbm_to_vmem [thread:$0]  %s2, 96, %s47, [#allocation6]
    $region13: #{tpu_custom_call.1} parent=1 // pred_fallthru
      _
    // Predicated region
    $region14: #{tpu_custom_call.1} parent=1 // pred_check
      _
    $region15: #{tpu_custom_call.1} parent=1 // pred_check_branch
      %51 = sbr.rel (0) target = $region17
    $region16: #{tpu_custom_call.1} parent=1 // pred_region
      %s53 = ssub.s32 1536, 1536
      %54 = vsyncadd [#allocation9], %s53
      %s55 = sshll.u32 [#allocation8], 4
      %s56 = int_to_ptr.vmem [resolvable:$true] %s55
      %61 = dma.hbm_to_vmem [thread:$0]  %s3, 1536, %s56, [#allocation9], 768, 768, 48
    $region17: #{tpu_custom_call.1} parent=1 // pred_fallthru
      _
    // Predicated region
    $region18: #{tpu_custom_call.1} parent=1 // pred_check
      _
    $region19: #{tpu_custom_call.1} parent=1 // pred_check_branch
      %63 = sbr.rel (0) target = $region21
    $region20: #{tpu_custom_call.1} parent=1 // pred_region
      %s65 = ssub.s32 96, 96
      %66 = vsyncadd [#allocation9], %s65
      %s68 = sshll.u32 [#allocation10], 4
      %s69 = int_to_ptr.vmem [resolvable:$true] %s68
      %71 = dma.hbm_to_vmem [thread:$0]  %s4, 96, %s69, [#allocation9]
    $region21: #{tpu_custom_call.1} parent=1 // pred_fallthru
      _
    // Predicated region
    $region22: #{tpu_custom_call.1} parent=1 // pred_check
      _
    $region23: #{tpu_custom_call.1} parent=1 // pred_check_branch
      %73 = sbr.rel (0) target = $region25
    $region24: #{tpu_custom_call.1} parent=1 // pred_region
      %s75 = ssub.s32 96, 96
      %76 = vsyncadd [#allocation12], %s75
      %s78 = sshll.u32 [#allocation11], 4
      %s79 = int_to_ptr.vmem [resolvable:$true] %s78
      %81 = dma.hbm_to_vmem [thread:$0]  %s5, 96, %s79, [#allocation12]
    $region25: #{tpu_custom_call.1} parent=1 // pred_fallthru
      _
    // Predicated region
    $region26: #{tpu_custom_call.1} parent=1 // pred_check
      _
    $region27: #{tpu_custom_call.1} parent=1 // pred_check_branch
      %83 = sbr.rel (0) target = $region29
    $region28: #{tpu_custom_call.1} parent=1 // pred_region
      %84 = dma.done [#allocation3], 3072
    $region29: #{tpu_custom_call.1} parent=1 // pred_fallthru
      _
    // Predicated region
    $region30: #{tpu_custom_call.1} parent=1 // pred_check
      _
    $region31: #{tpu_custom_call.1} parent=1 // pred_check_branch
      %86 = sbr.rel (0) target = $region33
    $region32: #{tpu_custom_call.1} parent=1 // pred_region
      %87 = dma.done [#allocation6], 147456
    $region33: #{tpu_custom_call.1} parent=1 // pred_fallthru
      _
    // Predicated region
    $region34: #{tpu_custom_call.1} parent=1 // pred_check
      _
    $region35: #{tpu_custom_call.1} parent=1 // pred_check_branch
      %89 = sbr.rel (0) target = $region37
    $region36: #{tpu_custom_call.1} parent=1 // pred_region
      %90 = dma.done [#allocation6], 96
    $region37: #{tpu_custom_call.1} parent=1 // pred_fallthru
      _
    // Predicated region
    $region38: #{tpu_custom_call.1} parent=1 // pred_check
      _
    $region39: #{tpu_custom_call.1} parent=1 // pred_check_branch
      %92 = sbr.rel (0) target = $region41
    $region40: #{tpu_custom_call.1} parent=1 // pred_region
      %93 = dma.done [#allocation9], 1536
    $region41: #{tpu_custom_call.1} parent=1 // pred_fallthru
      _
    // Predicated region
    $region42: #{tpu_custom_call.1} parent=1 // pred_check
      _
    $region43: #{tpu_custom_call.1} parent=1 // pred_check_branch
      %95 = sbr.rel (0) target = $region45
    $region44: #{tpu_custom_call.1} parent=1 // pred_region
      %96 = dma.done [#allocation9], 96
    $region45: #{tpu_custom_call.1} parent=1 // pred_fallthru
      _
    // Predicated region
    $region46: #{tpu_custom_call.1} parent=1 // pred_check
      _
    $region47: #{tpu_custom_call.1} parent=1 // pred_check_branch
      %98 = sbr.rel (0) target = $region49
    $region48: #{tpu_custom_call.1} parent=1 // pred_region
      %99 = dma.done [#allocation12], 96
    $region49: #{tpu_custom_call.1} parent=1 // pred_fallthru
      _
    %v100 = vld [vmem:[#allocation2] sm:$0xff]
    %v101 = vld [vmem:[#allocation2 + $0x8] sm:$0xff]
    %v102 = vld [vmem:[#allocation2 + $0x10] sm:$0xff]
    %v103 = vld [vmem:[#allocation2 + $0x18] sm:$0xff]
    %v104 = vld [vmem:[#allocation2 + $0x20] sm:$0xff]
    %v105 = vld [vmem:[#allocation2 + $0x28] sm:$0xff]
    %v106 = vld [vmem:[#allocation2 + $0x30] sm:$0xff]
    %v107 = vld [vmem:[#allocation2 + $0x38] sm:$0xff]
    %v108 = vld [vmem:[#allocation2 + $0x40] sm:$0xff]
    %v109 = vld [vmem:[#allocation2 + $0x48] sm:$0xff]
    %v110 = vld [vmem:[#allocation2 + $0x50] sm:$0xff]
    %v111 = vld [vmem:[#allocation2 + $0x58] sm:$0xff]
    %v112 = vld [vmem:[#allocation2 + $0x60] sm:$0xff]
    %v113 = vld [vmem:[#allocation2 + $0x68] sm:$0xff]
    %v114 = vld [vmem:[#allocation2 + $0x70] sm:$0xff]
    %v115 = vld [vmem:[#allocation2 + $0x78] sm:$0xff]
    %v116 = vld [vmem:[#allocation2 + $0x80] sm:$0xff]
    %v117 = vld [vmem:[#allocation2 + $0x88] sm:$0xff]
    %v118 = vld [vmem:[#allocation2 + $0x90] sm:$0xff]
    %v119 = vld [vmem:[#allocation2 + $0x98] sm:$0xff]
    %v120 = vld [vmem:[#allocation2 + $0xa0] sm:$0xff]
    %v121 = vld [vmem:[#allocation2 + $0xa8] sm:$0xff]
    %v122 = vld [vmem:[#allocation2 + $0xb0] sm:$0xff]
    %v123 = vld [vmem:[#allocation2 + $0xb8] sm:$0xff]
    %v124 = vld [vmem:[#allocation5] sm:$0xff]
    %v125 = vld [vmem:[#allocation5 + $0x8] sm:$0xff]
    %v126 = vld [vmem:[#allocation5 + $0x10] sm:$0xff]
    %v127 = vld [vmem:[#allocation5 + $0x18] sm:$0xff]
    %v128 = vld [vmem:[#allocation5 + $0x20] sm:$0xff]
    %v129 = vld [vmem:[#allocation5 + $0x28] sm:$0xff]
    %v130 = vld [vmem:[#allocation5 + $0x30] sm:$0xff]
    %v131 = vld [vmem:[#allocation5 + $0x38] sm:$0xff]
    %v132 = vld [vmem:[#allocation5 + $0x40] sm:$0xff]
    %v133 = vld [vmem:[#allocation5 + $0x48] sm:$0xff]
    %v134 = vld [vmem:[#allocation5 + $0x50] sm:$0xff]
    %v135 = vld [vmem:[#allocation5 + $0x58] sm:$0xff]
    %v136 = vld [vmem:[#allocation5 + $0x60] sm:$0xff]
    %v137 = vld [vmem:[#allocation5 + $0x68] sm:$0xff]
    %v138 = vld [vmem:[#allocation5 + $0x70] sm:$0xff]
    %v139 = vld [vmem:[#allocation5 + $0x78] sm:$0xff]
    %v140 = vld [vmem:[#allocation5 + $0x80] sm:$0xff]
    %v141 = vld [vmem:[#allocation5 + $0x88] sm:$0xff]
    %v142 = vld [vmem:[#allocation5 + $0x90] sm:$0xff]
    %v143 = vld [vmem:[#allocation5 + $0x98] sm:$0xff]
    %v144 = vld [vmem:[#allocation5 + $0xa0] sm:$0xff]
    %v145 = vld [vmem:[#allocation5 + $0xa8] sm:$0xff]
    %v146 = vld [vmem:[#allocation5 + $0xb0] sm:$0xff]
    %v147 = vld [vmem:[#allocation5 + $0xb8] sm:$0xff]
    %v148 = vld [vmem:[#allocation5 + $0xc0] sm:$0xff]
    %v149 = vld [vmem:[#allocation5 + $0xc8] sm:$0xff]
    %v150 = vld [vmem:[#allocation5 + $0xd0] sm:$0xff]
    %v151 = vld [vmem:[#allocation5 + $0xd8] sm:$0xff]
    %v152 = vld [vmem:[#allocation5 + $0xe0] sm:$0xff]
    %v153 = vld [vmem:[#allocation5 + $0xe8] sm:$0xff]
    %v154 = vld [vmem:[#allocation5 + $0xf0] sm:$0xff]
    %v155 = vld [vmem:[#allocation5 + $0xf8] sm:$0xff]
    %v156 = vld [vmem:[#allocation5 + $0x100] sm:$0xff]
    %v157 = vld [vmem:[#allocation5 + $0x108] sm:$0xff]
    %v158 = vld [vmem:[#allocation5 + $0x110] sm:$0xff]
    %v159 = vld [vmem:[#allocation5 + $0x118] sm:$0xff]
    %v160 = vld [vmem:[#allocation5 + $0x120] sm:$0xff]
    %v161 = vld [vmem:[#allocation5 + $0x128] sm:$0xff]
    %v162 = vld [vmem:[#allocation5 + $0x130] sm:$0xff]
    %v163 = vld [vmem:[#allocation5 + $0x138] sm:$0xff]
    %v164 = vld [vmem:[#allocation5 + $0x140] sm:$0xff]
    %v165 = vld [vmem:[#allocation5 + $0x148] sm:$0xff]
    %v166 = vld [vmem:[#allocation5 + $0x150] sm:$0xff]
    %v167 = vld [vmem:[#allocation5 + $0x158] sm:$0xff]
    %v168 = vld [vmem:[#allocation5 + $0x160] sm:$0xff]
    %v169 = vld [vmem:[#allocation5 + $0x168] sm:$0xff]
    %v170 = vld [vmem:[#allocation5 + $0x170] sm:$0xff]
    %v171 = vld [vmem:[#allocation5 + $0x178] sm:$0xff]
    %v172 = vld [vmem:[#allocation5 + $0x180] sm:$0xff]
    %v173 = vld [vmem:[#allocation5 + $0x188] sm:$0xff]
    %v174 = vld [vmem:[#allocation5 + $0x190] sm:$0xff]
    %v175 = vld [vmem:[#allocation5 + $0x198] sm:$0xff]
    %v176 = vld [vmem:[#allocation5 + $0x1a0] sm:$0xff]
    %v177 = vld [vmem:[#allocation5 + $0x1a8] sm:$0xff]
    %v178 = vld [vmem:[#allocation5 + $0x1b0] sm:$0xff]
    %v179 = vld [vmem:[#allocation5 + $0x1b8] sm:$0xff]
    %v180 = vld [vmem:[#allocation5 + $0x1c0] sm:$0xff]
    %v181 = vld [vmem:[#allocation5 + $0x1c8] sm:$0xff]
    %v182 = vld [vmem:[#allocation5 + $0x1d0] sm:$0xff]
    %v183 = vld [vmem:[#allocation5 + $0x1d8] sm:$0xff]
    %v184 = vld [vmem:[#allocation5 + $0x1e0] sm:$0xff]
    %v185 = vld [vmem:[#allocation5 + $0x1e8] sm:$0xff]
    %v186 = vld [vmem:[#allocation5 + $0x1f0] sm:$0xff]
    %v187 = vld [vmem:[#allocation5 + $0x1f8] sm:$0xff]
    %v188 = vld [vmem:[#allocation5 + $0x200] sm:$0xff]
    %v189 = vld [vmem:[#allocation5 + $0x208] sm:$0xff]
    %v190 = vld [vmem:[#allocation5 + $0x210] sm:$0xff]
    %v191 = vld [vmem:[#allocation5 + $0x218] sm:$0xff]
    %v192 = vld [vmem:[#allocation5 + $0x220] sm:$0xff]
    %v193 = vld [vmem:[#allocation5 + $0x228] sm:$0xff]
    %v194 = vld [vmem:[#allocation5 + $0x230] sm:$0xff]
    %v195 = vld [vmem:[#allocation5 + $0x238] sm:$0xff]
    %v196 = vld [vmem:[#allocation5 + $0x240] sm:$0xff]
    %v197 = vld [vmem:[#allocation5 + $0x248] sm:$0xff]
    %v198 = vld [vmem:[#allocation5 + $0x250] sm:$0xff]
    %v199 = vld [vmem:[#allocation5 + $0x258] sm:$0xff]
    %v200 = vld [vmem:[#allocation5 + $0x260] sm:$0xff]
    %v201 = vld [vmem:[#allocation5 + $0x268] sm:$0xff]
    %v202 = vld [vmem:[#allocation5 + $0x270] sm:$0xff]
    %v203 = vld [vmem:[#allocation5 + $0x278] sm:$0xff]
    %v204 = vld [vmem:[#allocation5 + $0x280] sm:$0xff]
    %v205 = vld [vmem:[#allocation5 + $0x288] sm:$0xff]
    %v206 = vld [vmem:[#allocation5 + $0x290] sm:$0xff]
    %v207 = vld [vmem:[#allocation5 + $0x298] sm:$0xff]
    %v208 = vld [vmem:[#allocation5 + $0x2a0] sm:$0xff]
    %v209 = vld [vmem:[#allocation5 + $0x2a8] sm:$0xff]
    %v210 = vld [vmem:[#allocation5 + $0x2b0] sm:$0xff]
    %v211 = vld [vmem:[#allocation5 + $0x2b8] sm:$0xff]
    %v212 = vld [vmem:[#allocation5 + $0x2c0] sm:$0xff]
    %v213 = vld [vmem:[#allocation5 + $0x2c8] sm:$0xff]
    %v214 = vld [vmem:[#allocation5 + $0x2d0] sm:$0xff]
    %v215 = vld [vmem:[#allocation5 + $0x2d8] sm:$0xff]
    %v216 = vld [vmem:[#allocation5 + $0x2e0] sm:$0xff]
    %v217 = vld [vmem:[#allocation5 + $0x2e8] sm:$0xff]
    %v218 = vld [vmem:[#allocation5 + $0x2f0] sm:$0xff]
    %v219 = vld [vmem:[#allocation5 + $0x2f8] sm:$0xff]
    %v220 = vld [vmem:[#allocation5 + $0x300] sm:$0xff]
    %v221 = vld [vmem:[#allocation5 + $0x308] sm:$0xff]
    %v222 = vld [vmem:[#allocation5 + $0x310] sm:$0xff]
    %v223 = vld [vmem:[#allocation5 + $0x318] sm:$0xff]
    %v224 = vld [vmem:[#allocation5 + $0x320] sm:$0xff]
    %v225 = vld [vmem:[#allocation5 + $0x328] sm:$0xff]
    %v226 = vld [vmem:[#allocation5 + $0x330] sm:$0xff]
    %v227 = vld [vmem:[#allocation5 + $0x338] sm:$0xff]
    %v228 = vld [vmem:[#allocation5 + $0x340] sm:$0xff]
    %v229 = vld [vmem:[#allocation5 + $0x348] sm:$0xff]
    %v230 = vld [vmem:[#allocation5 + $0x350] sm:$0xff]
    %v231 = vld [vmem:[#allocation5 + $0x358] sm:$0xff]
    %v232 = vld [vmem:[#allocation5 + $0x360] sm:$0xff]
    %v233 = vld [vmem:[#allocation5 + $0x368] sm:$0xff]
    %v234 = vld [vmem:[#allocation5 + $0x370] sm:$0xff]
    %v235 = vld [vmem:[#allocation5 + $0x378] sm:$0xff]
    %v236 = vld [vmem:[#allocation5 + $0x380] sm:$0xff]
    %v237 = vld [vmem:[#allocation5 + $0x388] sm:$0xff]
    %v238 = vld [vmem:[#allocation5 + $0x390] sm:$0xff]
    %v239 = vld [vmem:[#allocation5 + $0x398] sm:$0xff]
    %v240 = vld [vmem:[#allocation5 + $0x3a0] sm:$0xff]
    %v241 = vld [vmem:[#allocation5 + $0x3a8] sm:$0xff]
    %v242 = vld [vmem:[#allocation5 + $0x3b0] sm:$0xff]
    %v243 = vld [vmem:[#allocation5 + $0x3b8] sm:$0xff]
    %v244 = vld [vmem:[#allocation5 + $0x3c0] sm:$0xff]
    %v245 = vld [vmem:[#allocation5 + $0x3c8] sm:$0xff]
    %v246 = vld [vmem:[#allocation5 + $0x3d0] sm:$0xff]
    %v247 = vld [vmem:[#allocation5 + $0x3d8] sm:$0xff]
    %v248 = vld [vmem:[#allocation5 + $0x3e0] sm:$0xff]
    %v249 = vld [vmem:[#allocation5 + $0x3e8] sm:$0xff]
    %v250 = vld [vmem:[#allocation5 + $0x3f0] sm:$0xff]
    %v251 = vld [vmem:[#allocation5 + $0x3f8] sm:$0xff]
    %v252 = vld [vmem:[#allocation5 + $0x400] sm:$0xff]
    %v253 = vld [vmem:[#allocation5 + $0x408] sm:$0xff]
    %v254 = vld [vmem:[#allocation5 + $0x410] sm:$0xff]
    %v255 = vld [vmem:[#allocation5 + $0x418] sm:$0xff]
    %v256 = vld [vmem:[#allocation5 + $0x420] sm:$0xff]
    %v257 = vld [vmem:[#allocation5 + $0x428] sm:$0xff]
    %v258 = vld [vmem:[#allocation5 + $0x430] sm:$0xff]
    %v259 = vld [vmem:[#allocation5 + $0x438] sm:$0xff]
    %v260 = vld [vmem:[#allocation5 + $0x440] sm:$0xff]
    %v261 = vld [vmem:[#allocation5 + $0x448] sm:$0xff]
    %v262 = vld [vmem:[#allocation5 + $0x450] sm:$0xff]
    %v263 = vld [vmem:[#allocation5 + $0x458] sm:$0xff]
    %v264 = vld [vmem:[#allocation5 + $0x460] sm:$0xff]
    %v265 = vld [vmem:[#allocation5 + $0x468] sm:$0xff]
    %v266 = vld [vmem:[#allocation5 + $0x470] sm:$0xff]
    %v267 = vld [vmem:[#allocation5 + $0x478] sm:$0xff]
    %v268 = vld [vmem:[#allocation5 + $0x480] sm:$0xff]
    %v269 = vld [vmem:[#allocation5 + $0x488] sm:$0xff]
    %v270 = vld [vmem:[#allocation5 + $0x490] sm:$0xff]
    %v271 = vld [vmem:[#allocation5 + $0x498] sm:$0xff]
    %v272 = vld [vmem:[#allocation5 + $0x4a0] sm:$0xff]
    %v273 = vld [vmem:[#allocation5 + $0x4a8] sm:$0xff]
    %v274 = vld [vmem:[#allocation5 + $0x4b0] sm:$0xff]
    %v275 = vld [vmem:[#allocation5 + $0x4b8] sm:$0xff]
    %v276 = vld [vmem:[#allocation5 + $0x4c0] sm:$0xff]
    %v277 = vld [vmem:[#allocation5 + $0x4c8] sm:$0xff]
    %v278 = vld [vmem:[#allocation5 + $0x4d0] sm:$0xff]
    %v279 = vld [vmem:[#allocation5 + $0x4d8] sm:$0xff]
    %v280 = vld [vmem:[#allocation5 + $0x4e0] sm:$0xff]
    %v281 = vld [vmem:[#allocation5 + $0x4e8] sm:$0xff]
    %v282 = vld [vmem:[#allocation5 + $0x4f0] sm:$0xff]
    %v283 = vld [vmem:[#allocation5 + $0x4f8] sm:$0xff]
    %v284 = vld [vmem:[#allocation5 + $0x500] sm:$0xff]
    %v285 = vld [vmem:[#allocation5 + $0x508] sm:$0xff]
    %v286 = vld [vmem:[#allocation5 + $0x510] sm:$0xff]
    %v287 = vld [vmem:[#allocation5 + $0x518] sm:$0xff]
    %v288 = vld [vmem:[#allocation5 + $0x520] sm:$0xff]
    %v289 = vld [vmem:[#allocation5 + $0x528] sm:$0xff]
    %v290 = vld [vmem:[#allocation5 + $0x530] sm:$0xff]
    %v291 = vld [vmem:[#allocation5 + $0x538] sm:$0xff]
    %v292 = vld [vmem:[#allocation5 + $0x540] sm:$0xff]
    %v293 = vld [vmem:[#allocation5 + $0x548] sm:$0xff]
    %v294 = vld [vmem:[#allocation5 + $0x550] sm:$0xff]
    %v295 = vld [vmem:[#allocation5 + $0x558] sm:$0xff]
    %v296 = vld [vmem:[#allocation5 + $0x560] sm:$0xff]
    %v297 = vld [vmem:[#allocation5 + $0x568] sm:$0xff]
    %v298 = vld [vmem:[#allocation5 + $0x570] sm:$0xff]
    %v299 = vld [vmem:[#allocation5 + $0x578] sm:$0xff]
    %v300 = vld [vmem:[#allocation5 + $0x580] sm:$0xff]
    %v301 = vld [vmem:[#allocation5 + $0x588] sm:$0xff]
    %v302 = vld [vmem:[#allocation5 + $0x590] sm:$0xff]
    %v303 = vld [vmem:[#allocation5 + $0x598] sm:$0xff]
    %v304 = vld [vmem:[#allocation5 + $0x5a0] sm:$0xff]
    %v305 = vld [vmem:[#allocation5 + $0x5a8] sm:$0xff]
    %v306 = vld [vmem:[#allocation5 + $0x5b0] sm:$0xff]
    %v307 = vld [vmem:[#allocation5 + $0x5b8] sm:$0xff]
    %v308 = vld [vmem:[#allocation5 + $0x5c0] sm:$0xff]
    %v309 = vld [vmem:[#allocation5 + $0x5c8] sm:$0xff]
    %v310 = vld [vmem:[#allocation5 + $0x5d0] sm:$0xff]
    %v311 = vld [vmem:[#allocation5 + $0x5d8] sm:$0xff]
    %v312 = vld [vmem:[#allocation5 + $0x5e0] sm:$0xff]
    %v313 = vld [vmem:[#allocation5 + $0x5e8] sm:$0xff]
    %v314 = vld [vmem:[#allocation5 + $0x5f0] sm:$0xff]
    %v315 = vld [vmem:[#allocation5 + $0x5f8] sm:$0xff]
    %v316 = vld [vmem:[#allocation5 + $0x600] sm:$0xff]
    %v317 = vld [vmem:[#allocation5 + $0x608] sm:$0xff]
    %v318 = vld [vmem:[#allocation5 + $0x610] sm:$0xff]
    %v319 = vld [vmem:[#allocation5 + $0x618] sm:$0xff]
    %v320 = vld [vmem:[#allocation5 + $0x620] sm:$0xff]
    %v321 = vld [vmem:[#allocation5 + $0x628] sm:$0xff]
    %v322 = vld [vmem:[#allocation5 + $0x630] sm:$0xff]
    %v323 = vld [vmem:[#allocation5 + $0x638] sm:$0xff]
    %v324 = vld [vmem:[#allocation5 + $0x640] sm:$0xff]
    %v325 = vld [vmem:[#allocation5 + $0x648] sm:$0xff]
    %v326 = vld [vmem:[#allocation5 + $0x650] sm:$0xff]
    %v327 = vld [vmem:[#allocation5 + $0x658] sm:$0xff]
    %v328 = vld [vmem:[#allocation5 + $0x660] sm:$0xff]
    %v329 = vld [vmem:[#allocation5 + $0x668] sm:$0xff]
    %v330 = vld [vmem:[#allocation5 + $0x670] sm:$0xff]
    %v331 = vld [vmem:[#allocation5 + $0x678] sm:$0xff]
    %v332 = vld [vmem:[#allocation5 + $0x680] sm:$0xff]
    %v333 = vld [vmem:[#allocation5 + $0x688] sm:$0xff]
    %v334 = vld [vmem:[#allocation5 + $0x690] sm:$0xff]
    %v335 = vld [vmem:[#allocation5 + $0x698] sm:$0xff]
    %v336 = vld [vmem:[#allocation5 + $0x6a0] sm:$0xff]
    %v337 = vld [vmem:[#allocation5 + $0x6a8] sm:$0xff]
    %v338 = vld [vmem:[#allocation5 + $0x6b0] sm:$0xff]
    %v339 = vld [vmem:[#allocation5 + $0x6b8] sm:$0xff]
    %v340 = vld [vmem:[#allocation5 + $0x6c0] sm:$0xff]
    %v341 = vld [vmem:[#allocation5 + $0x6c8] sm:$0xff]
    %v342 = vld [vmem:[#allocation5 + $0x6d0] sm:$0xff]
    %v343 = vld [vmem:[#allocation5 + $0x6d8] sm:$0xff]
    %v344 = vld [vmem:[#allocation5 + $0x6e0] sm:$0xff]
    %v345 = vld [vmem:[#allocation5 + $0x6e8] sm:$0xff]
    %v346 = vld [vmem:[#allocation5 + $0x6f0] sm:$0xff]
    %v347 = vld [vmem:[#allocation5 + $0x6f8] sm:$0xff]
    %v348 = vld [vmem:[#allocation5 + $0x700] sm:$0xff]
    %v349 = vld [vmem:[#allocation5 + $0x708] sm:$0xff]
    %v350 = vld [vmem:[#allocation5 + $0x710] sm:$0xff]
    %v351 = vld [vmem:[#allocation5 + $0x718] sm:$0xff]
    %v352 = vld [vmem:[#allocation5 + $0x720] sm:$0xff]
    %v353 = vld [vmem:[#allocation5 + $0x728] sm:$0xff]
    %v354 = vld [vmem:[#allocation5 + $0x730] sm:$0xff]
    %v355 = vld [vmem:[#allocation5 + $0x738] sm:$0xff]
    %v356 = vld [vmem:[#allocation5 + $0x740] sm:$0xff]
    %v357 = vld [vmem:[#allocation5 + $0x748] sm:$0xff]
    %v358 = vld [vmem:[#allocation5 + $0x750] sm:$0xff]
    %v359 = vld [vmem:[#allocation5 + $0x758] sm:$0xff]
    %v360 = vld [vmem:[#allocation5 + $0x760] sm:$0xff]
    %v361 = vld [vmem:[#allocation5 + $0x768] sm:$0xff]
    %v362 = vld [vmem:[#allocation5 + $0x770] sm:$0xff]
    %v363 = vld [vmem:[#allocation5 + $0x778] sm:$0xff]
    %v364 = vld [vmem:[#allocation5 + $0x780] sm:$0xff]
    %v365 = vld [vmem:[#allocation5 + $0x788] sm:$0xff]
    %v366 = vld [vmem:[#allocation5 + $0x790] sm:$0xff]
    %v367 = vld [vmem:[#allocation5 + $0x798] sm:$0xff]
    %v368 = vld [vmem:[#allocation5 + $0x7a0] sm:$0xff]
    %v369 = vld [vmem:[#allocation5 + $0x7a8] sm:$0xff]
    %v370 = vld [vmem:[#allocation5 + $0x7b0] sm:$0xff]
    %v371 = vld [vmem:[#allocation5 + $0x7b8] sm:$0xff]
    %v372 = vld [vmem:[#allocation5 + $0x7c0] sm:$0xff]
    %v373 = vld [vmem:[#allocation5 + $0x7c8] sm:$0xff]
    %v374 = vld [vmem:[#allocation5 + $0x7d0] sm:$0xff]
    %v375 = vld [vmem:[#allocation5 + $0x7d8] sm:$0xff]
    %v376 = vld [vmem:[#allocation5 + $0x7e0] sm:$0xff]
    %v377 = vld [vmem:[#allocation5 + $0x7e8] sm:$0xff]
    %v378 = vld [vmem:[#allocation5 + $0x7f0] sm:$0xff]
    %v379 = vld [vmem:[#allocation5 + $0x7f8] sm:$0xff]
    %v380 = vld [vmem:[#allocation5 + $0x800] sm:$0xff]
    %v381 = vld [vmem:[#allocation5 + $0x808] sm:$0xff]
    %v382 = vld [vmem:[#allocation5 + $0x810] sm:$0xff]
    %v383 = vld [vmem:[#allocation5 + $0x818] sm:$0xff]
    %v384 = vld [vmem:[#allocation5 + $0x820] sm:$0xff]
    %v385 = vld [vmem:[#allocation5 + $0x828] sm:$0xff]
    %v386 = vld [vmem:[#allocation5 + $0x830] sm:$0xff]
    %v387 = vld [vmem:[#allocation5 + $0x838] sm:$0xff]
    %v388 = vld [vmem:[#allocation5 + $0x840] sm:$0xff]
    %v389 = vld [vmem:[#allocation5 + $0x848] sm:$0xff]
    %v390 = vld [vmem:[#allocation5 + $0x850] sm:$0xff]
    %v391 = vld [vmem:[#allocation5 + $0x858] sm:$0xff]
    %v392 = vld [vmem:[#allocation5 + $0x860] sm:$0xff]
    %v393 = vld [vmem:[#allocation5 + $0x868] sm:$0xff]
    %v394 = vld [vmem:[#allocation5 + $0x870] sm:$0xff]
    %v395 = vld [vmem:[#allocation5 + $0x878] sm:$0xff]
    %v396 = vld [vmem:[#allocation5 + $0x880] sm:$0xff]
    %v397 = vld [vmem:[#allocation5 + $0x888] sm:$0xff]
    %v398 = vld [vmem:[#allocation5 + $0x890] sm:$0xff]
    %v399 = vld [vmem:[#allocation5 + $0x898] sm:$0xff]
    %v400 = vld [vmem:[#allocation5 + $0x8a0] sm:$0xff]
    %v401 = vld [vmem:[#allocation5 + $0x8a8] sm:$0xff]
    %v402 = vld [vmem:[#allocation5 + $0x8b0] sm:$0xff]
    %v403 = vld [vmem:[#allocation5 + $0x8b8] sm:$0xff]
    %v404 = vld [vmem:[#allocation5 + $0x8c0] sm:$0xff]
    %v405 = vld [vmem:[#allocation5 + $0x8c8] sm:$0xff]
    %v406 = vld [vmem:[#allocation5 + $0x8d0] sm:$0xff]
    %v407 = vld [vmem:[#allocation5 + $0x8d8] sm:$0xff]
    %v408 = vld [vmem:[#allocation5 + $0x8e0] sm:$0xff]
    %v409 = vld [vmem:[#allocation5 + $0x8e8] sm:$0xff]
    %v410 = vld [vmem:[#allocation5 + $0x8f0] sm:$0xff]
    %v411 = vld [vmem:[#allocation5 + $0x8f8] sm:$0xff]
    %v412 = vld [vmem:[#allocation5 + $0x900] sm:$0xff]
    %v413 = vld [vmem:[#allocation5 + $0x908] sm:$0xff]
    %v414 = vld [vmem:[#allocation5 + $0x910] sm:$0xff]
    %v415 = vld [vmem:[#allocation5 + $0x918] sm:$0xff]
    %v416 = vld [vmem:[#allocation5 + $0x920] sm:$0xff]
    %v417 = vld [vmem:[#allocation5 + $0x928] sm:$0xff]
    %v418 = vld [vmem:[#allocation5 + $0x930] sm:$0xff]
    %v419 = vld [vmem:[#allocation5 + $0x938] sm:$0xff]
    %v420 = vld [vmem:[#allocation5 + $0x940] sm:$0xff]
    %v421 = vld [vmem:[#allocation5 + $0x948] sm:$0xff]
    %v422 = vld [vmem:[#allocation5 + $0x950] sm:$0xff]
    %v423 = vld [vmem:[#allocation5 + $0x958] sm:$0xff]
    %v424 = vld [vmem:[#allocation5 + $0x960] sm:$0xff]
    %v425 = vld [vmem:[#allocation5 + $0x968] sm:$0xff]
    %v426 = vld [vmem:[#allocation5 + $0x970] sm:$0xff]
    %v427 = vld [vmem:[#allocation5 + $0x978] sm:$0xff]
    %v428 = vld [vmem:[#allocation5 + $0x980] sm:$0xff]
    %v429 = vld [vmem:[#allocation5 + $0x988] sm:$0xff]
    %v430 = vld [vmem:[#allocation5 + $0x990] sm:$0xff]
    %v431 = vld [vmem:[#allocation5 + $0x998] sm:$0xff]
    %v432 = vld [vmem:[#allocation5 + $0x9a0] sm:$0xff]
    %v433 = vld [vmem:[#allocation5 + $0x9a8] sm:$0xff]
    %v434 = vld [vmem:[#allocation5 + $0x9b0] sm:$0xff]
    %v435 = vld [vmem:[#allocation5 + $0x9b8] sm:$0xff]
    %v436 = vld [vmem:[#allocation5 + $0x9c0] sm:$0xff]
    %v437 = vld [vmem:[#allocation5 + $0x9c8] sm:$0xff]
    %v438 = vld [vmem:[#allocation5 + $0x9d0] sm:$0xff]
    %v439 = vld [vmem:[#allocation5 + $0x9d8] sm:$0xff]
    %v440 = vld [vmem:[#allocation5 + $0x9e0] sm:$0xff]
    %v441 = vld [vmem:[#allocation5 + $0x9e8] sm:$0xff]
    %v442 = vld [vmem:[#allocation5 + $0x9f0] sm:$0xff]
    %v443 = vld [vmem:[#allocation5 + $0x9f8] sm:$0xff]
    %v444 = vld [vmem:[#allocation5 + $0xa00] sm:$0xff]
    %v445 = vld [vmem:[#allocation5 + $0xa08] sm:$0xff]
    %v446 = vld [vmem:[#allocation5 + $0xa10] sm:$0xff]
    %v447 = vld [vmem:[#allocation5 + $0xa18] sm:$0xff]
    %v448 = vld [vmem:[#allocation5 + $0xa20] sm:$0xff]
    %v449 = vld [vmem:[#allocation5 + $0xa28] sm:$0xff]
    %v450 = vld [vmem:[#allocation5 + $0xa30] sm:$0xff]
    %v451 = vld [vmem:[#allocation5 + $0xa38] sm:$0xff]
    %v452 = vld [vmem:[#allocation5 + $0xa40] sm:$0xff]
    %v453 = vld [vmem:[#allocation5 + $0xa48] sm:$0xff]
    %v454 = vld [vmem:[#allocation5 + $0xa50] sm:$0xff]
    %v455 = vld [vmem:[#allocation5 + $0xa58] sm:$0xff]
    %v456 = vld [vmem:[#allocation5 + $0xa60] sm:$0xff]
    %v457 = vld [vmem:[#allocation5 + $0xa68] sm:$0xff]
    %v458 = vld [vmem:[#allocation5 + $0xa70] sm:$0xff]
    %v459 = vld [vmem:[#allocation5 + $0xa78] sm:$0xff]
    %v460 = vld [vmem:[#allocation5 + $0xa80] sm:$0xff]
    %v461 = vld [vmem:[#allocation5 + $0xa88] sm:$0xff]
    %v462 = vld [vmem:[#allocation5 + $0xa90] sm:$0xff]
    %v463 = vld [vmem:[#allocation5 + $0xa98] sm:$0xff]
    %v464 = vld [vmem:[#allocation5 + $0xaa0] sm:$0xff]
    %v465 = vld [vmem:[#allocation5 + $0xaa8] sm:$0xff]
    %v466 = vld [vmem:[#allocation5 + $0xab0] sm:$0xff]
    %v467 = vld [vmem:[#allocation5 + $0xab8] sm:$0xff]
    %v468 = vld [vmem:[#allocation5 + $0xac0] sm:$0xff]
    %v469 = vld [vmem:[#allocation5 + $0xac8] sm:$0xff]
    %v470 = vld [vmem:[#allocation5 + $0xad0] sm:$0xff]
    %v471 = vld [vmem:[#allocation5 + $0xad8] sm:$0xff]
    %v472 = vld [vmem:[#allocation5 + $0xae0] sm:$0xff]
    %v473 = vld [vmem:[#allocation5 + $0xae8] sm:$0xff]
    %v474 = vld [vmem:[#allocation5 + $0xaf0] sm:$0xff]
    %v475 = vld [vmem:[#allocation5 + $0xaf8] sm:$0xff]
    %v476 = vld [vmem:[#allocation5 + $0xb00] sm:$0xff]
    %v477 = vld [vmem:[#allocation5 + $0xb08] sm:$0xff]
    %v478 = vld [vmem:[#allocation5 + $0xb10] sm:$0xff]
    %v479 = vld [vmem:[#allocation5 + $0xb18] sm:$0xff]
    %v480 = vld [vmem:[#allocation5 + $0xb20] sm:$0xff]
    %v481 = vld [vmem:[#allocation5 + $0xb28] sm:$0xff]
    %v482 = vld [vmem:[#allocation5 + $0xb30] sm:$0xff]
    %v483 = vld [vmem:[#allocation5 + $0xb38] sm:$0xff]
    %v484 = vld [vmem:[#allocation5 + $0xb40] sm:$0xff]
    %v485 = vld [vmem:[#allocation5 + $0xb48] sm:$0xff]
    %v486 = vld [vmem:[#allocation5 + $0xb50] sm:$0xff]
    %v487 = vld [vmem:[#allocation5 + $0xb58] sm:$0xff]
    %v488 = vld [vmem:[#allocation5 + $0xb60] sm:$0xff]
    %v489 = vld [vmem:[#allocation5 + $0xb68] sm:$0xff]
    %v490 = vld [vmem:[#allocation5 + $0xb70] sm:$0xff]
    %v491 = vld [vmem:[#allocation5 + $0xb78] sm:$0xff]
    %v492 = vld [vmem:[#allocation5 + $0xb80] sm:$0xff]
    %v493 = vld [vmem:[#allocation5 + $0xb88] sm:$0xff]
    %v494 = vld [vmem:[#allocation5 + $0xb90] sm:$0xff]
    %v495 = vld [vmem:[#allocation5 + $0xb98] sm:$0xff]
    %v496 = vld [vmem:[#allocation5 + $0xba0] sm:$0xff]
    %v497 = vld [vmem:[#allocation5 + $0xba8] sm:$0xff]
    %v498 = vld [vmem:[#allocation5 + $0xbb0] sm:$0xff]
    %v499 = vld [vmem:[#allocation5 + $0xbb8] sm:$0xff]
    %v500 = vld [vmem:[#allocation5 + $0xbc0] sm:$0xff]
    %v501 = vld [vmem:[#allocation5 + $0xbc8] sm:$0xff]
    %v502 = vld [vmem:[#allocation5 + $0xbd0] sm:$0xff]
    %v503 = vld [vmem:[#allocation5 + $0xbd8] sm:$0xff]
    %v504 = vld [vmem:[#allocation5 + $0xbe0] sm:$0xff]
    %v505 = vld [vmem:[#allocation5 + $0xbe8] sm:$0xff]
    %v506 = vld [vmem:[#allocation5 + $0xbf0] sm:$0xff]
    %v507 = vld [vmem:[#allocation5 + $0xbf8] sm:$0xff]
    %v508 = vld [vmem:[#allocation5 + $0xc00] sm:$0xff]
    %v509 = vld [vmem:[#allocation5 + $0xc08] sm:$0xff]
    %v510 = vld [vmem:[#allocation5 + $0xc10] sm:$0xff]
    %v511 = vld [vmem:[#allocation5 + $0xc18] sm:$0xff]
    %v512 = vld [vmem:[#allocation5 + $0xc20] sm:$0xff]
    %v513 = vld [vmem:[#allocation5 + $0xc28] sm:$0xff]
    %v514 = vld [vmem:[#allocation5 + $0xc30] sm:$0xff]
    %v515 = vld [vmem:[#allocation5 + $0xc38] sm:$0xff]
    %v516 = vld [vmem:[#allocation5 + $0xc40] sm:$0xff]
    %v517 = vld [vmem:[#allocation5 + $0xc48] sm:$0xff]
    %v518 = vld [vmem:[#allocation5 + $0xc50] sm:$0xff]
    %v519 = vld [vmem:[#allocation5 + $0xc58] sm:$0xff]
    %v520 = vld [vmem:[#allocation5 + $0xc60] sm:$0xff]
    %v521 = vld [vmem:[#allocation5 + $0xc68] sm:$0xff]
    %v522 = vld [vmem:[#allocation5 + $0xc70] sm:$0xff]
    %v523 = vld [vmem:[#allocation5 + $0xc78] sm:$0xff]
    %v524 = vld [vmem:[#allocation5 + $0xc80] sm:$0xff]
    %v525 = vld [vmem:[#allocation5 + $0xc88] sm:$0xff]
    %v526 = vld [vmem:[#allocation5 + $0xc90] sm:$0xff]
    %v527 = vld [vmem:[#allocation5 + $0xc98] sm:$0xff]
    %v528 = vld [vmem:[#allocation5 + $0xca0] sm:$0xff]
    %v529 = vld [vmem:[#allocation5 + $0xca8] sm:$0xff]
    %v530 = vld [vmem:[#allocation5 + $0xcb0] sm:$0xff]
    %v531 = vld [vmem:[#allocation5 + $0xcb8] sm:$0xff]
    %v532 = vld [vmem:[#allocation5 + $0xcc0] sm:$0xff]
    %v533 = vld [vmem:[#allocation5 + $0xcc8] sm:$0xff]
    %v534 = vld [vmem:[#allocation5 + $0xcd0] sm:$0xff]
    %v535 = vld [vmem:[#allocation5 + $0xcd8] sm:$0xff]
    %v536 = vld [vmem:[#allocation5 + $0xce0] sm:$0xff]
    %v537 = vld [vmem:[#allocation5 + $0xce8] sm:$0xff]
    %v538 = vld [vmem:[#allocation5 + $0xcf0] sm:$0xff]
    %v539 = vld [vmem:[#allocation5 + $0xcf8] sm:$0xff]
    %v540 = vld [vmem:[#allocation5 + $0xd00] sm:$0xff]
    %v541 = vld [vmem:[#allocation5 + $0xd08] sm:$0xff]
    %v542 = vld [vmem:[#allocation5 + $0xd10] sm:$0xff]
    %v543 = vld [vmem:[#allocation5 + $0xd18] sm:$0xff]
    %v544 = vld [vmem:[#allocation5 + $0xd20] sm:$0xff]
    %v545 = vld [vmem:[#allocation5 + $0xd28] sm:$0xff]
    %v546 = vld [vmem:[#allocation5 + $0xd30] sm:$0xff]
    %v547 = vld [vmem:[#allocation5 + $0xd38] sm:$0xff]
    %v548 = vld [vmem:[#allocation5 + $0xd40] sm:$0xff]
    %v549 = vld [vmem:[#allocation5 + $0xd48] sm:$0xff]
    %v550 = vld [vmem:[#allocation5 + $0xd50] sm:$0xff]
    %v551 = vld [vmem:[#allocation5 + $0xd58] sm:$0xff]
    %v552 = vld [vmem:[#allocation5 + $0xd60] sm:$0xff]
    %v553 = vld [vmem:[#allocation5 + $0xd68] sm:$0xff]
    %v554 = vld [vmem:[#allocation5 + $0xd70] sm:$0xff]
    %v555 = vld [vmem:[#allocation5 + $0xd78] sm:$0xff]
    %v556 = vld [vmem:[#allocation5 + $0xd80] sm:$0xff]
    %v557 = vld [vmem:[#allocation5 + $0xd88] sm:$0xff]
    %v558 = vld [vmem:[#allocation5 + $0xd90] sm:$0xff]
    %v559 = vld [vmem:[#allocation5 + $0xd98] sm:$0xff]
    %v560 = vld [vmem:[#allocation5 + $0xda0] sm:$0xff]
    %v561 = vld [vmem:[#allocation5 + $0xda8] sm:$0xff]
    %v562 = vld [vmem:[#allocation5 + $0xdb0] sm:$0xff]
    %v563 = vld [vmem:[#allocation5 + $0xdb8] sm:$0xff]
    %v564 = vld [vmem:[#allocation5 + $0xdc0] sm:$0xff]
    %v565 = vld [vmem:[#allocation5 + $0xdc8] sm:$0xff]
    %v566 = vld [vmem:[#allocation5 + $0xdd0] sm:$0xff]
    %v567 = vld [vmem:[#allocation5 + $0xdd8] sm:$0xff]
    %v568 = vld [vmem:[#allocation5 + $0xde0] sm:$0xff]
    %v569 = vld [vmem:[#allocation5 + $0xde8] sm:$0xff]
    %v570 = vld [vmem:[#allocation5 + $0xdf0] sm:$0xff]
    %v571 = vld [vmem:[#allocation5 + $0xdf8] sm:$0xff]
    %v572 = vld [vmem:[#allocation5 + $0xe00] sm:$0xff]
    %v573 = vld [vmem:[#allocation5 + $0xe08] sm:$0xff]
    %v574 = vld [vmem:[#allocation5 + $0xe10] sm:$0xff]
    %v575 = vld [vmem:[#allocation5 + $0xe18] sm:$0xff]
    %v576 = vld [vmem:[#allocation5 + $0xe20] sm:$0xff]
    %v577 = vld [vmem:[#allocation5 + $0xe28] sm:$0xff]
    %v578 = vld [vmem:[#allocation5 + $0xe30] sm:$0xff]
    %v579 = vld [vmem:[#allocation5 + $0xe38] sm:$0xff]
    %v580 = vld [vmem:[#allocation5 + $0xe40] sm:$0xff]
    %v581 = vld [vmem:[#allocation5 + $0xe48] sm:$0xff]
    %v582 = vld [vmem:[#allocation5 + $0xe50] sm:$0xff]
    %v583 = vld [vmem:[#allocation5 + $0xe58] sm:$0xff]
    %v584 = vld [vmem:[#allocation5 + $0xe60] sm:$0xff]
    %v585 = vld [vmem:[#allocation5 + $0xe68] sm:$0xff]
    %v586 = vld [vmem:[#allocation5 + $0xe70] sm:$0xff]
    %v587 = vld [vmem:[#allocation5 + $0xe78] sm:$0xff]
    %v588 = vld [vmem:[#allocation5 + $0xe80] sm:$0xff]
    %v589 = vld [vmem:[#allocation5 + $0xe88] sm:$0xff]
    %v590 = vld [vmem:[#allocation5 + $0xe90] sm:$0xff]
    %v591 = vld [vmem:[#allocation5 + $0xe98] sm:$0xff]
    %v592 = vld [vmem:[#allocation5 + $0xea0] sm:$0xff]
    %v593 = vld [vmem:[#allocation5 + $0xea8] sm:$0xff]
    %v594 = vld [vmem:[#allocation5 + $0xeb0] sm:$0xff]
    %v595 = vld [vmem:[#allocation5 + $0xeb8] sm:$0xff]
    %v596 = vld [vmem:[#allocation5 + $0xec0] sm:$0xff]
    %v597 = vld [vmem:[#allocation5 + $0xec8] sm:$0xff]
    %v598 = vld [vmem:[#allocation5 + $0xed0] sm:$0xff]
    %v599 = vld [vmem:[#allocation5 + $0xed8] sm:$0xff]
    %v600 = vld [vmem:[#allocation5 + $0xee0] sm:$0xff]
    %v601 = vld [vmem:[#allocation5 + $0xee8] sm:$0xff]
    %v602 = vld [vmem:[#allocation5 + $0xef0] sm:$0xff]
    %v603 = vld [vmem:[#allocation5 + $0xef8] sm:$0xff]
    %v604 = vld [vmem:[#allocation5 + $0xf00] sm:$0xff]
    %v605 = vld [vmem:[#allocation5 + $0xf08] sm:$0xff]
    %v606 = vld [vmem:[#allocation5 + $0xf10] sm:$0xff]
    %v607 = vld [vmem:[#allocation5 + $0xf18] sm:$0xff]
    %v608 = vld [vmem:[#allocation5 + $0xf20] sm:$0xff]
    %v609 = vld [vmem:[#allocation5 + $0xf28] sm:$0xff]
    %v610 = vld [vmem:[#allocation5 + $0xf30] sm:$0xff]
    %v611 = vld [vmem:[#allocation5 + $0xf38] sm:$0xff]
    %v612 = vld [vmem:[#allocation5 + $0xf40] sm:$0xff]
    %v613 = vld [vmem:[#allocation5 + $0xf48] sm:$0xff]
    %v614 = vld [vmem:[#allocation5 + $0xf50] sm:$0xff]
    %v615 = vld [vmem:[#allocation5 + $0xf58] sm:$0xff]
    %v616 = vld [vmem:[#allocation5 + $0xf60] sm:$0xff]
    %v617 = vld [vmem:[#allocation5 + $0xf68] sm:$0xff]
    %v618 = vld [vmem:[#allocation5 + $0xf70] sm:$0xff]
    %v619 = vld [vmem:[#allocation5 + $0xf78] sm:$0xff]
    %v620 = vld [vmem:[#allocation5 + $0xf80] sm:$0xff]
    %v621 = vld [vmem:[#allocation5 + $0xf88] sm:$0xff]
    %v622 = vld [vmem:[#allocation5 + $0xf90] sm:$0xff]
    %v623 = vld [vmem:[#allocation5 + $0xf98] sm:$0xff]
    %v624 = vld [vmem:[#allocation5 + $0xfa0] sm:$0xff]
    %v625 = vld [vmem:[#allocation5 + $0xfa8] sm:$0xff]
    %v626 = vld [vmem:[#allocation5 + $0xfb0] sm:$0xff]
    %v627 = vld [vmem:[#allocation5 + $0xfb8] sm:$0xff]
    %v628 = vld [vmem:[#allocation5 + $0xfc0] sm:$0xff]
    %v629 = vld [vmem:[#allocation5 + $0xfc8] sm:$0xff]
    %v630 = vld [vmem:[#allocation5 + $0xfd0] sm:$0xff]
    %v631 = vld [vmem:[#allocation5 + $0xfd8] sm:$0xff]
    %v632 = vld [vmem:[#allocation5 + $0xfe0] sm:$0xff]
    %v633 = vld [vmem:[#allocation5 + $0xfe8] sm:$0xff]
    %v634 = vld [vmem:[#allocation5 + $0xff0] sm:$0xff]
    %v635 = vld [vmem:[#allocation5 + $0xff8] sm:$0xff]
    %v636 = vld [vmem:[#allocation5 + $0x1000] sm:$0xff]
    %v637 = vld [vmem:[#allocation5 + $0x1008] sm:$0xff]
    %v638 = vld [vmem:[#allocation5 + $0x1010] sm:$0xff]
    %v639 = vld [vmem:[#allocation5 + $0x1018] sm:$0xff]
    %v640 = vld [vmem:[#allocation5 + $0x1020] sm:$0xff]
    %v641 = vld [vmem:[#allocation5 + $0x1028] sm:$0xff]
    %v642 = vld [vmem:[#allocation5 + $0x1030] sm:$0xff]
    %v643 = vld [vmem:[#allocation5 + $0x1038] sm:$0xff]
    %v644 = vld [vmem:[#allocation5 + $0x1040] sm:$0xff]
    %v645 = vld [vmem:[#allocation5 + $0x1048] sm:$0xff]
    %v646 = vld [vmem:[#allocation5 + $0x1050] sm:$0xff]
    %v647 = vld [vmem:[#allocation5 + $0x1058] sm:$0xff]
    %v648 = vld [vmem:[#allocation5 + $0x1060] sm:$0xff]
    %v649 = vld [vmem:[#allocation5 + $0x1068] sm:$0xff]
    %v650 = vld [vmem:[#allocation5 + $0x1070] sm:$0xff]
    %v651 = vld [vmem:[#allocation5 + $0x1078] sm:$0xff]
    %v652 = vld [vmem:[#allocation5 + $0x1080] sm:$0xff]
    %v653 = vld [vmem:[#allocation5 + $0x1088] sm:$0xff]
    %v654 = vld [vmem:[#allocation5 + $0x1090] sm:$0xff]
    %v655 = vld [vmem:[#allocation5 + $0x1098] sm:$0xff]
    %v656 = vld [vmem:[#allocation5 + $0x10a0] sm:$0xff]
    %v657 = vld [vmem:[#allocation5 + $0x10a8] sm:$0xff]
    %v658 = vld [vmem:[#allocation5 + $0x10b0] sm:$0xff]
    %v659 = vld [vmem:[#allocation5 + $0x10b8] sm:$0xff]
    %v660 = vld [vmem:[#allocation5 + $0x10c0] sm:$0xff]
    %v661 = vld [vmem:[#allocation5 + $0x10c8] sm:$0xff]
    %v662 = vld [vmem:[#allocation5 + $0x10d0] sm:$0xff]
    %v663 = vld [vmem:[#allocation5 + $0x10d8] sm:$0xff]
    %v664 = vld [vmem:[#allocation5 + $0x10e0] sm:$0xff]
    %v665 = vld [vmem:[#allocation5 + $0x10e8] sm:$0xff]
    %v666 = vld [vmem:[#allocation5 + $0x10f0] sm:$0xff]
    %v667 = vld [vmem:[#allocation5 + $0x10f8] sm:$0xff]
    %v668 = vld [vmem:[#allocation5 + $0x1100] sm:$0xff]
    %v669 = vld [vmem:[#allocation5 + $0x1108] sm:$0xff]
    %v670 = vld [vmem:[#allocation5 + $0x1110] sm:$0xff]
    %v671 = vld [vmem:[#allocation5 + $0x1118] sm:$0xff]
    %v672 = vld [vmem:[#allocation5 + $0x1120] sm:$0xff]
    %v673 = vld [vmem:[#allocation5 + $0x1128] sm:$0xff]
    %v674 = vld [vmem:[#allocation5 + $0x1130] sm:$0xff]
    %v675 = vld [vmem:[#allocation5 + $0x1138] sm:$0xff]
    %v676 = vld [vmem:[#allocation5 + $0x1140] sm:$0xff]
    %v677 = vld [vmem:[#allocation5 + $0x1148] sm:$0xff]
    %v678 = vld [vmem:[#allocation5 + $0x1150] sm:$0xff]
    %v679 = vld [vmem:[#allocation5 + $0x1158] sm:$0xff]
    %v680 = vld [vmem:[#allocation5 + $0x1160] sm:$0xff]
    %v681 = vld [vmem:[#allocation5 + $0x1168] sm:$0xff]
    %v682 = vld [vmem:[#allocation5 + $0x1170] sm:$0xff]
    %v683 = vld [vmem:[#allocation5 + $0x1178] sm:$0xff]
    %v684 = vld [vmem:[#allocation5 + $0x1180] sm:$0xff]
    %v685 = vld [vmem:[#allocation5 + $0x1188] sm:$0xff]
    %v686 = vld [vmem:[#allocation5 + $0x1190] sm:$0xff]
    %v687 = vld [vmem:[#allocation5 + $0x1198] sm:$0xff]
    %v688 = vld [vmem:[#allocation5 + $0x11a0] sm:$0xff]
    %v689 = vld [vmem:[#allocation5 + $0x11a8] sm:$0xff]
    %v690 = vld [vmem:[#allocation5 + $0x11b0] sm:$0xff]
    %v691 = vld [vmem:[#allocation5 + $0x11b8] sm:$0xff]
    %v692 = vld [vmem:[#allocation5 + $0x11c0] sm:$0xff]
    %v693 = vld [vmem:[#allocation5 + $0x11c8] sm:$0xff]
    %v694 = vld [vmem:[#allocation5 + $0x11d0] sm:$0xff]
    %v695 = vld [vmem:[#allocation5 + $0x11d8] sm:$0xff]
    %v696 = vld [vmem:[#allocation5 + $0x11e0] sm:$0xff]
    %v697 = vld [vmem:[#allocation5 + $0x11e8] sm:$0xff]
    %v698 = vld [vmem:[#allocation5 + $0x11f0] sm:$0xff]
    %v699 = vld [vmem:[#allocation5 + $0x11f8] sm:$0xff]
    %v700 = vld [vmem:[#allocation5 + $0x1200] sm:$0xff]
    %v701 = vld [vmem:[#allocation5 + $0x1208] sm:$0xff]
    %v702 = vld [vmem:[#allocation5 + $0x1210] sm:$0xff]
    %v703 = vld [vmem:[#allocation5 + $0x1218] sm:$0xff]
    %v704 = vld [vmem:[#allocation5 + $0x1220] sm:$0xff]
    %v705 = vld [vmem:[#allocation5 + $0x1228] sm:$0xff]
    %v706 = vld [vmem:[#allocation5 + $0x1230] sm:$0xff]
    %v707 = vld [vmem:[#allocation5 + $0x1238] sm:$0xff]
    %v708 = vld [vmem:[#allocation5 + $0x1240] sm:$0xff]
    %v709 = vld [vmem:[#allocation5 + $0x1248] sm:$0xff]
    %v710 = vld [vmem:[#allocation5 + $0x1250] sm:$0xff]
    %v711 = vld [vmem:[#allocation5 + $0x1258] sm:$0xff]
    %v712 = vld [vmem:[#allocation5 + $0x1260] sm:$0xff]
    %v713 = vld [vmem:[#allocation5 + $0x1268] sm:$0xff]
    %v714 = vld [vmem:[#allocation5 + $0x1270] sm:$0xff]
    %v715 = vld [vmem:[#allocation5 + $0x1278] sm:$0xff]
    %v716 = vld [vmem:[#allocation5 + $0x1280] sm:$0xff]
    %v717 = vld [vmem:[#allocation5 + $0x1288] sm:$0xff]
    %v718 = vld [vmem:[#allocation5 + $0x1290] sm:$0xff]
    %v719 = vld [vmem:[#allocation5 + $0x1298] sm:$0xff]
    %v720 = vld [vmem:[#allocation5 + $0x12a0] sm:$0xff]
    %v721 = vld [vmem:[#allocation5 + $0x12a8] sm:$0xff]
    %v722 = vld [vmem:[#allocation5 + $0x12b0] sm:$0xff]
    %v723 = vld [vmem:[#allocation5 + $0x12b8] sm:$0xff]
    %v724 = vld [vmem:[#allocation5 + $0x12c0] sm:$0xff]
    %v725 = vld [vmem:[#allocation5 + $0x12c8] sm:$0xff]
    %v726 = vld [vmem:[#allocation5 + $0x12d0] sm:$0xff]
    %v727 = vld [vmem:[#allocation5 + $0x12d8] sm:$0xff]
    %v728 = vld [vmem:[#allocation5 + $0x12e0] sm:$0xff]
    %v729 = vld [vmem:[#allocation5 + $0x12e8] sm:$0xff]
    %v730 = vld [vmem:[#allocation5 + $0x12f0] sm:$0xff]
    %v731 = vld [vmem:[#allocation5 + $0x12f8] sm:$0xff]
    %v732 = vld [vmem:[#allocation5 + $0x1300] sm:$0xff]
    %v733 = vld [vmem:[#allocation5 + $0x1308] sm:$0xff]
    %v734 = vld [vmem:[#allocation5 + $0x1310] sm:$0xff]
    %v735 = vld [vmem:[#allocation5 + $0x1318] sm:$0xff]
    %v736 = vld [vmem:[#allocation5 + $0x1320] sm:$0xff]
    %v737 = vld [vmem:[#allocation5 + $0x1328] sm:$0xff]
    %v738 = vld [vmem:[#allocation5 + $0x1330] sm:$0xff]
    %v739 = vld [vmem:[#allocation5 + $0x1338] sm:$0xff]
    %v740 = vld [vmem:[#allocation5 + $0x1340] sm:$0xff]
    %v741 = vld [vmem:[#allocation5 + $0x1348] sm:$0xff]
    %v742 = vld [vmem:[#allocation5 + $0x1350] sm:$0xff]
    %v743 = vld [vmem:[#allocation5 + $0x1358] sm:$0xff]
    %v744 = vld [vmem:[#allocation5 + $0x1360] sm:$0xff]
    %v745 = vld [vmem:[#allocation5 + $0x1368] sm:$0xff]
    %v746 = vld [vmem:[#allocation5 + $0x1370] sm:$0xff]
    %v747 = vld [vmem:[#allocation5 + $0x1378] sm:$0xff]
    %v748 = vld [vmem:[#allocation5 + $0x1380] sm:$0xff]
    %v749 = vld [vmem:[#allocation5 + $0x1388] sm:$0xff]
    %v750 = vld [vmem:[#allocation5 + $0x1390] sm:$0xff]
    %v751 = vld [vmem:[#allocation5 + $0x1398] sm:$0xff]
    %v752 = vld [vmem:[#allocation5 + $0x13a0] sm:$0xff]
    %v753 = vld [vmem:[#allocation5 + $0x13a8] sm:$0xff]
    %v754 = vld [vmem:[#allocation5 + $0x13b0] sm:$0xff]
    %v755 = vld [vmem:[#allocation5 + $0x13b8] sm:$0xff]
    %v756 = vld [vmem:[#allocation5 + $0x13c0] sm:$0xff]
    %v757 = vld [vmem:[#allocation5 + $0x13c8] sm:$0xff]
    %v758 = vld [vmem:[#allocation5 + $0x13d0] sm:$0xff]
    %v759 = vld [vmem:[#allocation5 + $0x13d8] sm:$0xff]
    %v760 = vld [vmem:[#allocation5 + $0x13e0] sm:$0xff]
    %v761 = vld [vmem:[#allocation5 + $0x13e8] sm:$0xff]
    %v762 = vld [vmem:[#allocation5 + $0x13f0] sm:$0xff]
    %v763 = vld [vmem:[#allocation5 + $0x13f8] sm:$0xff]
    %v764 = vld [vmem:[#allocation5 + $0x1400] sm:$0xff]
    %v765 = vld [vmem:[#allocation5 + $0x1408] sm:$0xff]
    %v766 = vld [vmem:[#allocation5 + $0x1410] sm:$0xff]
    %v767 = vld [vmem:[#allocation5 + $0x1418] sm:$0xff]
    %v768 = vld [vmem:[#allocation5 + $0x1420] sm:$0xff]
    %v769 = vld [vmem:[#allocation5 + $0x1428] sm:$0xff]
    %v770 = vld [vmem:[#allocation5 + $0x1430] sm:$0xff]
    %v771 = vld [vmem:[#allocation5 + $0x1438] sm:$0xff]
    %v772 = vld [vmem:[#allocation5 + $0x1440] sm:$0xff]
    %v773 = vld [vmem:[#allocation5 + $0x1448] sm:$0xff]
    %v774 = vld [vmem:[#allocation5 + $0x1450] sm:$0xff]
    %v775 = vld [vmem:[#allocation5 + $0x1458] sm:$0xff]
    %v776 = vld [vmem:[#allocation5 + $0x1460] sm:$0xff]
    %v777 = vld [vmem:[#allocation5 + $0x1468] sm:$0xff]
    %v778 = vld [vmem:[#allocation5 + $0x1470] sm:$0xff]
    %v779 = vld [vmem:[#allocation5 + $0x1478] sm:$0xff]
    %v780 = vld [vmem:[#allocation5 + $0x1480] sm:$0xff]
    %v781 = vld [vmem:[#allocation5 + $0x1488] sm:$0xff]
    %v782 = vld [vmem:[#allocation5 + $0x1490] sm:$0xff]
    %v783 = vld [vmem:[#allocation5 + $0x1498] sm:$0xff]
    %v784 = vld [vmem:[#allocation5 + $0x14a0] sm:$0xff]
    %v785 = vld [vmem:[#allocation5 + $0x14a8] sm:$0xff]
    %v786 = vld [vmem:[#allocation5 + $0x14b0] sm:$0xff]
    %v787 = vld [vmem:[#allocation5 + $0x14b8] sm:$0xff]
    %v788 = vld [vmem:[#allocation5 + $0x14c0] sm:$0xff]
    %v789 = vld [vmem:[#allocation5 + $0x14c8] sm:$0xff]
    %v790 = vld [vmem:[#allocation5 + $0x14d0] sm:$0xff]
    %v791 = vld [vmem:[#allocation5 + $0x14d8] sm:$0xff]
    %v792 = vld [vmem:[#allocation5 + $0x14e0] sm:$0xff]
    %v793 = vld [vmem:[#allocation5 + $0x14e8] sm:$0xff]
    %v794 = vld [vmem:[#allocation5 + $0x14f0] sm:$0xff]
    %v795 = vld [vmem:[#allocation5 + $0x14f8] sm:$0xff]
    %v796 = vld [vmem:[#allocation5 + $0x1500] sm:$0xff]
    %v797 = vld [vmem:[#allocation5 + $0x1508] sm:$0xff]
    %v798 = vld [vmem:[#allocation5 + $0x1510] sm:$0xff]
    %v799 = vld [vmem:[#allocation5 + $0x1518] sm:$0xff]
    %v800 = vld [vmem:[#allocation5 + $0x1520] sm:$0xff]
    %v801 = vld [vmem:[#allocation5 + $0x1528] sm:$0xff]
    %v802 = vld [vmem:[#allocation5 + $0x1530] sm:$0xff]
    %v803 = vld [vmem:[#allocation5 + $0x1538] sm:$0xff]
    %v804 = vld [vmem:[#allocation5 + $0x1540] sm:$0xff]
    %v805 = vld [vmem:[#allocation5 + $0x1548] sm:$0xff]
    %v806 = vld [vmem:[#allocation5 + $0x1550] sm:$0xff]
    %v807 = vld [vmem:[#allocation5 + $0x1558] sm:$0xff]
    %v808 = vld [vmem:[#allocation5 + $0x1560] sm:$0xff]
    %v809 = vld [vmem:[#allocation5 + $0x1568] sm:$0xff]
    %v810 = vld [vmem:[#allocation5 + $0x1570] sm:$0xff]
    %v811 = vld [vmem:[#allocation5 + $0x1578] sm:$0xff]
    %v812 = vld [vmem:[#allocation5 + $0x1580] sm:$0xff]
    %v813 = vld [vmem:[#allocation5 + $0x1588] sm:$0xff]
    %v814 = vld [vmem:[#allocation5 + $0x1590] sm:$0xff]
    %v815 = vld [vmem:[#allocation5 + $0x1598] sm:$0xff]
    %v816 = vld [vmem:[#allocation5 + $0x15a0] sm:$0xff]
    %v817 = vld [vmem:[#allocation5 + $0x15a8] sm:$0xff]
    %v818 = vld [vmem:[#allocation5 + $0x15b0] sm:$0xff]
    %v819 = vld [vmem:[#allocation5 + $0x15b8] sm:$0xff]
    %v820 = vld [vmem:[#allocation5 + $0x15c0] sm:$0xff]
    %v821 = vld [vmem:[#allocation5 + $0x15c8] sm:$0xff]
    %v822 = vld [vmem:[#allocation5 + $0x15d0] sm:$0xff]
    %v823 = vld [vmem:[#allocation5 + $0x15d8] sm:$0xff]
    %v824 = vld [vmem:[#allocation5 + $0x15e0] sm:$0xff]
    %v825 = vld [vmem:[#allocation5 + $0x15e8] sm:$0xff]
    %v826 = vld [vmem:[#allocation5 + $0x15f0] sm:$0xff]
    %v827 = vld [vmem:[#allocation5 + $0x15f8] sm:$0xff]
    %v828 = vld [vmem:[#allocation5 + $0x1600] sm:$0xff]
    %v829 = vld [vmem:[#allocation5 + $0x1608] sm:$0xff]
    %v830 = vld [vmem:[#allocation5 + $0x1610] sm:$0xff]
    %v831 = vld [vmem:[#allocation5 + $0x1618] sm:$0xff]
    %v832 = vld [vmem:[#allocation5 + $0x1620] sm:$0xff]
    %v833 = vld [vmem:[#allocation5 + $0x1628] sm:$0xff]
    %v834 = vld [vmem:[#allocation5 + $0x1630] sm:$0xff]
    %v835 = vld [vmem:[#allocation5 + $0x1638] sm:$0xff]
    %v836 = vld [vmem:[#allocation5 + $0x1640] sm:$0xff]
    %v837 = vld [vmem:[#allocation5 + $0x1648] sm:$0xff]
    %v838 = vld [vmem:[#allocation5 + $0x1650] sm:$0xff]
    %v839 = vld [vmem:[#allocation5 + $0x1658] sm:$0xff]
    %v840 = vld [vmem:[#allocation5 + $0x1660] sm:$0xff]
    %v841 = vld [vmem:[#allocation5 + $0x1668] sm:$0xff]
    %v842 = vld [vmem:[#allocation5 + $0x1670] sm:$0xff]
    %v843 = vld [vmem:[#allocation5 + $0x1678] sm:$0xff]
    %v844 = vld [vmem:[#allocation5 + $0x1680] sm:$0xff]
    %v845 = vld [vmem:[#allocation5 + $0x1688] sm:$0xff]
    %v846 = vld [vmem:[#allocation5 + $0x1690] sm:$0xff]
    %v847 = vld [vmem:[#allocation5 + $0x1698] sm:$0xff]
    %v848 = vld [vmem:[#allocation5 + $0x16a0] sm:$0xff]
    %v849 = vld [vmem:[#allocation5 + $0x16a8] sm:$0xff]
    %v850 = vld [vmem:[#allocation5 + $0x16b0] sm:$0xff]
    %v851 = vld [vmem:[#allocation5 + $0x16b8] sm:$0xff]
    %v852 = vld [vmem:[#allocation5 + $0x16c0] sm:$0xff]
    %v853 = vld [vmem:[#allocation5 + $0x16c8] sm:$0xff]
    %v854 = vld [vmem:[#allocation5 + $0x16d0] sm:$0xff]
    %v855 = vld [vmem:[#allocation5 + $0x16d8] sm:$0xff]
    %v856 = vld [vmem:[#allocation5 + $0x16e0] sm:$0xff]
    %v857 = vld [vmem:[#allocation5 + $0x16e8] sm:$0xff]
    %v858 = vld [vmem:[#allocation5 + $0x16f0] sm:$0xff]
    %v859 = vld [vmem:[#allocation5 + $0x16f8] sm:$0xff]
    %v860 = vld [vmem:[#allocation5 + $0x1700] sm:$0xff]
    %v861 = vld [vmem:[#allocation5 + $0x1708] sm:$0xff]
    %v862 = vld [vmem:[#allocation5 + $0x1710] sm:$0xff]
    %v863 = vld [vmem:[#allocation5 + $0x1718] sm:$0xff]
    %v864 = vld [vmem:[#allocation5 + $0x1720] sm:$0xff]
    %v865 = vld [vmem:[#allocation5 + $0x1728] sm:$0xff]
    %v866 = vld [vmem:[#allocation5 + $0x1730] sm:$0xff]
    %v867 = vld [vmem:[#allocation5 + $0x1738] sm:$0xff]
    %v868 = vld [vmem:[#allocation5 + $0x1740] sm:$0xff]
    %v869 = vld [vmem:[#allocation5 + $0x1748] sm:$0xff]
    %v870 = vld [vmem:[#allocation5 + $0x1750] sm:$0xff]
    %v871 = vld [vmem:[#allocation5 + $0x1758] sm:$0xff]
    %v872 = vld [vmem:[#allocation5 + $0x1760] sm:$0xff]
    %v873 = vld [vmem:[#allocation5 + $0x1768] sm:$0xff]
    %v874 = vld [vmem:[#allocation5 + $0x1770] sm:$0xff]
    %v875 = vld [vmem:[#allocation5 + $0x1778] sm:$0xff]
    %v876 = vld [vmem:[#allocation5 + $0x1780] sm:$0xff]
    %v877 = vld [vmem:[#allocation5 + $0x1788] sm:$0xff]
    %v878 = vld [vmem:[#allocation5 + $0x1790] sm:$0xff]
    %v879 = vld [vmem:[#allocation5 + $0x1798] sm:$0xff]
    %v880 = vld [vmem:[#allocation5 + $0x17a0] sm:$0xff]
    %v881 = vld [vmem:[#allocation5 + $0x17a8] sm:$0xff]
    %v882 = vld [vmem:[#allocation5 + $0x17b0] sm:$0xff]
    %v883 = vld [vmem:[#allocation5 + $0x17b8] sm:$0xff]
    %v884 = vld [vmem:[#allocation5 + $0x17c0] sm:$0xff]
    %v885 = vld [vmem:[#allocation5 + $0x17c8] sm:$0xff]
    %v886 = vld [vmem:[#allocation5 + $0x17d0] sm:$0xff]
    %v887 = vld [vmem:[#allocation5 + $0x17d8] sm:$0xff]
    %v888 = vld [vmem:[#allocation5 + $0x17e0] sm:$0xff]
    %v889 = vld [vmem:[#allocation5 + $0x17e8] sm:$0xff]
    %v890 = vld [vmem:[#allocation5 + $0x17f0] sm:$0xff]
    %v891 = vld [vmem:[#allocation5 + $0x17f8] sm:$0xff]
    %v892 = vld [vmem:[#allocation5 + $0x1800] sm:$0xff]
    %v893 = vld [vmem:[#allocation5 + $0x1808] sm:$0xff]
    %v894 = vld [vmem:[#allocation5 + $0x1810] sm:$0xff]
    %v895 = vld [vmem:[#allocation5 + $0x1818] sm:$0xff]
    %v896 = vld [vmem:[#allocation5 + $0x1820] sm:$0xff]
    %v897 = vld [vmem:[#allocation5 + $0x1828] sm:$0xff]
    %v898 = vld [vmem:[#allocation5 + $0x1830] sm:$0xff]
    %v899 = vld [vmem:[#allocation5 + $0x1838] sm:$0xff]
    %v900 = vld [vmem:[#allocation5 + $0x1840] sm:$0xff]
    %v901 = vld [vmem:[#allocation5 + $0x1848] sm:$0xff]
    %v902 = vld [vmem:[#allocation5 + $0x1850] sm:$0xff]
    %v903 = vld [vmem:[#allocation5 + $0x1858] sm:$0xff]
    %v904 = vld [vmem:[#allocation5 + $0x1860] sm:$0xff]
    %v905 = vld [vmem:[#allocation5 + $0x1868] sm:$0xff]
    %v906 = vld [vmem:[#allocation5 + $0x1870] sm:$0xff]
    %v907 = vld [vmem:[#allocation5 + $0x1878] sm:$0xff]
    %v908 = vld [vmem:[#allocation5 + $0x1880] sm:$0xff]
    %v909 = vld [vmem:[#allocation5 + $0x1888] sm:$0xff]
    %v910 = vld [vmem:[#allocation5 + $0x1890] sm:$0xff]
    %v911 = vld [vmem:[#allocation5 + $0x1898] sm:$0xff]
    %v912 = vld [vmem:[#allocation5 + $0x18a0] sm:$0xff]
    %v913 = vld [vmem:[#allocation5 + $0x18a8] sm:$0xff]
    %v914 = vld [vmem:[#allocation5 + $0x18b0] sm:$0xff]
    %v915 = vld [vmem:[#allocation5 + $0x18b8] sm:$0xff]
    %v916 = vld [vmem:[#allocation5 + $0x18c0] sm:$0xff]
    %v917 = vld [vmem:[#allocation5 + $0x18c8] sm:$0xff]
    %v918 = vld [vmem:[#allocation5 + $0x18d0] sm:$0xff]
    %v919 = vld [vmem:[#allocation5 + $0x18d8] sm:$0xff]
    %v920 = vld [vmem:[#allocation5 + $0x18e0] sm:$0xff]
    %v921 = vld [vmem:[#allocation5 + $0x18e8] sm:$0xff]
    %v922 = vld [vmem:[#allocation5 + $0x18f0] sm:$0xff]
    %v923 = vld [vmem:[#allocation5 + $0x18f8] sm:$0xff]
    %v924 = vld [vmem:[#allocation5 + $0x1900] sm:$0xff]
    %v925 = vld [vmem:[#allocation5 + $0x1908] sm:$0xff]
    %v926 = vld [vmem:[#allocation5 + $0x1910] sm:$0xff]
    %v927 = vld [vmem:[#allocation5 + $0x1918] sm:$0xff]
    %v928 = vld [vmem:[#allocation5 + $0x1920] sm:$0xff]
    %v929 = vld [vmem:[#allocation5 + $0x1928] sm:$0xff]
    %v930 = vld [vmem:[#allocation5 + $0x1930] sm:$0xff]
    %v931 = vld [vmem:[#allocation5 + $0x1938] sm:$0xff]
    %v932 = vld [vmem:[#allocation5 + $0x1940] sm:$0xff]
    %v933 = vld [vmem:[#allocation5 + $0x1948] sm:$0xff]
    %v934 = vld [vmem:[#allocation5 + $0x1950] sm:$0xff]
    %v935 = vld [vmem:[#allocation5 + $0x1958] sm:$0xff]
    %v936 = vld [vmem:[#allocation5 + $0x1960] sm:$0xff]
    %v937 = vld [vmem:[#allocation5 + $0x1968] sm:$0xff]
    %v938 = vld [vmem:[#allocation5 + $0x1970] sm:$0xff]
    %v939 = vld [vmem:[#allocation5 + $0x1978] sm:$0xff]
    %v940 = vld [vmem:[#allocation5 + $0x1980] sm:$0xff]
    %v941 = vld [vmem:[#allocation5 + $0x1988] sm:$0xff]
    %v942 = vld [vmem:[#allocation5 + $0x1990] sm:$0xff]
    %v943 = vld [vmem:[#allocation5 + $0x1998] sm:$0xff]
    %v944 = vld [vmem:[#allocation5 + $0x19a0] sm:$0xff]
    %v945 = vld [vmem:[#allocation5 + $0x19a8] sm:$0xff]
    %v946 = vld [vmem:[#allocation5 + $0x19b0] sm:$0xff]
    %v947 = vld [vmem:[#allocation5 + $0x19b8] sm:$0xff]
    %v948 = vld [vmem:[#allocation5 + $0x19c0] sm:$0xff]
    %v949 = vld [vmem:[#allocation5 + $0x19c8] sm:$0xff]
    %v950 = vld [vmem:[#allocation5 + $0x19d0] sm:$0xff]
    %v951 = vld [vmem:[#allocation5 + $0x19d8] sm:$0xff]
    %v952 = vld [vmem:[#allocation5 + $0x19e0] sm:$0xff]
    %v953 = vld [vmem:[#allocation5 + $0x19e8] sm:$0xff]
    %v954 = vld [vmem:[#allocation5 + $0x19f0] sm:$0xff]
    %v955 = vld [vmem:[#allocation5 + $0x19f8] sm:$0xff]
    %v956 = vld [vmem:[#allocation5 + $0x1a00] sm:$0xff]
    %v957 = vld [vmem:[#allocation5 + $0x1a08] sm:$0xff]
    %v958 = vld [vmem:[#allocation5 + $0x1a10] sm:$0xff]
    %v959 = vld [vmem:[#allocation5 + $0x1a18] sm:$0xff]
    %v960 = vld [vmem:[#allocation5 + $0x1a20] sm:$0xff]
    %v961 = vld [vmem:[#allocation5 + $0x1a28] sm:$0xff]
    %v962 = vld [vmem:[#allocation5 + $0x1a30] sm:$0xff]
    %v963 = vld [vmem:[#allocation5 + $0x1a38] sm:$0xff]
    %v964 = vld [vmem:[#allocation5 + $0x1a40] sm:$0xff]
    %v965 = vld [vmem:[#allocation5 + $0x1a48] sm:$0xff]
    %v966 = vld [vmem:[#allocation5 + $0x1a50] sm:$0xff]
    %v967 = vld [vmem:[#allocation5 + $0x1a58] sm:$0xff]
    %v968 = vld [vmem:[#allocation5 + $0x1a60] sm:$0xff]
    %v969 = vld [vmem:[#allocation5 + $0x1a68] sm:$0xff]
    %v970 = vld [vmem:[#allocation5 + $0x1a70] sm:$0xff]
    %v971 = vld [vmem:[#allocation5 + $0x1a78] sm:$0xff]
    %v972 = vld [vmem:[#allocation5 + $0x1a80] sm:$0xff]
    %v973 = vld [vmem:[#allocation5 + $0x1a88] sm:$0xff]
    %v974 = vld [vmem:[#allocation5 + $0x1a90] sm:$0xff]
    %v975 = vld [vmem:[#allocation5 + $0x1a98] sm:$0xff]
    %v976 = vld [vmem:[#allocation5 + $0x1aa0] sm:$0xff]
    %v977 = vld [vmem:[#allocation5 + $0x1aa8] sm:$0xff]
    %v978 = vld [vmem:[#allocation5 + $0x1ab0] sm:$0xff]
    %v979 = vld [vmem:[#allocation5 + $0x1ab8] sm:$0xff]
    %v980 = vld [vmem:[#allocation5 + $0x1ac0] sm:$0xff]
    %v981 = vld [vmem:[#allocation5 + $0x1ac8] sm:$0xff]
    %v982 = vld [vmem:[#allocation5 + $0x1ad0] sm:$0xff]
    %v983 = vld [vmem:[#allocation5 + $0x1ad8] sm:$0xff]
    %v984 = vld [vmem:[#allocation5 + $0x1ae0] sm:$0xff]
    %v985 = vld [vmem:[#allocation5 + $0x1ae8] sm:$0xff]
    %v986 = vld [vmem:[#allocation5 + $0x1af0] sm:$0xff]
    %v987 = vld [vmem:[#allocation5 + $0x1af8] sm:$0xff]
    %v988 = vld [vmem:[#allocation5 + $0x1b00] sm:$0xff]
    %v989 = vld [vmem:[#allocation5 + $0x1b08] sm:$0xff]
    %v990 = vld [vmem:[#allocation5 + $0x1b10] sm:$0xff]
    %v991 = vld [vmem:[#allocation5 + $0x1b18] sm:$0xff]
    %v992 = vld [vmem:[#allocation5 + $0x1b20] sm:$0xff]
    %v993 = vld [vmem:[#allocation5 + $0x1b28] sm:$0xff]
    %v994 = vld [vmem:[#allocation5 + $0x1b30] sm:$0xff]
    %v995 = vld [vmem:[#allocation5 + $0x1b38] sm:$0xff]
    %v996 = vld [vmem:[#allocation5 + $0x1b40] sm:$0xff]
    %v997 = vld [vmem:[#allocation5 + $0x1b48] sm:$0xff]
    %v998 = vld [vmem:[#allocation5 + $0x1b50] sm:$0xff]
    %v999 = vld [vmem:[#allocation5 + $0x1b58] sm:$0xff]
    %v1000 = vld [vmem:[#allocation5 + $0x1b60] sm:$0xff]
    %v1001 = vld [vmem:[#allocation5 + $0x1b68] sm:$0xff]
    %v1002 = vld [vmem:[#allocation5 + $0x1b70] sm:$0xff]
    %v1003 = vld [vmem:[#allocation5 + $0x1b78] sm:$0xff]
    %v1004 = vld [vmem:[#allocation5 + $0x1b80] sm:$0xff]
    %v1005 = vld [vmem:[#allocation5 + $0x1b88] sm:$0xff]
    %v1006 = vld [vmem:[#allocation5 + $0x1b90] sm:$0xff]
    %v1007 = vld [vmem:[#allocation5 + $0x1b98] sm:$0xff]
    %v1008 = vld [vmem:[#allocation5 + $0x1ba0] sm:$0xff]
    %v1009 = vld [vmem:[#allocation5 + $0x1ba8] sm:$0xff]
    %v1010 = vld [vmem:[#allocation5 + $0x1bb0] sm:$0xff]
    %v1011 = vld [vmem:[#allocation5 + $0x1bb8] sm:$0xff]
    %v1012 = vld [vmem:[#allocation5 + $0x1bc0] sm:$0xff]
    %v1013 = vld [vmem:[#allocation5 + $0x1bc8] sm:$0xff]
    %v1014 = vld [vmem:[#allocation5 + $0x1bd0] sm:$0xff]
    %v1015 = vld [vmem:[#allocation5 + $0x1bd8] sm:$0xff]
    %v1016 = vld [vmem:[#allocation5 + $0x1be0] sm:$0xff]
    %v1017 = vld [vmem:[#allocation5 + $0x1be8] sm:$0xff]
    %v1018 = vld [vmem:[#allocation5 + $0x1bf0] sm:$0xff]
    %v1019 = vld [vmem:[#allocation5 + $0x1bf8] sm:$0xff]
    %v1020 = vld [vmem:[#allocation5 + $0x1c00] sm:$0xff]
    %v1021 = vld [vmem:[#allocation5 + $0x1c08] sm:$0xff]
    %v1022 = vld [vmem:[#allocation5 + $0x1c10] sm:$0xff]
    %v1023 = vld [vmem:[#allocation5 + $0x1c18] sm:$0xff]
    %v1024 = vld [vmem:[#allocation5 + $0x1c20] sm:$0xff]
    %v1025 = vld [vmem:[#allocation5 + $0x1c28] sm:$0xff]
    %v1026 = vld [vmem:[#allocation5 + $0x1c30] sm:$0xff]
    %v1027 = vld [vmem:[#allocation5 + $0x1c38] sm:$0xff]
    %v1028 = vld [vmem:[#allocation5 + $0x1c40] sm:$0xff]
    %v1029 = vld [vmem:[#allocation5 + $0x1c48] sm:$0xff]
    %v1030 = vld [vmem:[#allocation5 + $0x1c50] sm:$0xff]
    %v1031 = vld [vmem:[#allocation5 + $0x1c58] sm:$0xff]
    %v1032 = vld [vmem:[#allocation5 + $0x1c60] sm:$0xff]
    %v1033 = vld [vmem:[#allocation5 + $0x1c68] sm:$0xff]
    %v1034 = vld [vmem:[#allocation5 + $0x1c70] sm:$0xff]
    %v1035 = vld [vmem:[#allocation5 + $0x1c78] sm:$0xff]
    %v1036 = vld [vmem:[#allocation5 + $0x1c80] sm:$0xff]
    %v1037 = vld [vmem:[#allocation5 + $0x1c88] sm:$0xff]
    %v1038 = vld [vmem:[#allocation5 + $0x1c90] sm:$0xff]
    %v1039 = vld [vmem:[#allocation5 + $0x1c98] sm:$0xff]
    %v1040 = vld [vmem:[#allocation5 + $0x1ca0] sm:$0xff]
    %v1041 = vld [vmem:[#allocation5 + $0x1ca8] sm:$0xff]
    %v1042 = vld [vmem:[#allocation5 + $0x1cb0] sm:$0xff]
    %v1043 = vld [vmem:[#allocation5 + $0x1cb8] sm:$0xff]
    %v1044 = vld [vmem:[#allocation5 + $0x1cc0] sm:$0xff]
    %v1045 = vld [vmem:[#allocation5 + $0x1cc8] sm:$0xff]
    %v1046 = vld [vmem:[#allocation5 + $0x1cd0] sm:$0xff]
    %v1047 = vld [vmem:[#allocation5 + $0x1cd8] sm:$0xff]
    %v1048 = vld [vmem:[#allocation5 + $0x1ce0] sm:$0xff]
    %v1049 = vld [vmem:[#allocation5 + $0x1ce8] sm:$0xff]
    %v1050 = vld [vmem:[#allocation5 + $0x1cf0] sm:$0xff]
    %v1051 = vld [vmem:[#allocation5 + $0x1cf8] sm:$0xff]
    %v1052 = vld [vmem:[#allocation5 + $0x1d00] sm:$0xff]
    %v1053 = vld [vmem:[#allocation5 + $0x1d08] sm:$0xff]
    %v1054 = vld [vmem:[#allocation5 + $0x1d10] sm:$0xff]
    %v1055 = vld [vmem:[#allocation5 + $0x1d18] sm:$0xff]
    %v1056 = vld [vmem:[#allocation5 + $0x1d20] sm:$0xff]
    %v1057 = vld [vmem:[#allocation5 + $0x1d28] sm:$0xff]
    %v1058 = vld [vmem:[#allocation5 + $0x1d30] sm:$0xff]
    %v1059 = vld [vmem:[#allocation5 + $0x1d38] sm:$0xff]
    %v1060 = vld [vmem:[#allocation5 + $0x1d40] sm:$0xff]
    %v1061 = vld [vmem:[#allocation5 + $0x1d48] sm:$0xff]
    %v1062 = vld [vmem:[#allocation5 + $0x1d50] sm:$0xff]
    %v1063 = vld [vmem:[#allocation5 + $0x1d58] sm:$0xff]
    %v1064 = vld [vmem:[#allocation5 + $0x1d60] sm:$0xff]
    %v1065 = vld [vmem:[#allocation5 + $0x1d68] sm:$0xff]
    %v1066 = vld [vmem:[#allocation5 + $0x1d70] sm:$0xff]
    %v1067 = vld [vmem:[#allocation5 + $0x1d78] sm:$0xff]
    %v1068 = vld [vmem:[#allocation5 + $0x1d80] sm:$0xff]
    %v1069 = vld [vmem:[#allocation5 + $0x1d88] sm:$0xff]
    %v1070 = vld [vmem:[#allocation5 + $0x1d90] sm:$0xff]
    %v1071 = vld [vmem:[#allocation5 + $0x1d98] sm:$0xff]
    %v1072 = vld [vmem:[#allocation5 + $0x1da0] sm:$0xff]
    %v1073 = vld [vmem:[#allocation5 + $0x1da8] sm:$0xff]
    %v1074 = vld [vmem:[#allocation5 + $0x1db0] sm:$0xff]
    %v1075 = vld [vmem:[#allocation5 + $0x1db8] sm:$0xff]
    %v1076 = vld [vmem:[#allocation5 + $0x1dc0] sm:$0xff]
    %v1077 = vld [vmem:[#allocation5 + $0x1dc8] sm:$0xff]
    %v1078 = vld [vmem:[#allocation5 + $0x1dd0] sm:$0xff]
    %v1079 = vld [vmem:[#allocation5 + $0x1dd8] sm:$0xff]
    %v1080 = vld [vmem:[#allocation5 + $0x1de0] sm:$0xff]
    %v1081 = vld [vmem:[#allocation5 + $0x1de8] sm:$0xff]
    %v1082 = vld [vmem:[#allocation5 + $0x1df0] sm:$0xff]
    %v1083 = vld [vmem:[#allocation5 + $0x1df8] sm:$0xff]
    %v1084 = vld [vmem:[#allocation5 + $0x1e00] sm:$0xff]
    %v1085 = vld [vmem:[#allocation5 + $0x1e08] sm:$0xff]
    %v1086 = vld [vmem:[#allocation5 + $0x1e10] sm:$0xff]
    %v1087 = vld [vmem:[#allocation5 + $0x1e18] sm:$0xff]
    %v1088 = vld [vmem:[#allocation5 + $0x1e20] sm:$0xff]
    %v1089 = vld [vmem:[#allocation5 + $0x1e28] sm:$0xff]
    %v1090 = vld [vmem:[#allocation5 + $0x1e30] sm:$0xff]
    %v1091 = vld [vmem:[#allocation5 + $0x1e38] sm:$0xff]
    %v1092 = vld [vmem:[#allocation5 + $0x1e40] sm:$0xff]
    %v1093 = vld [vmem:[#allocation5 + $0x1e48] sm:$0xff]
    %v1094 = vld [vmem:[#allocation5 + $0x1e50] sm:$0xff]
    %v1095 = vld [vmem:[#allocation5 + $0x1e58] sm:$0xff]
    %v1096 = vld [vmem:[#allocation5 + $0x1e60] sm:$0xff]
    %v1097 = vld [vmem:[#allocation5 + $0x1e68] sm:$0xff]
    %v1098 = vld [vmem:[#allocation5 + $0x1e70] sm:$0xff]
    %v1099 = vld [vmem:[#allocation5 + $0x1e78] sm:$0xff]
    %v1100 = vld [vmem:[#allocation5 + $0x1e80] sm:$0xff]
    %v1101 = vld [vmem:[#allocation5 + $0x1e88] sm:$0xff]
    %v1102 = vld [vmem:[#allocation5 + $0x1e90] sm:$0xff]
    %v1103 = vld [vmem:[#allocation5 + $0x1e98] sm:$0xff]
    %v1104 = vld [vmem:[#allocation5 + $0x1ea0] sm:$0xff]
    %v1105 = vld [vmem:[#allocation5 + $0x1ea8] sm:$0xff]
    %v1106 = vld [vmem:[#allocation5 + $0x1eb0] sm:$0xff]
    %v1107 = vld [vmem:[#allocation5 + $0x1eb8] sm:$0xff]
    %v1108 = vld [vmem:[#allocation5 + $0x1ec0] sm:$0xff]
    %v1109 = vld [vmem:[#allocation5 + $0x1ec8] sm:$0xff]
    %v1110 = vld [vmem:[#allocation5 + $0x1ed0] sm:$0xff]
    %v1111 = vld [vmem:[#allocation5 + $0x1ed8] sm:$0xff]
    %v1112 = vld [vmem:[#allocation5 + $0x1ee0] sm:$0xff]
    %v1113 = vld [vmem:[#allocation5 + $0x1ee8] sm:$0xff]
    %v1114 = vld [vmem:[#allocation5 + $0x1ef0] sm:$0xff]
    %v1115 = vld [vmem:[#allocation5 + $0x1ef8] sm:$0xff]
    %v1116 = vld [vmem:[#allocation5 + $0x1f00] sm:$0xff]
    %v1117 = vld [vmem:[#allocation5 + $0x1f08] sm:$0xff]
    %v1118 = vld [vmem:[#allocation5 + $0x1f10] sm:$0xff]
    %v1119 = vld [vmem:[#allocation5 + $0x1f18] sm:$0xff]
    %v1120 = vld [vmem:[#allocation5 + $0x1f20] sm:$0xff]
    %v1121 = vld [vmem:[#allocation5 + $0x1f28] sm:$0xff]
    %v1122 = vld [vmem:[#allocation5 + $0x1f30] sm:$0xff]
    %v1123 = vld [vmem:[#allocation5 + $0x1f38] sm:$0xff]
    %v1124 = vld [vmem:[#allocation5 + $0x1f40] sm:$0xff]
    %v1125 = vld [vmem:[#allocation5 + $0x1f48] sm:$0xff]
    %v1126 = vld [vmem:[#allocation5 + $0x1f50] sm:$0xff]
    %v1127 = vld [vmem:[#allocation5 + $0x1f58] sm:$0xff]
    %v1128 = vld [vmem:[#allocation5 + $0x1f60] sm:$0xff]
    %v1129 = vld [vmem:[#allocation5 + $0x1f68] sm:$0xff]
    %v1130 = vld [vmem:[#allocation5 + $0x1f70] sm:$0xff]
    %v1131 = vld [vmem:[#allocation5 + $0x1f78] sm:$0xff]
    %v1132 = vld [vmem:[#allocation5 + $0x1f80] sm:$0xff]
    %v1133 = vld [vmem:[#allocation5 + $0x1f88] sm:$0xff]
    %v1134 = vld [vmem:[#allocation5 + $0x1f90] sm:$0xff]
    %v1135 = vld [vmem:[#allocation5 + $0x1f98] sm:$0xff]
    %v1136 = vld [vmem:[#allocation5 + $0x1fa0] sm:$0xff]
    %v1137 = vld [vmem:[#allocation5 + $0x1fa8] sm:$0xff]
    %v1138 = vld [vmem:[#allocation5 + $0x1fb0] sm:$0xff]
    %v1139 = vld [vmem:[#allocation5 + $0x1fb8] sm:$0xff]
    %v1140 = vld [vmem:[#allocation5 + $0x1fc0] sm:$0xff]
    %v1141 = vld [vmem:[#allocation5 + $0x1fc8] sm:$0xff]
    %v1142 = vld [vmem:[#allocation5 + $0x1fd0] sm:$0xff]
    %v1143 = vld [vmem:[#allocation5 + $0x1fd8] sm:$0xff]
    %v1144 = vld [vmem:[#allocation5 + $0x1fe0] sm:$0xff]
    %v1145 = vld [vmem:[#allocation5 + $0x1fe8] sm:$0xff]
    %v1146 = vld [vmem:[#allocation5 + $0x1ff0] sm:$0xff]
    %v1147 = vld [vmem:[#allocation5 + $0x1ff8] sm:$0xff]
    %v1148 = vld [vmem:[#allocation5 + $0x2000] sm:$0xff]
    %v1149 = vld [vmem:[#allocation5 + $0x2008] sm:$0xff]
    %v1150 = vld [vmem:[#allocation5 + $0x2010] sm:$0xff]
    %v1151 = vld [vmem:[#allocation5 + $0x2018] sm:$0xff]
    %v1152 = vld [vmem:[#allocation5 + $0x2020] sm:$0xff]
    %v1153 = vld [vmem:[#allocation5 + $0x2028] sm:$0xff]
    %v1154 = vld [vmem:[#allocation5 + $0x2030] sm:$0xff]
    %v1155 = vld [vmem:[#allocation5 + $0x2038] sm:$0xff]
    %v1156 = vld [vmem:[#allocation5 + $0x2040] sm:$0xff]
    %v1157 = vld [vmem:[#allocation5 + $0x2048] sm:$0xff]
    %v1158 = vld [vmem:[#allocation5 + $0x2050] sm:$0xff]
    %v1159 = vld [vmem:[#allocation5 + $0x2058] sm:$0xff]
    %v1160 = vld [vmem:[#allocation5 + $0x2060] sm:$0xff]
    %v1161 = vld [vmem:[#allocation5 + $0x2068] sm:$0xff]
    %v1162 = vld [vmem:[#allocation5 + $0x2070] sm:$0xff]
    %v1163 = vld [vmem:[#allocation5 + $0x2078] sm:$0xff]
    %v1164 = vld [vmem:[#allocation5 + $0x2080] sm:$0xff]
    %v1165 = vld [vmem:[#allocation5 + $0x2088] sm:$0xff]
    %v1166 = vld [vmem:[#allocation5 + $0x2090] sm:$0xff]
    %v1167 = vld [vmem:[#allocation5 + $0x2098] sm:$0xff]
    %v1168 = vld [vmem:[#allocation5 + $0x20a0] sm:$0xff]
    %v1169 = vld [vmem:[#allocation5 + $0x20a8] sm:$0xff]
    %v1170 = vld [vmem:[#allocation5 + $0x20b0] sm:$0xff]
    %v1171 = vld [vmem:[#allocation5 + $0x20b8] sm:$0xff]
    %v1172 = vld [vmem:[#allocation5 + $0x20c0] sm:$0xff]
    %v1173 = vld [vmem:[#allocation5 + $0x20c8] sm:$0xff]
    %v1174 = vld [vmem:[#allocation5 + $0x20d0] sm:$0xff]
    %v1175 = vld [vmem:[#allocation5 + $0x20d8] sm:$0xff]
    %v1176 = vld [vmem:[#allocation5 + $0x20e0] sm:$0xff]
    %v1177 = vld [vmem:[#allocation5 + $0x20e8] sm:$0xff]
    %v1178 = vld [vmem:[#allocation5 + $0x20f0] sm:$0xff]
    %v1179 = vld [vmem:[#allocation5 + $0x20f8] sm:$0xff]
    %v1180 = vld [vmem:[#allocation5 + $0x2100] sm:$0xff]
    %v1181 = vld [vmem:[#allocation5 + $0x2108] sm:$0xff]
    %v1182 = vld [vmem:[#allocation5 + $0x2110] sm:$0xff]
    %v1183 = vld [vmem:[#allocation5 + $0x2118] sm:$0xff]
    %v1184 = vld [vmem:[#allocation5 + $0x2120] sm:$0xff]
    %v1185 = vld [vmem:[#allocation5 + $0x2128] sm:$0xff]
    %v1186 = vld [vmem:[#allocation5 + $0x2130] sm:$0xff]
    %v1187 = vld [vmem:[#allocation5 + $0x2138] sm:$0xff]
    %v1188 = vld [vmem:[#allocation5 + $0x2140] sm:$0xff]
    %v1189 = vld [vmem:[#allocation5 + $0x2148] sm:$0xff]
    %v1190 = vld [vmem:[#allocation5 + $0x2150] sm:$0xff]
    %v1191 = vld [vmem:[#allocation5 + $0x2158] sm:$0xff]
    %v1192 = vld [vmem:[#allocation5 + $0x2160] sm:$0xff]
    %v1193 = vld [vmem:[#allocation5 + $0x2168] sm:$0xff]
    %v1194 = vld [vmem:[#allocation5 + $0x2170] sm:$0xff]
    %v1195 = vld [vmem:[#allocation5 + $0x2178] sm:$0xff]
    %v1196 = vld [vmem:[#allocation5 + $0x2180] sm:$0xff]
    %v1197 = vld [vmem:[#allocation5 + $0x2188] sm:$0xff]
    %v1198 = vld [vmem:[#allocation5 + $0x2190] sm:$0xff]
    %v1199 = vld [vmem:[#allocation5 + $0x2198] sm:$0xff]
    %v1200 = vld [vmem:[#allocation5 + $0x21a0] sm:$0xff]
    %v1201 = vld [vmem:[#allocation5 + $0x21a8] sm:$0xff]
    %v1202 = vld [vmem:[#allocation5 + $0x21b0] sm:$0xff]
    %v1203 = vld [vmem:[#allocation5 + $0x21b8] sm:$0xff]
    %v1204 = vld [vmem:[#allocation5 + $0x21c0] sm:$0xff]
    %v1205 = vld [vmem:[#allocation5 + $0x21c8] sm:$0xff]
    %v1206 = vld [vmem:[#allocation5 + $0x21d0] sm:$0xff]
    %v1207 = vld [vmem:[#allocation5 + $0x21d8] sm:$0xff]
    %v1208 = vld [vmem:[#allocation5 + $0x21e0] sm:$0xff]
    %v1209 = vld [vmem:[#allocation5 + $0x21e8] sm:$0xff]
    %v1210 = vld [vmem:[#allocation5 + $0x21f0] sm:$0xff]
    %v1211 = vld [vmem:[#allocation5 + $0x21f8] sm:$0xff]
    %v1212 = vld [vmem:[#allocation5 + $0x2200] sm:$0xff]
    %v1213 = vld [vmem:[#allocation5 + $0x2208] sm:$0xff]
    %v1214 = vld [vmem:[#allocation5 + $0x2210] sm:$0xff]
    %v1215 = vld [vmem:[#allocation5 + $0x2218] sm:$0xff]
    %v1216 = vld [vmem:[#allocation5 + $0x2220] sm:$0xff]
    %v1217 = vld [vmem:[#allocation5 + $0x2228] sm:$0xff]
    %v1218 = vld [vmem:[#allocation5 + $0x2230] sm:$0xff]
    %v1219 = vld [vmem:[#allocation5 + $0x2238] sm:$0xff]
    %v1220 = vld [vmem:[#allocation5 + $0x2240] sm:$0xff]
    %v1221 = vld [vmem:[#allocation5 + $0x2248] sm:$0xff]
    %v1222 = vld [vmem:[#allocation5 + $0x2250] sm:$0xff]
    %v1223 = vld [vmem:[#allocation5 + $0x2258] sm:$0xff]
    %v1224 = vld [vmem:[#allocation5 + $0x2260] sm:$0xff]
    %v1225 = vld [vmem:[#allocation5 + $0x2268] sm:$0xff]
    %v1226 = vld [vmem:[#allocation5 + $0x2270] sm:$0xff]
    %v1227 = vld [vmem:[#allocation5 + $0x2278] sm:$0xff]
    %v1228 = vld [vmem:[#allocation5 + $0x2280] sm:$0xff]
    %v1229 = vld [vmem:[#allocation5 + $0x2288] sm:$0xff]
    %v1230 = vld [vmem:[#allocation5 + $0x2290] sm:$0xff]
    %v1231 = vld [vmem:[#allocation5 + $0x2298] sm:$0xff]
    %v1232 = vld [vmem:[#allocation5 + $0x22a0] sm:$0xff]
    %v1233 = vld [vmem:[#allocation5 + $0x22a8] sm:$0xff]
    %v1234 = vld [vmem:[#allocation5 + $0x22b0] sm:$0xff]
    %v1235 = vld [vmem:[#allocation5 + $0x22b8] sm:$0xff]
    %v1236 = vld [vmem:[#allocation5 + $0x22c0] sm:$0xff]
    %v1237 = vld [vmem:[#allocation5 + $0x22c8] sm:$0xff]
    %v1238 = vld [vmem:[#allocation5 + $0x22d0] sm:$0xff]
    %v1239 = vld [vmem:[#allocation5 + $0x22d8] sm:$0xff]
    %v1240 = vld [vmem:[#allocation5 + $0x22e0] sm:$0xff]
    %v1241 = vld [vmem:[#allocation5 + $0x22e8] sm:$0xff]
    %v1242 = vld [vmem:[#allocation5 + $0x22f0] sm:$0xff]
    %v1243 = vld [vmem:[#allocation5 + $0x22f8] sm:$0xff]
    %v1244 = vld [vmem:[#allocation5 + $0x2300] sm:$0xff]
    %v1245 = vld [vmem:[#allocation5 + $0x2308] sm:$0xff]
    %v1246 = vld [vmem:[#allocation5 + $0x2310] sm:$0xff]
    %v1247 = vld [vmem:[#allocation5 + $0x2318] sm:$0xff]
    %v1248 = vld [vmem:[#allocation5 + $0x2320] sm:$0xff]
    %v1249 = vld [vmem:[#allocation5 + $0x2328] sm:$0xff]
    %v1250 = vld [vmem:[#allocation5 + $0x2330] sm:$0xff]
    %v1251 = vld [vmem:[#allocation5 + $0x2338] sm:$0xff]
    %v1252 = vld [vmem:[#allocation5 + $0x2340] sm:$0xff]
    %v1253 = vld [vmem:[#allocation5 + $0x2348] sm:$0xff]
    %v1254 = vld [vmem:[#allocation5 + $0x2350] sm:$0xff]
    %v1255 = vld [vmem:[#allocation5 + $0x2358] sm:$0xff]
    %v1256 = vld [vmem:[#allocation5 + $0x2360] sm:$0xff]
    %v1257 = vld [vmem:[#allocation5 + $0x2368] sm:$0xff]
    %v1258 = vld [vmem:[#allocation5 + $0x2370] sm:$0xff]
    %v1259 = vld [vmem:[#allocation5 + $0x2378] sm:$0xff]
    %v1260 = vld [vmem:[#allocation5 + $0x2380] sm:$0xff]
    %v1261 = vld [vmem:[#allocation5 + $0x2388] sm:$0xff]
    %v1262 = vld [vmem:[#allocation5 + $0x2390] sm:$0xff]
    %v1263 = vld [vmem:[#allocation5 + $0x2398] sm:$0xff]
    %v1264 = vld [vmem:[#allocation5 + $0x23a0] sm:$0xff]
    %v1265 = vld [vmem:[#allocation5 + $0x23a8] sm:$0xff]
    %v1266 = vld [vmem:[#allocation5 + $0x23b0] sm:$0xff]
    %v1267 = vld [vmem:[#allocation5 + $0x23b8] sm:$0xff]
    %v1268 = vld [vmem:[#allocation5 + $0x23c0] sm:$0xff]
    %v1269 = vld [vmem:[#allocation5 + $0x23c8] sm:$0xff]
    %v1270 = vld [vmem:[#allocation5 + $0x23d0] sm:$0xff]
    %v1271 = vld [vmem:[#allocation5 + $0x23d8] sm:$0xff]
    %v1272 = vld [vmem:[#allocation5 + $0x23e0] sm:$0xff]
    %v1273 = vld [vmem:[#allocation5 + $0x23e8] sm:$0xff]
    %v1274 = vld [vmem:[#allocation5 + $0x23f0] sm:$0xff]
    %v1275 = vld [vmem:[#allocation5 + $0x23f8] sm:$0xff]
    %v1276 = vld [vmem:[#allocation7] sm:$0x3f]
    %v1278 = vlaneseq
    %v1279 = vshrl.u32 %v1278, 7
    %v1280 = vsub.s32 0, %v1279
    %v1281 = vrot.slane %v1276, %v1280
    %v1282 = vlaneseq
    %v1283 = vshrl.u32 %v1282, 7
    %v1284 = vsub.s32 1, %v1283
    %v1285 = vrot.slane %v1276, %v1284
    %v1286 = vlaneseq
    %v1287 = vshrl.u32 %v1286, 7
    %v1288 = vsub.s32 2, %v1287
    %v1289 = vrot.slane %v1276, %v1288
    %v1290 = vlaneseq
    %v1291 = vshrl.u32 %v1290, 7
    %v1292 = vsub.s32 3, %v1291
    %v1293 = vrot.slane %v1276, %v1292
    %v1294 = vlaneseq
    %v1295 = vshrl.u32 %v1294, 7
    %v1296 = vsub.s32 4, %v1295
    %v1297 = vrot.slane %v1276, %v1296
    %v1298 = vlaneseq
    %v1299 = vshrl.u32 %v1298, 7
    %v1300 = vsub.s32 5, %v1299
    %v1301 = vrot.slane %v1276, %v1300
    %v1332 = vunpack.c.l.b16 %v100
    %v1333 = vunpack.c.h.b16 %v100
    %v1334 = vunpack.c.l.b16 %v101
    %v1335 = vunpack.c.h.b16 %v101
    %v1336 = vunpack.c.l.b16 %v102
    %v1337 = vunpack.c.h.b16 %v102
    %v1338 = vunpack.c.l.b16 %v103
    %v1339 = vunpack.c.h.b16 %v103
    %v1340 = vunpack.c.l.b16 %v104
    %v1341 = vunpack.c.h.b16 %v104
    %v1342 = vunpack.c.l.b16 %v105
    %v1343 = vunpack.c.h.b16 %v105
    %v1344 = vunpack.c.l.b16 %v106
    %v1345 = vunpack.c.h.b16 %v106
    %v1346 = vunpack.c.l.b16 %v107
    %v1347 = vunpack.c.h.b16 %v107
    %v1348 = vunpack.c.l.b16 %v108
    %v1349 = vunpack.c.h.b16 %v108
    %v1350 = vunpack.c.l.b16 %v109
    %v1351 = vunpack.c.h.b16 %v109
    %v1352 = vunpack.c.l.b16 %v110
    %v1353 = vunpack.c.h.b16 %v110
    %v1354 = vunpack.c.l.b16 %v111
    %v1355 = vunpack.c.h.b16 %v111
    %v1356 = vunpack.c.l.b16 %v112
    %v1357 = vunpack.c.h.b16 %v112
    %v1358 = vunpack.c.l.b16 %v113
    %v1359 = vunpack.c.h.b16 %v113
    %v1360 = vunpack.c.l.b16 %v114
    %v1361 = vunpack.c.h.b16 %v114
    %v1362 = vunpack.c.l.b16 %v115
    %v1363 = vunpack.c.h.b16 %v115
    %v1364 = vunpack.c.l.b16 %v116
    %v1365 = vunpack.c.h.b16 %v116
    %v1366 = vunpack.c.l.b16 %v117
    %v1367 = vunpack.c.h.b16 %v117
    %v1368 = vunpack.c.l.b16 %v118
    %v1369 = vunpack.c.h.b16 %v118
    %v1370 = vunpack.c.l.b16 %v119
    %v1371 = vunpack.c.h.b16 %v119
    %v1372 = vunpack.c.l.b16 %v120
    %v1373 = vunpack.c.h.b16 %v120
    %v1374 = vunpack.c.l.b16 %v121
    %v1375 = vunpack.c.h.b16 %v121
    %v1376 = vunpack.c.l.b16 %v122
    %v1377 = vunpack.c.h.b16 %v122
    %v1378 = vunpack.c.l.b16 %v123
    %v1379 = vunpack.c.h.b16 %v123
    %v1380 = vpack.c.b16 %v1356, %v1332
    %v1381 = vpack.c.b16 %v1357, %v1333
    %v1382 = vpack.c.b16 %v1358, %v1334
    %v1383 = vpack.c.b16 %v1359, %v1335
    %v1384 = vpack.c.b16 %v1360, %v1336
    %v1385 = vpack.c.b16 %v1361, %v1337
    %v1386 = vpack.c.b16 %v1362, %v1338
    %v1387 = vpack.c.b16 %v1363, %v1339
    %v1388 = vpack.c.b16 %v1364, %v1340
    %v1389 = vpack.c.b16 %v1365, %v1341
    %v1390 = vpack.c.b16 %v1366, %v1342
    %v1391 = vpack.c.b16 %v1367, %v1343
    %v1392 = vpack.c.b16 %v1368, %v1344
    %v1393 = vpack.c.b16 %v1369, %v1345
    %v1394 = vpack.c.b16 %v1370, %v1346
    %v1395 = vpack.c.b16 %v1371, %v1347
    %v1396 = vpack.c.b16 %v1372, %v1348
    %v1397 = vpack.c.b16 %v1373, %v1349
    %v1398 = vpack.c.b16 %v1374, %v1350
    %v1399 = vpack.c.b16 %v1375, %v1351
    %v1400 = vpack.c.b16 %v1376, %v1352
    %v1401 = vpack.c.b16 %v1377, %v1353
    %v1402 = vpack.c.b16 %v1378, %v1354
    %v1403 = vpack.c.b16 %v1379, %v1355
    %v2580 = vunpack.c.l.b16 %v124
    %v2581 = vunpack.c.h.b16 %v124
    %v2582 = vunpack.c.l.b16 %v125
    %v2583 = vunpack.c.h.b16 %v125
    %v2584 = vunpack.c.l.b16 %v126
    %v2585 = vunpack.c.h.b16 %v126
    %v2586 = vunpack.c.l.b16 %v127
    %v2587 = vunpack.c.h.b16 %v127
    %v2588 = vunpack.c.l.b16 %v128
    %v2589 = vunpack.c.h.b16 %v128
    %v2590 = vunpack.c.l.b16 %v129
    %v2591 = vunpack.c.h.b16 %v129
    %v2592 = vunpack.c.l.b16 %v130
    %v2593 = vunpack.c.h.b16 %v130
    %v2594 = vunpack.c.l.b16 %v131
    %v2595 = vunpack.c.h.b16 %v131
    %v2596 = vunpack.c.l.b16 %v132
    %v2597 = vunpack.c.h.b16 %v132
    %v2598 = vunpack.c.l.b16 %v133
    %v2599 = vunpack.c.h.b16 %v133
    %v2600 = vunpack.c.l.b16 %v134
    %v2601 = vunpack.c.h.b16 %v134
    %v2602 = vunpack.c.l.b16 %v135
    %v2603 = vunpack.c.h.b16 %v135
    %v2604 = vunpack.c.l.b16 %v136
    %v2605 = vunpack.c.h.b16 %v136
    %v2606 = vunpack.c.l.b16 %v137
    %v2607 = vunpack.c.h.b16 %v137
    %v2608 = vunpack.c.l.b16 %v138
    %v2609 = vunpack.c.h.b16 %v138
    %v2610 = vunpack.c.l.b16 %v139
    %v2611 = vunpack.c.h.b16 %v139
    %v2612 = vunpack.c.l.b16 %v140
    %v2613 = vunpack.c.h.b16 %v140
    %v2614 = vunpack.c.l.b16 %v141
    %v2615 = vunpack.c.h.b16 %v141
    %v2616 = vunpack.c.l.b16 %v142
    %v2617 = vunpack.c.h.b16 %v142
    %v2618 = vunpack.c.l.b16 %v143
    %v2619 = vunpack.c.h.b16 %v143
    %v2620 = vunpack.c.l.b16 %v144
    %v2621 = vunpack.c.h.b16 %v144
    %v2622 = vunpack.c.l.b16 %v145
    %v2623 = vunpack.c.h.b16 %v145
    %v2624 = vunpack.c.l.b16 %v146
    %v2625 = vunpack.c.h.b16 %v146
    %v2626 = vunpack.c.l.b16 %v147
    %v2627 = vunpack.c.h.b16 %v147
    %v2628 = vunpack.c.l.b16 %v148
    %v2629 = vunpack.c.h.b16 %v148
    %v2630 = vunpack.c.l.b16 %v149
    %v2631 = vunpack.c.h.b16 %v149
    %v2632 = vunpack.c.l.b16 %v150
    %v2633 = vunpack.c.h.b16 %v150
    %v2634 = vunpack.c.l.b16 %v151
    %v2635 = vunpack.c.h.b16 %v151
    %v2636 = vunpack.c.l.b16 %v152
    %v2637 = vunpack.c.h.b16 %v152
    %v2638 = vunpack.c.l.b16 %v153
    %v2639 = vunpack.c.h.b16 %v153
    %v2640 = vunpack.c.l.b16 %v154
    %v2641 = vunpack.c.h.b16 %v154
    %v2642 = vunpack.c.l.b16 %v155
    %v2643 = vunpack.c.h.b16 %v155
    %v2644 = vunpack.c.l.b16 %v156
    %v2645 = vunpack.c.h.b16 %v156
    %v2646 = vunpack.c.l.b16 %v157
    %v2647 = vunpack.c.h.b16 %v157
    %v2648 = vunpack.c.l.b16 %v158
    %v2649 = vunpack.c.h.b16 %v158
    %v2650 = vunpack.c.l.b16 %v159
    %v2651 = vunpack.c.h.b16 %v159
    %v2652 = vunpack.c.l.b16 %v160
    %v2653 = vunpack.c.h.b16 %v160
    %v2654 = vunpack.c.l.b16 %v161
    %v2655 = vunpack.c.h.b16 %v161
    %v2656 = vunpack.c.l.b16 %v162
    %v2657 = vunpack.c.h.b16 %v162
    %v2658 = vunpack.c.l.b16 %v163
    %v2659 = vunpack.c.h.b16 %v163
    %v2660 = vunpack.c.l.b16 %v164
    %v2661 = vunpack.c.h.b16 %v164
    %v2662 = vunpack.c.l.b16 %v165
    %v2663 = vunpack.c.h.b16 %v165
    %v2664 = vunpack.c.l.b16 %v166
    %v2665 = vunpack.c.h.b16 %v166
    %v2666 = vunpack.c.l.b16 %v167
    %v2667 = vunpack.c.h.b16 %v167
    %v2668 = vunpack.c.l.b16 %v168
    %v2669 = vunpack.c.h.b16 %v168
    %v2670 = vunpack.c.l.b16 %v169
    %v2671 = vunpack.c.h.b16 %v169
    %v2672 = vunpack.c.l.b16 %v170
    %v2673 = vunpack.c.h.b16 %v170
    %v2674 = vunpack.c.l.b16 %v171
    %v2675 = vunpack.c.h.b16 %v171
    %v2676 = vunpack.c.l.b16 %v172
    %v2677 = vunpack.c.h.b16 %v172
    %v2678 = vunpack.c.l.b16 %v173
    %v2679 = vunpack.c.h.b16 %v173
    %v2680 = vunpack.c.l.b16 %v174
    %v2681 = vunpack.c.h.b16 %v174
    %v2682 = vunpack.c.l.b16 %v175
    %v2683 = vunpack.c.h.b16 %v175
    %v2684 = vunpack.c.l.b16 %v176
    %v2685 = vunpack.c.h.b16 %v176
    %v2686 = vunpack.c.l.b16 %v177
    %v2687 = vunpack.c.h.b16 %v177
    %v2688 = vunpack.c.l.b16 %v178
    %v2689 = vunpack.c.h.b16 %v178
    %v2690 = vunpack.c.l.b16 %v179
    %v2691 = vunpack.c.h.b16 %v179
    %v2692 = vunpack.c.l.b16 %v180
    %v2693 = vunpack.c.h.b16 %v180
    %v2694 = vunpack.c.l.b16 %v181
    %v2695 = vunpack.c.h.b16 %v181
    %v2696 = vunpack.c.l.b16 %v182
    %v2697 = vunpack.c.h.b16 %v182
    %v2698 = vunpack.c.l.b16 %v183
    %v2699 = vunpack.c.h.b16 %v183
    %v2700 = vunpack.c.l.b16 %v184
    %v2701 = vunpack.c.h.b16 %v184
    %v2702 = vunpack.c.l.b16 %v185
    %v2703 = vunpack.c.h.b16 %v185
    %v2704 = vunpack.c.l.b16 %v186
    %v2705 = vunpack.c.h.b16 %v186
    %v2706 = vunpack.c.l.b16 %v187
    %v2707 = vunpack.c.h.b16 %v187
    %v2708 = vunpack.c.l.b16 %v188
    %v2709 = vunpack.c.h.b16 %v188
    %v2710 = vunpack.c.l.b16 %v189
    %v2711 = vunpack.c.h.b16 %v189
    %v2712 = vunpack.c.l.b16 %v190
    %v2713 = vunpack.c.h.b16 %v190
    %v2714 = vunpack.c.l.b16 %v191
    %v2715 = vunpack.c.h.b16 %v191
    %v2716 = vunpack.c.l.b16 %v192
    %v2717 = vunpack.c.h.b16 %v192
    %v2718 = vunpack.c.l.b16 %v193
    %v2719 = vunpack.c.h.b16 %v193
    %v2720 = vunpack.c.l.b16 %v194
    %v2721 = vunpack.c.h.b16 %v194
    %v2722 = vunpack.c.l.b16 %v195
    %v2723 = vunpack.c.h.b16 %v195
    %v2724 = vunpack.c.l.b16 %v196
    %v2725 = vunpack.c.h.b16 %v196
    %v2726 = vunpack.c.l.b16 %v197
    %v2727 = vunpack.c.h.b16 %v197
    %v2728 = vunpack.c.l.b16 %v198
    %v2729 = vunpack.c.h.b16 %v198
    %v2730 = vunpack.c.l.b16 %v199
    %v2731 = vunpack.c.h.b16 %v199
    %v2732 = vunpack.c.l.b16 %v200
    %v2733 = vunpack.c.h.b16 %v200
    %v2734 = vunpack.c.l.b16 %v201
    %v2735 = vunpack.c.h.b16 %v201
    %v2736 = vunpack.c.l.b16 %v202
    %v2737 = vunpack.c.h.b16 %v202
    %v2738 = vunpack.c.l.b16 %v203
    %v2739 = vunpack.c.h.b16 %v203
    %v2740 = vunpack.c.l.b16 %v204
    %v2741 = vunpack.c.h.b16 %v204
    %v2742 = vunpack.c.l.b16 %v205
    %v2743 = vunpack.c.h.b16 %v205
    %v2744 = vunpack.c.l.b16 %v206
    %v2745 = vunpack.c.h.b16 %v206
    %v2746 = vunpack.c.l.b16 %v207
    %v2747 = vunpack.c.h.b16 %v207
    %v2748 = vunpack.c.l.b16 %v208
    %v2749 = vunpack.c.h.b16 %v208
    %v2750 = vunpack.c.l.b16 %v209
    %v2751 = vunpack.c.h.b16 %v209
    %v2752 = vunpack.c.l.b16 %v210
    %v2753 = vunpack.c.h.b16 %v210
    %v2754 = vunpack.c.l.b16 %v211
    %v2755 = vunpack.c.h.b16 %v211
    %v2756 = vunpack.c.l.b16 %v212
    %v2757 = vunpack.c.h.b16 %v212
    %v2758 = vunpack.c.l.b16 %v213
    %v2759 = vunpack.c.h.b16 %v213
    %v2760 = vunpack.c.l.b16 %v214
    %v2761 = vunpack.c.h.b16 %v214
    %v2762 = vunpack.c.l.b16 %v215
    %v2763 = vunpack.c.h.b16 %v215
    %v2764 = vunpack.c.l.b16 %v216
    %v2765 = vunpack.c.h.b16 %v216
    %v2766 = vunpack.c.l.b16 %v217
    %v2767 = vunpack.c.h.b16 %v217
    %v2768 = vunpack.c.l.b16 %v218
    %v2769 = vunpack.c.h.b16 %v218
    %v2770 = vunpack.c.l.b16 %v219
    %v2771 = vunpack.c.h.b16 %v219
    %v2772 = vunpack.c.l.b16 %v220
    %v2773 = vunpack.c.h.b16 %v220
    %v2774 = vunpack.c.l.b16 %v221
    %v2775 = vunpack.c.h.b16 %v221
    %v2776 = vunpack.c.l.b16 %v222
    %v2777 = vunpack.c.h.b16 %v222
    %v2778 = vunpack.c.l.b16 %v223
    %v2779 = vunpack.c.h.b16 %v223
    %v2780 = vunpack.c.l.b16 %v224
    %v2781 = vunpack.c.h.b16 %v224
    %v2782 = vunpack.c.l.b16 %v225
    %v2783 = vunpack.c.h.b16 %v225
    %v2784 = vunpack.c.l.b16 %v226
    %v2785 = vunpack.c.h.b16 %v226
    %v2786 = vunpack.c.l.b16 %v227
    %v2787 = vunpack.c.h.b16 %v227
    %v2788 = vunpack.c.l.b16 %v228
    %v2789 = vunpack.c.h.b16 %v228
    %v2790 = vunpack.c.l.b16 %v229
    %v2791 = vunpack.c.h.b16 %v229
    %v2792 = vunpack.c.l.b16 %v230
    %v2793 = vunpack.c.h.b16 %v230
    %v2794 = vunpack.c.l.b16 %v231
    %v2795 = vunpack.c.h.b16 %v231
    %v2796 = vunpack.c.l.b16 %v232
    %v2797 = vunpack.c.h.b16 %v232
    %v2798 = vunpack.c.l.b16 %v233
    %v2799 = vunpack.c.h.b16 %v233
    %v2800 = vunpack.c.l.b16 %v234
    %v2801 = vunpack.c.h.b16 %v234
    %v2802 = vunpack.c.l.b16 %v235
    %v2803 = vunpack.c.h.b16 %v235
    %v2804 = vunpack.c.l.b16 %v236
    %v2805 = vunpack.c.h.b16 %v236
    %v2806 = vunpack.c.l.b16 %v237
    %v2807 = vunpack.c.h.b16 %v237
    %v2808 = vunpack.c.l.b16 %v238
    %v2809 = vunpack.c.h.b16 %v238
    %v2810 = vunpack.c.l.b16 %v239
    %v2811 = vunpack.c.h.b16 %v239
    %v2812 = vunpack.c.l.b16 %v240
    %v2813 = vunpack.c.h.b16 %v240
    %v2814 = vunpack.c.l.b16 %v241
    %v2815 = vunpack.c.h.b16 %v241
    %v2816 = vunpack.c.l.b16 %v242
    %v2817 = vunpack.c.h.b16 %v242
    %v2818 = vunpack.c.l.b16 %v243
    %v2819 = vunpack.c.h.b16 %v243
    %v2820 = vunpack.c.l.b16 %v244
    %v2821 = vunpack.c.h.b16 %v244
    %v2822 = vunpack.c.l.b16 %v245
    %v2823 = vunpack.c.h.b16 %v245
    %v2824 = vunpack.c.l.b16 %v246
    %v2825 = vunpack.c.h.b16 %v246
    %v2826 = vunpack.c.l.b16 %v247
    %v2827 = vunpack.c.h.b16 %v247
    %v2828 = vunpack.c.l.b16 %v248
    %v2829 = vunpack.c.h.b16 %v248
    %v2830 = vunpack.c.l.b16 %v249
    %v2831 = vunpack.c.h.b16 %v249
    %v2832 = vunpack.c.l.b16 %v250
    %v2833 = vunpack.c.h.b16 %v250
    %v2834 = vunpack.c.l.b16 %v251
    %v2835 = vunpack.c.h.b16 %v251
    %v2836 = vunpack.c.l.b16 %v252
    %v2837 = vunpack.c.h.b16 %v252
    %v2838 = vunpack.c.l.b16 %v253
    %v2839 = vunpack.c.h.b16 %v253
    %v2840 = vunpack.c.l.b16 %v254
    %v2841 = vunpack.c.h.b16 %v254
    %v2842 = vunpack.c.l.b16 %v255
    %v2843 = vunpack.c.h.b16 %v255
    %v2844 = vunpack.c.l.b16 %v256
    %v2845 = vunpack.c.h.b16 %v256
    %v2846 = vunpack.c.l.b16 %v257
    %v2847 = vunpack.c.h.b16 %v257
    %v2848 = vunpack.c.l.b16 %v258
    %v2849 = vunpack.c.h.b16 %v258
    %v2850 = vunpack.c.l.b16 %v259
    %v2851 = vunpack.c.h.b16 %v259
    %v2852 = vunpack.c.l.b16 %v260
    %v2853 = vunpack.c.h.b16 %v260
    %v2854 = vunpack.c.l.b16 %v261
    %v2855 = vunpack.c.h.b16 %v261
    %v2856 = vunpack.c.l.b16 %v262
    %v2857 = vunpack.c.h.b16 %v262
    %v2858 = vunpack.c.l.b16 %v263
    %v2859 = vunpack.c.h.b16 %v263
    %v2860 = vunpack.c.l.b16 %v264
    %v2861 = vunpack.c.h.b16 %v264
    %v2862 = vunpack.c.l.b16 %v265
    %v2863 = vunpack.c.h.b16 %v265
    %v2864 = vunpack.c.l.b16 %v266
    %v2865 = vunpack.c.h.b16 %v266
    %v2866 = vunpack.c.l.b16 %v267
    %v2867 = vunpack.c.h.b16 %v267
    %v2868 = vunpack.c.l.b16 %v268
    %v2869 = vunpack.c.h.b16 %v268
    %v2870 = vunpack.c.l.b16 %v269
    %v2871 = vunpack.c.h.b16 %v269
    %v2872 = vunpack.c.l.b16 %v270
    %v2873 = vunpack.c.h.b16 %v270
    %v2874 = vunpack.c.l.b16 %v271
    %v2875 = vunpack.c.h.b16 %v271
    %v2876 = vunpack.c.l.b16 %v272
    %v2877 = vunpack.c.h.b16 %v272
    %v2878 = vunpack.c.l.b16 %v273
    %v2879 = vunpack.c.h.b16 %v273
    %v2880 = vunpack.c.l.b16 %v274
    %v2881 = vunpack.c.h.b16 %v274
    %v2882 = vunpack.c.l.b16 %v275
    %v2883 = vunpack.c.h.b16 %v275
    %v2884 = vunpack.c.l.b16 %v276
    %v2885 = vunpack.c.h.b16 %v276
    %v2886 = vunpack.c.l.b16 %v277
    %v2887 = vunpack.c.h.b16 %v277
    %v2888 = vunpack.c.l.b16 %v278
    %v2889 = vunpack.c.h.b16 %v278
    %v2890 = vunpack.c.l.b16 %v279
    %v2891 = vunpack.c.h.b16 %v279
    %v2892 = vunpack.c.l.b16 %v280
    %v2893 = vunpack.c.h.b16 %v280
    %v2894 = vunpack.c.l.b16 %v281
    %v2895 = vunpack.c.h.b16 %v281
    %v2896 = vunpack.c.l.b16 %v282
    %v2897 = vunpack.c.h.b16 %v282
    %v2898 = vunpack.c.l.b16 %v283
    %v2899 = vunpack.c.h.b16 %v283
    %v2900 = vunpack.c.l.b16 %v284
    %v2901 = vunpack.c.h.b16 %v284
    %v2902 = vunpack.c.l.b16 %v285
    %v2903 = vunpack.c.h.b16 %v285
    %v2904 = vunpack.c.l.b16 %v286
    %v2905 = vunpack.c.h.b16 %v286
    %v2906 = vunpack.c.l.b16 %v287
    %v2907 = vunpack.c.h.b16 %v287
    %v2908 = vunpack.c.l.b16 %v288
    %v2909 = vunpack.c.h.b16 %v288
    %v2910 = vunpack.c.l.b16 %v289
    %v2911 = vunpack.c.h.b16 %v289
    %v2912 = vunpack.c.l.b16 %v290
    %v2913 = vunpack.c.h.b16 %v290
    %v2914 = vunpack.c.l.b16 %v291
    %v2915 = vunpack.c.h.b16 %v291
    %v2916 = vunpack.c.l.b16 %v292
    %v2917 = vunpack.c.h.b16 %v292
    %v2918 = vunpack.c.l.b16 %v293
    %v2919 = vunpack.c.h.b16 %v293
    %v2920 = vunpack.c.l.b16 %v294
    %v2921 = vunpack.c.h.b16 %v294
    %v2922 = vunpack.c.l.b16 %v295
    %v2923 = vunpack.c.h.b16 %v295
    %v2924 = vunpack.c.l.b16 %v296
    %v2925 = vunpack.c.h.b16 %v296
    %v2926 = vunpack.c.l.b16 %v297
    %v2927 = vunpack.c.h.b16 %v297
    %v2928 = vunpack.c.l.b16 %v298
    %v2929 = vunpack.c.h.b16 %v298
    %v2930 = vunpack.c.l.b16 %v299
    %v2931 = vunpack.c.h.b16 %v299
    %v2932 = vunpack.c.l.b16 %v300
    %v2933 = vunpack.c.h.b16 %v300
    %v2934 = vunpack.c.l.b16 %v301
    %v2935 = vunpack.c.h.b16 %v301
    %v2936 = vunpack.c.l.b16 %v302
    %v2937 = vunpack.c.h.b16 %v302
    %v2938 = vunpack.c.l.b16 %v303
    %v2939 = vunpack.c.h.b16 %v303
    %v2940 = vunpack.c.l.b16 %v304
    %v2941 = vunpack.c.h.b16 %v304
    %v2942 = vunpack.c.l.b16 %v305
    %v2943 = vunpack.c.h.b16 %v305
    %v2944 = vunpack.c.l.b16 %v306
    %v2945 = vunpack.c.h.b16 %v306
    %v2946 = vunpack.c.l.b16 %v307
    %v2947 = vunpack.c.h.b16 %v307
    %v2948 = vunpack.c.l.b16 %v308
    %v2949 = vunpack.c.h.b16 %v308
    %v2950 = vunpack.c.l.b16 %v309
    %v2951 = vunpack.c.h.b16 %v309
    %v2952 = vunpack.c.l.b16 %v310
    %v2953 = vunpack.c.h.b16 %v310
    %v2954 = vunpack.c.l.b16 %v311
    %v2955 = vunpack.c.h.b16 %v311
    %v2956 = vunpack.c.l.b16 %v312
    %v2957 = vunpack.c.h.b16 %v312
    %v2958 = vunpack.c.l.b16 %v313
    %v2959 = vunpack.c.h.b16 %v313
    %v2960 = vunpack.c.l.b16 %v314
    %v2961 = vunpack.c.h.b16 %v314
    %v2962 = vunpack.c.l.b16 %v315
    %v2963 = vunpack.c.h.b16 %v315
    %v2964 = vunpack.c.l.b16 %v316
    %v2965 = vunpack.c.h.b16 %v316
    %v2966 = vunpack.c.l.b16 %v317
    %v2967 = vunpack.c.h.b16 %v317
    %v2968 = vunpack.c.l.b16 %v318
    %v2969 = vunpack.c.h.b16 %v318
    %v2970 = vunpack.c.l.b16 %v319
    %v2971 = vunpack.c.h.b16 %v319
    %v2972 = vunpack.c.l.b16 %v320
    %v2973 = vunpack.c.h.b16 %v320
    %v2974 = vunpack.c.l.b16 %v321
    %v2975 = vunpack.c.h.b16 %v321
    %v2976 = vunpack.c.l.b16 %v322
    %v2977 = vunpack.c.h.b16 %v322
    %v2978 = vunpack.c.l.b16 %v323
    %v2979 = vunpack.c.h.b16 %v323
    %v2980 = vunpack.c.l.b16 %v324
    %v2981 = vunpack.c.h.b16 %v324
    %v2982 = vunpack.c.l.b16 %v325
    %v2983 = vunpack.c.h.b16 %v325
    %v2984 = vunpack.c.l.b16 %v326
    %v2985 = vunpack.c.h.b16 %v326
    %v2986 = vunpack.c.l.b16 %v327
    %v2987 = vunpack.c.h.b16 %v327
    %v2988 = vunpack.c.l.b16 %v328
    %v2989 = vunpack.c.h.b16 %v328
    %v2990 = vunpack.c.l.b16 %v329
    %v2991 = vunpack.c.h.b16 %v329
    %v2992 = vunpack.c.l.b16 %v330
    %v2993 = vunpack.c.h.b16 %v330
    %v2994 = vunpack.c.l.b16 %v331
    %v2995 = vunpack.c.h.b16 %v331
    %v2996 = vunpack.c.l.b16 %v332
    %v2997 = vunpack.c.h.b16 %v332
    %v2998 = vunpack.c.l.b16 %v333
    %v2999 = vunpack.c.h.b16 %v333
    %v3000 = vunpack.c.l.b16 %v334
    %v3001 = vunpack.c.h.b16 %v334
    %v3002 = vunpack.c.l.b16 %v335
    %v3003 = vunpack.c.h.b16 %v335
    %v3004 = vunpack.c.l.b16 %v336
    %v3005 = vunpack.c.h.b16 %v336
    %v3006 = vunpack.c.l.b16 %v337
    %v3007 = vunpack.c.h.b16 %v337
    %v3008 = vunpack.c.l.b16 %v338
    %v3009 = vunpack.c.h.b16 %v338
    %v3010 = vunpack.c.l.b16 %v339
    %v3011 = vunpack.c.h.b16 %v339
    %v3012 = vunpack.c.l.b16 %v340
    %v3013 = vunpack.c.h.b16 %v340
    %v3014 = vunpack.c.l.b16 %v341
    %v3015 = vunpack.c.h.b16 %v341
    %v3016 = vunpack.c.l.b16 %v342
    %v3017 = vunpack.c.h.b16 %v342
    %v3018 = vunpack.c.l.b16 %v343
    %v3019 = vunpack.c.h.b16 %v343
    %v3020 = vunpack.c.l.b16 %v344
    %v3021 = vunpack.c.h.b16 %v344
    %v3022 = vunpack.c.l.b16 %v345
    %v3023 = vunpack.c.h.b16 %v345
    %v3024 = vunpack.c.l.b16 %v346
    %v3025 = vunpack.c.h.b16 %v346
    %v3026 = vunpack.c.l.b16 %v347
    %v3027 = vunpack.c.h.b16 %v347
    %v3028 = vunpack.c.l.b16 %v348
    %v3029 = vunpack.c.h.b16 %v348
    %v3030 = vunpack.c.l.b16 %v349
    %v3031 = vunpack.c.h.b16 %v349
    %v3032 = vunpack.c.l.b16 %v350
    %v3033 = vunpack.c.h.b16 %v350
    %v3034 = vunpack.c.l.b16 %v351
    %v3035 = vunpack.c.h.b16 %v351
    %v3036 = vunpack.c.l.b16 %v352
    %v3037 = vunpack.c.h.b16 %v352
    %v3038 = vunpack.c.l.b16 %v353
    %v3039 = vunpack.c.h.b16 %v353
    %v3040 = vunpack.c.l.b16 %v354
    %v3041 = vunpack.c.h.b16 %v354
    %v3042 = vunpack.c.l.b16 %v355
    %v3043 = vunpack.c.h.b16 %v355
    %v3044 = vunpack.c.l.b16 %v356
    %v3045 = vunpack.c.h.b16 %v356
    %v3046 = vunpack.c.l.b16 %v357
    %v3047 = vunpack.c.h.b16 %v357
    %v3048 = vunpack.c.l.b16 %v358
    %v3049 = vunpack.c.h.b16 %v358
    %v3050 = vunpack.c.l.b16 %v359
    %v3051 = vunpack.c.h.b16 %v359
    %v3052 = vunpack.c.l.b16 %v360
    %v3053 = vunpack.c.h.b16 %v360
    %v3054 = vunpack.c.l.b16 %v361
    %v3055 = vunpack.c.h.b16 %v361
    %v3056 = vunpack.c.l.b16 %v362
    %v3057 = vunpack.c.h.b16 %v362
    %v3058 = vunpack.c.l.b16 %v363
    %v3059 = vunpack.c.h.b16 %v363
    %v3060 = vunpack.c.l.b16 %v364
    %v3061 = vunpack.c.h.b16 %v364
    %v3062 = vunpack.c.l.b16 %v365
    %v3063 = vunpack.c.h.b16 %v365
    %v3064 = vunpack.c.l.b16 %v366
    %v3065 = vunpack.c.h.b16 %v366
    %v3066 = vunpack.c.l.b16 %v367
    %v3067 = vunpack.c.h.b16 %v367
    %v3068 = vunpack.c.l.b16 %v368
    %v3069 = vunpack.c.h.b16 %v368
    %v3070 = vunpack.c.l.b16 %v369
    %v3071 = vunpack.c.h.b16 %v369
    %v3072 = vunpack.c.l.b16 %v370
    %v3073 = vunpack.c.h.b16 %v370
    %v3074 = vunpack.c.l.b16 %v371
    %v3075 = vunpack.c.h.b16 %v371
    %v3076 = vunpack.c.l.b16 %v372
    %v3077 = vunpack.c.h.b16 %v372
    %v3078 = vunpack.c.l.b16 %v373
    %v3079 = vunpack.c.h.b16 %v373
    %v3080 = vunpack.c.l.b16 %v374
    %v3081 = vunpack.c.h.b16 %v374
    %v3082 = vunpack.c.l.b16 %v375
    %v3083 = vunpack.c.h.b16 %v375
    %v3084 = vunpack.c.l.b16 %v376
    %v3085 = vunpack.c.h.b16 %v376
    %v3086 = vunpack.c.l.b16 %v377
    %v3087 = vunpack.c.h.b16 %v377
    %v3088 = vunpack.c.l.b16 %v378
    %v3089 = vunpack.c.h.b16 %v378
    %v3090 = vunpack.c.l.b16 %v379
    %v3091 = vunpack.c.h.b16 %v379
    %v3092 = vunpack.c.l.b16 %v380
    %v3093 = vunpack.c.h.b16 %v380
    %v3094 = vunpack.c.l.b16 %v381
    %v3095 = vunpack.c.h.b16 %v381
    %v3096 = vunpack.c.l.b16 %v382
    %v3097 = vunpack.c.h.b16 %v382
    %v3098 = vunpack.c.l.b16 %v383
    %v3099 = vunpack.c.h.b16 %v383
    %v3100 = vunpack.c.l.b16 %v384
    %v3101 = vunpack.c.h.b16 %v384
    %v3102 = vunpack.c.l.b16 %v385
    %v3103 = vunpack.c.h.b16 %v385
    %v3104 = vunpack.c.l.b16 %v386
    %v3105 = vunpack.c.h.b16 %v386
    %v3106 = vunpack.c.l.b16 %v387
    %v3107 = vunpack.c.h.b16 %v387
    %v3108 = vunpack.c.l.b16 %v388
    %v3109 = vunpack.c.h.b16 %v388
    %v3110 = vunpack.c.l.b16 %v389
    %v3111 = vunpack.c.h.b16 %v389
    %v3112 = vunpack.c.l.b16 %v390
    %v3113 = vunpack.c.h.b16 %v390
    %v3114 = vunpack.c.l.b16 %v391
    %v3115 = vunpack.c.h.b16 %v391
    %v3116 = vunpack.c.l.b16 %v392
    %v3117 = vunpack.c.h.b16 %v392
    %v3118 = vunpack.c.l.b16 %v393
    %v3119 = vunpack.c.h.b16 %v393
    %v3120 = vunpack.c.l.b16 %v394
    %v3121 = vunpack.c.h.b16 %v394
    %v3122 = vunpack.c.l.b16 %v395
    %v3123 = vunpack.c.h.b16 %v395
    %v3124 = vunpack.c.l.b16 %v396
    %v3125 = vunpack.c.h.b16 %v396
    %v3126 = vunpack.c.l.b16 %v397
    %v3127 = vunpack.c.h.b16 %v397
    %v3128 = vunpack.c.l.b16 %v398
    %v3129 = vunpack.c.h.b16 %v398
    %v3130 = vunpack.c.l.b16 %v399
    %v3131 = vunpack.c.h.b16 %v399
    %v3132 = vunpack.c.l.b16 %v400
    %v3133 = vunpack.c.h.b16 %v400
    %v3134 = vunpack.c.l.b16 %v401
    %v3135 = vunpack.c.h.b16 %v401
    %v3136 = vunpack.c.l.b16 %v402
    %v3137 = vunpack.c.h.b16 %v402
    %v3138 = vunpack.c.l.b16 %v403
    %v3139 = vunpack.c.h.b16 %v403
    %v3140 = vunpack.c.l.b16 %v404
    %v3141 = vunpack.c.h.b16 %v404
    %v3142 = vunpack.c.l.b16 %v405
    %v3143 = vunpack.c.h.b16 %v405
    %v3144 = vunpack.c.l.b16 %v406
    %v3145 = vunpack.c.h.b16 %v406
    %v3146 = vunpack.c.l.b16 %v407
    %v3147 = vunpack.c.h.b16 %v407
    %v3148 = vunpack.c.l.b16 %v408
    %v3149 = vunpack.c.h.b16 %v408
    %v3150 = vunpack.c.l.b16 %v409
    %v3151 = vunpack.c.h.b16 %v409
    %v3152 = vunpack.c.l.b16 %v410
    %v3153 = vunpack.c.h.b16 %v410
    %v3154 = vunpack.c.l.b16 %v411
    %v3155 = vunpack.c.h.b16 %v411
    %v3156 = vunpack.c.l.b16 %v412
    %v3157 = vunpack.c.h.b16 %v412
    %v3158 = vunpack.c.l.b16 %v413
    %v3159 = vunpack.c.h.b16 %v413
    %v3160 = vunpack.c.l.b16 %v414
    %v3161 = vunpack.c.h.b16 %v414
    %v3162 = vunpack.c.l.b16 %v415
    %v3163 = vunpack.c.h.b16 %v415
    %v3164 = vunpack.c.l.b16 %v416
    %v3165 = vunpack.c.h.b16 %v416
    %v3166 = vunpack.c.l.b16 %v417
    %v3167 = vunpack.c.h.b16 %v417
    %v3168 = vunpack.c.l.b16 %v418
    %v3169 = vunpack.c.h.b16 %v418
    %v3170 = vunpack.c.l.b16 %v419
    %v3171 = vunpack.c.h.b16 %v419
    %v3172 = vunpack.c.l.b16 %v420
    %v3173 = vunpack.c.h.b16 %v420
    %v3174 = vunpack.c.l.b16 %v421
    %v3175 = vunpack.c.h.b16 %v421
    %v3176 = vunpack.c.l.b16 %v422
    %v3177 = vunpack.c.h.b16 %v422
    %v3178 = vunpack.c.l.b16 %v423
    %v3179 = vunpack.c.h.b16 %v423
    %v3180 = vunpack.c.l.b16 %v424
    %v3181 = vunpack.c.h.b16 %v424
    %v3182 = vunpack.c.l.b16 %v425
    %v3183 = vunpack.c.h.b16 %v425
    %v3184 = vunpack.c.l.b16 %v426
    %v3185 = vunpack.c.h.b16 %v426
    %v3186 = vunpack.c.l.b16 %v427
    %v3187 = vunpack.c.h.b16 %v427
    %v3188 = vunpack.c.l.b16 %v428
    %v3189 = vunpack.c.h.b16 %v428
    %v3190 = vunpack.c.l.b16 %v429
    %v3191 = vunpack.c.h.b16 %v429
    %v3192 = vunpack.c.l.b16 %v430
    %v3193 = vunpack.c.h.b16 %v430
    %v3194 = vunpack.c.l.b16 %v431
    %v3195 = vunpack.c.h.b16 %v431
    %v3196 = vunpack.c.l.b16 %v432
    %v3197 = vunpack.c.h.b16 %v432
    %v3198 = vunpack.c.l.b16 %v433
    %v3199 = vunpack.c.h.b16 %v433
    %v3200 = vunpack.c.l.b16 %v434
    %v3201 = vunpack.c.h.b16 %v434
    %v3202 = vunpack.c.l.b16 %v435
    %v3203 = vunpack.c.h.b16 %v435
    %v3204 = vunpack.c.l.b16 %v436
    %v3205 = vunpack.c.h.b16 %v436
    %v3206 = vunpack.c.l.b16 %v437
    %v3207 = vunpack.c.h.b16 %v437
    %v3208 = vunpack.c.l.b16 %v438
    %v3209 = vunpack.c.h.b16 %v438
    %v3210 = vunpack.c.l.b16 %v439
    %v3211 = vunpack.c.h.b16 %v439
    %v3212 = vunpack.c.l.b16 %v440
    %v3213 = vunpack.c.h.b16 %v440
    %v3214 = vunpack.c.l.b16 %v441
    %v3215 = vunpack.c.h.b16 %v441
    %v3216 = vunpack.c.l.b16 %v442
    %v3217 = vunpack.c.h.b16 %v442
    %v3218 = vunpack.c.l.b16 %v443
    %v3219 = vunpack.c.h.b16 %v443
    %v3220 = vunpack.c.l.b16 %v444
    %v3221 = vunpack.c.h.b16 %v444
    %v3222 = vunpack.c.l.b16 %v445
    %v3223 = vunpack.c.h.b16 %v445
    %v3224 = vunpack.c.l.b16 %v446
    %v3225 = vunpack.c.h.b16 %v446
    %v3226 = vunpack.c.l.b16 %v447
    %v3227 = vunpack.c.h.b16 %v447
    %v3228 = vunpack.c.l.b16 %v448
    %v3229 = vunpack.c.h.b16 %v448
    %v3230 = vunpack.c.l.b16 %v449
    %v3231 = vunpack.c.h.b16 %v449
    %v3232 = vunpack.c.l.b16 %v450
    %v3233 = vunpack.c.h.b16 %v450
    %v3234 = vunpack.c.l.b16 %v451
    %v3235 = vunpack.c.h.b16 %v451
    %v3236 = vunpack.c.l.b16 %v452
    %v3237 = vunpack.c.h.b16 %v452
    %v3238 = vunpack.c.l.b16 %v453
    %v3239 = vunpack.c.h.b16 %v453
    %v3240 = vunpack.c.l.b16 %v454
    %v3241 = vunpack.c.h.b16 %v454
    %v3242 = vunpack.c.l.b16 %v455
    %v3243 = vunpack.c.h.b16 %v455
    %v3244 = vunpack.c.l.b16 %v456
    %v3245 = vunpack.c.h.b16 %v456
    %v3246 = vunpack.c.l.b16 %v457
    %v3247 = vunpack.c.h.b16 %v457
    %v3248 = vunpack.c.l.b16 %v458
    %v3249 = vunpack.c.h.b16 %v458
    %v3250 = vunpack.c.l.b16 %v459
    %v3251 = vunpack.c.h.b16 %v459
    %v3252 = vunpack.c.l.b16 %v460
    %v3253 = vunpack.c.h.b16 %v460
    %v3254 = vunpack.c.l.b16 %v461
    %v3255 = vunpack.c.h.b16 %v461
    %v3256 = vunpack.c.l.b16 %v462
    %v3257 = vunpack.c.h.b16 %v462
    %v3258 = vunpack.c.l.b16 %v463
    %v3259 = vunpack.c.h.b16 %v463
    %v3260 = vunpack.c.l.b16 %v464
    %v3261 = vunpack.c.h.b16 %v464
    %v3262 = vunpack.c.l.b16 %v465
    %v3263 = vunpack.c.h.b16 %v465
    %v3264 = vunpack.c.l.b16 %v466
    %v3265 = vunpack.c.h.b16 %v466
    %v3266 = vunpack.c.l.b16 %v467
    %v3267 = vunpack.c.h.b16 %v467
    %v3268 = vunpack.c.l.b16 %v468
    %v3269 = vunpack.c.h.b16 %v468
    %v3270 = vunpack.c.l.b16 %v469
    %v3271 = vunpack.c.h.b16 %v469
    %v3272 = vunpack.c.l.b16 %v470
    %v3273 = vunpack.c.h.b16 %v470
    %v3274 = vunpack.c.l.b16 %v471
    %v3275 = vunpack.c.h.b16 %v471
    %v3276 = vunpack.c.l.b16 %v472
    %v3277 = vunpack.c.h.b16 %v472
    %v3278 = vunpack.c.l.b16 %v473
    %v3279 = vunpack.c.h.b16 %v473
    %v3280 = vunpack.c.l.b16 %v474
    %v3281 = vunpack.c.h.b16 %v474
    %v3282 = vunpack.c.l.b16 %v475
    %v3283 = vunpack.c.h.b16 %v475
    %v3284 = vunpack.c.l.b16 %v476
    %v3285 = vunpack.c.h.b16 %v476
    %v3286 = vunpack.c.l.b16 %v477
    %v3287 = vunpack.c.h.b16 %v477
    %v3288 = vunpack.c.l.b16 %v478
    %v3289 = vunpack.c.h.b16 %v478
    %v3290 = vunpack.c.l.b16 %v479
    %v3291 = vunpack.c.h.b16 %v479
    %v3292 = vunpack.c.l.b16 %v480
    %v3293 = vunpack.c.h.b16 %v480
    %v3294 = vunpack.c.l.b16 %v481
    %v3295 = vunpack.c.h.b16 %v481
    %v3296 = vunpack.c.l.b16 %v482
    %v3297 = vunpack.c.h.b16 %v482
    %v3298 = vunpack.c.l.b16 %v483
    %v3299 = vunpack.c.h.b16 %v483
    %v3300 = vunpack.c.l.b16 %v484
    %v3301 = vunpack.c.h.b16 %v484
    %v3302 = vunpack.c.l.b16 %v485
    %v3303 = vunpack.c.h.b16 %v485
    %v3304 = vunpack.c.l.b16 %v486
    %v3305 = vunpack.c.h.b16 %v486
    %v3306 = vunpack.c.l.b16 %v487
    %v3307 = vunpack.c.h.b16 %v487
    %v3308 = vunpack.c.l.b16 %v488
    %v3309 = vunpack.c.h.b16 %v488
    %v3310 = vunpack.c.l.b16 %v489
    %v3311 = vunpack.c.h.b16 %v489
    %v3312 = vunpack.c.l.b16 %v490
    %v3313 = vunpack.c.h.b16 %v490
    %v3314 = vunpack.c.l.b16 %v491
    %v3315 = vunpack.c.h.b16 %v491
    %v3316 = vunpack.c.l.b16 %v492
    %v3317 = vunpack.c.h.b16 %v492
    %v3318 = vunpack.c.l.b16 %v493
    %v3319 = vunpack.c.h.b16 %v493
    %v3320 = vunpack.c.l.b16 %v494
    %v3321 = vunpack.c.h.b16 %v494
    %v3322 = vunpack.c.l.b16 %v495
    %v3323 = vunpack.c.h.b16 %v495
    %v3324 = vunpack.c.l.b16 %v496
    %v3325 = vunpack.c.h.b16 %v496
    %v3326 = vunpack.c.l.b16 %v497
    %v3327 = vunpack.c.h.b16 %v497
    %v3328 = vunpack.c.l.b16 %v498
    %v3329 = vunpack.c.h.b16 %v498
    %v3330 = vunpack.c.l.b16 %v499
    %v3331 = vunpack.c.h.b16 %v499
    %v3332 = vunpack.c.l.b16 %v500
    %v3333 = vunpack.c.h.b16 %v500
    %v3334 = vunpack.c.l.b16 %v501
    %v3335 = vunpack.c.h.b16 %v501
    %v3336 = vunpack.c.l.b16 %v502
    %v3337 = vunpack.c.h.b16 %v502
    %v3338 = vunpack.c.l.b16 %v503
    %v3339 = vunpack.c.h.b16 %v503
    %v3340 = vunpack.c.l.b16 %v504
    %v3341 = vunpack.c.h.b16 %v504
    %v3342 = vunpack.c.l.b16 %v505
    %v3343 = vunpack.c.h.b16 %v505
    %v3344 = vunpack.c.l.b16 %v506
    %v3345 = vunpack.c.h.b16 %v506
    %v3346 = vunpack.c.l.b16 %v507
    %v3347 = vunpack.c.h.b16 %v507
    %v3348 = vunpack.c.l.b16 %v508
    %v3349 = vunpack.c.h.b16 %v508
    %v3350 = vunpack.c.l.b16 %v509
    %v3351 = vunpack.c.h.b16 %v509
    %v3352 = vunpack.c.l.b16 %v510
    %v3353 = vunpack.c.h.b16 %v510
    %v3354 = vunpack.c.l.b16 %v511
    %v3355 = vunpack.c.h.b16 %v511
    %v3356 = vunpack.c.l.b16 %v512
    %v3357 = vunpack.c.h.b16 %v512
    %v3358 = vunpack.c.l.b16 %v513
    %v3359 = vunpack.c.h.b16 %v513
    %v3360 = vunpack.c.l.b16 %v514
    %v3361 = vunpack.c.h.b16 %v514
    %v3362 = vunpack.c.l.b16 %v515
    %v3363 = vunpack.c.h.b16 %v515
    %v3364 = vunpack.c.l.b16 %v516
    %v3365 = vunpack.c.h.b16 %v516
    %v3366 = vunpack.c.l.b16 %v517
    %v3367 = vunpack.c.h.b16 %v517
    %v3368 = vunpack.c.l.b16 %v518
    %v3369 = vunpack.c.h.b16 %v518
    %v3370 = vunpack.c.l.b16 %v519
    %v3371 = vunpack.c.h.b16 %v519
    %v3372 = vunpack.c.l.b16 %v520
    %v3373 = vunpack.c.h.b16 %v520
    %v3374 = vunpack.c.l.b16 %v521
    %v3375 = vunpack.c.h.b16 %v521
    %v3376 = vunpack.c.l.b16 %v522
    %v3377 = vunpack.c.h.b16 %v522
    %v3378 = vunpack.c.l.b16 %v523
    %v3379 = vunpack.c.h.b16 %v523
    %v3380 = vunpack.c.l.b16 %v524
    %v3381 = vunpack.c.h.b16 %v524
    %v3382 = vunpack.c.l.b16 %v525
    %v3383 = vunpack.c.h.b16 %v525
    %v3384 = vunpack.c.l.b16 %v526
    %v3385 = vunpack.c.h.b16 %v526
    %v3386 = vunpack.c.l.b16 %v527
    %v3387 = vunpack.c.h.b16 %v527
    %v3388 = vunpack.c.l.b16 %v528
    %v3389 = vunpack.c.h.b16 %v528
    %v3390 = vunpack.c.l.b16 %v529
    %v3391 = vunpack.c.h.b16 %v529
    %v3392 = vunpack.c.l.b16 %v530
    %v3393 = vunpack.c.h.b16 %v530
    %v3394 = vunpack.c.l.b16 %v531
    %v3395 = vunpack.c.h.b16 %v531
    %v3396 = vunpack.c.l.b16 %v532
    %v3397 = vunpack.c.h.b16 %v532
    %v3398 = vunpack.c.l.b16 %v533
    %v3399 = vunpack.c.h.b16 %v533
    %v3400 = vunpack.c.l.b16 %v534
    %v3401 = vunpack.c.h.b16 %v534
    %v3402 = vunpack.c.l.b16 %v535
    %v3403 = vunpack.c.h.b16 %v535
    %v3404 = vunpack.c.l.b16 %v536
    %v3405 = vunpack.c.h.b16 %v536
    %v3406 = vunpack.c.l.b16 %v537
    %v3407 = vunpack.c.h.b16 %v537
    %v3408 = vunpack.c.l.b16 %v538
    %v3409 = vunpack.c.h.b16 %v538
    %v3410 = vunpack.c.l.b16 %v539
    %v3411 = vunpack.c.h.b16 %v539
    %v3412 = vunpack.c.l.b16 %v540
    %v3413 = vunpack.c.h.b16 %v540
    %v3414 = vunpack.c.l.b16 %v541
    %v3415 = vunpack.c.h.b16 %v541
    %v3416 = vunpack.c.l.b16 %v542
    %v3417 = vunpack.c.h.b16 %v542
    %v3418 = vunpack.c.l.b16 %v543
    %v3419 = vunpack.c.h.b16 %v543
    %v3420 = vunpack.c.l.b16 %v544
    %v3421 = vunpack.c.h.b16 %v544
    %v3422 = vunpack.c.l.b16 %v545
    %v3423 = vunpack.c.h.b16 %v545
    %v3424 = vunpack.c.l.b16 %v546
    %v3425 = vunpack.c.h.b16 %v546
    %v3426 = vunpack.c.l.b16 %v547
    %v3427 = vunpack.c.h.b16 %v547
    %v3428 = vunpack.c.l.b16 %v548
    %v3429 = vunpack.c.h.b16 %v548
    %v3430 = vunpack.c.l.b16 %v549
    %v3431 = vunpack.c.h.b16 %v549
    %v3432 = vunpack.c.l.b16 %v550
    %v3433 = vunpack.c.h.b16 %v550
    %v3434 = vunpack.c.l.b16 %v551
    %v3435 = vunpack.c.h.b16 %v551
    %v3436 = vunpack.c.l.b16 %v552
    %v3437 = vunpack.c.h.b16 %v552
    %v3438 = vunpack.c.l.b16 %v553
    %v3439 = vunpack.c.h.b16 %v553
    %v3440 = vunpack.c.l.b16 %v554
    %v3441 = vunpack.c.h.b16 %v554
    %v3442 = vunpack.c.l.b16 %v555
    %v3443 = vunpack.c.h.b16 %v555
    %v3444 = vunpack.c.l.b16 %v556
    %v3445 = vunpack.c.h.b16 %v556
    %v3446 = vunpack.c.l.b16 %v557
    %v3447 = vunpack.c.h.b16 %v557
    %v3448 = vunpack.c.l.b16 %v558
    %v3449 = vunpack.c.h.b16 %v558
    %v3450 = vunpack.c.l.b16 %v559
    %v3451 = vunpack.c.h.b16 %v559
    %v3452 = vunpack.c.l.b16 %v560
    %v3453 = vunpack.c.h.b16 %v560
    %v3454 = vunpack.c.l.b16 %v561
    %v3455 = vunpack.c.h.b16 %v561
    %v3456 = vunpack.c.l.b16 %v562
    %v3457 = vunpack.c.h.b16 %v562
    %v3458 = vunpack.c.l.b16 %v563
    %v3459 = vunpack.c.h.b16 %v563
    %v3460 = vunpack.c.l.b16 %v564
    %v3461 = vunpack.c.h.b16 %v564
    %v3462 = vunpack.c.l.b16 %v565
    %v3463 = vunpack.c.h.b16 %v565
    %v3464 = vunpack.c.l.b16 %v566
    %v3465 = vunpack.c.h.b16 %v566
    %v3466 = vunpack.c.l.b16 %v567
    %v3467 = vunpack.c.h.b16 %v567
    %v3468 = vunpack.c.l.b16 %v568
    %v3469 = vunpack.c.h.b16 %v568
    %v3470 = vunpack.c.l.b16 %v569
    %v3471 = vunpack.c.h.b16 %v569
    %v3472 = vunpack.c.l.b16 %v570
    %v3473 = vunpack.c.h.b16 %v570
    %v3474 = vunpack.c.l.b16 %v571
    %v3475 = vunpack.c.h.b16 %v571
    %v3476 = vunpack.c.l.b16 %v572
    %v3477 = vunpack.c.h.b16 %v572
    %v3478 = vunpack.c.l.b16 %v573
    %v3479 = vunpack.c.h.b16 %v573
    %v3480 = vunpack.c.l.b16 %v574
    %v3481 = vunpack.c.h.b16 %v574
    %v3482 = vunpack.c.l.b16 %v575
    %v3483 = vunpack.c.h.b16 %v575
    %v3484 = vunpack.c.l.b16 %v576
    %v3485 = vunpack.c.h.b16 %v576
    %v3486 = vunpack.c.l.b16 %v577
    %v3487 = vunpack.c.h.b16 %v577
    %v3488 = vunpack.c.l.b16 %v578
    %v3489 = vunpack.c.h.b16 %v578
    %v3490 = vunpack.c.l.b16 %v579
    %v3491 = vunpack.c.h.b16 %v579
    %v3492 = vunpack.c.l.b16 %v580
    %v3493 = vunpack.c.h.b16 %v580
    %v3494 = vunpack.c.l.b16 %v581
    %v3495 = vunpack.c.h.b16 %v581
    %v3496 = vunpack.c.l.b16 %v582
    %v3497 = vunpack.c.h.b16 %v582
    %v3498 = vunpack.c.l.b16 %v583
    %v3499 = vunpack.c.h.b16 %v583
    %v3500 = vunpack.c.l.b16 %v584
    %v3501 = vunpack.c.h.b16 %v584
    %v3502 = vunpack.c.l.b16 %v585
    %v3503 = vunpack.c.h.b16 %v585
    %v3504 = vunpack.c.l.b16 %v586
    %v3505 = vunpack.c.h.b16 %v586
    %v3506 = vunpack.c.l.b16 %v587
    %v3507 = vunpack.c.h.b16 %v587
    %v3508 = vunpack.c.l.b16 %v588
    %v3509 = vunpack.c.h.b16 %v588
    %v3510 = vunpack.c.l.b16 %v589
    %v3511 = vunpack.c.h.b16 %v589
    %v3512 = vunpack.c.l.b16 %v590
    %v3513 = vunpack.c.h.b16 %v590
    %v3514 = vunpack.c.l.b16 %v591
    %v3515 = vunpack.c.h.b16 %v591
    %v3516 = vunpack.c.l.b16 %v592
    %v3517 = vunpack.c.h.b16 %v592
    %v3518 = vunpack.c.l.b16 %v593
    %v3519 = vunpack.c.h.b16 %v593
    %v3520 = vunpack.c.l.b16 %v594
    %v3521 = vunpack.c.h.b16 %v594
    %v3522 = vunpack.c.l.b16 %v595
    %v3523 = vunpack.c.h.b16 %v595
    %v3524 = vunpack.c.l.b16 %v596
    %v3525 = vunpack.c.h.b16 %v596
    %v3526 = vunpack.c.l.b16 %v597
    %v3527 = vunpack.c.h.b16 %v597
    %v3528 = vunpack.c.l.b16 %v598
    %v3529 = vunpack.c.h.b16 %v598
    %v3530 = vunpack.c.l.b16 %v599
    %v3531 = vunpack.c.h.b16 %v599
    %v3532 = vunpack.c.l.b16 %v600
    %v3533 = vunpack.c.h.b16 %v600
    %v3534 = vunpack.c.l.b16 %v601
    %v3535 = vunpack.c.h.b16 %v601
    %v3536 = vunpack.c.l.b16 %v602
    %v3537 = vunpack.c.h.b16 %v602
    %v3538 = vunpack.c.l.b16 %v603
    %v3539 = vunpack.c.h.b16 %v603
    %v3540 = vunpack.c.l.b16 %v604
    %v3541 = vunpack.c.h.b16 %v604
    %v3542 = vunpack.c.l.b16 %v605
    %v3543 = vunpack.c.h.b16 %v605
    %v3544 = vunpack.c.l.b16 %v606
    %v3545 = vunpack.c.h.b16 %v606
    %v3546 = vunpack.c.l.b16 %v607
    %v3547 = vunpack.c.h.b16 %v607
    %v3548 = vunpack.c.l.b16 %v608
    %v3549 = vunpack.c.h.b16 %v608
    %v3550 = vunpack.c.l.b16 %v609
    %v3551 = vunpack.c.h.b16 %v609
    %v3552 = vunpack.c.l.b16 %v610
    %v3553 = vunpack.c.h.b16 %v610
    %v3554 = vunpack.c.l.b16 %v611
    %v3555 = vunpack.c.h.b16 %v611
    %v3556 = vunpack.c.l.b16 %v612
    %v3557 = vunpack.c.h.b16 %v612
    %v3558 = vunpack.c.l.b16 %v613
    %v3559 = vunpack.c.h.b16 %v613
    %v3560 = vunpack.c.l.b16 %v614
    %v3561 = vunpack.c.h.b16 %v614
    %v3562 = vunpack.c.l.b16 %v615
    %v3563 = vunpack.c.h.b16 %v615
    %v3564 = vunpack.c.l.b16 %v616
    %v3565 = vunpack.c.h.b16 %v616
    %v3566 = vunpack.c.l.b16 %v617
    %v3567 = vunpack.c.h.b16 %v617
    %v3568 = vunpack.c.l.b16 %v618
    %v3569 = vunpack.c.h.b16 %v618
    %v3570 = vunpack.c.l.b16 %v619
    %v3571 = vunpack.c.h.b16 %v619
    %v3572 = vunpack.c.l.b16 %v620
    %v3573 = vunpack.c.h.b16 %v620
    %v3574 = vunpack.c.l.b16 %v621
    %v3575 = vunpack.c.h.b16 %v621
    %v3576 = vunpack.c.l.b16 %v622
    %v3577 = vunpack.c.h.b16 %v622
    %v3578 = vunpack.c.l.b16 %v623
    %v3579 = vunpack.c.h.b16 %v623
    %v3580 = vunpack.c.l.b16 %v624
    %v3581 = vunpack.c.h.b16 %v624
    %v3582 = vunpack.c.l.b16 %v625
    %v3583 = vunpack.c.h.b16 %v625
    %v3584 = vunpack.c.l.b16 %v626
    %v3585 = vunpack.c.h.b16 %v626
    %v3586 = vunpack.c.l.b16 %v627
    %v3587 = vunpack.c.h.b16 %v627
    %v3588 = vunpack.c.l.b16 %v628
    %v3589 = vunpack.c.h.b16 %v628
    %v3590 = vunpack.c.l.b16 %v629
    %v3591 = vunpack.c.h.b16 %v629
    %v3592 = vunpack.c.l.b16 %v630
    %v3593 = vunpack.c.h.b16 %v630
    %v3594 = vunpack.c.l.b16 %v631
    %v3595 = vunpack.c.h.b16 %v631
    %v3596 = vunpack.c.l.b16 %v632
    %v3597 = vunpack.c.h.b16 %v632
    %v3598 = vunpack.c.l.b16 %v633
    %v3599 = vunpack.c.h.b16 %v633
    %v3600 = vunpack.c.l.b16 %v634
    %v3601 = vunpack.c.h.b16 %v634
    %v3602 = vunpack.c.l.b16 %v635
    %v3603 = vunpack.c.h.b16 %v635
    %v3604 = vunpack.c.l.b16 %v636
    %v3605 = vunpack.c.h.b16 %v636
    %v3606 = vunpack.c.l.b16 %v637
    %v3607 = vunpack.c.h.b16 %v637
    %v3608 = vunpack.c.l.b16 %v638
    %v3609 = vunpack.c.h.b16 %v638
    %v3610 = vunpack.c.l.b16 %v639
    %v3611 = vunpack.c.h.b16 %v639
    %v3612 = vunpack.c.l.b16 %v640
    %v3613 = vunpack.c.h.b16 %v640
    %v3614 = vunpack.c.l.b16 %v641
    %v3615 = vunpack.c.h.b16 %v641
    %v3616 = vunpack.c.l.b16 %v642
    %v3617 = vunpack.c.h.b16 %v642
    %v3618 = vunpack.c.l.b16 %v643
    %v3619 = vunpack.c.h.b16 %v643
    %v3620 = vunpack.c.l.b16 %v644
    %v3621 = vunpack.c.h.b16 %v644
    %v3622 = vunpack.c.l.b16 %v645
    %v3623 = vunpack.c.h.b16 %v645
    %v3624 = vunpack.c.l.b16 %v646
    %v3625 = vunpack.c.h.b16 %v646
    %v3626 = vunpack.c.l.b16 %v647
    %v3627 = vunpack.c.h.b16 %v647
    %v3628 = vunpack.c.l.b16 %v648
    %v3629 = vunpack.c.h.b16 %v648
    %v3630 = vunpack.c.l.b16 %v649
    %v3631 = vunpack.c.h.b16 %v649
    %v3632 = vunpack.c.l.b16 %v650
    %v3633 = vunpack.c.h.b16 %v650
    %v3634 = vunpack.c.l.b16 %v651
    %v3635 = vunpack.c.h.b16 %v651
    %v3636 = vunpack.c.l.b16 %v652
    %v3637 = vunpack.c.h.b16 %v652
    %v3638 = vunpack.c.l.b16 %v653
    %v3639 = vunpack.c.h.b16 %v653
    %v3640 = vunpack.c.l.b16 %v654
    %v3641 = vunpack.c.h.b16 %v654
    %v3642 = vunpack.c.l.b16 %v655
    %v3643 = vunpack.c.h.b16 %v655
    %v3644 = vunpack.c.l.b16 %v656
    %v3645 = vunpack.c.h.b16 %v656
    %v3646 = vunpack.c.l.b16 %v657
    %v3647 = vunpack.c.h.b16 %v657
    %v3648 = vunpack.c.l.b16 %v658
    %v3649 = vunpack.c.h.b16 %v658
    %v3650 = vunpack.c.l.b16 %v659
    %v3651 = vunpack.c.h.b16 %v659
    %v3652 = vunpack.c.l.b16 %v660
    %v3653 = vunpack.c.h.b16 %v660
    %v3654 = vunpack.c.l.b16 %v661
    %v3655 = vunpack.c.h.b16 %v661
    %v3656 = vunpack.c.l.b16 %v662
    %v3657 = vunpack.c.h.b16 %v662
    %v3658 = vunpack.c.l.b16 %v663
    %v3659 = vunpack.c.h.b16 %v663
    %v3660 = vunpack.c.l.b16 %v664
    %v3661 = vunpack.c.h.b16 %v664
    %v3662 = vunpack.c.l.b16 %v665
    %v3663 = vunpack.c.h.b16 %v665
    %v3664 = vunpack.c.l.b16 %v666
    %v3665 = vunpack.c.h.b16 %v666
    %v3666 = vunpack.c.l.b16 %v667
    %v3667 = vunpack.c.h.b16 %v667
    %v3668 = vunpack.c.l.b16 %v668
    %v3669 = vunpack.c.h.b16 %v668
    %v3670 = vunpack.c.l.b16 %v669
    %v3671 = vunpack.c.h.b16 %v669
    %v3672 = vunpack.c.l.b16 %v670
    %v3673 = vunpack.c.h.b16 %v670
    %v3674 = vunpack.c.l.b16 %v671
    %v3675 = vunpack.c.h.b16 %v671
    %v3676 = vunpack.c.l.b16 %v672
    %v3677 = vunpack.c.h.b16 %v672
    %v3678 = vunpack.c.l.b16 %v673
    %v3679 = vunpack.c.h.b16 %v673
    %v3680 = vunpack.c.l.b16 %v674
    %v3681 = vunpack.c.h.b16 %v674
    %v3682 = vunpack.c.l.b16 %v675
    %v3683 = vunpack.c.h.b16 %v675
    %v3684 = vunpack.c.l.b16 %v676
    %v3685 = vunpack.c.h.b16 %v676
    %v3686 = vunpack.c.l.b16 %v677
    %v3687 = vunpack.c.h.b16 %v677
    %v3688 = vunpack.c.l.b16 %v678
    %v3689 = vunpack.c.h.b16 %v678
    %v3690 = vunpack.c.l.b16 %v679
    %v3691 = vunpack.c.h.b16 %v679
    %v3692 = vunpack.c.l.b16 %v680
    %v3693 = vunpack.c.h.b16 %v680
    %v3694 = vunpack.c.l.b16 %v681
    %v3695 = vunpack.c.h.b16 %v681
    %v3696 = vunpack.c.l.b16 %v682
    %v3697 = vunpack.c.h.b16 %v682
    %v3698 = vunpack.c.l.b16 %v683
    %v3699 = vunpack.c.h.b16 %v683
    %v3700 = vunpack.c.l.b16 %v684
    %v3701 = vunpack.c.h.b16 %v684
    %v3702 = vunpack.c.l.b16 %v685
    %v3703 = vunpack.c.h.b16 %v685
    %v3704 = vunpack.c.l.b16 %v686
    %v3705 = vunpack.c.h.b16 %v686
    %v3706 = vunpack.c.l.b16 %v687
    %v3707 = vunpack.c.h.b16 %v687
    %v3708 = vunpack.c.l.b16 %v688
    %v3709 = vunpack.c.h.b16 %v688
    %v3710 = vunpack.c.l.b16 %v689
    %v3711 = vunpack.c.h.b16 %v689
    %v3712 = vunpack.c.l.b16 %v690
    %v3713 = vunpack.c.h.b16 %v690
    %v3714 = vunpack.c.l.b16 %v691
    %v3715 = vunpack.c.h.b16 %v691
    %v3716 = vunpack.c.l.b16 %v692
    %v3717 = vunpack.c.h.b16 %v692
    %v3718 = vunpack.c.l.b16 %v693
    %v3719 = vunpack.c.h.b16 %v693
    %v3720 = vunpack.c.l.b16 %v694
    %v3721 = vunpack.c.h.b16 %v694
    %v3722 = vunpack.c.l.b16 %v695
    %v3723 = vunpack.c.h.b16 %v695
    %v3724 = vunpack.c.l.b16 %v696
    %v3725 = vunpack.c.h.b16 %v696
    %v3726 = vunpack.c.l.b16 %v697
    %v3727 = vunpack.c.h.b16 %v697
    %v3728 = vunpack.c.l.b16 %v698
    %v3729 = vunpack.c.h.b16 %v698
    %v3730 = vunpack.c.l.b16 %v699
    %v3731 = vunpack.c.h.b16 %v699
    %v3732 = vunpack.c.l.b16 %v700
    %v3733 = vunpack.c.h.b16 %v700
    %v3734 = vunpack.c.l.b16 %v701
    %v3735 = vunpack.c.h.b16 %v701
    %v3736 = vunpack.c.l.b16 %v702
    %v3737 = vunpack.c.h.b16 %v702
    %v3738 = vunpack.c.l.b16 %v703
    %v3739 = vunpack.c.h.b16 %v703
    %v3740 = vunpack.c.l.b16 %v704
    %v3741 = vunpack.c.h.b16 %v704
    %v3742 = vunpack.c.l.b16 %v705
    %v3743 = vunpack.c.h.b16 %v705
    %v3744 = vunpack.c.l.b16 %v706
    %v3745 = vunpack.c.h.b16 %v706
    %v3746 = vunpack.c.l.b16 %v707
    %v3747 = vunpack.c.h.b16 %v707
    %v3748 = vunpack.c.l.b16 %v708
    %v3749 = vunpack.c.h.b16 %v708
    %v3750 = vunpack.c.l.b16 %v709
    %v3751 = vunpack.c.h.b16 %v709
    %v3752 = vunpack.c.l.b16 %v710
    %v3753 = vunpack.c.h.b16 %v710
    %v3754 = vunpack.c.l.b16 %v711
    %v3755 = vunpack.c.h.b16 %v711
    %v3756 = vunpack.c.l.b16 %v712
    %v3757 = vunpack.c.h.b16 %v712
    %v3758 = vunpack.c.l.b16 %v713
    %v3759 = vunpack.c.h.b16 %v713
    %v3760 = vunpack.c.l.b16 %v714
    %v3761 = vunpack.c.h.b16 %v714
    %v3762 = vunpack.c.l.b16 %v715
    %v3763 = vunpack.c.h.b16 %v715
    %v3764 = vunpack.c.l.b16 %v716
    %v3765 = vunpack.c.h.b16 %v716
    %v3766 = vunpack.c.l.b16 %v717
    %v3767 = vunpack.c.h.b16 %v717
    %v3768 = vunpack.c.l.b16 %v718
    %v3769 = vunpack.c.h.b16 %v718
    %v3770 = vunpack.c.l.b16 %v719
    %v3771 = vunpack.c.h.b16 %v719
    %v3772 = vunpack.c.l.b16 %v720
    %v3773 = vunpack.c.h.b16 %v720
    %v3774 = vunpack.c.l.b16 %v721
    %v3775 = vunpack.c.h.b16 %v721
    %v3776 = vunpack.c.l.b16 %v722
    %v3777 = vunpack.c.h.b16 %v722
    %v3778 = vunpack.c.l.b16 %v723
    %v3779 = vunpack.c.h.b16 %v723
    %v3780 = vunpack.c.l.b16 %v724
    %v3781 = vunpack.c.h.b16 %v724
    %v3782 = vunpack.c.l.b16 %v725
    %v3783 = vunpack.c.h.b16 %v725
    %v3784 = vunpack.c.l.b16 %v726
    %v3785 = vunpack.c.h.b16 %v726
    %v3786 = vunpack.c.l.b16 %v727
    %v3787 = vunpack.c.h.b16 %v727
    %v3788 = vunpack.c.l.b16 %v728
    %v3789 = vunpack.c.h.b16 %v728
    %v3790 = vunpack.c.l.b16 %v729
    %v3791 = vunpack.c.h.b16 %v729
    %v3792 = vunpack.c.l.b16 %v730
    %v3793 = vunpack.c.h.b16 %v730
    %v3794 = vunpack.c.l.b16 %v731
    %v3795 = vunpack.c.h.b16 %v731
    %v3796 = vunpack.c.l.b16 %v732
    %v3797 = vunpack.c.h.b16 %v732
    %v3798 = vunpack.c.l.b16 %v733
    %v3799 = vunpack.c.h.b16 %v733
    %v3800 = vunpack.c.l.b16 %v734
    %v3801 = vunpack.c.h.b16 %v734
    %v3802 = vunpack.c.l.b16 %v735
    %v3803 = vunpack.c.h.b16 %v735
    %v3804 = vunpack.c.l.b16 %v736
    %v3805 = vunpack.c.h.b16 %v736
    %v3806 = vunpack.c.l.b16 %v737
    %v3807 = vunpack.c.h.b16 %v737
    %v3808 = vunpack.c.l.b16 %v738
    %v3809 = vunpack.c.h.b16 %v738
    %v3810 = vunpack.c.l.b16 %v739
    %v3811 = vunpack.c.h.b16 %v739
    %v3812 = vunpack.c.l.b16 %v740
    %v3813 = vunpack.c.h.b16 %v740
    %v3814 = vunpack.c.l.b16 %v741
    %v3815 = vunpack.c.h.b16 %v741
    %v3816 = vunpack.c.l.b16 %v742
    %v3817 = vunpack.c.h.b16 %v742
    %v3818 = vunpack.c.l.b16 %v743
    %v3819 = vunpack.c.h.b16 %v743
    %v3820 = vunpack.c.l.b16 %v744
    %v3821 = vunpack.c.h.b16 %v744
    %v3822 = vunpack.c.l.b16 %v745
    %v3823 = vunpack.c.h.b16 %v745
    %v3824 = vunpack.c.l.b16 %v746
    %v3825 = vunpack.c.h.b16 %v746
    %v3826 = vunpack.c.l.b16 %v747
    %v3827 = vunpack.c.h.b16 %v747
    %v3828 = vunpack.c.l.b16 %v748
    %v3829 = vunpack.c.h.b16 %v748
    %v3830 = vunpack.c.l.b16 %v749
    %v3831 = vunpack.c.h.b16 %v749
    %v3832 = vunpack.c.l.b16 %v750
    %v3833 = vunpack.c.h.b16 %v750
    %v3834 = vunpack.c.l.b16 %v751
    %v3835 = vunpack.c.h.b16 %v751
    %v3836 = vunpack.c.l.b16 %v752
    %v3837 = vunpack.c.h.b16 %v752
    %v3838 = vunpack.c.l.b16 %v753
    %v3839 = vunpack.c.h.b16 %v753
    %v3840 = vunpack.c.l.b16 %v754
    %v3841 = vunpack.c.h.b16 %v754
    %v3842 = vunpack.c.l.b16 %v755
    %v3843 = vunpack.c.h.b16 %v755
    %v3844 = vunpack.c.l.b16 %v756
    %v3845 = vunpack.c.h.b16 %v756
    %v3846 = vunpack.c.l.b16 %v757
    %v3847 = vunpack.c.h.b16 %v757
    %v3848 = vunpack.c.l.b16 %v758
    %v3849 = vunpack.c.h.b16 %v758
    %v3850 = vunpack.c.l.b16 %v759
    %v3851 = vunpack.c.h.b16 %v759
    %v3852 = vunpack.c.l.b16 %v760
    %v3853 = vunpack.c.h.b16 %v760
    %v3854 = vunpack.c.l.b16 %v761
    %v3855 = vunpack.c.h.b16 %v761
    %v3856 = vunpack.c.l.b16 %v762
    %v3857 = vunpack.c.h.b16 %v762
    %v3858 = vunpack.c.l.b16 %v763
    %v3859 = vunpack.c.h.b16 %v763
    %v3860 = vunpack.c.l.b16 %v764
    %v3861 = vunpack.c.h.b16 %v764
    %v3862 = vunpack.c.l.b16 %v765
    %v3863 = vunpack.c.h.b16 %v765
    %v3864 = vunpack.c.l.b16 %v766
    %v3865 = vunpack.c.h.b16 %v766
    %v3866 = vunpack.c.l.b16 %v767
    %v3867 = vunpack.c.h.b16 %v767
    %v3868 = vunpack.c.l.b16 %v768
    %v3869 = vunpack.c.h.b16 %v768
    %v3870 = vunpack.c.l.b16 %v769
    %v3871 = vunpack.c.h.b16 %v769
    %v3872 = vunpack.c.l.b16 %v770
    %v3873 = vunpack.c.h.b16 %v770
    %v3874 = vunpack.c.l.b16 %v771
    %v3875 = vunpack.c.h.b16 %v771
    %v3876 = vunpack.c.l.b16 %v772
    %v3877 = vunpack.c.h.b16 %v772
    %v3878 = vunpack.c.l.b16 %v773
    %v3879 = vunpack.c.h.b16 %v773
    %v3880 = vunpack.c.l.b16 %v774
    %v3881 = vunpack.c.h.b16 %v774
    %v3882 = vunpack.c.l.b16 %v775
    %v3883 = vunpack.c.h.b16 %v775
    %v3884 = vunpack.c.l.b16 %v776
    %v3885 = vunpack.c.h.b16 %v776
    %v3886 = vunpack.c.l.b16 %v777
    %v3887 = vunpack.c.h.b16 %v777
    %v3888 = vunpack.c.l.b16 %v778
    %v3889 = vunpack.c.h.b16 %v778
    %v3890 = vunpack.c.l.b16 %v779
    %v3891 = vunpack.c.h.b16 %v779
    %v3892 = vunpack.c.l.b16 %v780
    %v3893 = vunpack.c.h.b16 %v780
    %v3894 = vunpack.c.l.b16 %v781
    %v3895 = vunpack.c.h.b16 %v781
    %v3896 = vunpack.c.l.b16 %v782
    %v3897 = vunpack.c.h.b16 %v782
    %v3898 = vunpack.c.l.b16 %v783
    %v3899 = vunpack.c.h.b16 %v783
    %v3900 = vunpack.c.l.b16 %v784
    %v3901 = vunpack.c.h.b16 %v784
    %v3902 = vunpack.c.l.b16 %v785
    %v3903 = vunpack.c.h.b16 %v785
    %v3904 = vunpack.c.l.b16 %v786
    %v3905 = vunpack.c.h.b16 %v786
    %v3906 = vunpack.c.l.b16 %v787
    %v3907 = vunpack.c.h.b16 %v787
    %v3908 = vunpack.c.l.b16 %v788
    %v3909 = vunpack.c.h.b16 %v788
    %v3910 = vunpack.c.l.b16 %v789
    %v3911 = vunpack.c.h.b16 %v789
    %v3912 = vunpack.c.l.b16 %v790
    %v3913 = vunpack.c.h.b16 %v790
    %v3914 = vunpack.c.l.b16 %v791
    %v3915 = vunpack.c.h.b16 %v791
    %v3916 = vunpack.c.l.b16 %v792
    %v3917 = vunpack.c.h.b16 %v792
    %v3918 = vunpack.c.l.b16 %v793
    %v3919 = vunpack.c.h.b16 %v793
    %v3920 = vunpack.c.l.b16 %v794
    %v3921 = vunpack.c.h.b16 %v794
    %v3922 = vunpack.c.l.b16 %v795
    %v3923 = vunpack.c.h.b16 %v795
    %v3924 = vunpack.c.l.b16 %v796
    %v3925 = vunpack.c.h.b16 %v796
    %v3926 = vunpack.c.l.b16 %v797
    %v3927 = vunpack.c.h.b16 %v797
    %v3928 = vunpack.c.l.b16 %v798
    %v3929 = vunpack.c.h.b16 %v798
    %v3930 = vunpack.c.l.b16 %v799
    %v3931 = vunpack.c.h.b16 %v799
    %v3932 = vunpack.c.l.b16 %v800
    %v3933 = vunpack.c.h.b16 %v800
    %v3934 = vunpack.c.l.b16 %v801
    %v3935 = vunpack.c.h.b16 %v801
    %v3936 = vunpack.c.l.b16 %v802
    %v3937 = vunpack.c.h.b16 %v802
    %v3938 = vunpack.c.l.b16 %v803
    %v3939 = vunpack.c.h.b16 %v803
    %v3940 = vunpack.c.l.b16 %v804
    %v3941 = vunpack.c.h.b16 %v804
    %v3942 = vunpack.c.l.b16 %v805
    %v3943 = vunpack.c.h.b16 %v805
    %v3944 = vunpack.c.l.b16 %v806
    %v3945 = vunpack.c.h.b16 %v806
    %v3946 = vunpack.c.l.b16 %v807
    %v3947 = vunpack.c.h.b16 %v807
    %v3948 = vunpack.c.l.b16 %v808
    %v3949 = vunpack.c.h.b16 %v808
    %v3950 = vunpack.c.l.b16 %v809
    %v3951 = vunpack.c.h.b16 %v809
    %v3952 = vunpack.c.l.b16 %v810
    %v3953 = vunpack.c.h.b16 %v810
    %v3954 = vunpack.c.l.b16 %v811
    %v3955 = vunpack.c.h.b16 %v811
    %v3956 = vunpack.c.l.b16 %v812
    %v3957 = vunpack.c.h.b16 %v812
    %v3958 = vunpack.c.l.b16 %v813
    %v3959 = vunpack.c.h.b16 %v813
    %v3960 = vunpack.c.l.b16 %v814
    %v3961 = vunpack.c.h.b16 %v814
    %v3962 = vunpack.c.l.b16 %v815
    %v3963 = vunpack.c.h.b16 %v815
    %v3964 = vunpack.c.l.b16 %v816
    %v3965 = vunpack.c.h.b16 %v816
    %v3966 = vunpack.c.l.b16 %v817
    %v3967 = vunpack.c.h.b16 %v817
    %v3968 = vunpack.c.l.b16 %v818
    %v3969 = vunpack.c.h.b16 %v818
    %v3970 = vunpack.c.l.b16 %v819
    %v3971 = vunpack.c.h.b16 %v819
    %v3972 = vunpack.c.l.b16 %v820
    %v3973 = vunpack.c.h.b16 %v820
    %v3974 = vunpack.c.l.b16 %v821
    %v3975 = vunpack.c.h.b16 %v821
    %v3976 = vunpack.c.l.b16 %v822
    %v3977 = vunpack.c.h.b16 %v822
    %v3978 = vunpack.c.l.b16 %v823
    %v3979 = vunpack.c.h.b16 %v823
    %v3980 = vunpack.c.l.b16 %v824
    %v3981 = vunpack.c.h.b16 %v824
    %v3982 = vunpack.c.l.b16 %v825
    %v3983 = vunpack.c.h.b16 %v825
    %v3984 = vunpack.c.l.b16 %v826
    %v3985 = vunpack.c.h.b16 %v826
    %v3986 = vunpack.c.l.b16 %v827
    %v3987 = vunpack.c.h.b16 %v827
    %v3988 = vunpack.c.l.b16 %v828
    %v3989 = vunpack.c.h.b16 %v828
    %v3990 = vunpack.c.l.b16 %v829
    %v3991 = vunpack.c.h.b16 %v829
    %v3992 = vunpack.c.l.b16 %v830
    %v3993 = vunpack.c.h.b16 %v830
    %v3994 = vunpack.c.l.b16 %v831
    %v3995 = vunpack.c.h.b16 %v831
    %v3996 = vunpack.c.l.b16 %v832
    %v3997 = vunpack.c.h.b16 %v832
    %v3998 = vunpack.c.l.b16 %v833
    %v3999 = vunpack.c.h.b16 %v833
    %v4000 = vunpack.c.l.b16 %v834
    %v4001 = vunpack.c.h.b16 %v834
    %v4002 = vunpack.c.l.b16 %v835
    %v4003 = vunpack.c.h.b16 %v835
    %v4004 = vunpack.c.l.b16 %v836
    %v4005 = vunpack.c.h.b16 %v836
    %v4006 = vunpack.c.l.b16 %v837
    %v4007 = vunpack.c.h.b16 %v837
    %v4008 = vunpack.c.l.b16 %v838
    %v4009 = vunpack.c.h.b16 %v838
    %v4010 = vunpack.c.l.b16 %v839
    %v4011 = vunpack.c.h.b16 %v839
    %v4012 = vunpack.c.l.b16 %v840
    %v4013 = vunpack.c.h.b16 %v840
    %v4014 = vunpack.c.l.b16 %v841
    %v4015 = vunpack.c.h.b16 %v841
    %v4016 = vunpack.c.l.b16 %v842
    %v4017 = vunpack.c.h.b16 %v842
    %v4018 = vunpack.c.l.b16 %v843
    %v4019 = vunpack.c.h.b16 %v843
    %v4020 = vunpack.c.l.b16 %v844
    %v4021 = vunpack.c.h.b16 %v844
    %v4022 = vunpack.c.l.b16 %v845
    %v4023 = vunpack.c.h.b16 %v845
    %v4024 = vunpack.c.l.b16 %v846
    %v4025 = vunpack.c.h.b16 %v846
    %v4026 = vunpack.c.l.b16 %v847
    %v4027 = vunpack.c.h.b16 %v847
    %v4028 = vunpack.c.l.b16 %v848
    %v4029 = vunpack.c.h.b16 %v848
    %v4030 = vunpack.c.l.b16 %v849
    %v4031 = vunpack.c.h.b16 %v849
    %v4032 = vunpack.c.l.b16 %v850
    %v4033 = vunpack.c.h.b16 %v850
    %v4034 = vunpack.c.l.b16 %v851
    %v4035 = vunpack.c.h.b16 %v851
    %v4036 = vunpack.c.l.b16 %v852
    %v4037 = vunpack.c.h.b16 %v852
    %v4038 = vunpack.c.l.b16 %v853
    %v4039 = vunpack.c.h.b16 %v853
    %v4040 = vunpack.c.l.b16 %v854
    %v4041 = vunpack.c.h.b16 %v854
    %v4042 = vunpack.c.l.b16 %v855
    %v4043 = vunpack.c.h.b16 %v855
    %v4044 = vunpack.c.l.b16 %v856
    %v4045 = vunpack.c.h.b16 %v856
    %v4046 = vunpack.c.l.b16 %v857
    %v4047 = vunpack.c.h.b16 %v857
    %v4048 = vunpack.c.l.b16 %v858
    %v4049 = vunpack.c.h.b16 %v858
    %v4050 = vunpack.c.l.b16 %v859
    %v4051 = vunpack.c.h.b16 %v859
    %v4052 = vunpack.c.l.b16 %v860
    %v4053 = vunpack.c.h.b16 %v860
    %v4054 = vunpack.c.l.b16 %v861
    %v4055 = vunpack.c.h.b16 %v861
    %v4056 = vunpack.c.l.b16 %v862
    %v4057 = vunpack.c.h.b16 %v862
    %v4058 = vunpack.c.l.b16 %v863
    %v4059 = vunpack.c.h.b16 %v863
    %v4060 = vunpack.c.l.b16 %v864
    %v4061 = vunpack.c.h.b16 %v864
    %v4062 = vunpack.c.l.b16 %v865
    %v4063 = vunpack.c.h.b16 %v865
    %v4064 = vunpack.c.l.b16 %v866
    %v4065 = vunpack.c.h.b16 %v866
    %v4066 = vunpack.c.l.b16 %v867
    %v4067 = vunpack.c.h.b16 %v867
    %v4068 = vunpack.c.l.b16 %v868
    %v4069 = vunpack.c.h.b16 %v868
    %v4070 = vunpack.c.l.b16 %v869
    %v4071 = vunpack.c.h.b16 %v869
    %v4072 = vunpack.c.l.b16 %v870
    %v4073 = vunpack.c.h.b16 %v870
    %v4074 = vunpack.c.l.b16 %v871
    %v4075 = vunpack.c.h.b16 %v871
    %v4076 = vunpack.c.l.b16 %v872
    %v4077 = vunpack.c.h.b16 %v872
    %v4078 = vunpack.c.l.b16 %v873
    %v4079 = vunpack.c.h.b16 %v873
    %v4080 = vunpack.c.l.b16 %v874
    %v4081 = vunpack.c.h.b16 %v874
    %v4082 = vunpack.c.l.b16 %v875
    %v4083 = vunpack.c.h.b16 %v875
    %v4084 = vunpack.c.l.b16 %v876
    %v4085 = vunpack.c.h.b16 %v876
    %v4086 = vunpack.c.l.b16 %v877
    %v4087 = vunpack.c.h.b16 %v877
    %v4088 = vunpack.c.l.b16 %v878
    %v4089 = vunpack.c.h.b16 %v878
    %v4090 = vunpack.c.l.b16 %v879
    %v4091 = vunpack.c.h.b16 %v879
    %v4092 = vunpack.c.l.b16 %v880
    %v4093 = vunpack.c.h.b16 %v880
    %v4094 = vunpack.c.l.b16 %v881
    %v4095 = vunpack.c.h.b16 %v881
    %v4096 = vunpack.c.l.b16 %v882
    %v4097 = vunpack.c.h.b16 %v882
    %v4098 = vunpack.c.l.b16 %v883
    %v4099 = vunpack.c.h.b16 %v883
    %v4100 = vunpack.c.l.b16 %v884
    %v4101 = vunpack.c.h.b16 %v884
    %v4102 = vunpack.c.l.b16 %v885
    %v4103 = vunpack.c.h.b16 %v885
    %v4104 = vunpack.c.l.b16 %v886
    %v4105 = vunpack.c.h.b16 %v886
    %v4106 = vunpack.c.l.b16 %v887
    %v4107 = vunpack.c.h.b16 %v887
    %v4108 = vunpack.c.l.b16 %v888
    %v4109 = vunpack.c.h.b16 %v888
    %v4110 = vunpack.c.l.b16 %v889
    %v4111 = vunpack.c.h.b16 %v889
    %v4112 = vunpack.c.l.b16 %v890
    %v4113 = vunpack.c.h.b16 %v890
    %v4114 = vunpack.c.l.b16 %v891
    %v4115 = vunpack.c.h.b16 %v891
    %v4116 = vunpack.c.l.b16 %v892
    %v4117 = vunpack.c.h.b16 %v892
    %v4118 = vunpack.c.l.b16 %v893
    %v4119 = vunpack.c.h.b16 %v893
    %v4120 = vunpack.c.l.b16 %v894
    %v4121 = vunpack.c.h.b16 %v894
    %v4122 = vunpack.c.l.b16 %v895
    %v4123 = vunpack.c.h.b16 %v895
    %v4124 = vunpack.c.l.b16 %v896
    %v4125 = vunpack.c.h.b16 %v896
    %v4126 = vunpack.c.l.b16 %v897
    %v4127 = vunpack.c.h.b16 %v897
    %v4128 = vunpack.c.l.b16 %v898
    %v4129 = vunpack.c.h.b16 %v898
    %v4130 = vunpack.c.l.b16 %v899
    %v4131 = vunpack.c.h.b16 %v899
    %v4132 = vunpack.c.l.b16 %v900
    %v4133 = vunpack.c.h.b16 %v900
    %v4134 = vunpack.c.l.b16 %v901
    %v4135 = vunpack.c.h.b16 %v901
    %v4136 = vunpack.c.l.b16 %v902
    %v4137 = vunpack.c.h.b16 %v902
    %v4138 = vunpack.c.l.b16 %v903
    %v4139 = vunpack.c.h.b16 %v903
    %v4140 = vunpack.c.l.b16 %v904
    %v4141 = vunpack.c.h.b16 %v904
    %v4142 = vunpack.c.l.b16 %v905
    %v4143 = vunpack.c.h.b16 %v905
    %v4144 = vunpack.c.l.b16 %v906
    %v4145 = vunpack.c.h.b16 %v906
    %v4146 = vunpack.c.l.b16 %v907
    %v4147 = vunpack.c.h.b16 %v907
    %v4148 = vunpack.c.l.b16 %v908
    %v4149 = vunpack.c.h.b16 %v908
    %v4150 = vunpack.c.l.b16 %v909
    %v4151 = vunpack.c.h.b16 %v909
    %v4152 = vunpack.c.l.b16 %v910
    %v4153 = vunpack.c.h.b16 %v910
    %v4154 = vunpack.c.l.b16 %v911
    %v4155 = vunpack.c.h.b16 %v911
    %v4156 = vunpack.c.l.b16 %v912
    %v4157 = vunpack.c.h.b16 %v912
    %v4158 = vunpack.c.l.b16 %v913
    %v4159 = vunpack.c.h.b16 %v913
    %v4160 = vunpack.c.l.b16 %v914
    %v4161 = vunpack.c.h.b16 %v914
    %v4162 = vunpack.c.l.b16 %v915
    %v4163 = vunpack.c.h.b16 %v915
    %v4164 = vunpack.c.l.b16 %v916
    %v4165 = vunpack.c.h.b16 %v916
    %v4166 = vunpack.c.l.b16 %v917
    %v4167 = vunpack.c.h.b16 %v917
    %v4168 = vunpack.c.l.b16 %v918
    %v4169 = vunpack.c.h.b16 %v918
    %v4170 = vunpack.c.l.b16 %v919
    %v4171 = vunpack.c.h.b16 %v919
    %v4172 = vunpack.c.l.b16 %v920
    %v4173 = vunpack.c.h.b16 %v920
    %v4174 = vunpack.c.l.b16 %v921
    %v4175 = vunpack.c.h.b16 %v921
    %v4176 = vunpack.c.l.b16 %v922
    %v4177 = vunpack.c.h.b16 %v922
    %v4178 = vunpack.c.l.b16 %v923
    %v4179 = vunpack.c.h.b16 %v923
    %v4180 = vunpack.c.l.b16 %v924
    %v4181 = vunpack.c.h.b16 %v924
    %v4182 = vunpack.c.l.b16 %v925
    %v4183 = vunpack.c.h.b16 %v925
    %v4184 = vunpack.c.l.b16 %v926
    %v4185 = vunpack.c.h.b16 %v926
    %v4186 = vunpack.c.l.b16 %v927
    %v4187 = vunpack.c.h.b16 %v927
    %v4188 = vunpack.c.l.b16 %v928
    %v4189 = vunpack.c.h.b16 %v928
    %v4190 = vunpack.c.l.b16 %v929
    %v4191 = vunpack.c.h.b16 %v929
    %v4192 = vunpack.c.l.b16 %v930
    %v4193 = vunpack.c.h.b16 %v930
    %v4194 = vunpack.c.l.b16 %v931
    %v4195 = vunpack.c.h.b16 %v931
    %v4196 = vunpack.c.l.b16 %v932
    %v4197 = vunpack.c.h.b16 %v932
    %v4198 = vunpack.c.l.b16 %v933
    %v4199 = vunpack.c.h.b16 %v933
    %v4200 = vunpack.c.l.b16 %v934
    %v4201 = vunpack.c.h.b16 %v934
    %v4202 = vunpack.c.l.b16 %v935
    %v4203 = vunpack.c.h.b16 %v935
    %v4204 = vunpack.c.l.b16 %v936
    %v4205 = vunpack.c.h.b16 %v936
    %v4206 = vunpack.c.l.b16 %v937
    %v4207 = vunpack.c.h.b16 %v937
    %v4208 = vunpack.c.l.b16 %v938
    %v4209 = vunpack.c.h.b16 %v938
    %v4210 = vunpack.c.l.b16 %v939
    %v4211 = vunpack.c.h.b16 %v939
    %v4212 = vunpack.c.l.b16 %v940
    %v4213 = vunpack.c.h.b16 %v940
    %v4214 = vunpack.c.l.b16 %v941
    %v4215 = vunpack.c.h.b16 %v941
    %v4216 = vunpack.c.l.b16 %v942
    %v4217 = vunpack.c.h.b16 %v942
    %v4218 = vunpack.c.l.b16 %v943
    %v4219 = vunpack.c.h.b16 %v943
    %v4220 = vunpack.c.l.b16 %v944
    %v4221 = vunpack.c.h.b16 %v944
    %v4222 = vunpack.c.l.b16 %v945
    %v4223 = vunpack.c.h.b16 %v945
    %v4224 = vunpack.c.l.b16 %v946
    %v4225 = vunpack.c.h.b16 %v946
    %v4226 = vunpack.c.l.b16 %v947
    %v4227 = vunpack.c.h.b16 %v947
    %v4228 = vunpack.c.l.b16 %v948
    %v4229 = vunpack.c.h.b16 %v948
    %v4230 = vunpack.c.l.b16 %v949
    %v4231 = vunpack.c.h.b16 %v949
    %v4232 = vunpack.c.l.b16 %v950
    %v4233 = vunpack.c.h.b16 %v950
    %v4234 = vunpack.c.l.b16 %v951
    %v4235 = vunpack.c.h.b16 %v951
    %v4236 = vunpack.c.l.b16 %v952
    %v4237 = vunpack.c.h.b16 %v952
    %v4238 = vunpack.c.l.b16 %v953
    %v4239 = vunpack.c.h.b16 %v953
    %v4240 = vunpack.c.l.b16 %v954
    %v4241 = vunpack.c.h.b16 %v954
    %v4242 = vunpack.c.l.b16 %v955
    %v4243 = vunpack.c.h.b16 %v955
    %v4244 = vunpack.c.l.b16 %v956
    %v4245 = vunpack.c.h.b16 %v956
    %v4246 = vunpack.c.l.b16 %v957
    %v4247 = vunpack.c.h.b16 %v957
    %v4248 = vunpack.c.l.b16 %v958
    %v4249 = vunpack.c.h.b16 %v958
    %v4250 = vunpack.c.l.b16 %v959
    %v4251 = vunpack.c.h.b16 %v959
    %v4252 = vunpack.c.l.b16 %v960
    %v4253 = vunpack.c.h.b16 %v960
    %v4254 = vunpack.c.l.b16 %v961
    %v4255 = vunpack.c.h.b16 %v961
    %v4256 = vunpack.c.l.b16 %v962
    %v4257 = vunpack.c.h.b16 %v962
    %v4258 = vunpack.c.l.b16 %v963
    %v4259 = vunpack.c.h.b16 %v963
    %v4260 = vunpack.c.l.b16 %v964
    %v4261 = vunpack.c.h.b16 %v964
    %v4262 = vunpack.c.l.b16 %v965
    %v4263 = vunpack.c.h.b16 %v965
    %v4264 = vunpack.c.l.b16 %v966
    %v4265 = vunpack.c.h.b16 %v966
    %v4266 = vunpack.c.l.b16 %v967
    %v4267 = vunpack.c.h.b16 %v967
    %v4268 = vunpack.c.l.b16 %v968
    %v4269 = vunpack.c.h.b16 %v968
    %v4270 = vunpack.c.l.b16 %v969
    %v4271 = vunpack.c.h.b16 %v969
    %v4272 = vunpack.c.l.b16 %v970
    %v4273 = vunpack.c.h.b16 %v970
    %v4274 = vunpack.c.l.b16 %v971
    %v4275 = vunpack.c.h.b16 %v971
    %v4276 = vunpack.c.l.b16 %v972
    %v4277 = vunpack.c.h.b16 %v972
    %v4278 = vunpack.c.l.b16 %v973
    %v4279 = vunpack.c.h.b16 %v973
    %v4280 = vunpack.c.l.b16 %v974
    %v4281 = vunpack.c.h.b16 %v974
    %v4282 = vunpack.c.l.b16 %v975
    %v4283 = vunpack.c.h.b16 %v975
    %v4284 = vunpack.c.l.b16 %v976
    %v4285 = vunpack.c.h.b16 %v976
    %v4286 = vunpack.c.l.b16 %v977
    %v4287 = vunpack.c.h.b16 %v977
    %v4288 = vunpack.c.l.b16 %v978
    %v4289 = vunpack.c.h.b16 %v978
    %v4290 = vunpack.c.l.b16 %v979
    %v4291 = vunpack.c.h.b16 %v979
    %v4292 = vunpack.c.l.b16 %v980
    %v4293 = vunpack.c.h.b16 %v980
    %v4294 = vunpack.c.l.b16 %v981
    %v4295 = vunpack.c.h.b16 %v981
    %v4296 = vunpack.c.l.b16 %v982
    %v4297 = vunpack.c.h.b16 %v982
    %v4298 = vunpack.c.l.b16 %v983
    %v4299 = vunpack.c.h.b16 %v983
    %v4300 = vunpack.c.l.b16 %v984
    %v4301 = vunpack.c.h.b16 %v984
    %v4302 = vunpack.c.l.b16 %v985
    %v4303 = vunpack.c.h.b16 %v985
    %v4304 = vunpack.c.l.b16 %v986
    %v4305 = vunpack.c.h.b16 %v986
    %v4306 = vunpack.c.l.b16 %v987
    %v4307 = vunpack.c.h.b16 %v987
    %v4308 = vunpack.c.l.b16 %v988
    %v4309 = vunpack.c.h.b16 %v988
    %v4310 = vunpack.c.l.b16 %v989
    %v4311 = vunpack.c.h.b16 %v989
    %v4312 = vunpack.c.l.b16 %v990
    %v4313 = vunpack.c.h.b16 %v990
    %v4314 = vunpack.c.l.b16 %v991
    %v4315 = vunpack.c.h.b16 %v991
    %v4316 = vunpack.c.l.b16 %v992
    %v4317 = vunpack.c.h.b16 %v992
    %v4318 = vunpack.c.l.b16 %v993
    %v4319 = vunpack.c.h.b16 %v993
    %v4320 = vunpack.c.l.b16 %v994
    %v4321 = vunpack.c.h.b16 %v994
    %v4322 = vunpack.c.l.b16 %v995
    %v4323 = vunpack.c.h.b16 %v995
    %v4324 = vunpack.c.l.b16 %v996
    %v4325 = vunpack.c.h.b16 %v996
    %v4326 = vunpack.c.l.b16 %v997
    %v4327 = vunpack.c.h.b16 %v997
    %v4328 = vunpack.c.l.b16 %v998
    %v4329 = vunpack.c.h.b16 %v998
    %v4330 = vunpack.c.l.b16 %v999
    %v4331 = vunpack.c.h.b16 %v999
    %v4332 = vunpack.c.l.b16 %v1000
    %v4333 = vunpack.c.h.b16 %v1000
    %v4334 = vunpack.c.l.b16 %v1001
    %v4335 = vunpack.c.h.b16 %v1001
    %v4336 = vunpack.c.l.b16 %v1002
    %v4337 = vunpack.c.h.b16 %v1002
    %v4338 = vunpack.c.l.b16 %v1003
    %v4339 = vunpack.c.h.b16 %v1003
    %v4340 = vunpack.c.l.b16 %v1004
    %v4341 = vunpack.c.h.b16 %v1004
    %v4342 = vunpack.c.l.b16 %v1005
    %v4343 = vunpack.c.h.b16 %v1005
    %v4344 = vunpack.c.l.b16 %v1006
    %v4345 = vunpack.c.h.b16 %v1006
    %v4346 = vunpack.c.l.b16 %v1007
    %v4347 = vunpack.c.h.b16 %v1007
    %v4348 = vunpack.c.l.b16 %v1008
    %v4349 = vunpack.c.h.b16 %v1008
    %v4350 = vunpack.c.l.b16 %v1009
    %v4351 = vunpack.c.h.b16 %v1009
    %v4352 = vunpack.c.l.b16 %v1010
    %v4353 = vunpack.c.h.b16 %v1010
    %v4354 = vunpack.c.l.b16 %v1011
    %v4355 = vunpack.c.h.b16 %v1011
    %v4356 = vunpack.c.l.b16 %v1012
    %v4357 = vunpack.c.h.b16 %v1012
    %v4358 = vunpack.c.l.b16 %v1013
    %v4359 = vunpack.c.h.b16 %v1013
    %v4360 = vunpack.c.l.b16 %v1014
    %v4361 = vunpack.c.h.b16 %v1014
    %v4362 = vunpack.c.l.b16 %v1015
    %v4363 = vunpack.c.h.b16 %v1015
    %v4364 = vunpack.c.l.b16 %v1016
    %v4365 = vunpack.c.h.b16 %v1016
    %v4366 = vunpack.c.l.b16 %v1017
    %v4367 = vunpack.c.h.b16 %v1017
    %v4368 = vunpack.c.l.b16 %v1018
    %v4369 = vunpack.c.h.b16 %v1018
    %v4370 = vunpack.c.l.b16 %v1019
    %v4371 = vunpack.c.h.b16 %v1019
    %v4372 = vunpack.c.l.b16 %v1020
    %v4373 = vunpack.c.h.b16 %v1020
    %v4374 = vunpack.c.l.b16 %v1021
    %v4375 = vunpack.c.h.b16 %v1021
    %v4376 = vunpack.c.l.b16 %v1022
    %v4377 = vunpack.c.h.b16 %v1022
    %v4378 = vunpack.c.l.b16 %v1023
    %v4379 = vunpack.c.h.b16 %v1023
    %v4380 = vunpack.c.l.b16 %v1024
    %v4381 = vunpack.c.h.b16 %v1024
    %v4382 = vunpack.c.l.b16 %v1025
    %v4383 = vunpack.c.h.b16 %v1025
    %v4384 = vunpack.c.l.b16 %v1026
    %v4385 = vunpack.c.h.b16 %v1026
    %v4386 = vunpack.c.l.b16 %v1027
    %v4387 = vunpack.c.h.b16 %v1027
    %v4388 = vunpack.c.l.b16 %v1028
    %v4389 = vunpack.c.h.b16 %v1028
    %v4390 = vunpack.c.l.b16 %v1029
    %v4391 = vunpack.c.h.b16 %v1029
    %v4392 = vunpack.c.l.b16 %v1030
    %v4393 = vunpack.c.h.b16 %v1030
    %v4394 = vunpack.c.l.b16 %v1031
    %v4395 = vunpack.c.h.b16 %v1031
    %v4396 = vunpack.c.l.b16 %v1032
    %v4397 = vunpack.c.h.b16 %v1032
    %v4398 = vunpack.c.l.b16 %v1033
    %v4399 = vunpack.c.h.b16 %v1033
    %v4400 = vunpack.c.l.b16 %v1034
    %v4401 = vunpack.c.h.b16 %v1034
    %v4402 = vunpack.c.l.b16 %v1035
    %v4403 = vunpack.c.h.b16 %v1035
    %v4404 = vunpack.c.l.b16 %v1036
    %v4405 = vunpack.c.h.b16 %v1036
    %v4406 = vunpack.c.l.b16 %v1037
    %v4407 = vunpack.c.h.b16 %v1037
    %v4408 = vunpack.c.l.b16 %v1038
    %v4409 = vunpack.c.h.b16 %v1038
    %v4410 = vunpack.c.l.b16 %v1039
    %v4411 = vunpack.c.h.b16 %v1039
    %v4412 = vunpack.c.l.b16 %v1040
    %v4413 = vunpack.c.h.b16 %v1040
    %v4414 = vunpack.c.l.b16 %v1041
    %v4415 = vunpack.c.h.b16 %v1041
    %v4416 = vunpack.c.l.b16 %v1042
    %v4417 = vunpack.c.h.b16 %v1042
    %v4418 = vunpack.c.l.b16 %v1043
    %v4419 = vunpack.c.h.b16 %v1043
    %v4420 = vunpack.c.l.b16 %v1044
    %v4421 = vunpack.c.h.b16 %v1044
    %v4422 = vunpack.c.l.b16 %v1045
    %v4423 = vunpack.c.h.b16 %v1045
    %v4424 = vunpack.c.l.b16 %v1046
    %v4425 = vunpack.c.h.b16 %v1046
    %v4426 = vunpack.c.l.b16 %v1047
    %v4427 = vunpack.c.h.b16 %v1047
    %v4428 = vunpack.c.l.b16 %v1048
    %v4429 = vunpack.c.h.b16 %v1048
    %v4430 = vunpack.c.l.b16 %v1049
    %v4431 = vunpack.c.h.b16 %v1049
    %v4432 = vunpack.c.l.b16 %v1050
    %v4433 = vunpack.c.h.b16 %v1050
    %v4434 = vunpack.c.l.b16 %v1051
    %v4435 = vunpack.c.h.b16 %v1051
    %v4436 = vunpack.c.l.b16 %v1052
    %v4437 = vunpack.c.h.b16 %v1052
    %v4438 = vunpack.c.l.b16 %v1053
    %v4439 = vunpack.c.h.b16 %v1053
    %v4440 = vunpack.c.l.b16 %v1054
    %v4441 = vunpack.c.h.b16 %v1054
    %v4442 = vunpack.c.l.b16 %v1055
    %v4443 = vunpack.c.h.b16 %v1055
    %v4444 = vunpack.c.l.b16 %v1056
    %v4445 = vunpack.c.h.b16 %v1056
    %v4446 = vunpack.c.l.b16 %v1057
    %v4447 = vunpack.c.h.b16 %v1057
    %v4448 = vunpack.c.l.b16 %v1058
    %v4449 = vunpack.c.h.b16 %v1058
    %v4450 = vunpack.c.l.b16 %v1059
    %v4451 = vunpack.c.h.b16 %v1059
    %v4452 = vunpack.c.l.b16 %v1060
    %v4453 = vunpack.c.h.b16 %v1060
    %v4454 = vunpack.c.l.b16 %v1061
    %v4455 = vunpack.c.h.b16 %v1061
    %v4456 = vunpack.c.l.b16 %v1062
    %v4457 = vunpack.c.h.b16 %v1062
    %v4458 = vunpack.c.l.b16 %v1063
    %v4459 = vunpack.c.h.b16 %v1063
    %v4460 = vunpack.c.l.b16 %v1064
    %v4461 = vunpack.c.h.b16 %v1064
    %v4462 = vunpack.c.l.b16 %v1065
    %v4463 = vunpack.c.h.b16 %v1065
    %v4464 = vunpack.c.l.b16 %v1066
    %v4465 = vunpack.c.h.b16 %v1066
    %v4466 = vunpack.c.l.b16 %v1067
    %v4467 = vunpack.c.h.b16 %v1067
    %v4468 = vunpack.c.l.b16 %v1068
    %v4469 = vunpack.c.h.b16 %v1068
    %v4470 = vunpack.c.l.b16 %v1069
    %v4471 = vunpack.c.h.b16 %v1069
    %v4472 = vunpack.c.l.b16 %v1070
    %v4473 = vunpack.c.h.b16 %v1070
    %v4474 = vunpack.c.l.b16 %v1071
    %v4475 = vunpack.c.h.b16 %v1071
    %v4476 = vunpack.c.l.b16 %v1072
    %v4477 = vunpack.c.h.b16 %v1072
    %v4478 = vunpack.c.l.b16 %v1073
    %v4479 = vunpack.c.h.b16 %v1073
    %v4480 = vunpack.c.l.b16 %v1074
    %v4481 = vunpack.c.h.b16 %v1074
    %v4482 = vunpack.c.l.b16 %v1075
    %v4483 = vunpack.c.h.b16 %v1075
    %v4484 = vunpack.c.l.b16 %v1076
    %v4485 = vunpack.c.h.b16 %v1076
    %v4486 = vunpack.c.l.b16 %v1077
    %v4487 = vunpack.c.h.b16 %v1077
    %v4488 = vunpack.c.l.b16 %v1078
    %v4489 = vunpack.c.h.b16 %v1078
    %v4490 = vunpack.c.l.b16 %v1079
    %v4491 = vunpack.c.h.b16 %v1079
    %v4492 = vunpack.c.l.b16 %v1080
    %v4493 = vunpack.c.h.b16 %v1080
    %v4494 = vunpack.c.l.b16 %v1081
    %v4495 = vunpack.c.h.b16 %v1081
    %v4496 = vunpack.c.l.b16 %v1082
    %v4497 = vunpack.c.h.b16 %v1082
    %v4498 = vunpack.c.l.b16 %v1083
    %v4499 = vunpack.c.h.b16 %v1083
    %v4500 = vunpack.c.l.b16 %v1084
    %v4501 = vunpack.c.h.b16 %v1084
    %v4502 = vunpack.c.l.b16 %v1085
    %v4503 = vunpack.c.h.b16 %v1085
    %v4504 = vunpack.c.l.b16 %v1086
    %v4505 = vunpack.c.h.b16 %v1086
    %v4506 = vunpack.c.l.b16 %v1087
    %v4507 = vunpack.c.h.b16 %v1087
    %v4508 = vunpack.c.l.b16 %v1088
    %v4509 = vunpack.c.h.b16 %v1088
    %v4510 = vunpack.c.l.b16 %v1089
    %v4511 = vunpack.c.h.b16 %v1089
    %v4512 = vunpack.c.l.b16 %v1090
    %v4513 = vunpack.c.h.b16 %v1090
    %v4514 = vunpack.c.l.b16 %v1091
    %v4515 = vunpack.c.h.b16 %v1091
    %v4516 = vunpack.c.l.b16 %v1092
    %v4517 = vunpack.c.h.b16 %v1092
    %v4518 = vunpack.c.l.b16 %v1093
    %v4519 = vunpack.c.h.b16 %v1093
    %v4520 = vunpack.c.l.b16 %v1094
    %v4521 = vunpack.c.h.b16 %v1094
    %v4522 = vunpack.c.l.b16 %v1095
    %v4523 = vunpack.c.h.b16 %v1095
    %v4524 = vunpack.c.l.b16 %v1096
    %v4525 = vunpack.c.h.b16 %v1096
    %v4526 = vunpack.c.l.b16 %v1097
    %v4527 = vunpack.c.h.b16 %v1097
    %v4528 = vunpack.c.l.b16 %v1098
    %v4529 = vunpack.c.h.b16 %v1098
    %v4530 = vunpack.c.l.b16 %v1099
    %v4531 = vunpack.c.h.b16 %v1099
    %v4532 = vunpack.c.l.b16 %v1100
    %v4533 = vunpack.c.h.b16 %v1100
    %v4534 = vunpack.c.l.b16 %v1101
    %v4535 = vunpack.c.h.b16 %v1101
    %v4536 = vunpack.c.l.b16 %v1102
    %v4537 = vunpack.c.h.b16 %v1102
    %v4538 = vunpack.c.l.b16 %v1103
    %v4539 = vunpack.c.h.b16 %v1103
    %v4540 = vunpack.c.l.b16 %v1104
    %v4541 = vunpack.c.h.b16 %v1104
    %v4542 = vunpack.c.l.b16 %v1105
    %v4543 = vunpack.c.h.b16 %v1105
    %v4544 = vunpack.c.l.b16 %v1106
    %v4545 = vunpack.c.h.b16 %v1106
    %v4546 = vunpack.c.l.b16 %v1107
    %v4547 = vunpack.c.h.b16 %v1107
    %v4548 = vunpack.c.l.b16 %v1108
    %v4549 = vunpack.c.h.b16 %v1108
    %v4550 = vunpack.c.l.b16 %v1109
    %v4551 = vunpack.c.h.b16 %v1109
    %v4552 = vunpack.c.l.b16 %v1110
    %v4553 = vunpack.c.h.b16 %v1110
    %v4554 = vunpack.c.l.b16 %v1111
    %v4555 = vunpack.c.h.b16 %v1111
    %v4556 = vunpack.c.l.b16 %v1112
    %v4557 = vunpack.c.h.b16 %v1112
    %v4558 = vunpack.c.l.b16 %v1113
    %v4559 = vunpack.c.h.b16 %v1113
    %v4560 = vunpack.c.l.b16 %v1114
    %v4561 = vunpack.c.h.b16 %v1114
    %v4562 = vunpack.c.l.b16 %v1115
    %v4563 = vunpack.c.h.b16 %v1115
    %v4564 = vunpack.c.l.b16 %v1116
    %v4565 = vunpack.c.h.b16 %v1116
    %v4566 = vunpack.c.l.b16 %v1117
    %v4567 = vunpack.c.h.b16 %v1117
    %v4568 = vunpack.c.l.b16 %v1118
    %v4569 = vunpack.c.h.b16 %v1118
    %v4570 = vunpack.c.l.b16 %v1119
    %v4571 = vunpack.c.h.b16 %v1119
    %v4572 = vunpack.c.l.b16 %v1120
    %v4573 = vunpack.c.h.b16 %v1120
    %v4574 = vunpack.c.l.b16 %v1121
    %v4575 = vunpack.c.h.b16 %v1121
    %v4576 = vunpack.c.l.b16 %v1122
    %v4577 = vunpack.c.h.b16 %v1122
    %v4578 = vunpack.c.l.b16 %v1123
    %v4579 = vunpack.c.h.b16 %v1123
    %v4580 = vunpack.c.l.b16 %v1124
    %v4581 = vunpack.c.h.b16 %v1124
    %v4582 = vunpack.c.l.b16 %v1125
    %v4583 = vunpack.c.h.b16 %v1125
    %v4584 = vunpack.c.l.b16 %v1126
    %v4585 = vunpack.c.h.b16 %v1126
    %v4586 = vunpack.c.l.b16 %v1127
    %v4587 = vunpack.c.h.b16 %v1127
    %v4588 = vunpack.c.l.b16 %v1128
    %v4589 = vunpack.c.h.b16 %v1128
    %v4590 = vunpack.c.l.b16 %v1129
    %v4591 = vunpack.c.h.b16 %v1129
    %v4592 = vunpack.c.l.b16 %v1130
    %v4593 = vunpack.c.h.b16 %v1130
    %v4594 = vunpack.c.l.b16 %v1131
    %v4595 = vunpack.c.h.b16 %v1131
    %v4596 = vunpack.c.l.b16 %v1132
    %v4597 = vunpack.c.h.b16 %v1132
    %v4598 = vunpack.c.l.b16 %v1133
    %v4599 = vunpack.c.h.b16 %v1133
    %v4600 = vunpack.c.l.b16 %v1134
    %v4601 = vunpack.c.h.b16 %v1134
    %v4602 = vunpack.c.l.b16 %v1135
    %v4603 = vunpack.c.h.b16 %v1135
    %v4604 = vunpack.c.l.b16 %v1136
    %v4605 = vunpack.c.h.b16 %v1136
    %v4606 = vunpack.c.l.b16 %v1137
    %v4607 = vunpack.c.h.b16 %v1137
    %v4608 = vunpack.c.l.b16 %v1138
    %v4609 = vunpack.c.h.b16 %v1138
    %v4610 = vunpack.c.l.b16 %v1139
    %v4611 = vunpack.c.h.b16 %v1139
    %v4612 = vunpack.c.l.b16 %v1140
    %v4613 = vunpack.c.h.b16 %v1140
    %v4614 = vunpack.c.l.b16 %v1141
    %v4615 = vunpack.c.h.b16 %v1141
    %v4616 = vunpack.c.l.b16 %v1142
    %v4617 = vunpack.c.h.b16 %v1142
    %v4618 = vunpack.c.l.b16 %v1143
    %v4619 = vunpack.c.h.b16 %v1143
    %v4620 = vunpack.c.l.b16 %v1144
    %v4621 = vunpack.c.h.b16 %v1144
    %v4622 = vunpack.c.l.b16 %v1145
    %v4623 = vunpack.c.h.b16 %v1145
    %v4624 = vunpack.c.l.b16 %v1146
    %v4625 = vunpack.c.h.b16 %v1146
    %v4626 = vunpack.c.l.b16 %v1147
    %v4627 = vunpack.c.h.b16 %v1147
    %v4628 = vunpack.c.l.b16 %v1148
    %v4629 = vunpack.c.h.b16 %v1148
    %v4630 = vunpack.c.l.b16 %v1149
    %v4631 = vunpack.c.h.b16 %v1149
    %v4632 = vunpack.c.l.b16 %v1150
    %v4633 = vunpack.c.h.b16 %v1150
    %v4634 = vunpack.c.l.b16 %v1151
    %v4635 = vunpack.c.h.b16 %v1151
    %v4636 = vunpack.c.l.b16 %v1152
    %v4637 = vunpack.c.h.b16 %v1152
    %v4638 = vunpack.c.l.b16 %v1153
    %v4639 = vunpack.c.h.b16 %v1153
    %v4640 = vunpack.c.l.b16 %v1154
    %v4641 = vunpack.c.h.b16 %v1154
    %v4642 = vunpack.c.l.b16 %v1155
    %v4643 = vunpack.c.h.b16 %v1155
    %v4644 = vunpack.c.l.b16 %v1156
    %v4645 = vunpack.c.h.b16 %v1156
    %v4646 = vunpack.c.l.b16 %v1157
    %v4647 = vunpack.c.h.b16 %v1157
    %v4648 = vunpack.c.l.b16 %v1158
    %v4649 = vunpack.c.h.b16 %v1158
    %v4650 = vunpack.c.l.b16 %v1159
    %v4651 = vunpack.c.h.b16 %v1159
    %v4652 = vunpack.c.l.b16 %v1160
    %v4653 = vunpack.c.h.b16 %v1160
    %v4654 = vunpack.c.l.b16 %v1161
    %v4655 = vunpack.c.h.b16 %v1161
    %v4656 = vunpack.c.l.b16 %v1162
    %v4657 = vunpack.c.h.b16 %v1162
    %v4658 = vunpack.c.l.b16 %v1163
    %v4659 = vunpack.c.h.b16 %v1163
    %v4660 = vunpack.c.l.b16 %v1164
    %v4661 = vunpack.c.h.b16 %v1164
    %v4662 = vunpack.c.l.b16 %v1165
    %v4663 = vunpack.c.h.b16 %v1165
    %v4664 = vunpack.c.l.b16 %v1166
    %v4665 = vunpack.c.h.b16 %v1166
    %v4666 = vunpack.c.l.b16 %v1167
    %v4667 = vunpack.c.h.b16 %v1167
    %v4668 = vunpack.c.l.b16 %v1168
    %v4669 = vunpack.c.h.b16 %v1168
    %v4670 = vunpack.c.l.b16 %v1169
    %v4671 = vunpack.c.h.b16 %v1169
    %v4672 = vunpack.c.l.b16 %v1170
    %v4673 = vunpack.c.h.b16 %v1170
    %v4674 = vunpack.c.l.b16 %v1171
    %v4675 = vunpack.c.h.b16 %v1171
    %v4676 = vunpack.c.l.b16 %v1172
    %v4677 = vunpack.c.h.b16 %v1172
    %v4678 = vunpack.c.l.b16 %v1173
    %v4679 = vunpack.c.h.b16 %v1173
    %v4680 = vunpack.c.l.b16 %v1174
    %v4681 = vunpack.c.h.b16 %v1174
    %v4682 = vunpack.c.l.b16 %v1175
    %v4683 = vunpack.c.h.b16 %v1175
    %v4684 = vunpack.c.l.b16 %v1176
    %v4685 = vunpack.c.h.b16 %v1176
    %v4686 = vunpack.c.l.b16 %v1177
    %v4687 = vunpack.c.h.b16 %v1177
    %v4688 = vunpack.c.l.b16 %v1178
    %v4689 = vunpack.c.h.b16 %v1178
    %v4690 = vunpack.c.l.b16 %v1179
    %v4691 = vunpack.c.h.b16 %v1179
    %v4692 = vunpack.c.l.b16 %v1180
    %v4693 = vunpack.c.h.b16 %v1180
    %v4694 = vunpack.c.l.b16 %v1181
    %v4695 = vunpack.c.h.b16 %v1181
    %v4696 = vunpack.c.l.b16 %v1182
    %v4697 = vunpack.c.h.b16 %v1182
    %v4698 = vunpack.c.l.b16 %v1183
    %v4699 = vunpack.c.h.b16 %v1183
    %v4700 = vunpack.c.l.b16 %v1184
    %v4701 = vunpack.c.h.b16 %v1184
    %v4702 = vunpack.c.l.b16 %v1185
    %v4703 = vunpack.c.h.b16 %v1185
    %v4704 = vunpack.c.l.b16 %v1186
    %v4705 = vunpack.c.h.b16 %v1186
    %v4706 = vunpack.c.l.b16 %v1187
    %v4707 = vunpack.c.h.b16 %v1187
    %v4708 = vunpack.c.l.b16 %v1188
    %v4709 = vunpack.c.h.b16 %v1188
    %v4710 = vunpack.c.l.b16 %v1189
    %v4711 = vunpack.c.h.b16 %v1189
    %v4712 = vunpack.c.l.b16 %v1190
    %v4713 = vunpack.c.h.b16 %v1190
    %v4714 = vunpack.c.l.b16 %v1191
    %v4715 = vunpack.c.h.b16 %v1191
    %v4716 = vunpack.c.l.b16 %v1192
    %v4717 = vunpack.c.h.b16 %v1192
    %v4718 = vunpack.c.l.b16 %v1193
    %v4719 = vunpack.c.h.b16 %v1193
    %v4720 = vunpack.c.l.b16 %v1194
    %v4721 = vunpack.c.h.b16 %v1194
    %v4722 = vunpack.c.l.b16 %v1195
    %v4723 = vunpack.c.h.b16 %v1195
    %v4724 = vunpack.c.l.b16 %v1196
    %v4725 = vunpack.c.h.b16 %v1196
    %v4726 = vunpack.c.l.b16 %v1197
    %v4727 = vunpack.c.h.b16 %v1197
    %v4728 = vunpack.c.l.b16 %v1198
    %v4729 = vunpack.c.h.b16 %v1198
    %v4730 = vunpack.c.l.b16 %v1199
    %v4731 = vunpack.c.h.b16 %v1199
    %v4732 = vunpack.c.l.b16 %v1200
    %v4733 = vunpack.c.h.b16 %v1200
    %v4734 = vunpack.c.l.b16 %v1201
    %v4735 = vunpack.c.h.b16 %v1201
    %v4736 = vunpack.c.l.b16 %v1202
    %v4737 = vunpack.c.h.b16 %v1202
    %v4738 = vunpack.c.l.b16 %v1203
    %v4739 = vunpack.c.h.b16 %v1203
    %v4740 = vunpack.c.l.b16 %v1204
    %v4741 = vunpack.c.h.b16 %v1204
    %v4742 = vunpack.c.l.b16 %v1205
    %v4743 = vunpack.c.h.b16 %v1205
    %v4744 = vunpack.c.l.b16 %v1206
    %v4745 = vunpack.c.h.b16 %v1206
    %v4746 = vunpack.c.l.b16 %v1207
    %v4747 = vunpack.c.h.b16 %v1207
    %v4748 = vunpack.c.l.b16 %v1208
    %v4749 = vunpack.c.h.b16 %v1208
    %v4750 = vunpack.c.l.b16 %v1209
    %v4751 = vunpack.c.h.b16 %v1209
    %v4752 = vunpack.c.l.b16 %v1210
    %v4753 = vunpack.c.h.b16 %v1210
    %v4754 = vunpack.c.l.b16 %v1211
    %v4755 = vunpack.c.h.b16 %v1211
    %v4756 = vunpack.c.l.b16 %v1212
    %v4757 = vunpack.c.h.b16 %v1212
    %v4758 = vunpack.c.l.b16 %v1213
    %v4759 = vunpack.c.h.b16 %v1213
    %v4760 = vunpack.c.l.b16 %v1214
    %v4761 = vunpack.c.h.b16 %v1214
    %v4762 = vunpack.c.l.b16 %v1215
    %v4763 = vunpack.c.h.b16 %v1215
    %v4764 = vunpack.c.l.b16 %v1216
    %v4765 = vunpack.c.h.b16 %v1216
    %v4766 = vunpack.c.l.b16 %v1217
    %v4767 = vunpack.c.h.b16 %v1217
    %v4768 = vunpack.c.l.b16 %v1218
    %v4769 = vunpack.c.h.b16 %v1218
    %v4770 = vunpack.c.l.b16 %v1219
    %v4771 = vunpack.c.h.b16 %v1219
    %v4772 = vunpack.c.l.b16 %v1220
    %v4773 = vunpack.c.h.b16 %v1220
    %v4774 = vunpack.c.l.b16 %v1221
    %v4775 = vunpack.c.h.b16 %v1221
    %v4776 = vunpack.c.l.b16 %v1222
    %v4777 = vunpack.c.h.b16 %v1222
    %v4778 = vunpack.c.l.b16 %v1223
    %v4779 = vunpack.c.h.b16 %v1223
    %v4780 = vunpack.c.l.b16 %v1224
    %v4781 = vunpack.c.h.b16 %v1224
    %v4782 = vunpack.c.l.b16 %v1225
    %v4783 = vunpack.c.h.b16 %v1225
    %v4784 = vunpack.c.l.b16 %v1226
    %v4785 = vunpack.c.h.b16 %v1226
    %v4786 = vunpack.c.l.b16 %v1227
    %v4787 = vunpack.c.h.b16 %v1227
    %v4788 = vunpack.c.l.b16 %v1228
    %v4789 = vunpack.c.h.b16 %v1228
    %v4790 = vunpack.c.l.b16 %v1229
    %v4791 = vunpack.c.h.b16 %v1229
    %v4792 = vunpack.c.l.b16 %v1230
    %v4793 = vunpack.c.h.b16 %v1230
    %v4794 = vunpack.c.l.b16 %v1231
    %v4795 = vunpack.c.h.b16 %v1231
    %v4796 = vunpack.c.l.b16 %v1232
    %v4797 = vunpack.c.h.b16 %v1232
    %v4798 = vunpack.c.l.b16 %v1233
    %v4799 = vunpack.c.h.b16 %v1233
    %v4800 = vunpack.c.l.b16 %v1234
    %v4801 = vunpack.c.h.b16 %v1234
    %v4802 = vunpack.c.l.b16 %v1235
    %v4803 = vunpack.c.h.b16 %v1235
    %v4804 = vunpack.c.l.b16 %v1236
    %v4805 = vunpack.c.h.b16 %v1236
    %v4806 = vunpack.c.l.b16 %v1237
    %v4807 = vunpack.c.h.b16 %v1237
    %v4808 = vunpack.c.l.b16 %v1238
    %v4809 = vunpack.c.h.b16 %v1238
    %v4810 = vunpack.c.l.b16 %v1239
    %v4811 = vunpack.c.h.b16 %v1239
    %v4812 = vunpack.c.l.b16 %v1240
    %v4813 = vunpack.c.h.b16 %v1240
    %v4814 = vunpack.c.l.b16 %v1241
    %v4815 = vunpack.c.h.b16 %v1241
    %v4816 = vunpack.c.l.b16 %v1242
    %v4817 = vunpack.c.h.b16 %v1242
    %v4818 = vunpack.c.l.b16 %v1243
    %v4819 = vunpack.c.h.b16 %v1243
    %v4820 = vunpack.c.l.b16 %v1244
    %v4821 = vunpack.c.h.b16 %v1244
    %v4822 = vunpack.c.l.b16 %v1245
    %v4823 = vunpack.c.h.b16 %v1245
    %v4824 = vunpack.c.l.b16 %v1246
    %v4825 = vunpack.c.h.b16 %v1246
    %v4826 = vunpack.c.l.b16 %v1247
    %v4827 = vunpack.c.h.b16 %v1247
    %v4828 = vunpack.c.l.b16 %v1248
    %v4829 = vunpack.c.h.b16 %v1248
    %v4830 = vunpack.c.l.b16 %v1249
    %v4831 = vunpack.c.h.b16 %v1249
    %v4832 = vunpack.c.l.b16 %v1250
    %v4833 = vunpack.c.h.b16 %v1250
    %v4834 = vunpack.c.l.b16 %v1251
    %v4835 = vunpack.c.h.b16 %v1251
    %v4836 = vunpack.c.l.b16 %v1252
    %v4837 = vunpack.c.h.b16 %v1252
    %v4838 = vunpack.c.l.b16 %v1253
    %v4839 = vunpack.c.h.b16 %v1253
    %v4840 = vunpack.c.l.b16 %v1254
    %v4841 = vunpack.c.h.b16 %v1254
    %v4842 = vunpack.c.l.b16 %v1255
    %v4843 = vunpack.c.h.b16 %v1255
    %v4844 = vunpack.c.l.b16 %v1256
    %v4845 = vunpack.c.h.b16 %v1256
    %v4846 = vunpack.c.l.b16 %v1257
    %v4847 = vunpack.c.h.b16 %v1257
    %v4848 = vunpack.c.l.b16 %v1258
    %v4849 = vunpack.c.h.b16 %v1258
    %v4850 = vunpack.c.l.b16 %v1259
    %v4851 = vunpack.c.h.b16 %v1259
    %v4852 = vunpack.c.l.b16 %v1260
    %v4853 = vunpack.c.h.b16 %v1260
    %v4854 = vunpack.c.l.b16 %v1261
    %v4855 = vunpack.c.h.b16 %v1261
    %v4856 = vunpack.c.l.b16 %v1262
    %v4857 = vunpack.c.h.b16 %v1262
    %v4858 = vunpack.c.l.b16 %v1263
    %v4859 = vunpack.c.h.b16 %v1263
    %v4860 = vunpack.c.l.b16 %v1264
    %v4861 = vunpack.c.h.b16 %v1264
    %v4862 = vunpack.c.l.b16 %v1265
    %v4863 = vunpack.c.h.b16 %v1265
    %v4864 = vunpack.c.l.b16 %v1266
    %v4865 = vunpack.c.h.b16 %v1266
    %v4866 = vunpack.c.l.b16 %v1267
    %v4867 = vunpack.c.h.b16 %v1267
    %v4868 = vunpack.c.l.b16 %v1268
    %v4869 = vunpack.c.h.b16 %v1268
    %v4870 = vunpack.c.l.b16 %v1269
    %v4871 = vunpack.c.h.b16 %v1269
    %v4872 = vunpack.c.l.b16 %v1270
    %v4873 = vunpack.c.h.b16 %v1270
    %v4874 = vunpack.c.l.b16 %v1271
    %v4875 = vunpack.c.h.b16 %v1271
    %v4876 = vunpack.c.l.b16 %v1272
    %v4877 = vunpack.c.h.b16 %v1272
    %v4878 = vunpack.c.l.b16 %v1273
    %v4879 = vunpack.c.h.b16 %v1273
    %v4880 = vunpack.c.l.b16 %v1274
    %v4881 = vunpack.c.h.b16 %v1274
    %v4882 = vunpack.c.l.b16 %v1275
    %v4883 = vunpack.c.h.b16 %v1275
    %v4884 = vpack.c.b16 %v2586, %v2580
    %v4885 = vpack.c.b16 %v2587, %v2581
    %v4886 = vpack.c.b16 %v2588, %v2582
    %v4887 = vpack.c.b16 %v2589, %v2583
    %v4888 = vpack.c.b16 %v2590, %v2584
    %v4889 = vpack.c.b16 %v2591, %v2585
    %v4890 = vpack.c.b16 %v2598, %v2592
    %v4891 = vpack.c.b16 %v2599, %v2593
    %v4892 = vpack.c.b16 %v2600, %v2594
    %v4893 = vpack.c.b16 %v2601, %v2595
    %v4894 = vpack.c.b16 %v2602, %v2596
    %v4895 = vpack.c.b16 %v2603, %v2597
    %v4896 = vpack.c.b16 %v2610, %v2604
    %v4897 = vpack.c.b16 %v2611, %v2605
    %v4898 = vpack.c.b16 %v2612, %v2606
    %v4899 = vpack.c.b16 %v2613, %v2607
    %v4900 = vpack.c.b16 %v2614, %v2608
    %v4901 = vpack.c.b16 %v2615, %v2609
    %v4902 = vpack.c.b16 %v2622, %v2616
    %v4903 = vpack.c.b16 %v2623, %v2617
    %v4904 = vpack.c.b16 %v2624, %v2618
    %v4905 = vpack.c.b16 %v2625, %v2619
    %v4906 = vpack.c.b16 %v2626, %v2620
    %v4907 = vpack.c.b16 %v2627, %v2621
    %v4908 = vpack.c.b16 %v2634, %v2628
    %v4909 = vpack.c.b16 %v2635, %v2629
    %v4910 = vpack.c.b16 %v2636, %v2630
    %v4911 = vpack.c.b16 %v2637, %v2631
    %v4912 = vpack.c.b16 %v2638, %v2632
    %v4913 = vpack.c.b16 %v2639, %v2633
    %v4914 = vpack.c.b16 %v2646, %v2640
    %v4915 = vpack.c.b16 %v2647, %v2641
    %v4916 = vpack.c.b16 %v2648, %v2642
    %v4917 = vpack.c.b16 %v2649, %v2643
    %v4918 = vpack.c.b16 %v2650, %v2644
    %v4919 = vpack.c.b16 %v2651, %v2645
    %v4920 = vpack.c.b16 %v2658, %v2652
    %v4921 = vpack.c.b16 %v2659, %v2653
    %v4922 = vpack.c.b16 %v2660, %v2654
    %v4923 = vpack.c.b16 %v2661, %v2655
    %v4924 = vpack.c.b16 %v2662, %v2656
    %v4925 = vpack.c.b16 %v2663, %v2657
    %v4926 = vpack.c.b16 %v2670, %v2664
    %v4927 = vpack.c.b16 %v2671, %v2665
    %v4928 = vpack.c.b16 %v2672, %v2666
    %v4929 = vpack.c.b16 %v2673, %v2667
    %v4930 = vpack.c.b16 %v2674, %v2668
    %v4931 = vpack.c.b16 %v2675, %v2669
    %v4932 = vpack.c.b16 %v2682, %v2676
    %v4933 = vpack.c.b16 %v2683, %v2677
    %v4934 = vpack.c.b16 %v2684, %v2678
    %v4935 = vpack.c.b16 %v2685, %v2679
    %v4936 = vpack.c.b16 %v2686, %v2680
    %v4937 = vpack.c.b16 %v2687, %v2681
    %v4938 = vpack.c.b16 %v2694, %v2688
    %v4939 = vpack.c.b16 %v2695, %v2689
    %v4940 = vpack.c.b16 %v2696, %v2690
    %v4941 = vpack.c.b16 %v2697, %v2691
    %v4942 = vpack.c.b16 %v2698, %v2692
    %v4943 = vpack.c.b16 %v2699, %v2693
    %v4944 = vpack.c.b16 %v2706, %v2700
    %v4945 = vpack.c.b16 %v2707, %v2701
    %v4946 = vpack.c.b16 %v2708, %v2702
    %v4947 = vpack.c.b16 %v2709, %v2703
    %v4948 = vpack.c.b16 %v2710, %v2704
    %v4949 = vpack.c.b16 %v2711, %v2705
    %v4950 = vpack.c.b16 %v2718, %v2712
    %v4951 = vpack.c.b16 %v2719, %v2713
    %v4952 = vpack.c.b16 %v2720, %v2714
    %v4953 = vpack.c.b16 %v2721, %v2715
    %v4954 = vpack.c.b16 %v2722, %v2716
    %v4955 = vpack.c.b16 %v2723, %v2717
    %v4956 = vpack.c.b16 %v2730, %v2724
    %v4957 = vpack.c.b16 %v2731, %v2725
    %v4958 = vpack.c.b16 %v2732, %v2726
    %v4959 = vpack.c.b16 %v2733, %v2727
    %v4960 = vpack.c.b16 %v2734, %v2728
    %v4961 = vpack.c.b16 %v2735, %v2729
    %v4962 = vpack.c.b16 %v2742, %v2736
    %v4963 = vpack.c.b16 %v2743, %v2737
    %v4964 = vpack.c.b16 %v2744, %v2738
    %v4965 = vpack.c.b16 %v2745, %v2739
    %v4966 = vpack.c.b16 %v2746, %v2740
    %v4967 = vpack.c.b16 %v2747, %v2741
    %v4968 = vpack.c.b16 %v2754, %v2748
    %v4969 = vpack.c.b16 %v2755, %v2749
    %v4970 = vpack.c.b16 %v2756, %v2750
    %v4971 = vpack.c.b16 %v2757, %v2751
    %v4972 = vpack.c.b16 %v2758, %v2752
    %v4973 = vpack.c.b16 %v2759, %v2753
    %v4974 = vpack.c.b16 %v2766, %v2760
    %v4975 = vpack.c.b16 %v2767, %v2761
    %v4976 = vpack.c.b16 %v2768, %v2762
    %v4977 = vpack.c.b16 %v2769, %v2763
    %v4978 = vpack.c.b16 %v2770, %v2764
    %v4979 = vpack.c.b16 %v2771, %v2765
    %v4980 = vpack.c.b16 %v2778, %v2772
    %v4981 = vpack.c.b16 %v2779, %v2773
    %v4982 = vpack.c.b16 %v2780, %v2774
    %v4983 = vpack.c.b16 %v2781, %v2775
    %v4984 = vpack.c.b16 %v2782, %v2776
    %v4985 = vpack.c.b16 %v2783, %v2777
    %v4986 = vpack.c.b16 %v2790, %v2784
    %v4987 = vpack.c.b16 %v2791, %v2785
    %v4988 = vpack.c.b16 %v2792, %v2786
    %v4989 = vpack.c.b16 %v2793, %v2787
    %v4990 = vpack.c.b16 %v2794, %v2788
    %v4991 = vpack.c.b16 %v2795, %v2789
    %v4992 = vpack.c.b16 %v2802, %v2796
    %v4993 = vpack.c.b16 %v2803, %v2797
    %v4994 = vpack.c.b16 %v2804, %v2798
    %v4995 = vpack.c.b16 %v2805, %v2799
    %v4996 = vpack.c.b16 %v2806, %v2800
    %v4997 = vpack.c.b16 %v2807, %v2801
    %v4998 = vpack.c.b16 %v2814, %v2808
    %v4999 = vpack.c.b16 %v2815, %v2809
    %v5000 = vpack.c.b16 %v2816, %v2810
    %v5001 = vpack.c.b16 %v2817, %v2811
    %v5002 = vpack.c.b16 %v2818, %v2812
    %v5003 = vpack.c.b16 %v2819, %v2813
    %v5004 = vpack.c.b16 %v2826, %v2820
    %v5005 = vpack.c.b16 %v2827, %v2821
    %v5006 = vpack.c.b16 %v2828, %v2822
    %v5007 = vpack.c.b16 %v2829, %v2823
    %v5008 = vpack.c.b16 %v2830, %v2824
    %v5009 = vpack.c.b16 %v2831, %v2825
    %v5010 = vpack.c.b16 %v2838, %v2832
    %v5011 = vpack.c.b16 %v2839, %v2833
    %v5012 = vpack.c.b16 %v2840, %v2834
    %v5013 = vpack.c.b16 %v2841, %v2835
    %v5014 = vpack.c.b16 %v2842, %v2836
    %v5015 = vpack.c.b16 %v2843, %v2837
    %v5016 = vpack.c.b16 %v2850, %v2844
    %v5017 = vpack.c.b16 %v2851, %v2845
    %v5018 = vpack.c.b16 %v2852, %v2846
    %v5019 = vpack.c.b16 %v2853, %v2847
    %v5020 = vpack.c.b16 %v2854, %v2848
    %v5021 = vpack.c.b16 %v2855, %v2849
    %v5022 = vpack.c.b16 %v2862, %v2856
    %v5023 = vpack.c.b16 %v2863, %v2857
    %v5024 = vpack.c.b16 %v2864, %v2858
    %v5025 = vpack.c.b16 %v2865, %v2859
    %v5026 = vpack.c.b16 %v2866, %v2860
    %v5027 = vpack.c.b16 %v2867, %v2861
    %v5028 = vpack.c.b16 %v2874, %v2868
    %v5029 = vpack.c.b16 %v2875, %v2869
    %v5030 = vpack.c.b16 %v2876, %v2870
    %v5031 = vpack.c.b16 %v2877, %v2871
    %v5032 = vpack.c.b16 %v2878, %v2872
    %v5033 = vpack.c.b16 %v2879, %v2873
    %v5034 = vpack.c.b16 %v2886, %v2880
    %v5035 = vpack.c.b16 %v2887, %v2881
    %v5036 = vpack.c.b16 %v2888, %v2882
    %v5037 = vpack.c.b16 %v2889, %v2883
    %v5038 = vpack.c.b16 %v2890, %v2884
    %v5039 = vpack.c.b16 %v2891, %v2885
    %v5040 = vpack.c.b16 %v2898, %v2892
    %v5041 = vpack.c.b16 %v2899, %v2893
    %v5042 = vpack.c.b16 %v2900, %v2894
    %v5043 = vpack.c.b16 %v2901, %v2895
    %v5044 = vpack.c.b16 %v2902, %v2896
    %v5045 = vpack.c.b16 %v2903, %v2897
    %v5046 = vpack.c.b16 %v2910, %v2904
    %v5047 = vpack.c.b16 %v2911, %v2905
    %v5048 = vpack.c.b16 %v2912, %v2906
    %v5049 = vpack.c.b16 %v2913, %v2907
    %v5050 = vpack.c.b16 %v2914, %v2908
    %v5051 = vpack.c.b16 %v2915, %v2909
    %v5052 = vpack.c.b16 %v2922, %v2916
    %v5053 = vpack.c.b16 %v2923, %v2917
    %v5054 = vpack.c.b16 %v2924, %v2918
    %v5055 = vpack.c.b16 %v2925, %v2919
    %v5056 = vpack.c.b16 %v2926, %v2920
    %v5057 = vpack.c.b16 %v2927, %v2921
    %v5058 = vpack.c.b16 %v2934, %v2928
    %v5059 = vpack.c.b16 %v2935, %v2929
    %v5060 = vpack.c.b16 %v2936, %v2930
    %v5061 = vpack.c.b16 %v2937, %v2931
    %v5062 = vpack.c.b16 %v2938, %v2932
    %v5063 = vpack.c.b16 %v2939, %v2933
    %v5064 = vpack.c.b16 %v2946, %v2940
    %v5065 = vpack.c.b16 %v2947, %v2941
    %v5066 = vpack.c.b16 %v2948, %v2942
    %v5067 = vpack.c.b16 %v2949, %v2943
    %v5068 = vpack.c.b16 %v2950, %v2944
    %v5069 = vpack.c.b16 %v2951, %v2945
    %v5070 = vpack.c.b16 %v2958, %v2952
    %v5071 = vpack.c.b16 %v2959, %v2953
    %v5072 = vpack.c.b16 %v2960, %v2954
    %v5073 = vpack.c.b16 %v2961, %v2955
    %v5074 = vpack.c.b16 %v2962, %v2956
    %v5075 = vpack.c.b16 %v2963, %v2957
    %v5076 = vpack.c.b16 %v2970, %v2964
    %v5077 = vpack.c.b16 %v2971, %v2965
    %v5078 = vpack.c.b16 %v2972, %v2966
    %v5079 = vpack.c.b16 %v2973, %v2967
    %v5080 = vpack.c.b16 %v2974, %v2968
    %v5081 = vpack.c.b16 %v2975, %v2969
    %v5082 = vpack.c.b16 %v2982, %v2976
    %v5083 = vpack.c.b16 %v2983, %v2977
    %v5084 = vpack.c.b16 %v2984, %v2978
    %v5085 = vpack.c.b16 %v2985, %v2979
    %v5086 = vpack.c.b16 %v2986, %v2980
    %v5087 = vpack.c.b16 %v2987, %v2981
    %v5088 = vpack.c.b16 %v2994, %v2988
    %v5089 = vpack.c.b16 %v2995, %v2989
    %v5090 = vpack.c.b16 %v2996, %v2990
    %v5091 = vpack.c.b16 %v2997, %v2991
    %v5092 = vpack.c.b16 %v2998, %v2992
    %v5093 = vpack.c.b16 %v2999, %v2993
    %v5094 = vpack.c.b16 %v3006, %v3000
    %v5095 = vpack.c.b16 %v3007, %v3001
    %v5096 = vpack.c.b16 %v3008, %v3002
    %v5097 = vpack.c.b16 %v3009, %v3003
    %v5098 = vpack.c.b16 %v3010, %v3004
    %v5099 = vpack.c.b16 %v3011, %v3005
    %v5100 = vpack.c.b16 %v3018, %v3012
    %v5101 = vpack.c.b16 %v3019, %v3013
    %v5102 = vpack.c.b16 %v3020, %v3014
    %v5103 = vpack.c.b16 %v3021, %v3015
    %v5104 = vpack.c.b16 %v3022, %v3016
    %v5105 = vpack.c.b16 %v3023, %v3017
    %v5106 = vpack.c.b16 %v3030, %v3024
    %v5107 = vpack.c.b16 %v3031, %v3025
    %v5108 = vpack.c.b16 %v3032, %v3026
    %v5109 = vpack.c.b16 %v3033, %v3027
    %v5110 = vpack.c.b16 %v3034, %v3028
    %v5111 = vpack.c.b16 %v3035, %v3029
    %v5112 = vpack.c.b16 %v3042, %v3036
    %v5113 = vpack.c.b16 %v3043, %v3037
    %v5114 = vpack.c.b16 %v3044, %v3038
    %v5115 = vpack.c.b16 %v3045, %v3039
    %v5116 = vpack.c.b16 %v3046, %v3040
    %v5117 = vpack.c.b16 %v3047, %v3041
    %v5118 = vpack.c.b16 %v3054, %v3048
    %v5119 = vpack.c.b16 %v3055, %v3049
    %v5120 = vpack.c.b16 %v3056, %v3050
    %v5121 = vpack.c.b16 %v3057, %v3051
    %v5122 = vpack.c.b16 %v3058, %v3052
    %v5123 = vpack.c.b16 %v3059, %v3053
    %v5124 = vpack.c.b16 %v3066, %v3060
    %v5125 = vpack.c.b16 %v3067, %v3061
    %v5126 = vpack.c.b16 %v3068, %v3062
    %v5127 = vpack.c.b16 %v3069, %v3063
    %v5128 = vpack.c.b16 %v3070, %v3064
    %v5129 = vpack.c.b16 %v3071, %v3065
    %v5130 = vpack.c.b16 %v3078, %v3072
    %v5131 = vpack.c.b16 %v3079, %v3073
    %v5132 = vpack.c.b16 %v3080, %v3074
    %v5133 = vpack.c.b16 %v3081, %v3075
    %v5134 = vpack.c.b16 %v3082, %v3076
    %v5135 = vpack.c.b16 %v3083, %v3077
    %v5136 = vpack.c.b16 %v3090, %v3084
    %v5137 = vpack.c.b16 %v3091, %v3085
    %v5138 = vpack.c.b16 %v3092, %v3086
    %v5139 = vpack.c.b16 %v3093, %v3087
    %v5140 = vpack.c.b16 %v3094, %v3088
    %v5141 = vpack.c.b16 %v3095, %v3089
    %v5142 = vpack.c.b16 %v3102, %v3096
    %v5143 = vpack.c.b16 %v3103, %v3097
    %v5144 = vpack.c.b16 %v3104, %v3098
    %v5145 = vpack.c.b16 %v3105, %v3099
    %v5146 = vpack.c.b16 %v3106, %v3100
    %v5147 = vpack.c.b16 %v3107, %v3101
    %v5148 = vpack.c.b16 %v3114, %v3108
    %v5149 = vpack.c.b16 %v3115, %v3109
    %v5150 = vpack.c.b16 %v3116, %v3110
    %v5151 = vpack.c.b16 %v3117, %v3111
    %v5152 = vpack.c.b16 %v3118, %v3112
    %v5153 = vpack.c.b16 %v3119, %v3113
    %v5154 = vpack.c.b16 %v3126, %v3120
    %v5155 = vpack.c.b16 %v3127, %v3121
    %v5156 = vpack.c.b16 %v3128, %v3122
    %v5157 = vpack.c.b16 %v3129, %v3123
    %v5158 = vpack.c.b16 %v3130, %v3124
    %v5159 = vpack.c.b16 %v3131, %v3125
    %v5160 = vpack.c.b16 %v3138, %v3132
    %v5161 = vpack.c.b16 %v3139, %v3133
    %v5162 = vpack.c.b16 %v3140, %v3134
    %v5163 = vpack.c.b16 %v3141, %v3135
    %v5164 = vpack.c.b16 %v3142, %v3136
    %v5165 = vpack.c.b16 %v3143, %v3137
    %v5166 = vpack.c.b16 %v3150, %v3144
    %v5167 = vpack.c.b16 %v3151, %v3145
    %v5168 = vpack.c.b16 %v3152, %v3146
    %v5169 = vpack.c.b16 %v3153, %v3147
    %v5170 = vpack.c.b16 %v3154, %v3148
    %v5171 = vpack.c.b16 %v3155, %v3149
    %v5172 = vpack.c.b16 %v3162, %v3156
    %v5173 = vpack.c.b16 %v3163, %v3157
    %v5174 = vpack.c.b16 %v3164, %v3158
    %v5175 = vpack.c.b16 %v3165, %v3159
    %v5176 = vpack.c.b16 %v3166, %v3160
    %v5177 = vpack.c.b16 %v3167, %v3161
    %v5178 = vpack.c.b16 %v3174, %v3168
    %v5179 = vpack.c.b16 %v3175, %v3169
    %v5180 = vpack.c.b16 %v3176, %v3170
    %v5181 = vpack.c.b16 %v3177, %v3171
    %v5182 = vpack.c.b16 %v3178, %v3172
    %v5183 = vpack.c.b16 %v3179, %v3173
    %v5184 = vpack.c.b16 %v3186, %v3180
    %v5185 = vpack.c.b16 %v3187, %v3181
    %v5186 = vpack.c.b16 %v3188, %v3182
    %v5187 = vpack.c.b16 %v3189, %v3183
    %v5188 = vpack.c.b16 %v3190, %v3184
    %v5189 = vpack.c.b16 %v3191, %v3185
    %v5190 = vpack.c.b16 %v3198, %v3192
    %v5191 = vpack.c.b16 %v3199, %v3193
    %v5192 = vpack.c.b16 %v3200, %v3194
    %v5193 = vpack.c.b16 %v3201, %v3195
    %v5194 = vpack.c.b16 %v3202, %v3196
    %v5195 = vpack.c.b16 %v3203, %v3197
    %v5196 = vpack.c.b16 %v3210, %v3204
    %v5197 = vpack.c.b16 %v3211, %v3205
    %v5198 = vpack.c.b16 %v3212, %v3206
    %v5199 = vpack.c.b16 %v3213, %v3207
    %v5200 = vpack.c.b16 %v3214, %v3208
    %v5201 = vpack.c.b16 %v3215, %v3209
    %v5202 = vpack.c.b16 %v3222, %v3216
    %v5203 = vpack.c.b16 %v3223, %v3217
    %v5204 = vpack.c.b16 %v3224, %v3218
    %v5205 = vpack.c.b16 %v3225, %v3219
    %v5206 = vpack.c.b16 %v3226, %v3220
    %v5207 = vpack.c.b16 %v3227, %v3221
    %v5208 = vpack.c.b16 %v3234, %v3228
    %v5209 = vpack.c.b16 %v3235, %v3229
    %v5210 = vpack.c.b16 %v3236, %v3230
    %v5211 = vpack.c.b16 %v3237, %v3231
    %v5212 = vpack.c.b16 %v3238, %v3232
    %v5213 = vpack.c.b16 %v3239, %v3233
    %v5214 = vpack.c.b16 %v3246, %v3240
    %v5215 = vpack.c.b16 %v3247, %v3241
    %v5216 = vpack.c.b16 %v3248, %v3242
    %v5217 = vpack.c.b16 %v3249, %v3243
    %v5218 = vpack.c.b16 %v3250, %v3244
    %v5219 = vpack.c.b16 %v3251, %v3245
    %v5220 = vpack.c.b16 %v3258, %v3252
    %v5221 = vpack.c.b16 %v3259, %v3253
    %v5222 = vpack.c.b16 %v3260, %v3254
    %v5223 = vpack.c.b16 %v3261, %v3255
    %v5224 = vpack.c.b16 %v3262, %v3256
    %v5225 = vpack.c.b16 %v3263, %v3257
    %v5226 = vpack.c.b16 %v3270, %v3264
    %v5227 = vpack.c.b16 %v3271, %v3265
    %v5228 = vpack.c.b16 %v3272, %v3266
    %v5229 = vpack.c.b16 %v3273, %v3267
    %v5230 = vpack.c.b16 %v3274, %v3268
    %v5231 = vpack.c.b16 %v3275, %v3269
    %v5232 = vpack.c.b16 %v3282, %v3276
    %v5233 = vpack.c.b16 %v3283, %v3277
    %v5234 = vpack.c.b16 %v3284, %v3278
    %v5235 = vpack.c.b16 %v3285, %v3279
    %v5236 = vpack.c.b16 %v3286, %v3280
    %v5237 = vpack.c.b16 %v3287, %v3281
    %v5238 = vpack.c.b16 %v3294, %v3288
    %v5239 = vpack.c.b16 %v3295, %v3289
    %v5240 = vpack.c.b16 %v3296, %v3290
    %v5241 = vpack.c.b16 %v3297, %v3291
    %v5242 = vpack.c.b16 %v3298, %v3292
    %v5243 = vpack.c.b16 %v3299, %v3293
    %v5244 = vpack.c.b16 %v3306, %v3300
    %v5245 = vpack.c.b16 %v3307, %v3301
    %v5246 = vpack.c.b16 %v3308, %v3302
    %v5247 = vpack.c.b16 %v3309, %v3303
    %v5248 = vpack.c.b16 %v3310, %v3304
    %v5249 = vpack.c.b16 %v3311, %v3305
    %v5250 = vpack.c.b16 %v3318, %v3312
    %v5251 = vpack.c.b16 %v3319, %v3313
    %v5252 = vpack.c.b16 %v3320, %v3314
    %v5253 = vpack.c.b16 %v3321, %v3315
    %v5254 = vpack.c.b16 %v3322, %v3316
    %v5255 = vpack.c.b16 %v3323, %v3317
    %v5256 = vpack.c.b16 %v3330, %v3324
    %v5257 = vpack.c.b16 %v3331, %v3325
    %v5258 = vpack.c.b16 %v3332, %v3326
    %v5259 = vpack.c.b16 %v3333, %v3327
    %v5260 = vpack.c.b16 %v3334, %v3328
    %v5261 = vpack.c.b16 %v3335, %v3329
    %v5262 = vpack.c.b16 %v3342, %v3336
    %v5263 = vpack.c.b16 %v3343, %v3337
    %v5264 = vpack.c.b16 %v3344, %v3338
    %v5265 = vpack.c.b16 %v3345, %v3339
    %v5266 = vpack.c.b16 %v3346, %v3340
    %v5267 = vpack.c.b16 %v3347, %v3341
    %v5268 = vpack.c.b16 %v3354, %v3348
    %v5269 = vpack.c.b16 %v3355, %v3349
    %v5270 = vpack.c.b16 %v3356, %v3350
    %v5271 = vpack.c.b16 %v3357, %v3351
    %v5272 = vpack.c.b16 %v3358, %v3352
    %v5273 = vpack.c.b16 %v3359, %v3353
    %v5274 = vpack.c.b16 %v3366, %v3360
    %v5275 = vpack.c.b16 %v3367, %v3361
    %v5276 = vpack.c.b16 %v3368, %v3362
    %v5277 = vpack.c.b16 %v3369, %v3363
    %v5278 = vpack.c.b16 %v3370, %v3364
    %v5279 = vpack.c.b16 %v3371, %v3365
    %v5280 = vpack.c.b16 %v3378, %v3372
    %v5281 = vpack.c.b16 %v3379, %v3373
    %v5282 = vpack.c.b16 %v3380, %v3374
    %v5283 = vpack.c.b16 %v3381, %v3375
    %v5284 = vpack.c.b16 %v3382, %v3376
    %v5285 = vpack.c.b16 %v3383, %v3377
    %v5286 = vpack.c.b16 %v3390, %v3384
    %v5287 = vpack.c.b16 %v3391, %v3385
    %v5288 = vpack.c.b16 %v3392, %v3386
    %v5289 = vpack.c.b16 %v3393, %v3387
    %v5290 = vpack.c.b16 %v3394, %v3388
    %v5291 = vpack.c.b16 %v3395, %v3389
    %v5292 = vpack.c.b16 %v3402, %v3396
    %v5293 = vpack.c.b16 %v3403, %v3397
    %v5294 = vpack.c.b16 %v3404, %v3398
    %v5295 = vpack.c.b16 %v3405, %v3399
    %v5296 = vpack.c.b16 %v3406, %v3400
    %v5297 = vpack.c.b16 %v3407, %v3401
    %v5298 = vpack.c.b16 %v3414, %v3408
    %v5299 = vpack.c.b16 %v3415, %v3409
    %v5300 = vpack.c.b16 %v3416, %v3410
    %v5301 = vpack.c.b16 %v3417, %v3411
    %v5302 = vpack.c.b16 %v3418, %v3412
    %v5303 = vpack.c.b16 %v3419, %v3413
    %v5304 = vpack.c.b16 %v3426, %v3420
    %v5305 = vpack.c.b16 %v3427, %v3421
    %v5306 = vpack.c.b16 %v3428, %v3422
    %v5307 = vpack.c.b16 %v3429, %v3423
    %v5308 = vpack.c.b16 %v3430, %v3424
    %v5309 = vpack.c.b16 %v3431, %v3425
    %v5310 = vpack.c.b16 %v3438, %v3432
    %v5311 = vpack.c.b16 %v3439, %v3433
    %v5312 = vpack.c.b16 %v3440, %v3434
    %v5313 = vpack.c.b16 %v3441, %v3435
    %v5314 = vpack.c.b16 %v3442, %v3436
    %v5315 = vpack.c.b16 %v3443, %v3437
    %v5316 = vpack.c.b16 %v3450, %v3444
    %v5317 = vpack.c.b16 %v3451, %v3445
    %v5318 = vpack.c.b16 %v3452, %v3446
    %v5319 = vpack.c.b16 %v3453, %v3447
    %v5320 = vpack.c.b16 %v3454, %v3448
    %v5321 = vpack.c.b16 %v3455, %v3449
    %v5322 = vpack.c.b16 %v3462, %v3456
    %v5323 = vpack.c.b16 %v3463, %v3457
    %v5324 = vpack.c.b16 %v3464, %v3458
    %v5325 = vpack.c.b16 %v3465, %v3459
    %v5326 = vpack.c.b16 %v3466, %v3460
    %v5327 = vpack.c.b16 %v3467, %v3461
    %v5328 = vpack.c.b16 %v3474, %v3468
    %v5329 = vpack.c.b16 %v3475, %v3469
    %v5330 = vpack.c.b16 %v3476, %v3470
    %v5331 = vpack.c.b16 %v3477, %v3471
    %v5332 = vpack.c.b16 %v3478, %v3472
    %v5333 = vpack.c.b16 %v3479, %v3473
    %v5334 = vpack.c.b16 %v3486, %v3480
    %v5335 = vpack.c.b16 %v3487, %v3481
    %v5336 = vpack.c.b16 %v3488, %v3482
    %v5337 = vpack.c.b16 %v3489, %v3483
    %v5338 = vpack.c.b16 %v3490, %v3484
    %v5339 = vpack.c.b16 %v3491, %v3485
    %v5340 = vpack.c.b16 %v3498, %v3492
    %v5341 = vpack.c.b16 %v3499, %v3493
    %v5342 = vpack.c.b16 %v3500, %v3494
    %v5343 = vpack.c.b16 %v3501, %v3495
    %v5344 = vpack.c.b16 %v3502, %v3496
    %v5345 = vpack.c.b16 %v3503, %v3497
    %v5346 = vpack.c.b16 %v3510, %v3504
    %v5347 = vpack.c.b16 %v3511, %v3505
    %v5348 = vpack.c.b16 %v3512, %v3506
    %v5349 = vpack.c.b16 %v3513, %v3507
    %v5350 = vpack.c.b16 %v3514, %v3508
    %v5351 = vpack.c.b16 %v3515, %v3509
    %v5352 = vpack.c.b16 %v3522, %v3516
    %v5353 = vpack.c.b16 %v3523, %v3517
    %v5354 = vpack.c.b16 %v3524, %v3518
    %v5355 = vpack.c.b16 %v3525, %v3519
    %v5356 = vpack.c.b16 %v3526, %v3520
    %v5357 = vpack.c.b16 %v3527, %v3521
    %v5358 = vpack.c.b16 %v3534, %v3528
    %v5359 = vpack.c.b16 %v3535, %v3529
    %v5360 = vpack.c.b16 %v3536, %v3530
    %v5361 = vpack.c.b16 %v3537, %v3531
    %v5362 = vpack.c.b16 %v3538, %v3532
    %v5363 = vpack.c.b16 %v3539, %v3533
    %v5364 = vpack.c.b16 %v3546, %v3540
    %v5365 = vpack.c.b16 %v3547, %v3541
    %v5366 = vpack.c.b16 %v3548, %v3542
    %v5367 = vpack.c.b16 %v3549, %v3543
    %v5368 = vpack.c.b16 %v3550, %v3544
    %v5369 = vpack.c.b16 %v3551, %v3545
    %v5370 = vpack.c.b16 %v3558, %v3552
    %v5371 = vpack.c.b16 %v3559, %v3553
    %v5372 = vpack.c.b16 %v3560, %v3554
    %v5373 = vpack.c.b16 %v3561, %v3555
    %v5374 = vpack.c.b16 %v3562, %v3556
    %v5375 = vpack.c.b16 %v3563, %v3557
    %v5376 = vpack.c.b16 %v3570, %v3564
    %v5377 = vpack.c.b16 %v3571, %v3565
    %v5378 = vpack.c.b16 %v3572, %v3566
    %v5379 = vpack.c.b16 %v3573, %v3567
    %v5380 = vpack.c.b16 %v3574, %v3568
    %v5381 = vpack.c.b16 %v3575, %v3569
    %v5382 = vpack.c.b16 %v3582, %v3576
    %v5383 = vpack.c.b16 %v3583, %v3577
    %v5384 = vpack.c.b16 %v3584, %v3578
    %v5385 = vpack.c.b16 %v3585, %v3579
    %v5386 = vpack.c.b16 %v3586, %v3580
    %v5387 = vpack.c.b16 %v3587, %v3581
    %v5388 = vpack.c.b16 %v3594, %v3588
    %v5389 = vpack.c.b16 %v3595, %v3589
    %v5390 = vpack.c.b16 %v3596, %v3590
    %v5391 = vpack.c.b16 %v3597, %v3591
    %v5392 = vpack.c.b16 %v3598, %v3592
    %v5393 = vpack.c.b16 %v3599, %v3593
    %v5394 = vpack.c.b16 %v3606, %v3600
    %v5395 = vpack.c.b16 %v3607, %v3601
    %v5396 = vpack.c.b16 %v3608, %v3602
    %v5397 = vpack.c.b16 %v3609, %v3603
    %v5398 = vpack.c.b16 %v3610, %v3604
    %v5399 = vpack.c.b16 %v3611, %v3605
    %v5400 = vpack.c.b16 %v3618, %v3612
    %v5401 = vpack.c.b16 %v3619, %v3613
    %v5402 = vpack.c.b16 %v3620, %v3614
    %v5403 = vpack.c.b16 %v3621, %v3615
    %v5404 = vpack.c.b16 %v3622, %v3616
    %v5405 = vpack.c.b16 %v3623, %v3617
    %v5406 = vpack.c.b16 %v3630, %v3624
    %v5407 = vpack.c.b16 %v3631, %v3625
    %v5408 = vpack.c.b16 %v3632, %v3626
    %v5409 = vpack.c.b16 %v3633, %v3627
    %v5410 = vpack.c.b16 %v3634, %v3628
    %v5411 = vpack.c.b16 %v3635, %v3629
    %v5412 = vpack.c.b16 %v3642, %v3636
    %v5413 = vpack.c.b16 %v3643, %v3637
    %v5414 = vpack.c.b16 %v3644, %v3638
    %v5415 = vpack.c.b16 %v3645, %v3639
    %v5416 = vpack.c.b16 %v3646, %v3640
    %v5417 = vpack.c.b16 %v3647, %v3641
    %v5418 = vpack.c.b16 %v3654, %v3648
    %v5419 = vpack.c.b16 %v3655, %v3649
    %v5420 = vpack.c.b16 %v3656, %v3650
    %v5421 = vpack.c.b16 %v3657, %v3651
    %v5422 = vpack.c.b16 %v3658, %v3652
    %v5423 = vpack.c.b16 %v3659, %v3653
    %v5424 = vpack.c.b16 %v3666, %v3660
    %v5425 = vpack.c.b16 %v3667, %v3661
    %v5426 = vpack.c.b16 %v3668, %v3662
    %v5427 = vpack.c.b16 %v3669, %v3663
    %v5428 = vpack.c.b16 %v3670, %v3664
    %v5429 = vpack.c.b16 %v3671, %v3665
    %v5430 = vpack.c.b16 %v3678, %v3672
    %v5431 = vpack.c.b16 %v3679, %v3673
    %v5432 = vpack.c.b16 %v3680, %v3674
    %v5433 = vpack.c.b16 %v3681, %v3675
    %v5434 = vpack.c.b16 %v3682, %v3676
    %v5435 = vpack.c.b16 %v3683, %v3677
    %v5436 = vpack.c.b16 %v3690, %v3684
    %v5437 = vpack.c.b16 %v3691, %v3685
    %v5438 = vpack.c.b16 %v3692, %v3686
    %v5439 = vpack.c.b16 %v3693, %v3687
    %v5440 = vpack.c.b16 %v3694, %v3688
    %v5441 = vpack.c.b16 %v3695, %v3689
    %v5442 = vpack.c.b16 %v3702, %v3696
    %v5443 = vpack.c.b16 %v3703, %v3697
    %v5444 = vpack.c.b16 %v3704, %v3698
    %v5445 = vpack.c.b16 %v3705, %v3699
    %v5446 = vpack.c.b16 %v3706, %v3700
    %v5447 = vpack.c.b16 %v3707, %v3701
    %v5448 = vpack.c.b16 %v3714, %v3708
    %v5449 = vpack.c.b16 %v3715, %v3709
    %v5450 = vpack.c.b16 %v3716, %v3710
    %v5451 = vpack.c.b16 %v3717, %v3711
    %v5452 = vpack.c.b16 %v3718, %v3712
    %v5453 = vpack.c.b16 %v3719, %v3713
    %v5454 = vpack.c.b16 %v3726, %v3720
    %v5455 = vpack.c.b16 %v3727, %v3721
    %v5456 = vpack.c.b16 %v3728, %v3722
    %v5457 = vpack.c.b16 %v3729, %v3723
    %v5458 = vpack.c.b16 %v3730, %v3724
    %v5459 = vpack.c.b16 %v3731, %v3725
    %v5460 = vpack.c.b16 %v3738, %v3732
    %v5461 = vpack.c.b16 %v3739, %v3733
    %v5462 = vpack.c.b16 %v3740, %v3734
    %v5463 = vpack.c.b16 %v3741, %v3735
    %v5464 = vpack.c.b16 %v3742, %v3736
    %v5465 = vpack.c.b16 %v3743, %v3737
    %v5466 = vpack.c.b16 %v3750, %v3744
    %v5467 = vpack.c.b16 %v3751, %v3745
    %v5468 = vpack.c.b16 %v3752, %v3746
    %v5469 = vpack.c.b16 %v3753, %v3747
    %v5470 = vpack.c.b16 %v3754, %v3748
    %v5471 = vpack.c.b16 %v3755, %v3749
    %v5472 = vpack.c.b16 %v3762, %v3756
    %v5473 = vpack.c.b16 %v3763, %v3757
    %v5474 = vpack.c.b16 %v3764, %v3758
    %v5475 = vpack.c.b16 %v3765, %v3759
    %v5476 = vpack.c.b16 %v3766, %v3760
    %v5477 = vpack.c.b16 %v3767, %v3761
    %v5478 = vpack.c.b16 %v3774, %v3768
    %v5479 = vpack.c.b16 %v3775, %v3769
    %v5480 = vpack.c.b16 %v3776, %v3770
    %v5481 = vpack.c.b16 %v3777, %v3771
    %v5482 = vpack.c.b16 %v3778, %v3772
    %v5483 = vpack.c.b16 %v3779, %v3773
    %v5484 = vpack.c.b16 %v3786, %v3780
    %v5485 = vpack.c.b16 %v3787, %v3781
    %v5486 = vpack.c.b16 %v3788, %v3782
    %v5487 = vpack.c.b16 %v3789, %v3783
    %v5488 = vpack.c.b16 %v3790, %v3784
    %v5489 = vpack.c.b16 %v3791, %v3785
    %v5490 = vpack.c.b16 %v3798, %v3792
    %v5491 = vpack.c.b16 %v3799, %v3793
    %v5492 = vpack.c.b16 %v3800, %v3794
    %v5493 = vpack.c.b16 %v3801, %v3795
    %v5494 = vpack.c.b16 %v3802, %v3796
    %v5495 = vpack.c.b16 %v3803, %v3797
    %v5496 = vpack.c.b16 %v3810, %v3804
    %v5497 = vpack.c.b16 %v3811, %v3805
    %v5498 = vpack.c.b16 %v3812, %v3806
    %v5499 = vpack.c.b16 %v3813, %v3807
    %v5500 = vpack.c.b16 %v3814, %v3808
    %v5501 = vpack.c.b16 %v3815, %v3809
    %v5502 = vpack.c.b16 %v3822, %v3816
    %v5503 = vpack.c.b16 %v3823, %v3817
    %v5504 = vpack.c.b16 %v3824, %v3818
    %v5505 = vpack.c.b16 %v3825, %v3819
    %v5506 = vpack.c.b16 %v3826, %v3820
    %v5507 = vpack.c.b16 %v3827, %v3821
    %v5508 = vpack.c.b16 %v3834, %v3828
    %v5509 = vpack.c.b16 %v3835, %v3829
    %v5510 = vpack.c.b16 %v3836, %v3830
    %v5511 = vpack.c.b16 %v3837, %v3831
    %v5512 = vpack.c.b16 %v3838, %v3832
    %v5513 = vpack.c.b16 %v3839, %v3833
    %v5514 = vpack.c.b16 %v3846, %v3840
    %v5515 = vpack.c.b16 %v3847, %v3841
    %v5516 = vpack.c.b16 %v3848, %v3842
    %v5517 = vpack.c.b16 %v3849, %v3843
    %v5518 = vpack.c.b16 %v3850, %v3844
    %v5519 = vpack.c.b16 %v3851, %v3845
    %v5520 = vpack.c.b16 %v3858, %v3852
    %v5521 = vpack.c.b16 %v3859, %v3853
    %v5522 = vpack.c.b16 %v3860, %v3854
    %v5523 = vpack.c.b16 %v3861, %v3855
    %v5524 = vpack.c.b16 %v3862, %v3856
    %v5525 = vpack.c.b16 %v3863, %v3857
    %v5526 = vpack.c.b16 %v3870, %v3864
    %v5527 = vpack.c.b16 %v3871, %v3865
    %v5528 = vpack.c.b16 %v3872, %v3866
    %v5529 = vpack.c.b16 %v3873, %v3867
    %v5530 = vpack.c.b16 %v3874, %v3868
    %v5531 = vpack.c.b16 %v3875, %v3869
    %v5532 = vpack.c.b16 %v3882, %v3876
    %v5533 = vpack.c.b16 %v3883, %v3877
    %v5534 = vpack.c.b16 %v3884, %v3878
    %v5535 = vpack.c.b16 %v3885, %v3879
    %v5536 = vpack.c.b16 %v3886, %v3880
    %v5537 = vpack.c.b16 %v3887, %v3881
    %v5538 = vpack.c.b16 %v3894, %v3888
    %v5539 = vpack.c.b16 %v3895, %v3889
    %v5540 = vpack.c.b16 %v3896, %v3890
    %v5541 = vpack.c.b16 %v3897, %v3891
    %v5542 = vpack.c.b16 %v3898, %v3892
    %v5543 = vpack.c.b16 %v3899, %v3893
    %v5544 = vpack.c.b16 %v3906, %v3900
    %v5545 = vpack.c.b16 %v3907, %v3901
    %v5546 = vpack.c.b16 %v3908, %v3902
    %v5547 = vpack.c.b16 %v3909, %v3903
    %v5548 = vpack.c.b16 %v3910, %v3904
    %v5549 = vpack.c.b16 %v3911, %v3905
    %v5550 = vpack.c.b16 %v3918, %v3912
    %v5551 = vpack.c.b16 %v3919, %v3913
    %v5552 = vpack.c.b16 %v3920, %v3914
    %v5553 = vpack.c.b16 %v3921, %v3915
    %v5554 = vpack.c.b16 %v3922, %v3916
    %v5555 = vpack.c.b16 %v3923, %v3917
    %v5556 = vpack.c.b16 %v3930, %v3924
    %v5557 = vpack.c.b16 %v3931, %v3925
    %v5558 = vpack.c.b16 %v3932, %v3926
    %v5559 = vpack.c.b16 %v3933, %v3927
    %v5560 = vpack.c.b16 %v3934, %v3928
    %v5561 = vpack.c.b16 %v3935, %v3929
    %v5562 = vpack.c.b16 %v3942, %v3936
    %v5563 = vpack.c.b16 %v3943, %v3937
    %v5564 = vpack.c.b16 %v3944, %v3938
    %v5565 = vpack.c.b16 %v3945, %v3939
    %v5566 = vpack.c.b16 %v3946, %v3940
    %v5567 = vpack.c.b16 %v3947, %v3941
    %v5568 = vpack.c.b16 %v3954, %v3948
    %v5569 = vpack.c.b16 %v3955, %v3949
    %v5570 = vpack.c.b16 %v3956, %v3950
    %v5571 = vpack.c.b16 %v3957, %v3951
    %v5572 = vpack.c.b16 %v3958, %v3952
    %v5573 = vpack.c.b16 %v3959, %v3953
    %v5574 = vpack.c.b16 %v3966, %v3960
    %v5575 = vpack.c.b16 %v3967, %v3961
    %v5576 = vpack.c.b16 %v3968, %v3962
    %v5577 = vpack.c.b16 %v3969, %v3963
    %v5578 = vpack.c.b16 %v3970, %v3964
    %v5579 = vpack.c.b16 %v3971, %v3965
    %v5580 = vpack.c.b16 %v3978, %v3972
    %v5581 = vpack.c.b16 %v3979, %v3973
    %v5582 = vpack.c.b16 %v3980, %v3974
    %v5583 = vpack.c.b16 %v3981, %v3975
    %v5584 = vpack.c.b16 %v3982, %v3976
    %v5585 = vpack.c.b16 %v3983, %v3977
    %v5586 = vpack.c.b16 %v3990, %v3984
    %v5587 = vpack.c.b16 %v3991, %v3985
    %v5588 = vpack.c.b16 %v3992, %v3986
    %v5589 = vpack.c.b16 %v3993, %v3987
    %v5590 = vpack.c.b16 %v3994, %v3988
    %v5591 = vpack.c.b16 %v3995, %v3989
    %v5592 = vpack.c.b16 %v4002, %v3996
    %v5593 = vpack.c.b16 %v4003, %v3997
    %v5594 = vpack.c.b16 %v4004, %v3998
    %v5595 = vpack.c.b16 %v4005, %v3999
    %v5596 = vpack.c.b16 %v4006, %v4000
    %v5597 = vpack.c.b16 %v4007, %v4001
    %v5598 = vpack.c.b16 %v4014, %v4008
    %v5599 = vpack.c.b16 %v4015, %v4009
    %v5600 = vpack.c.b16 %v4016, %v4010
    %v5601 = vpack.c.b16 %v4017, %v4011
    %v5602 = vpack.c.b16 %v4018, %v4012
    %v5603 = vpack.c.b16 %v4019, %v4013
    %v5604 = vpack.c.b16 %v4026, %v4020
    %v5605 = vpack.c.b16 %v4027, %v4021
    %v5606 = vpack.c.b16 %v4028, %v4022
    %v5607 = vpack.c.b16 %v4029, %v4023
    %v5608 = vpack.c.b16 %v4030, %v4024
    %v5609 = vpack.c.b16 %v4031, %v4025
    %v5610 = vpack.c.b16 %v4038, %v4032
    %v5611 = vpack.c.b16 %v4039, %v4033
    %v5612 = vpack.c.b16 %v4040, %v4034
    %v5613 = vpack.c.b16 %v4041, %v4035
    %v5614 = vpack.c.b16 %v4042, %v4036
    %v5615 = vpack.c.b16 %v4043, %v4037
    %v5616 = vpack.c.b16 %v4050, %v4044
    %v5617 = vpack.c.b16 %v4051, %v4045
    %v5618 = vpack.c.b16 %v4052, %v4046
    %v5619 = vpack.c.b16 %v4053, %v4047
    %v5620 = vpack.c.b16 %v4054, %v4048
    %v5621 = vpack.c.b16 %v4055, %v4049
    %v5622 = vpack.c.b16 %v4062, %v4056
    %v5623 = vpack.c.b16 %v4063, %v4057
    %v5624 = vpack.c.b16 %v4064, %v4058
    %v5625 = vpack.c.b16 %v4065, %v4059
    %v5626 = vpack.c.b16 %v4066, %v4060
    %v5627 = vpack.c.b16 %v4067, %v4061
    %v5628 = vpack.c.b16 %v4074, %v4068
    %v5629 = vpack.c.b16 %v4075, %v4069
    %v5630 = vpack.c.b16 %v4076, %v4070
    %v5631 = vpack.c.b16 %v4077, %v4071
    %v5632 = vpack.c.b16 %v4078, %v4072
    %v5633 = vpack.c.b16 %v4079, %v4073
    %v5634 = vpack.c.b16 %v4086, %v4080
    %v5635 = vpack.c.b16 %v4087, %v4081
    %v5636 = vpack.c.b16 %v4088, %v4082
    %v5637 = vpack.c.b16 %v4089, %v4083
    %v5638 = vpack.c.b16 %v4090, %v4084
    %v5639 = vpack.c.b16 %v4091, %v4085
    %v5640 = vpack.c.b16 %v4098, %v4092
    %v5641 = vpack.c.b16 %v4099, %v4093
    %v5642 = vpack.c.b16 %v4100, %v4094
    %v5643 = vpack.c.b16 %v4101, %v4095
    %v5644 = vpack.c.b16 %v4102, %v4096
    %v5645 = vpack.c.b16 %v4103, %v4097
    %v5646 = vpack.c.b16 %v4110, %v4104
    %v5647 = vpack.c.b16 %v4111, %v4105
    %v5648 = vpack.c.b16 %v4112, %v4106
    %v5649 = vpack.c.b16 %v4113, %v4107
    %v5650 = vpack.c.b16 %v4114, %v4108
    %v5651 = vpack.c.b16 %v4115, %v4109
    %v5652 = vpack.c.b16 %v4122, %v4116
    %v5653 = vpack.c.b16 %v4123, %v4117
    %v5654 = vpack.c.b16 %v4124, %v4118
    %v5655 = vpack.c.b16 %v4125, %v4119
    %v5656 = vpack.c.b16 %v4126, %v4120
    %v5657 = vpack.c.b16 %v4127, %v4121
    %v5658 = vpack.c.b16 %v4134, %v4128
    %v5659 = vpack.c.b16 %v4135, %v4129
    %v5660 = vpack.c.b16 %v4136, %v4130
    %v5661 = vpack.c.b16 %v4137, %v4131
    %v5662 = vpack.c.b16 %v4138, %v4132
    %v5663 = vpack.c.b16 %v4139, %v4133
    %v5664 = vpack.c.b16 %v4146, %v4140
    %v5665 = vpack.c.b16 %v4147, %v4141
    %v5666 = vpack.c.b16 %v4148, %v4142
    %v5667 = vpack.c.b16 %v4149, %v4143
    %v5668 = vpack.c.b16 %v4150, %v4144
    %v5669 = vpack.c.b16 %v4151, %v4145
    %v5670 = vpack.c.b16 %v4158, %v4152
    %v5671 = vpack.c.b16 %v4159, %v4153
    %v5672 = vpack.c.b16 %v4160, %v4154
    %v5673 = vpack.c.b16 %v4161, %v4155
    %v5674 = vpack.c.b16 %v4162, %v4156
    %v5675 = vpack.c.b16 %v4163, %v4157
    %v5676 = vpack.c.b16 %v4170, %v4164
    %v5677 = vpack.c.b16 %v4171, %v4165
    %v5678 = vpack.c.b16 %v4172, %v4166
    %v5679 = vpack.c.b16 %v4173, %v4167
    %v5680 = vpack.c.b16 %v4174, %v4168
    %v5681 = vpack.c.b16 %v4175, %v4169
    %v5682 = vpack.c.b16 %v4182, %v4176
    %v5683 = vpack.c.b16 %v4183, %v4177
    %v5684 = vpack.c.b16 %v4184, %v4178
    %v5685 = vpack.c.b16 %v4185, %v4179
    %v5686 = vpack.c.b16 %v4186, %v4180
    %v5687 = vpack.c.b16 %v4187, %v4181
    %v5688 = vpack.c.b16 %v4194, %v4188
    %v5689 = vpack.c.b16 %v4195, %v4189
    %v5690 = vpack.c.b16 %v4196, %v4190
    %v5691 = vpack.c.b16 %v4197, %v4191
    %v5692 = vpack.c.b16 %v4198, %v4192
    %v5693 = vpack.c.b16 %v4199, %v4193
    %v5694 = vpack.c.b16 %v4206, %v4200
    %v5695 = vpack.c.b16 %v4207, %v4201
    %v5696 = vpack.c.b16 %v4208, %v4202
    %v5697 = vpack.c.b16 %v4209, %v4203
    %v5698 = vpack.c.b16 %v4210, %v4204
    %v5699 = vpack.c.b16 %v4211, %v4205
    %v5700 = vpack.c.b16 %v4218, %v4212
    %v5701 = vpack.c.b16 %v4219, %v4213
    %v5702 = vpack.c.b16 %v4220, %v4214
    %v5703 = vpack.c.b16 %v4221, %v4215
    %v5704 = vpack.c.b16 %v4222, %v4216
    %v5705 = vpack.c.b16 %v4223, %v4217
    %v5706 = vpack.c.b16 %v4230, %v4224
    %v5707 = vpack.c.b16 %v4231, %v4225
    %v5708 = vpack.c.b16 %v4232, %v4226
    %v5709 = vpack.c.b16 %v4233, %v4227
    %v5710 = vpack.c.b16 %v4234, %v4228
    %v5711 = vpack.c.b16 %v4235, %v4229
    %v5712 = vpack.c.b16 %v4242, %v4236
    %v5713 = vpack.c.b16 %v4243, %v4237
    %v5714 = vpack.c.b16 %v4244, %v4238
    %v5715 = vpack.c.b16 %v4245, %v4239
    %v5716 = vpack.c.b16 %v4246, %v4240
    %v5717 = vpack.c.b16 %v4247, %v4241
    %v5718 = vpack.c.b16 %v4254, %v4248
    %v5719 = vpack.c.b16 %v4255, %v4249
    %v5720 = vpack.c.b16 %v4256, %v4250
    %v5721 = vpack.c.b16 %v4257, %v4251
    %v5722 = vpack.c.b16 %v4258, %v4252
    %v5723 = vpack.c.b16 %v4259, %v4253
    %v5724 = vpack.c.b16 %v4266, %v4260
    %v5725 = vpack.c.b16 %v4267, %v4261
    %v5726 = vpack.c.b16 %v4268, %v4262
    %v5727 = vpack.c.b16 %v4269, %v4263
    %v5728 = vpack.c.b16 %v4270, %v4264
    %v5729 = vpack.c.b16 %v4271, %v4265
    %v5730 = vpack.c.b16 %v4278, %v4272
    %v5731 = vpack.c.b16 %v4279, %v4273
    %v5732 = vpack.c.b16 %v4280, %v4274
    %v5733 = vpack.c.b16 %v4281, %v4275
    %v5734 = vpack.c.b16 %v4282, %v4276
    %v5735 = vpack.c.b16 %v4283, %v4277
    %v5736 = vpack.c.b16 %v4290, %v4284
    %v5737 = vpack.c.b16 %v4291, %v4285
    %v5738 = vpack.c.b16 %v4292, %v4286
    %v5739 = vpack.c.b16 %v4293, %v4287
    %v5740 = vpack.c.b16 %v4294, %v4288
    %v5741 = vpack.c.b16 %v4295, %v4289
    %v5742 = vpack.c.b16 %v4302, %v4296
    %v5743 = vpack.c.b16 %v4303, %v4297
    %v5744 = vpack.c.b16 %v4304, %v4298
    %v5745 = vpack.c.b16 %v4305, %v4299
    %v5746 = vpack.c.b16 %v4306, %v4300
    %v5747 = vpack.c.b16 %v4307, %v4301
    %v5748 = vpack.c.b16 %v4314, %v4308
    %v5749 = vpack.c.b16 %v4315, %v4309
    %v5750 = vpack.c.b16 %v4316, %v4310
    %v5751 = vpack.c.b16 %v4317, %v4311
    %v5752 = vpack.c.b16 %v4318, %v4312
    %v5753 = vpack.c.b16 %v4319, %v4313
    %v5754 = vpack.c.b16 %v4326, %v4320
    %v5755 = vpack.c.b16 %v4327, %v4321
    %v5756 = vpack.c.b16 %v4328, %v4322
    %v5757 = vpack.c.b16 %v4329, %v4323
    %v5758 = vpack.c.b16 %v4330, %v4324
    %v5759 = vpack.c.b16 %v4331, %v4325
    %v5760 = vpack.c.b16 %v4338, %v4332
    %v5761 = vpack.c.b16 %v4339, %v4333
    %v5762 = vpack.c.b16 %v4340, %v4334
    %v5763 = vpack.c.b16 %v4341, %v4335
    %v5764 = vpack.c.b16 %v4342, %v4336
    %v5765 = vpack.c.b16 %v4343, %v4337
    %v5766 = vpack.c.b16 %v4350, %v4344
    %v5767 = vpack.c.b16 %v4351, %v4345
    %v5768 = vpack.c.b16 %v4352, %v4346
    %v5769 = vpack.c.b16 %v4353, %v4347
    %v5770 = vpack.c.b16 %v4354, %v4348
    %v5771 = vpack.c.b16 %v4355, %v4349
    %v5772 = vpack.c.b16 %v4362, %v4356
    %v5773 = vpack.c.b16 %v4363, %v4357
    %v5774 = vpack.c.b16 %v4364, %v4358
    %v5775 = vpack.c.b16 %v4365, %v4359
    %v5776 = vpack.c.b16 %v4366, %v4360
    %v5777 = vpack.c.b16 %v4367, %v4361
    %v5778 = vpack.c.b16 %v4374, %v4368
    %v5779 = vpack.c.b16 %v4375, %v4369
    %v5780 = vpack.c.b16 %v4376, %v4370
    %v5781 = vpack.c.b16 %v4377, %v4371
    %v5782 = vpack.c.b16 %v4378, %v4372
    %v5783 = vpack.c.b16 %v4379, %v4373
    %v5784 = vpack.c.b16 %v4386, %v4380
    %v5785 = vpack.c.b16 %v4387, %v4381
    %v5786 = vpack.c.b16 %v4388, %v4382
    %v5787 = vpack.c.b16 %v4389, %v4383
    %v5788 = vpack.c.b16 %v4390, %v4384
    %v5789 = vpack.c.b16 %v4391, %v4385
    %v5790 = vpack.c.b16 %v4398, %v4392
    %v5791 = vpack.c.b16 %v4399, %v4393
    %v5792 = vpack.c.b16 %v4400, %v4394
    %v5793 = vpack.c.b16 %v4401, %v4395
    %v5794 = vpack.c.b16 %v4402, %v4396
    %v5795 = vpack.c.b16 %v4403, %v4397
    %v5796 = vpack.c.b16 %v4410, %v4404
    %v5797 = vpack.c.b16 %v4411, %v4405
    %v5798 = vpack.c.b16 %v4412, %v4406
    %v5799 = vpack.c.b16 %v4413, %v4407
    %v5800 = vpack.c.b16 %v4414, %v4408
    %v5801 = vpack.c.b16 %v4415, %v4409
    %v5802 = vpack.c.b16 %v4422, %v4416
    %v5803 = vpack.c.b16 %v4423, %v4417
    %v5804 = vpack.c.b16 %v4424, %v4418
    %v5805 = vpack.c.b16 %v4425, %v4419
    %v5806 = vpack.c.b16 %v4426, %v4420
    %v5807 = vpack.c.b16 %v4427, %v4421
    %v5808 = vpack.c.b16 %v4434, %v4428
    %v5809 = vpack.c.b16 %v4435, %v4429
    %v5810 = vpack.c.b16 %v4436, %v4430
    %v5811 = vpack.c.b16 %v4437, %v4431
    %v5812 = vpack.c.b16 %v4438, %v4432
    %v5813 = vpack.c.b16 %v4439, %v4433
    %v5814 = vpack.c.b16 %v4446, %v4440
    %v5815 = vpack.c.b16 %v4447, %v4441
    %v5816 = vpack.c.b16 %v4448, %v4442
    %v5817 = vpack.c.b16 %v4449, %v4443
    %v5818 = vpack.c.b16 %v4450, %v4444
    %v5819 = vpack.c.b16 %v4451, %v4445
    %v5820 = vpack.c.b16 %v4458, %v4452
    %v5821 = vpack.c.b16 %v4459, %v4453
    %v5822 = vpack.c.b16 %v4460, %v4454
    %v5823 = vpack.c.b16 %v4461, %v4455
    %v5824 = vpack.c.b16 %v4462, %v4456
    %v5825 = vpack.c.b16 %v4463, %v4457
    %v5826 = vpack.c.b16 %v4470, %v4464
    %v5827 = vpack.c.b16 %v4471, %v4465
    %v5828 = vpack.c.b16 %v4472, %v4466
    %v5829 = vpack.c.b16 %v4473, %v4467
    %v5830 = vpack.c.b16 %v4474, %v4468
    %v5831 = vpack.c.b16 %v4475, %v4469
    %v5832 = vpack.c.b16 %v4482, %v4476
    %v5833 = vpack.c.b16 %v4483, %v4477
    %v5834 = vpack.c.b16 %v4484, %v4478
    %v5835 = vpack.c.b16 %v4485, %v4479
    %v5836 = vpack.c.b16 %v4486, %v4480
    %v5837 = vpack.c.b16 %v4487, %v4481
    %v5838 = vpack.c.b16 %v4494, %v4488
    %v5839 = vpack.c.b16 %v4495, %v4489
    %v5840 = vpack.c.b16 %v4496, %v4490
    %v5841 = vpack.c.b16 %v4497, %v4491
    %v5842 = vpack.c.b16 %v4498, %v4492
    %v5843 = vpack.c.b16 %v4499, %v4493
    %v5844 = vpack.c.b16 %v4506, %v4500
    %v5845 = vpack.c.b16 %v4507, %v4501
    %v5846 = vpack.c.b16 %v4508, %v4502
    %v5847 = vpack.c.b16 %v4509, %v4503
    %v5848 = vpack.c.b16 %v4510, %v4504
    %v5849 = vpack.c.b16 %v4511, %v4505
    %v5850 = vpack.c.b16 %v4518, %v4512
    %v5851 = vpack.c.b16 %v4519, %v4513
    %v5852 = vpack.c.b16 %v4520, %v4514
    %v5853 = vpack.c.b16 %v4521, %v4515
    %v5854 = vpack.c.b16 %v4522, %v4516
    %v5855 = vpack.c.b16 %v4523, %v4517
    %v5856 = vpack.c.b16 %v4530, %v4524
    %v5857 = vpack.c.b16 %v4531, %v4525
    %v5858 = vpack.c.b16 %v4532, %v4526
    %v5859 = vpack.c.b16 %v4533, %v4527
    %v5860 = vpack.c.b16 %v4534, %v4528
    %v5861 = vpack.c.b16 %v4535, %v4529
    %v5862 = vpack.c.b16 %v4542, %v4536
    %v5863 = vpack.c.b16 %v4543, %v4537
    %v5864 = vpack.c.b16 %v4544, %v4538
    %v5865 = vpack.c.b16 %v4545, %v4539
    %v5866 = vpack.c.b16 %v4546, %v4540
    %v5867 = vpack.c.b16 %v4547, %v4541
    %v5868 = vpack.c.b16 %v4554, %v4548
    %v5869 = vpack.c.b16 %v4555, %v4549
    %v5870 = vpack.c.b16 %v4556, %v4550
    %v5871 = vpack.c.b16 %v4557, %v4551
    %v5872 = vpack.c.b16 %v4558, %v4552
    %v5873 = vpack.c.b16 %v4559, %v4553
    %v5874 = vpack.c.b16 %v4566, %v4560
    %v5875 = vpack.c.b16 %v4567, %v4561
    %v5876 = vpack.c.b16 %v4568, %v4562
    %v5877 = vpack.c.b16 %v4569, %v4563
    %v5878 = vpack.c.b16 %v4570, %v4564
    %v5879 = vpack.c.b16 %v4571, %v4565
    %v5880 = vpack.c.b16 %v4578, %v4572
    %v5881 = vpack.c.b16 %v4579, %v4573
    %v5882 = vpack.c.b16 %v4580, %v4574
    %v5883 = vpack.c.b16 %v4581, %v4575
    %v5884 = vpack.c.b16 %v4582, %v4576
    %v5885 = vpack.c.b16 %v4583, %v4577
    %v5886 = vpack.c.b16 %v4590, %v4584
    %v5887 = vpack.c.b16 %v4591, %v4585
    %v5888 = vpack.c.b16 %v4592, %v4586
    %v5889 = vpack.c.b16 %v4593, %v4587
    %v5890 = vpack.c.b16 %v4594, %v4588
    %v5891 = vpack.c.b16 %v4595, %v4589
    %v5892 = vpack.c.b16 %v4602, %v4596
    %v5893 = vpack.c.b16 %v4603, %v4597
    %v5894 = vpack.c.b16 %v4604, %v4598
    %v5895 = vpack.c.b16 %v4605, %v4599
    %v5896 = vpack.c.b16 %v4606, %v4600
    %v5897 = vpack.c.b16 %v4607, %v4601
    %v5898 = vpack.c.b16 %v4614, %v4608
    %v5899 = vpack.c.b16 %v4615, %v4609
    %v5900 = vpack.c.b16 %v4616, %v4610
    %v5901 = vpack.c.b16 %v4617, %v4611
    %v5902 = vpack.c.b16 %v4618, %v4612
    %v5903 = vpack.c.b16 %v4619, %v4613
    %v5904 = vpack.c.b16 %v4626, %v4620
    %v5905 = vpack.c.b16 %v4627, %v4621
    %v5906 = vpack.c.b16 %v4628, %v4622
    %v5907 = vpack.c.b16 %v4629, %v4623
    %v5908 = vpack.c.b16 %v4630, %v4624
    %v5909 = vpack.c.b16 %v4631, %v4625
    %v5910 = vpack.c.b16 %v4638, %v4632
    %v5911 = vpack.c.b16 %v4639, %v4633
    %v5912 = vpack.c.b16 %v4640, %v4634
    %v5913 = vpack.c.b16 %v4641, %v4635
    %v5914 = vpack.c.b16 %v4642, %v4636
    %v5915 = vpack.c.b16 %v4643, %v4637
    %v5916 = vpack.c.b16 %v4650, %v4644
    %v5917 = vpack.c.b16 %v4651, %v4645
    %v5918 = vpack.c.b16 %v4652, %v4646
    %v5919 = vpack.c.b16 %v4653, %v4647
    %v5920 = vpack.c.b16 %v4654, %v4648
    %v5921 = vpack.c.b16 %v4655, %v4649
    %v5922 = vpack.c.b16 %v4662, %v4656
    %v5923 = vpack.c.b16 %v4663, %v4657
    %v5924 = vpack.c.b16 %v4664, %v4658
    %v5925 = vpack.c.b16 %v4665, %v4659
    %v5926 = vpack.c.b16 %v4666, %v4660
    %v5927 = vpack.c.b16 %v4667, %v4661
    %v5928 = vpack.c.b16 %v4674, %v4668
    %v5929 = vpack.c.b16 %v4675, %v4669
    %v5930 = vpack.c.b16 %v4676, %v4670
    %v5931 = vpack.c.b16 %v4677, %v4671
    %v5932 = vpack.c.b16 %v4678, %v4672
    %v5933 = vpack.c.b16 %v4679, %v4673
    %v5934 = vpack.c.b16 %v4686, %v4680
    %v5935 = vpack.c.b16 %v4687, %v4681
    %v5936 = vpack.c.b16 %v4688, %v4682
    %v5937 = vpack.c.b16 %v4689, %v4683
    %v5938 = vpack.c.b16 %v4690, %v4684
    %v5939 = vpack.c.b16 %v4691, %v4685
    %v5940 = vpack.c.b16 %v4698, %v4692
    %v5941 = vpack.c.b16 %v4699, %v4693
    %v5942 = vpack.c.b16 %v4700, %v4694
    %v5943 = vpack.c.b16 %v4701, %v4695
    %v5944 = vpack.c.b16 %v4702, %v4696
    %v5945 = vpack.c.b16 %v4703, %v4697
    %v5946 = vpack.c.b16 %v4710, %v4704
    %v5947 = vpack.c.b16 %v4711, %v4705
    %v5948 = vpack.c.b16 %v4712, %v4706
    %v5949 = vpack.c.b16 %v4713, %v4707
    %v5950 = vpack.c.b16 %v4714, %v4708
    %v5951 = vpack.c.b16 %v4715, %v4709
    %v5952 = vpack.c.b16 %v4722, %v4716
    %v5953 = vpack.c.b16 %v4723, %v4717
    %v5954 = vpack.c.b16 %v4724, %v4718
    %v5955 = vpack.c.b16 %v4725, %v4719
    %v5956 = vpack.c.b16 %v4726, %v4720
    %v5957 = vpack.c.b16 %v4727, %v4721
    %v5958 = vpack.c.b16 %v4734, %v4728
    %v5959 = vpack.c.b16 %v4735, %v4729
    %v5960 = vpack.c.b16 %v4736, %v4730
    %v5961 = vpack.c.b16 %v4737, %v4731
    %v5962 = vpack.c.b16 %v4738, %v4732
    %v5963 = vpack.c.b16 %v4739, %v4733
    %v5964 = vpack.c.b16 %v4746, %v4740
    %v5965 = vpack.c.b16 %v4747, %v4741
    %v5966 = vpack.c.b16 %v4748, %v4742
    %v5967 = vpack.c.b16 %v4749, %v4743
    %v5968 = vpack.c.b16 %v4750, %v4744
    %v5969 = vpack.c.b16 %v4751, %v4745
    %v5970 = vpack.c.b16 %v4758, %v4752
    %v5971 = vpack.c.b16 %v4759, %v4753
    %v5972 = vpack.c.b16 %v4760, %v4754
    %v5973 = vpack.c.b16 %v4761, %v4755
    %v5974 = vpack.c.b16 %v4762, %v4756
    %v5975 = vpack.c.b16 %v4763, %v4757
    %v5976 = vpack.c.b16 %v4770, %v4764
    %v5977 = vpack.c.b16 %v4771, %v4765
    %v5978 = vpack.c.b16 %v4772, %v4766
    %v5979 = vpack.c.b16 %v4773, %v4767
    %v5980 = vpack.c.b16 %v4774, %v4768
    %v5981 = vpack.c.b16 %v4775, %v4769
    %v5982 = vpack.c.b16 %v4782, %v4776
    %v5983 = vpack.c.b16 %v4783, %v4777
    %v5984 = vpack.c.b16 %v4784, %v4778
    %v5985 = vpack.c.b16 %v4785, %v4779
    %v5986 = vpack.c.b16 %v4786, %v4780
    %v5987 = vpack.c.b16 %v4787, %v4781
    %v5988 = vpack.c.b16 %v4794, %v4788
    %v5989 = vpack.c.b16 %v4795, %v4789
    %v5990 = vpack.c.b16 %v4796, %v4790
    %v5991 = vpack.c.b16 %v4797, %v4791
    %v5992 = vpack.c.b16 %v4798, %v4792
    %v5993 = vpack.c.b16 %v4799, %v4793
    %v5994 = vpack.c.b16 %v4806, %v4800
    %v5995 = vpack.c.b16 %v4807, %v4801
    %v5996 = vpack.c.b16 %v4808, %v4802
    %v5997 = vpack.c.b16 %v4809, %v4803
    %v5998 = vpack.c.b16 %v4810, %v4804
    %v5999 = vpack.c.b16 %v4811, %v4805
    %v6000 = vpack.c.b16 %v4818, %v4812
    %v6001 = vpack.c.b16 %v4819, %v4813
    %v6002 = vpack.c.b16 %v4820, %v4814
    %v6003 = vpack.c.b16 %v4821, %v4815
    %v6004 = vpack.c.b16 %v4822, %v4816
    %v6005 = vpack.c.b16 %v4823, %v4817
    %v6006 = vpack.c.b16 %v4830, %v4824
    %v6007 = vpack.c.b16 %v4831, %v4825
    %v6008 = vpack.c.b16 %v4832, %v4826
    %v6009 = vpack.c.b16 %v4833, %v4827
    %v6010 = vpack.c.b16 %v4834, %v4828
    %v6011 = vpack.c.b16 %v4835, %v4829
    %v6012 = vpack.c.b16 %v4842, %v4836
    %v6013 = vpack.c.b16 %v4843, %v4837
    %v6014 = vpack.c.b16 %v4844, %v4838
    %v6015 = vpack.c.b16 %v4845, %v4839
    %v6016 = vpack.c.b16 %v4846, %v4840
    %v6017 = vpack.c.b16 %v4847, %v4841
    %v6018 = vpack.c.b16 %v4854, %v4848
    %v6019 = vpack.c.b16 %v4855, %v4849
    %v6020 = vpack.c.b16 %v4856, %v4850
    %v6021 = vpack.c.b16 %v4857, %v4851
    %v6022 = vpack.c.b16 %v4858, %v4852
    %v6023 = vpack.c.b16 %v4859, %v4853
    %v6024 = vpack.c.b16 %v4866, %v4860
    %v6025 = vpack.c.b16 %v4867, %v4861
    %v6026 = vpack.c.b16 %v4868, %v4862
    %v6027 = vpack.c.b16 %v4869, %v4863
    %v6028 = vpack.c.b16 %v4870, %v4864
    %v6029 = vpack.c.b16 %v4871, %v4865
    %v6030 = vpack.c.b16 %v4878, %v4872
    %v6031 = vpack.c.b16 %v4879, %v4873
    %v6032 = vpack.c.b16 %v4880, %v4874
    %v6033 = vpack.c.b16 %v4881, %v4875
    %v6034 = vpack.c.b16 %v4882, %v4876
    %v6035 = vpack.c.b16 %v4883, %v4877
    %7188 = vmatprep.subr.bf16.mxu0 %v4885
    %7189 = vmatpush1.bf16.msra.mxu0 %v4884
    %7190 = vmatprep.subr.bf16.mxu0 %v4891
    %7191 = vmatpush1.bf16.msra.mxu0 %v4890
    %7192 = vmatprep.subr.bf16.mxu0 %v4897
    %7193 = vmatpush1.bf16.msra.mxu0 %v4896
    %7194 = vmatprep.subr.bf16.mxu0 %v4903
    %7195 = vmatpush1.bf16.msra.mxu0 %v4902
    %7196 = vmatprep.subr.bf16.mxu0 %v4909
    %7197 = vmatpush1.bf16.msra.mxu0 %v4908
    %7198 = vmatprep.subr.bf16.mxu0 %v4915
    %7199 = vmatpush1.bf16.msra.mxu0 %v4914
    %7200 = vmatprep.subr.bf16.mxu0 %v4921
    %7201 = vmatpush1.bf16.msra.mxu0 %v4920
    %7202 = vmatprep.subr.bf16.mxu0 %v4927
    %7203 = vmatpush1.bf16.msra.mxu0 %v4926
    %7204 = vmatprep.subr.bf16.mxu0 %v4933
    %7205 = vmatpush1.bf16.msra.mxu0 %v4932
    %7206 = vmatprep.subr.bf16.mxu0 %v4939
    %7207 = vmatpush1.bf16.msra.mxu0 %v4938
    %7208 = vmatprep.subr.bf16.mxu0 %v4945
    %7209 = vmatpush1.bf16.msra.mxu0 %v4944
    %7210 = vmatprep.subr.bf16.mxu0 %v4951
    %7211 = vmatpush1.bf16.msra.mxu0 %v4950
    %7212 = vmatprep.subr.bf16.mxu0 %v4957
    %7213 = vmatpush1.bf16.msra.mxu0 %v4956
    %7214 = vmatprep.subr.bf16.mxu0 %v4963
    %7215 = vmatpush1.bf16.msra.mxu0 %v4962
    %7216 = vmatprep.subr.bf16.mxu0 %v4969
    %7217 = vmatpush1.bf16.msra.mxu0 %v4968
    %7218 = vmatprep.subr.bf16.mxu0 %v4975
    %7219 = vmatpush1.bf16.msra.mxu0 %v4974
    %7220 = vmatprep.mubr.bf16.mxu0 %v1381
    %7221 = vmatmul.mubr.bf16.gmra.mrb[0].mxu0 %v1380
    %v7222 = vpop.f32.mrb[0].mxu0
    %v7223 = vadd.f32 %v1281, %v7222
    %v7224 = vpop.f32.mrb[0].mxu0
    %v7225 = vadd.f32 %v1285, %v7224
    %v7226 = vpop.f32.mrb[0].mxu0
    %v7227 = vadd.f32 %v1281, %v7226
    %v7228 = vpop.f32.mrb[0].mxu0
    %v7229 = vadd.f32 %v1285, %v7228
    %7230 = vdwg.mxu0
    %7231 = vmatprep.subr.bf16.mxu0 %v4981
    %7232 = vmatpush1.bf16.msra.mxu0 %v4980
    %7233 = vmatprep.subr.bf16.mxu0 %v4987
    %7234 = vmatpush1.bf16.msra.mxu0 %v4986
    %7235 = vmatprep.subr.bf16.mxu0 %v4993
    %7236 = vmatpush1.bf16.msra.mxu0 %v4992
    %7237 = vmatprep.subr.bf16.mxu0 %v4999
    %7238 = vmatpush1.bf16.msra.mxu0 %v4998
    %7239 = vmatprep.subr.bf16.mxu0 %v5005
    %7240 = vmatpush1.bf16.msra.mxu0 %v5004
    %7241 = vmatprep.subr.bf16.mxu0 %v5011
    %7242 = vmatpush1.bf16.msra.mxu0 %v5010
    %7243 = vmatprep.subr.bf16.mxu0 %v5017
    %7244 = vmatpush1.bf16.msra.mxu0 %v5016
    %7245 = vmatprep.subr.bf16.mxu0 %v5023
    %7246 = vmatpush1.bf16.msra.mxu0 %v5022
    %7247 = vmatprep.subr.bf16.mxu0 %v5029
    %7248 = vmatpush1.bf16.msra.mxu0 %v5028
    %7249 = vmatprep.subr.bf16.mxu0 %v5035
    %7250 = vmatpush1.bf16.msra.mxu0 %v5034
    %7251 = vmatprep.subr.bf16.mxu0 %v5041
    %7252 = vmatpush1.bf16.msra.mxu0 %v5040
    %7253 = vmatprep.subr.bf16.mxu0 %v5047
    %7254 = vmatpush1.bf16.msra.mxu0 %v5046
    %7255 = vmatprep.subr.bf16.mxu0 %v5053
    %7256 = vmatpush1.bf16.msra.mxu0 %v5052
    %7257 = vmatprep.subr.bf16.mxu0 %v5059
    %7258 = vmatpush1.bf16.msra.mxu0 %v5058
    %7259 = vmatprep.subr.bf16.mxu0 %v5065
    %7260 = vmatpush1.bf16.msra.mxu0 %v5064
    %7261 = vmatprep.subr.bf16.mxu0 %v5071
    %7262 = vmatpush1.bf16.msra.mxu0 %v5070
    %7263 = vmatprep.mubr.bf16.mxu0 %v1383
    %7264 = vmatmul.mubr.bf16.gmra.mrb[0].mxu0 %v1382
    %v7265 = vpop.f32.mrb[0].mxu0
    %v7266 = vadd.f32 %v7223, %v7265
    %v7267 = vpop.f32.mrb[0].mxu0
    %v7268 = vadd.f32 %v7225, %v7267
    %v7269 = vpop.f32.mrb[0].mxu0
    %v7270 = vadd.f32 %v7227, %v7269
    %v7271 = vpop.f32.mrb[0].mxu0
    %v7272 = vadd.f32 %v7229, %v7271
    %7273 = vdwg.mxu0
    %7274 = vmatprep.subr.bf16.mxu0 %v5077
    %7275 = vmatpush1.bf16.msra.mxu0 %v5076
    %7276 = vmatprep.subr.bf16.mxu0 %v5083
    %7277 = vmatpush1.bf16.msra.mxu0 %v5082
    %7278 = vmatprep.subr.bf16.mxu0 %v5089
    %7279 = vmatpush1.bf16.msra.mxu0 %v5088
    %7280 = vmatprep.subr.bf16.mxu0 %v5095
    %7281 = vmatpush1.bf16.msra.mxu0 %v5094
    %7282 = vmatprep.subr.bf16.mxu0 %v5101
    %7283 = vmatpush1.bf16.msra.mxu0 %v5100
    %7284 = vmatprep.subr.bf16.mxu0 %v5107
    %7285 = vmatpush1.bf16.msra.mxu0 %v5106
    %7286 = vmatprep.subr.bf16.mxu0 %v5113
    %7287 = vmatpush1.bf16.msra.mxu0 %v5112
    %7288 = vmatprep.subr.bf16.mxu0 %v5119
    %7289 = vmatpush1.bf16.msra.mxu0 %v5118
    %7290 = vmatprep.subr.bf16.mxu0 %v5125
    %7291 = vmatpush1.bf16.msra.mxu0 %v5124
    %7292 = vmatprep.subr.bf16.mxu0 %v5131
    %7293 = vmatpush1.bf16.msra.mxu0 %v5130
    %7294 = vmatprep.subr.bf16.mxu0 %v5137
    %7295 = vmatpush1.bf16.msra.mxu0 %v5136
    %7296 = vmatprep.subr.bf16.mxu0 %v5143
    %7297 = vmatpush1.bf16.msra.mxu0 %v5142
    %7298 = vmatprep.subr.bf16.mxu0 %v5149
    %7299 = vmatpush1.bf16.msra.mxu0 %v5148
    %7300 = vmatprep.subr.bf16.mxu0 %v5155
    %7301 = vmatpush1.bf16.msra.mxu0 %v5154
    %7302 = vmatprep.subr.bf16.mxu0 %v5161
    %7303 = vmatpush1.bf16.msra.mxu0 %v5160
    %7304 = vmatprep.subr.bf16.mxu0 %v5167
    %7305 = vmatpush1.bf16.msra.mxu0 %v5166
    %7306 = vmatprep.mubr.bf16.mxu0 %v1385
    %7307 = vmatmul.mubr.bf16.gmra.mrb[0].mxu0 %v1384
    %v7308 = vpop.f32.mrb[0].mxu0
    %v7309 = vadd.f32 %v7266, %v7308
    %v7310 = vpop.f32.mrb[0].mxu0
    %v7311 = vadd.f32 %v7268, %v7310
    %v7312 = vpop.f32.mrb[0].mxu0
    %v7313 = vadd.f32 %v7270, %v7312
    %v7314 = vpop.f32.mrb[0].mxu0
    %v7315 = vadd.f32 %v7272, %v7314
    %7316 = vdwg.mxu0
    %7317 = vmatprep.subr.bf16.mxu0 %v5173
    %7318 = vmatpush1.bf16.msra.mxu0 %v5172
    %7319 = vmatprep.subr.bf16.mxu0 %v5179
    %7320 = vmatpush1.bf16.msra.mxu0 %v5178
    %7321 = vmatprep.subr.bf16.mxu0 %v5185
    %7322 = vmatpush1.bf16.msra.mxu0 %v5184
    %7323 = vmatprep.subr.bf16.mxu0 %v5191
    %7324 = vmatpush1.bf16.msra.mxu0 %v5190
    %7325 = vmatprep.subr.bf16.mxu0 %v5197
    %7326 = vmatpush1.bf16.msra.mxu0 %v5196
    %7327 = vmatprep.subr.bf16.mxu0 %v5203
    %7328 = vmatpush1.bf16.msra.mxu0 %v5202
    %7329 = vmatprep.subr.bf16.mxu0 %v5209
    %7330 = vmatpush1.bf16.msra.mxu0 %v5208
    %7331 = vmatprep.subr.bf16.mxu0 %v5215
    %7332 = vmatpush1.bf16.msra.mxu0 %v5214
    %7333 = vmatprep.subr.bf16.mxu0 %v5221
    %7334 = vmatpush1.bf16.msra.mxu0 %v5220
    %7335 = vmatprep.subr.bf16.mxu0 %v5227
    %7336 = vmatpush1.bf16.msra.mxu0 %v5226
    %7337 = vmatprep.subr.bf16.mxu0 %v5233
    %7338 = vmatpush1.bf16.msra.mxu0 %v5232
    %7339 = vmatprep.subr.bf16.mxu0 %v5239
    %7340 = vmatpush1.bf16.msra.mxu0 %v5238
    %7341 = vmatprep.subr.bf16.mxu0 %v5245
    %7342 = vmatpush1.bf16.msra.mxu0 %v5244
    %7343 = vmatprep.subr.bf16.mxu0 %v5251
    %7344 = vmatpush1.bf16.msra.mxu0 %v5250
    %7345 = vmatprep.subr.bf16.mxu0 %v5257
    %7346 = vmatpush1.bf16.msra.mxu0 %v5256
    %7347 = vmatprep.subr.bf16.mxu0 %v5263
    %7348 = vmatpush1.bf16.msra.mxu0 %v5262
    %7349 = vmatprep.mubr.bf16.mxu0 %v1387
    %7350 = vmatmul.mubr.bf16.gmra.mrb[0].mxu0 %v1386
    %v7351 = vpop.f32.mrb[0].mxu0
    %v7352 = vadd.f32 %v7309, %v7351
    %v7353 = vpop.f32.mrb[0].mxu0
    %v7354 = vadd.f32 %v7311, %v7353
    %v7355 = vpop.f32.mrb[0].mxu0
    %v7356 = vadd.f32 %v7313, %v7355
    %v7357 = vpop.f32.mrb[0].mxu0
    %v7358 = vadd.f32 %v7315, %v7357
    %7359 = vdwg.mxu0
    %7360 = vmatprep.subr.bf16.mxu0 %v5269
    %7361 = vmatpush1.bf16.msra.mxu0 %v5268
    %7362 = vmatprep.subr.bf16.mxu0 %v5275
    %7363 = vmatpush1.bf16.msra.mxu0 %v5274
    %7364 = vmatprep.subr.bf16.mxu0 %v5281
    %7365 = vmatpush1.bf16.msra.mxu0 %v5280
    %7366 = vmatprep.subr.bf16.mxu0 %v5287
    %7367 = vmatpush1.bf16.msra.mxu0 %v5286
    %7368 = vmatprep.subr.bf16.mxu0 %v5293
    %7369 = vmatpush1.bf16.msra.mxu0 %v5292
    %7370 = vmatprep.subr.bf16.mxu0 %v5299
    %7371 = vmatpush1.bf16.msra.mxu0 %v5298
    %7372 = vmatprep.subr.bf16.mxu0 %v5305
    %7373 = vmatpush1.bf16.msra.mxu0 %v5304
    %7374 = vmatprep.subr.bf16.mxu0 %v5311
    %7375 = vmatpush1.bf16.msra.mxu0 %v5310
    %7376 = vmatprep.subr.bf16.mxu0 %v5317
    %7377 = vmatpush1.bf16.msra.mxu0 %v5316
    %7378 = vmatprep.subr.bf16.mxu0 %v5323
    %7379 = vmatpush1.bf16.msra.mxu0 %v5322
    %7380 = vmatprep.subr.bf16.mxu0 %v5329
    %7381 = vmatpush1.bf16.msra.mxu0 %v5328
    %7382 = vmatprep.subr.bf16.mxu0 %v5335
    %7383 = vmatpush1.bf16.msra.mxu0 %v5334
    %7384 = vmatprep.subr.bf16.mxu0 %v5341
    %7385 = vmatpush1.bf16.msra.mxu0 %v5340
    %7386 = vmatprep.subr.bf16.mxu0 %v5347
    %7387 = vmatpush1.bf16.msra.mxu0 %v5346
    %7388 = vmatprep.subr.bf16.mxu0 %v5353
    %7389 = vmatpush1.bf16.msra.mxu0 %v5352
    %7390 = vmatprep.subr.bf16.mxu0 %v5359
    %7391 = vmatpush1.bf16.msra.mxu0 %v5358
    %7392 = vmatprep.mubr.bf16.mxu0 %v1389
    %7393 = vmatmul.mubr.bf16.gmra.mrb[0].mxu0 %v1388
    %v7394 = vpop.f32.mrb[0].mxu0
    %v7395 = vadd.f32 %v7352, %v7394
    %v7396 = vpop.f32.mrb[0].mxu0
    %v7397 = vadd.f32 %v7354, %v7396
    %v7398 = vpop.f32.mrb[0].mxu0
    %v7399 = vadd.f32 %v7356, %v7398
    %v7400 = vpop.f32.mrb[0].mxu0
    %v7401 = vadd.f32 %v7358, %v7400
    %7402 = vdwg.mxu0
    %7403 = vmatprep.subr.bf16.mxu0 %v5365
    %7404 = vmatpush1.bf16.msra.mxu0 %v5364
    %7405 = vmatprep.subr.bf16.mxu0 %v5371
    %7406 = vmatpush1.bf16.msra.mxu0 %v5370
    %7407 = vmatprep.subr.bf16.mxu0 %v5377
    %7408 = vmatpush1.bf16.msra.mxu0 %v5376
    %7409 = vmatprep.subr.bf16.mxu0 %v5383
    %7410 = vmatpush1.bf16.msra.mxu0 %v5382
    %7411 = vmatprep.subr.bf16.mxu0 %v5389
    %7412 = vmatpush1.bf16.msra.mxu0 %v5388
    %7413 = vmatprep.subr.bf16.mxu0 %v5395
    %7414 = vmatpush1.bf16.msra.mxu0 %v5394
    %7415 = vmatprep.subr.bf16.mxu0 %v5401
    %7416 = vmatpush1.bf16.msra.mxu0 %v5400
    %7417 = vmatprep.subr.bf16.mxu0 %v5407
    %7418 = vmatpush1.bf16.msra.mxu0 %v5406
    %7419 = vmatprep.subr.bf16.mxu0 %v5413
    %7420 = vmatpush1.bf16.msra.mxu0 %v5412
    %7421 = vmatprep.subr.bf16.mxu0 %v5419
    %7422 = vmatpush1.bf16.msra.mxu0 %v5418
    %7423 = vmatprep.subr.bf16.mxu0 %v5425
    %7424 = vmatpush1.bf16.msra.mxu0 %v5424
    %7425 = vmatprep.subr.bf16.mxu0 %v5431
    %7426 = vmatpush1.bf16.msra.mxu0 %v5430
    %7427 = vmatprep.subr.bf16.mxu0 %v5437
    %7428 = vmatpush1.bf16.msra.mxu0 %v5436
    %7429 = vmatprep.subr.bf16.mxu0 %v5443
    %7430 = vmatpush1.bf16.msra.mxu0 %v5442
    %7431 = vmatprep.subr.bf16.mxu0 %v5449
    %7432 = vmatpush1.bf16.msra.mxu0 %v5448
    %7433 = vmatprep.subr.bf16.mxu0 %v5455
    %7434 = vmatpush1.bf16.msra.mxu0 %v5454
    %7435 = vmatprep.mubr.bf16.mxu0 %v1391
    %7436 = vmatmul.mubr.bf16.gmra.mrb[0].mxu0 %v1390
    %v7437 = vpop.f32.mrb[0].mxu0
    %v7438 = vadd.f32 %v7395, %v7437
    %v7439 = vpop.f32.mrb[0].mxu0
    %v7440 = vadd.f32 %v7397, %v7439
    %v7441 = vpop.f32.mrb[0].mxu0
    %v7442 = vadd.f32 %v7399, %v7441
    %v7443 = vpop.f32.mrb[0].mxu0
    %v7444 = vadd.f32 %v7401, %v7443
    %7445 = vdwg.mxu0
    %7446 = vmatprep.subr.bf16.mxu0 %v5461
    %7447 = vmatpush1.bf16.msra.mxu0 %v5460
    %7448 = vmatprep.subr.bf16.mxu0 %v5467
    %7449 = vmatpush1.bf16.msra.mxu0 %v5466
    %7450 = vmatprep.subr.bf16.mxu0 %v5473
    %7451 = vmatpush1.bf16.msra.mxu0 %v5472
    %7452 = vmatprep.subr.bf16.mxu0 %v5479
    %7453 = vmatpush1.bf16.msra.mxu0 %v5478
    %7454 = vmatprep.subr.bf16.mxu0 %v5485
    %7455 = vmatpush1.bf16.msra.mxu0 %v5484
    %7456 = vmatprep.subr.bf16.mxu0 %v5491
    %7457 = vmatpush1.bf16.msra.mxu0 %v5490
    %7458 = vmatprep.subr.bf16.mxu0 %v5497
    %7459 = vmatpush1.bf16.msra.mxu0 %v5496
    %7460 = vmatprep.subr.bf16.mxu0 %v5503
    %7461 = vmatpush1.bf16.msra.mxu0 %v5502
    %7462 = vmatprep.subr.bf16.mxu0 %v5509
    %7463 = vmatpush1.bf16.msra.mxu0 %v5508
    %7464 = vmatprep.subr.bf16.mxu0 %v5515
    %7465 = vmatpush1.bf16.msra.mxu0 %v5514
    %7466 = vmatprep.subr.bf16.mxu0 %v5521
    %7467 = vmatpush1.bf16.msra.mxu0 %v5520
    %7468 = vmatprep.subr.bf16.mxu0 %v5527
    %7469 = vmatpush1.bf16.msra.mxu0 %v5526
    %7470 = vmatprep.subr.bf16.mxu0 %v5533
    %7471 = vmatpush1.bf16.msra.mxu0 %v5532
    %7472 = vmatprep.subr.bf16.mxu0 %v5539
    %7473 = vmatpush1.bf16.msra.mxu0 %v5538
    %7474 = vmatprep.subr.bf16.mxu0 %v5545
    %7475 = vmatpush1.bf16.msra.mxu0 %v5544
    %7476 = vmatprep.subr.bf16.mxu0 %v5551
    %7477 = vmatpush1.bf16.msra.mxu0 %v5550
    %7478 = vmatprep.mubr.bf16.mxu0 %v1393
    %7479 = vmatmul.mubr.bf16.gmra.mrb[0].mxu0 %v1392
    %v7480 = vpop.f32.mrb[0].mxu0
    %v7481 = vadd.f32 %v7438, %v7480
    %v7482 = vpop.f32.mrb[0].mxu0
    %v7483 = vadd.f32 %v7440, %v7482
    %v7484 = vpop.f32.mrb[0].mxu0
    %v7485 = vadd.f32 %v7442, %v7484
    %v7486 = vpop.f32.mrb[0].mxu0
    %v7487 = vadd.f32 %v7444, %v7486
    %7488 = vdwg.mxu0
    %7489 = vmatprep.subr.bf16.mxu0 %v5557
    %7490 = vmatpush1.bf16.msra.mxu0 %v5556
    %7491 = vmatprep.subr.bf16.mxu0 %v5563
    %7492 = vmatpush1.bf16.msra.mxu0 %v5562
    %7493 = vmatprep.subr.bf16.mxu0 %v5569
    %7494 = vmatpush1.bf16.msra.mxu0 %v5568
    %7495 = vmatprep.subr.bf16.mxu0 %v5575
    %7496 = vmatpush1.bf16.msra.mxu0 %v5574
    %7497 = vmatprep.subr.bf16.mxu0 %v5581
    %7498 = vmatpush1.bf16.msra.mxu0 %v5580
    %7499 = vmatprep.subr.bf16.mxu0 %v5587
    %7500 = vmatpush1.bf16.msra.mxu0 %v5586
    %7501 = vmatprep.subr.bf16.mxu0 %v5593
    %7502 = vmatpush1.bf16.msra.mxu0 %v5592
    %7503 = vmatprep.subr.bf16.mxu0 %v5599
    %7504 = vmatpush1.bf16.msra.mxu0 %v5598
    %7505 = vmatprep.subr.bf16.mxu0 %v5605
    %7506 = vmatpush1.bf16.msra.mxu0 %v5604
    %7507 = vmatprep.subr.bf16.mxu0 %v5611
    %7508 = vmatpush1.bf16.msra.mxu0 %v5610
    %7509 = vmatprep.subr.bf16.mxu0 %v5617
    %7510 = vmatpush1.bf16.msra.mxu0 %v5616
    %7511 = vmatprep.subr.bf16.mxu0 %v5623
    %7512 = vmatpush1.bf16.msra.mxu0 %v5622
    %7513 = vmatprep.subr.bf16.mxu0 %v5629
    %7514 = vmatpush1.bf16.msra.mxu0 %v5628
    %7515 = vmatprep.subr.bf16.mxu0 %v5635
    %7516 = vmatpush1.bf16.msra.mxu0 %v5634
    %7517 = vmatprep.subr.bf16.mxu0 %v5641
    %7518 = vmatpush1.bf16.msra.mxu0 %v5640
    %7519 = vmatprep.subr.bf16.mxu0 %v5647
    %7520 = vmatpush1.bf16.msra.mxu0 %v5646
    %7521 = vmatprep.mubr.bf16.mxu0 %v1395
    %7522 = vmatmul.mubr.bf16.gmra.mrb[0].mxu0 %v1394
    %v7523 = vpop.f32.mrb[0].mxu0
    %v7524 = vadd.f32 %v7481, %v7523
    %v7525 = vpop.f32.mrb[0].mxu0
    %v7526 = vadd.f32 %v7483, %v7525
    %v7527 = vpop.f32.mrb[0].mxu0
    %v7528 = vadd.f32 %v7485, %v7527
    %v7529 = vpop.f32.mrb[0].mxu0
    %v7530 = vadd.f32 %v7487, %v7529
    %7531 = vdwg.mxu0
    %7532 = vmatprep.subr.bf16.mxu0 %v5653
    %7533 = vmatpush1.bf16.msra.mxu0 %v5652
    %7534 = vmatprep.subr.bf16.mxu0 %v5659
    %7535 = vmatpush1.bf16.msra.mxu0 %v5658
    %7536 = vmatprep.subr.bf16.mxu0 %v5665
    %7537 = vmatpush1.bf16.msra.mxu0 %v5664
    %7538 = vmatprep.subr.bf16.mxu0 %v5671
    %7539 = vmatpush1.bf16.msra.mxu0 %v5670
    %7540 = vmatprep.subr.bf16.mxu0 %v5677
    %7541 = vmatpush1.bf16.msra.mxu0 %v5676
    %7542 = vmatprep.subr.bf16.mxu0 %v5683
    %7543 = vmatpush1.bf16.msra.mxu0 %v5682
    %7544 = vmatprep.subr.bf16.mxu0 %v5689
    %7545 = vmatpush1.bf16.msra.mxu0 %v5688
    %7546 = vmatprep.subr.bf16.mxu0 %v5695
    %7547 = vmatpush1.bf16.msra.mxu0 %v5694
    %7548 = vmatprep.subr.bf16.mxu0 %v5701
    %7549 = vmatpush1.bf16.msra.mxu0 %v5700
    %7550 = vmatprep.subr.bf16.mxu0 %v5707
    %7551 = vmatpush1.bf16.msra.mxu0 %v5706
    %7552 = vmatprep.subr.bf16.mxu0 %v5713
    %7553 = vmatpush1.bf16.msra.mxu0 %v5712
    %7554 = vmatprep.subr.bf16.mxu0 %v5719
    %7555 = vmatpush1.bf16.msra.mxu0 %v5718
    %7556 = vmatprep.subr.bf16.mxu0 %v5725
    %7557 = vmatpush1.bf16.msra.mxu0 %v5724
    %7558 = vmatprep.subr.bf16.mxu0 %v5731
    %7559 = vmatpush1.bf16.msra.mxu0 %v5730
    %7560 = vmatprep.subr.bf16.mxu0 %v5737
    %7561 = vmatpush1.bf16.msra.mxu0 %v5736
    %7562 = vmatprep.subr.bf16.mxu0 %v5743
    %7563 = vmatpush1.bf16.msra.mxu0 %v5742
    %7564 = vmatprep.mubr.bf16.mxu0 %v1397
    %7565 = vmatmul.mubr.bf16.gmra.mrb[0].mxu0 %v1396
    %v7566 = vpop.f32.mrb[0].mxu0
    %v7567 = vadd.f32 %v7524, %v7566
    %v7568 = vpop.f32.mrb[0].mxu0
    %v7569 = vadd.f32 %v7526, %v7568
    %v7570 = vpop.f32.mrb[0].mxu0
    %v7571 = vadd.f32 %v7528, %v7570
    %v7572 = vpop.f32.mrb[0].mxu0
    %v7573 = vadd.f32 %v7530, %v7572
    %7574 = vdwg.mxu0
    %7575 = vmatprep.subr.bf16.mxu0 %v5749
    %7576 = vmatpush1.bf16.msra.mxu0 %v5748
    %7577 = vmatprep.subr.bf16.mxu0 %v5755
    %7578 = vmatpush1.bf16.msra.mxu0 %v5754
    %7579 = vmatprep.subr.bf16.mxu0 %v5761
    %7580 = vmatpush1.bf16.msra.mxu0 %v5760
    %7581 = vmatprep.subr.bf16.mxu0 %v5767
    %7582 = vmatpush1.bf16.msra.mxu0 %v5766
    %7583 = vmatprep.subr.bf16.mxu0 %v5773
    %7584 = vmatpush1.bf16.msra.mxu0 %v5772
    %7585 = vmatprep.subr.bf16.mxu0 %v5779
    %7586 = vmatpush1.bf16.msra.mxu0 %v5778
    %7587 = vmatprep.subr.bf16.mxu0 %v5785
    %7588 = vmatpush1.bf16.msra.mxu0 %v5784
    %7589 = vmatprep.subr.bf16.mxu0 %v5791
    %7590 = vmatpush1.bf16.msra.mxu0 %v5790
    %7591 = vmatprep.subr.bf16.mxu0 %v5797
    %7592 = vmatpush1.bf16.msra.mxu0 %v5796
    %7593 = vmatprep.subr.bf16.mxu0 %v5803
    %7594 = vmatpush1.bf16.msra.mxu0 %v5802
    %7595 = vmatprep.subr.bf16.mxu0 %v5809
    %7596 = vmatpush1.bf16.msra.mxu0 %v5808
    %7597 = vmatprep.subr.bf16.mxu0 %v5815
    %7598 = vmatpush1.bf16.msra.mxu0 %v5814
    %7599 = vmatprep.subr.bf16.mxu0 %v5821
    %7600 = vmatpush1.bf16.msra.mxu0 %v5820
    %7601 = vmatprep.subr.bf16.mxu0 %v5827
    %7602 = vmatpush1.bf16.msra.mxu0 %v5826
    %7603 = vmatprep.subr.bf16.mxu0 %v5833
    %7604 = vmatpush1.bf16.msra.mxu0 %v5832
    %7605 = vmatprep.subr.bf16.mxu0 %v5839
    %7606 = vmatpush1.bf16.msra.mxu0 %v5838
    %7607 = vmatprep.mubr.bf16.mxu0 %v1399
    %7608 = vmatmul.mubr.bf16.gmra.mrb[0].mxu0 %v1398
    %v7609 = vpop.f32.mrb[0].mxu0
    %v7610 = vadd.f32 %v7567, %v7609
    %v7611 = vpop.f32.mrb[0].mxu0
    %v7612 = vadd.f32 %v7569, %v7611
    %v7613 = vpop.f32.mrb[0].mxu0
    %v7614 = vadd.f32 %v7571, %v7613
    %v7615 = vpop.f32.mrb[0].mxu0
    %v7616 = vadd.f32 %v7573, %v7615
    %7617 = vdwg.mxu0
    %7618 = vmatprep.subr.bf16.mxu0 %v5845
    %7619 = vmatpush1.bf16.msra.mxu0 %v5844
    %7620 = vmatprep.subr.bf16.mxu0 %v5851
    %7621 = vmatpush1.bf16.msra.mxu0 %v5850
    %7622 = vmatprep.subr.bf16.mxu0 %v5857
    %7623 = vmatpush1.bf16.msra.mxu0 %v5856
    %7624 = vmatprep.subr.bf16.mxu0 %v5863
    %7625 = vmatpush1.bf16.msra.mxu0 %v5862
    %7626 = vmatprep.subr.bf16.mxu0 %v5869
    %7627 = vmatpush1.bf16.msra.mxu0 %v5868
    %7628 = vmatprep.subr.bf16.mxu0 %v5875
    %7629 = vmatpush1.bf16.msra.mxu0 %v5874
    %7630 = vmatprep.subr.bf16.mxu0 %v5881
    %7631 = vmatpush1.bf16.msra.mxu0 %v5880
    %7632 = vmatprep.subr.bf16.mxu0 %v5887
    %7633 = vmatpush1.bf16.msra.mxu0 %v5886
    %7634 = vmatprep.subr.bf16.mxu0 %v5893
    %7635 = vmatpush1.bf16.msra.mxu0 %v5892
    %7636 = vmatprep.subr.bf16.mxu0 %v5899
    %7637 = vmatpush1.bf16.msra.mxu0 %v5898
    %7638 = vmatprep.subr.bf16.mxu0 %v5905
    %7639 = vmatpush1.bf16.msra.mxu0 %v5904
    %7640 = vmatprep.subr.bf16.mxu0 %v5911
    %7641 = vmatpush1.bf16.msra.mxu0 %v5910
    %7642 = vmatprep.subr.bf16.mxu0 %v5917
    %7643 = vmatpush1.bf16.msra.mxu0 %v5916
    %7644 = vmatprep.subr.bf16.mxu0 %v5923
    %7645 = vmatpush1.bf16.msra.mxu0 %v5922
    %7646 = vmatprep.subr.bf16.mxu0 %v5929
    %7647 = vmatpush1.bf16.msra.mxu0 %v5928
    %7648 = vmatprep.subr.bf16.mxu0 %v5935
    %7649 = vmatpush1.bf16.msra.mxu0 %v5934
    %7650 = vmatprep.mubr.bf16.mxu0 %v1401
    %7651 = vmatmul.mubr.bf16.gmra.mrb[0].mxu0 %v1400
    %v7652 = vpop.f32.mrb[0].mxu0
    %v7653 = vadd.f32 %v7610, %v7652
    %v7654 = vpop.f32.mrb[0].mxu0
    %v7655 = vadd.f32 %v7612, %v7654
    %v7656 = vpop.f32.mrb[0].mxu0
    %v7657 = vadd.f32 %v7614, %v7656
    %v7658 = vpop.f32.mrb[0].mxu0
    %v7659 = vadd.f32 %v7616, %v7658
    %7660 = vdwg.mxu0
    %7661 = vmatprep.subr.bf16.mxu0 %v5941
    %7662 = vmatpush1.bf16.msra.mxu0 %v5940
    %7663 = vmatprep.subr.bf16.mxu0 %v5947
    %7664 = vmatpush1.bf16.msra.mxu0 %v5946
    %7665 = vmatprep.subr.bf16.mxu0 %v5953
    %7666 = vmatpush1.bf16.msra.mxu0 %v5952
    %7667 = vmatprep.subr.bf16.mxu0 %v5959
    %7668 = vmatpush1.bf16.msra.mxu0 %v5958
    %7669 = vmatprep.subr.bf16.mxu0 %v5965
    %7670 = vmatpush1.bf16.msra.mxu0 %v5964
    %7671 = vmatprep.subr.bf16.mxu0 %v5971
    %7672 = vmatpush1.bf16.msra.mxu0 %v5970
    %7673 = vmatprep.subr.bf16.mxu0 %v5977
    %7674 = vmatpush1.bf16.msra.mxu0 %v5976
    %7675 = vmatprep.subr.bf16.mxu0 %v5983
    %7676 = vmatpush1.bf16.msra.mxu0 %v5982
    %7677 = vmatprep.subr.bf16.mxu0 %v5989
    %7678 = vmatpush1.bf16.msra.mxu0 %v5988
    %7679 = vmatprep.subr.bf16.mxu0 %v5995
    %7680 = vmatpush1.bf16.msra.mxu0 %v5994
    %7681 = vmatprep.subr.bf16.mxu0 %v6001
    %7682 = vmatpush1.bf16.msra.mxu0 %v6000
    %7683 = vmatprep.subr.bf16.mxu0 %v6007
    %7684 = vmatpush1.bf16.msra.mxu0 %v6006
    %7685 = vmatprep.subr.bf16.mxu0 %v6013
    %7686 = vmatpush1.bf16.msra.mxu0 %v6012
    %7687 = vmatprep.subr.bf16.mxu0 %v6019
    %7688 = vmatpush1.bf16.msra.mxu0 %v6018
    %7689 = vmatprep.subr.bf16.mxu0 %v6025
    %7690 = vmatpush1.bf16.msra.mxu0 %v6024
    %7691 = vmatprep.subr.bf16.mxu0 %v6031
    %7692 = vmatpush1.bf16.msra.mxu0 %v6030
    %7693 = vmatprep.mubr.bf16.mxu0 %v1403
    %7694 = vmatmul.mubr.bf16.gmra.mrb[0].mxu0 %v1402
    %v7695 = vpop.f32.mrb[0].mxu0
    %v7696 = vadd.f32 %v7653, %v7695
    %v7697 = vpop.f32.mrb[0].mxu0
    %v7698 = vadd.f32 %v7655, %v7697
    %v7699 = vpop.f32.mrb[0].mxu0
    %v7700 = vadd.f32 %v7657, %v7699
    %v7701 = vpop.f32.mrb[0].mxu0
    %v7702 = vadd.f32 %v7659, %v7701
    %7703 = vdwg.mxu0
    %7704 = vmatprep.subr.bf16.mxu0 %v4887
    %7705 = vmatpush1.bf16.msra.mxu0 %v4886
    %7706 = vmatprep.subr.bf16.mxu0 %v4893
    %7707 = vmatpush1.bf16.msra.mxu0 %v4892
    %7708 = vmatprep.subr.bf16.mxu0 %v4899
    %7709 = vmatpush1.bf16.msra.mxu0 %v4898
    %7710 = vmatprep.subr.bf16.mxu0 %v4905
    %7711 = vmatpush1.bf16.msra.mxu0 %v4904
    %7712 = vmatprep.subr.bf16.mxu0 %v4911
    %7713 = vmatpush1.bf16.msra.mxu0 %v4910
    %7714 = vmatprep.subr.bf16.mxu0 %v4917
    %7715 = vmatpush1.bf16.msra.mxu0 %v4916
    %7716 = vmatprep.subr.bf16.mxu0 %v4923
    %7717 = vmatpush1.bf16.msra.mxu0 %v4922
    %7718 = vmatprep.subr.bf16.mxu0 %v4929
    %7719 = vmatpush1.bf16.msra.mxu0 %v4928
    %7720 = vmatprep.subr.bf16.mxu0 %v4935
    %7721 = vmatpush1.bf16.msra.mxu0 %v4934
    %7722 = vmatprep.subr.bf16.mxu0 %v4941
    %7723 = vmatpush1.bf16.msra.mxu0 %v4940
    %7724 = vmatprep.subr.bf16.mxu0 %v4947
    %7725 = vmatpush1.bf16.msra.mxu0 %v4946
    %7726 = vmatprep.subr.bf16.mxu0 %v4953
    %7727 = vmatpush1.bf16.msra.mxu0 %v4952
    %7728 = vmatprep.subr.bf16.mxu0 %v4959
    %7729 = vmatpush1.bf16.msra.mxu0 %v4958
    %7730 = vmatprep.subr.bf16.mxu0 %v4965
    %7731 = vmatpush1.bf16.msra.mxu0 %v4964
    %7732 = vmatprep.subr.bf16.mxu0 %v4971
    %7733 = vmatpush1.bf16.msra.mxu0 %v4970
    %7734 = vmatprep.subr.bf16.mxu0 %v4977
    %7735 = vmatpush1.bf16.msra.mxu0 %v4976
    %7736 = vmatprep.mubr.bf16.mxu0 %v1381
    %7737 = vmatmul.mubr.bf16.gmra.mrb[0].mxu0 %v1380
    %v7738 = vpop.f32.mrb[0].mxu0
    %v7739 = vadd.f32 %v1289, %v7738
    %v7740 = vpop.f32.mrb[0].mxu0
    %v7741 = vadd.f32 %v1293, %v7740
    %v7742 = vpop.f32.mrb[0].mxu0
    %v7743 = vadd.f32 %v1289, %v7742
    %v7744 = vpop.f32.mrb[0].mxu0
    %v7745 = vadd.f32 %v1293, %v7744
    %7746 = vdwg.mxu0
    %7747 = vmatprep.subr.bf16.mxu0 %v4983
    %7748 = vmatpush1.bf16.msra.mxu0 %v4982
    %7749 = vmatprep.subr.bf16.mxu0 %v4989
    %7750 = vmatpush1.bf16.msra.mxu0 %v4988
    %7751 = vmatprep.subr.bf16.mxu0 %v4995
    %7752 = vmatpush1.bf16.msra.mxu0 %v4994
    %7753 = vmatprep.subr.bf16.mxu0 %v5001
    %7754 = vmatpush1.bf16.msra.mxu0 %v5000
    %7755 = vmatprep.subr.bf16.mxu0 %v5007
    %7756 = vmatpush1.bf16.msra.mxu0 %v5006
    %7757 = vmatprep.subr.bf16.mxu0 %v5013
    %7758 = vmatpush1.bf16.msra.mxu0 %v5012
    %7759 = vmatprep.subr.bf16.mxu0 %v5019
    %7760 = vmatpush1.bf16.msra.mxu0 %v5018
    %7761 = vmatprep.subr.bf16.mxu0 %v5025
    %7762 = vmatpush1.bf16.msra.mxu0 %v5024
    %7763 = vmatprep.subr.bf16.mxu0 %v5031
    %7764 = vmatpush1.bf16.msra.mxu0 %v5030
    %7765 = vmatprep.subr.bf16.mxu0 %v5037
    %7766 = vmatpush1.bf16.msra.mxu0 %v5036
    %7767 = vmatprep.subr.bf16.mxu0 %v5043
    %7768 = vmatpush1.bf16.msra.mxu0 %v5042
    %7769 = vmatprep.subr.bf16.mxu0 %v5049
    %7770 = vmatpush1.bf16.msra.mxu0 %v5048
    %7771 = vmatprep.subr.bf16.mxu0 %v5055
    %7772 = vmatpush1.bf16.msra.mxu0 %v5054
    %7773 = vmatprep.subr.bf16.mxu0 %v5061
    %7774 = vmatpush1.bf16.msra.mxu0 %v5060
    %7775 = vmatprep.subr.bf16.mxu0 %v5067
    %7776 = vmatpush1.bf16.msra.mxu0 %v5066
    %7777 = vmatprep.subr.bf16.mxu0 %v5073
    %7778 = vmatpush1.bf16.msra.mxu0 %v5072
    %7779 = vmatprep.mubr.bf16.mxu0 %v1383
    %7780 = vmatmul.mubr.bf16.gmra.mrb[0].mxu0 %v1382
    %v7781 = vpop.f32.mrb[0].mxu0
    %v7782 = vadd.f32 %v7739, %v7781
    %v7783 = vpop.f32.mrb[0].mxu0
    %v7784 = vadd.f32 %v7741, %v7783
    %v7785 = vpop.f32.mrb[0].mxu0
    %v7786 = vadd.f32 %v7743, %v7785
    %v7787 = vpop.f32.mrb[0].mxu0
    %v7788 = vadd.f32 %v7745, %v7787
    %7789 = vdwg.mxu0
    %7790 = vmatprep.subr.bf16.mxu0 %v5079
    %7791 = vmatpush1.bf16.msra.mxu0 %v5078
    %7792 = vmatprep.subr.bf16.mxu0 %v5085
    %7793 = vmatpush1.bf16.msra.mxu0 %v5084
    %7794 = vmatprep.subr.bf16.mxu0 %v5091
    %7795 = vmatpush1.bf16.msra.mxu0 %v5090
    %7796 = vmatprep.subr.bf16.mxu0 %v5097
    %7797 = vmatpush1.bf16.msra.mxu0 %v5096
    %7798 = vmatprep.subr.bf16.mxu0 %v5103
    %7799 = vmatpush1.bf16.msra.mxu0 %v5102
    %7800 = vmatprep.subr.bf16.mxu0 %v5109
    %7801 = vmatpush1.bf16.msra.mxu0 %v5108
    %7802 = vmatprep.subr.bf16.mxu0 %v5115
    %7803 = vmatpush1.bf16.msra.mxu0 %v5114
    %7804 = vmatprep.subr.bf16.mxu0 %v5121
    %7805 = vmatpush1.bf16.msra.mxu0 %v5120
    %7806 = vmatprep.subr.bf16.mxu0 %v5127
    %7807 = vmatpush1.bf16.msra.mxu0 %v5126
    %7808 = vmatprep.subr.bf16.mxu0 %v5133
    %7809 = vmatpush1.bf16.msra.mxu0 %v5132
    %7810 = vmatprep.subr.bf16.mxu0 %v5139
    %7811 = vmatpush1.bf16.msra.mxu0 %v5138
    %7812 = vmatprep.subr.bf16.mxu0 %v5145
    %7813 = vmatpush1.bf16.msra.mxu0 %v5144
    %7814 = vmatprep.subr.bf16.mxu0 %v5151
    %7815 = vmatpush1.bf16.msra.mxu0 %v5150
    %7816 = vmatprep.subr.bf16.mxu0 %v5157
    %7817 = vmatpush1.bf16.msra.mxu0 %v5156
    %7818 = vmatprep.subr.bf16.mxu0 %v5163
    %7819 = vmatpush1.bf16.msra.mxu0 %v5162
    %7820 = vmatprep.subr.bf16.mxu0 %v5169
    %7821 = vmatpush1.bf16.msra.mxu0 %v5168
    %7822 = vmatprep.mubr.bf16.mxu0 %v1385
    %7823 = vmatmul.mubr.bf16.gmra.mrb[0].mxu0 %v1384
    %v7824 = vpop.f32.mrb[0].mxu0
    %v7825 = vadd.f32 %v7782, %v7824
    %v7826 = vpop.f32.mrb[0].mxu0
    %v7827 = vadd.f32 %v7784, %v7826
    %v7828 = vpop.f32.mrb[0].mxu0
    %v7829 = vadd.f32 %v7786, %v7828
    %v7830 = vpop.f32.mrb[0].mxu0
    %v7831 = vadd.f32 %v7788, %v7830
    %7832 = vdwg.mxu0
    %7833 = vmatprep.subr.bf16.mxu0 %v5175
    %7834 = vmatpush1.bf16.msra.mxu0 %v5174
    %7835 = vmatprep.subr.bf16.mxu0 %v5181
    %7836 = vmatpush1.bf16.msra.mxu0 %v5180
    %7837 = vmatprep.subr.bf16.mxu0 %v5187
    %7838 = vmatpush1.bf16.msra.mxu0 %v5186
    %7839 = vmatprep.subr.bf16.mxu0 %v5193
    %7840 = vmatpush1.bf16.msra.mxu0 %v5192
    %7841 = vmatprep.subr.bf16.mxu0 %v5199
    %7842 = vmatpush1.bf16.msra.mxu0 %v5198
    %7843 = vmatprep.subr.bf16.mxu0 %v5205
    %7844 = vmatpush1.bf16.msra.mxu0 %v5204
    %7845 = vmatprep.subr.bf16.mxu0 %v5211
    %7846 = vmatpush1.bf16.msra.mxu0 %v5210
    %7847 = vmatprep.subr.bf16.mxu0 %v5217
    %7848 = vmatpush1.bf16.msra.mxu0 %v5216
    %7849 = vmatprep.subr.bf16.mxu0 %v5223
    %7850 = vmatpush1.bf16.msra.mxu0 %v5222
    %7851 = vmatprep.subr.bf16.mxu0 %v5229
    %7852 = vmatpush1.bf16.msra.mxu0 %v5228
    %7853 = vmatprep.subr.bf16.mxu0 %v5235
    %7854 = vmatpush1.bf16.msra.mxu0 %v5234
    %7855 = vmatprep.subr.bf16.mxu0 %v5241
    %7856 = vmatpush1.bf16.msra.mxu0 %v5240
    %7857 = vmatprep.subr.bf16.mxu0 %v5247
    %7858 = vmatpush1.bf16.msra.mxu0 %v5246
    %7859 = vmatprep.subr.bf16.mxu0 %v5253
    %7860 = vmatpush1.bf16.msra.mxu0 %v5252
    %7861 = vmatprep.subr.bf16.mxu0 %v5259
    %7862 = vmatpush1.bf16.msra.mxu0 %v5258
    %7863 = vmatprep.subr.bf16.mxu0 %v5265
    %7864 = vmatpush1.bf16.msra.mxu0 %v5264
    %7865 = vmatprep.mubr.bf16.mxu0 %v1387
    %7866 = vmatmul.mubr.bf16.gmra.mrb[0].mxu0 %v1386
    %v7867 = vpop.f32.mrb[0].mxu0
    %v7868 = vadd.f32 %v7825, %v7867
    %v7869 = vpop.f32.mrb[0].mxu0
    %v7870 = vadd.f32 %v7827, %v7869
    %v7871 = vpop.f32.mrb[0].mxu0
    %v7872 = vadd.f32 %v7829, %v7871
    %v7873 = vpop.f32.mrb[0].mxu0
    %v7874 = vadd.f32 %v7831, %v7873
    %7875 = vdwg.mxu0
    %7876 = vmatprep.subr.bf16.mxu0 %v5271
    %7877 = vmatpush1.bf16.msra.mxu0 %v5270
    %7878 = vmatprep.subr.bf16.mxu0 %v5277
    %7879 = vmatpush1.bf16.msra.mxu0 %v5276
    %7880 = vmatprep.subr.bf16.mxu0 %v5283
    %7881 = vmatpush1.bf16.msra.mxu0 %v5282
    %7882 = vmatprep.subr.bf16.mxu0 %v5289
    %7883 = vmatpush1.bf16.msra.mxu0 %v5288
    %7884 = vmatprep.subr.bf16.mxu0 %v5295
    %7885 = vmatpush1.bf16.msra.mxu0 %v5294
    %7886 = vmatprep.subr.bf16.mxu0 %v5301
    %7887 = vmatpush1.bf16.msra.mxu0 %v5300
    %7888 = vmatprep.subr.bf16.mxu0 %v5307
    %7889 = vmatpush1.bf16.msra.mxu0 %v5306
    %7890 = vmatprep.subr.bf16.mxu0 %v5313
    %7891 = vmatpush1.bf16.msra.mxu0 %v5312
    %7892 = vmatprep.subr.bf16.mxu0 %v5319
    %7893 = vmatpush1.bf16.msra.mxu0 %v5318
    %7894 = vmatprep.subr.bf16.mxu0 %v5325
    %7895 = vmatpush1.bf16.msra.mxu0 %v5324
    %7896 = vmatprep.subr.bf16.mxu0 %v5331
    %7897 = vmatpush1.bf16.msra.mxu0 %v5330
    %7898 = vmatprep.subr.bf16.mxu0 %v5337
    %7899 = vmatpush1.bf16.msra.mxu0 %v5336
    %7900 = vmatprep.subr.bf16.mxu0 %v5343
    %7901 = vmatpush1.bf16.msra.mxu0 %v5342
    %7902 = vmatprep.subr.bf16.mxu0 %v5349
    %7903 = vmatpush1.bf16.msra.mxu0 %v5348
    %7904 = vmatprep.subr.bf16.mxu0 %v5355
    %7905 = vmatpush1.bf16.msra.mxu0 %v5354
    %7906 = vmatprep.subr.bf16.mxu0 %v5361
    %7907 = vmatpush1.bf16.msra.mxu0 %v5360
    %7908 = vmatprep.mubr.bf16.mxu0 %v1389
    %7909 = vmatmul.mubr.bf16.gmra.mrb[0].mxu0 %v1388
    %v7910 = vpop.f32.mrb[0].mxu0
    %v7911 = vadd.f32 %v7868, %v7910
    %v7912 = vpop.f32.mrb[0].mxu0
    %v7913 = vadd.f32 %v7870, %v7912
    %v7914 = vpop.f32.mrb[0].mxu0
    %v7915 = vadd.f32 %v7872, %v7914
    %v7916 = vpop.f32.mrb[0].mxu0
    %v7917 = vadd.f32 %v7874, %v7916
    %7918 = vdwg.mxu0
    %7919 = vmatprep.subr.bf16.mxu0 %v5367
    %7920 = vmatpush1.bf16.msra.mxu0 %v5366
    %7921 = vmatprep.subr.bf16.mxu0 %v5373
    %7922 = vmatpush1.bf16.msra.mxu0 %v5372
    %7923 = vmatprep.subr.bf16.mxu0 %v5379
    %7924 = vmatpush1.bf16.msra.mxu0 %v5378
    %7925 = vmatprep.subr.bf16.mxu0 %v5385
    %7926 = vmatpush1.bf16.msra.mxu0 %v5384
    %7927 = vmatprep.subr.bf16.mxu0 %v5391
    %7928 = vmatpush1.bf16.msra.mxu0 %v5390
    %7929 = vmatprep.subr.bf16.mxu0 %v5397
    %7930 = vmatpush1.bf16.msra.mxu0 %v5396
    %7931 = vmatprep.subr.bf16.mxu0 %v5403
    %7932 = vmatpush1.bf16.msra.mxu0 %v5402
    %7933 = vmatprep.subr.bf16.mxu0 %v5409
    %7934 = vmatpush1.bf16.msra.mxu0 %v5408
    %7935 = vmatprep.subr.bf16.mxu0 %v5415
    %7936 = vmatpush1.bf16.msra.mxu0 %v5414
    %7937 = vmatprep.subr.bf16.mxu0 %v5421
    %7938 = vmatpush1.bf16.msra.mxu0 %v5420
    %7939 = vmatprep.subr.bf16.mxu0 %v5427
    %7940 = vmatpush1.bf16.msra.mxu0 %v5426
    %7941 = vmatprep.subr.bf16.mxu0 %v5433
    %7942 = vmatpush1.bf16.msra.mxu0 %v5432
    %7943 = vmatprep.subr.bf16.mxu0 %v5439
    %7944 = vmatpush1.bf16.msra.mxu0 %v5438
    %7945 = vmatprep.subr.bf16.mxu0 %v5445
    %7946 = vmatpush1.bf16.msra.mxu0 %v5444
    %7947 = vmatprep.subr.bf16.mxu0 %v5451
    %7948 = vmatpush1.bf16.msra.mxu0 %v5450
    %7949 = vmatprep.subr.bf16.mxu0 %v5457
    %7950 = vmatpush1.bf16.msra.mxu0 %v5456
    %7951 = vmatprep.mubr.bf16.mxu0 %v1391
    %7952 = vmatmul.mubr.bf16.gmra.mrb[0].mxu0 %v1390
    %v7953 = vpop.f32.mrb[0].mxu0
    %v7954 = vadd.f32 %v7911, %v7953
    %v7955 = vpop.f32.mrb[0].mxu0
    %v7956 = vadd.f32 %v7913, %v7955
    %v7957 = vpop.f32.mrb[0].mxu0
    %v7958 = vadd.f32 %v7915, %v7957
    %v7959 = vpop.f32.mrb[0].mxu0
    %v7960 = vadd.f32 %v7917, %v7959
    %7961 = vdwg.mxu0
    %7962 = vmatprep.subr.bf16.mxu0 %v5463
    %7963 = vmatpush1.bf16.msra.mxu0 %v5462
    %7964 = vmatprep.subr.bf16.mxu0 %v5469
    %7965 = vmatpush1.bf16.msra.mxu0 %v5468
    %7966 = vmatprep.subr.bf16.mxu0 %v5475
    %7967 = vmatpush1.bf16.msra.mxu0 %v5474
    %7968 = vmatprep.subr.bf16.mxu0 %v5481
    %7969 = vmatpush1.bf16.msra.mxu0 %v5480
    %7970 = vmatprep.subr.bf16.mxu0 %v5487
    %7971 = vmatpush1.bf16.msra.mxu0 %v5486
    %7972 = vmatprep.subr.bf16.mxu0 %v5493
    %7973 = vmatpush1.bf16.msra.mxu0 %v5492
    %7974 = vmatprep.subr.bf16.mxu0 %v5499
    %7975 = vmatpush1.bf16.msra.mxu0 %v5498
    %7976 = vmatprep.subr.bf16.mxu0 %v5505
    %7977 = vmatpush1.bf16.msra.mxu0 %v5504
    %7978 = vmatprep.subr.bf16.mxu0 %v5511
    %7979 = vmatpush1.bf16.msra.mxu0 %v5510
    %7980 = vmatprep.subr.bf16.mxu0 %v5517
    %7981 = vmatpush1.bf16.msra.mxu0 %v5516
    %7982 = vmatprep.subr.bf16.mxu0 %v5523
    %7983 = vmatpush1.bf16.msra.mxu0 %v5522
    %7984 = vmatprep.subr.bf16.mxu0 %v5529
    %7985 = vmatpush1.bf16.msra.mxu0 %v5528
    %7986 = vmatprep.subr.bf16.mxu0 %v5535
    %7987 = vmatpush1.bf16.msra.mxu0 %v5534
    %7988 = vmatprep.subr.bf16.mxu0 %v5541
    %7989 = vmatpush1.bf16.msra.mxu0 %v5540
    %7990 = vmatprep.subr.bf16.mxu0 %v5547
    %7991 = vmatpush1.bf16.msra.mxu0 %v5546
    %7992 = vmatprep.subr.bf16.mxu0 %v5553
    %7993 = vmatpush1.bf16.msra.mxu0 %v5552
    %7994 = vmatprep.mubr.bf16.mxu0 %v1393
    %7995 = vmatmul.mubr.bf16.gmra.mrb[0].mxu0 %v1392
    %v7996 = vpop.f32.mrb[0].mxu0
    %v7997 = vadd.f32 %v7954, %v7996
    %v7998 = vpop.f32.mrb[0].mxu0
    %v7999 = vadd.f32 %v7956, %v7998
    %v8000 = vpop.f32.mrb[0].mxu0
    %v8001 = vadd.f32 %v7958, %v8000
    %v8002 = vpop.f32.mrb[0].mxu0
    %v8003 = vadd.f32 %v7960, %v8002
    %8004 = vdwg.mxu0
    %8005 = vmatprep.subr.bf16.mxu0 %v5559
    %8006 = vmatpush1.bf16.msra.mxu0 %v5558
    %8007 = vmatprep.subr.bf16.mxu0 %v5565
    %8008 = vmatpush1.bf16.msra.mxu0 %v5564
    %8009 = vmatprep.subr.bf16.mxu0 %v5571
    %8010 = vmatpush1.bf16.msra.mxu0 %v5570
    %8011 = vmatprep.subr.bf16.mxu0 %v5577
    %8012 = vmatpush1.bf16.msra.mxu0 %v5576
    %8013 = vmatprep.subr.bf16.mxu0 %v5583
    %8014 = vmatpush1.bf16.msra.mxu0 %v5582
    %8015 = vmatprep.subr.bf16.mxu0 %v5589
    %8016 = vmatpush1.bf16.msra.mxu0 %v5588
    %8017 = vmatprep.subr.bf16.mxu0 %v5595
    %8018 = vmatpush1.bf16.msra.mxu0 %v5594
    %8019 = vmatprep.subr.bf16.mxu0 %v5601
    %8020 = vmatpush1.bf16.msra.mxu0 %v5600
    %8021 = vmatprep.subr.bf16.mxu0 %v5607
    %8022 = vmatpush1.bf16.msra.mxu0 %v5606
    %8023 = vmatprep.subr.bf16.mxu0 %v5613
    %8024 = vmatpush1.bf16.msra.mxu0 %v5612
    %8025 = vmatprep.subr.bf16.mxu0 %v5619
    %8026 = vmatpush1.bf16.msra.mxu0 %v5618
    %8027 = vmatprep.subr.bf16.mxu0 %v5625
    %8028 = vmatpush1.bf16.msra.mxu0 %v5624
    %8029 = vmatprep.subr.bf16.mxu0 %v5631
    %8030 = vmatpush1.bf16.msra.mxu0 %v5630
    %8031 = vmatprep.subr.bf16.mxu0 %v5637
    %8032 = vmatpush1.bf16.msra.mxu0 %v5636
    %8033 = vmatprep.subr.bf16.mxu0 %v5643
    %8034 = vmatpush1.bf16.msra.mxu0 %v5642
    %8035 = vmatprep.subr.bf16.mxu0 %v5649
    %8036 = vmatpush1.bf16.msra.mxu0 %v5648
    %8037 = vmatprep.mubr.bf16.mxu0 %v1395
    %8038 = vmatmul.mubr.bf16.gmra.mrb[0].mxu0 %v1394
    %v8039 = vpop.f32.mrb[0].mxu0
    %v8040 = vadd.f32 %v7997, %v8039
    %v8041 = vpop.f32.mrb[0].mxu0
    %v8042 = vadd.f32 %v7999, %v8041
    %v8043 = vpop.f32.mrb[0].mxu0
    %v8044 = vadd.f32 %v8001, %v8043
    %v8045 = vpop.f32.mrb[0].mxu0
    %v8046 = vadd.f32 %v8003, %v8045
    %8047 = vdwg.mxu0
    %8048 = vmatprep.subr.bf16.mxu0 %v5655
    %8049 = vmatpush1.bf16.msra.mxu0 %v5654
    %8050 = vmatprep.subr.bf16.mxu0 %v5661
    %8051 = vmatpush1.bf16.msra.mxu0 %v5660
    %8052 = vmatprep.subr.bf16.mxu0 %v5667
    %8053 = vmatpush1.bf16.msra.mxu0 %v5666
    %8054 = vmatprep.subr.bf16.mxu0 %v5673
    %8055 = vmatpush1.bf16.msra.mxu0 %v5672
    %8056 = vmatprep.subr.bf16.mxu0 %v5679
    %8057 = vmatpush1.bf16.msra.mxu0 %v5678
    %8058 = vmatprep.subr.bf16.mxu0 %v5685
    %8059 = vmatpush1.bf16.msra.mxu0 %v5684
    %8060 = vmatprep.subr.bf16.mxu0 %v5691
    %8061 = vmatpush1.bf16.msra.mxu0 %v5690
    %8062 = vmatprep.subr.bf16.mxu0 %v5697
    %8063 = vmatpush1.bf16.msra.mxu0 %v5696
    %8064 = vmatprep.subr.bf16.mxu0 %v5703
    %8065 = vmatpush1.bf16.msra.mxu0 %v5702
    %8066 = vmatprep.subr.bf16.mxu0 %v5709
    %8067 = vmatpush1.bf16.msra.mxu0 %v5708
    %8068 = vmatprep.subr.bf16.mxu0 %v5715
    %8069 = vmatpush1.bf16.msra.mxu0 %v5714
    %8070 = vmatprep.subr.bf16.mxu0 %v5721
    %8071 = vmatpush1.bf16.msra.mxu0 %v5720
    %8072 = vmatprep.subr.bf16.mxu0 %v5727
    %8073 = vmatpush1.bf16.msra.mxu0 %v5726
    %8074 = vmatprep.subr.bf16.mxu0 %v5733
    %8075 = vmatpush1.bf16.msra.mxu0 %v5732
    %8076 = vmatprep.subr.bf16.mxu0 %v5739
    %8077 = vmatpush1.bf16.msra.mxu0 %v5738
    %8078 = vmatprep.subr.bf16.mxu0 %v5745
    %8079 = vmatpush1.bf16.msra.mxu0 %v5744
    %8080 = vmatprep.mubr.bf16.mxu0 %v1397
    %8081 = vmatmul.mubr.bf16.gmra.mrb[0].mxu0 %v1396
    %v8082 = vpop.f32.mrb[0].mxu0
    %v8083 = vadd.f32 %v8040, %v8082
    %v8084 = vpop.f32.mrb[0].mxu0
    %v8085 = vadd.f32 %v8042, %v8084
    %v8086 = vpop.f32.mrb[0].mxu0
    %v8087 = vadd.f32 %v8044, %v8086
    %v8088 = vpop.f32.mrb[0].mxu0
    %v8089 = vadd.f32 %v8046, %v8088
    %8090 = vdwg.mxu0
    %8091 = vmatprep.subr.bf16.mxu0 %v5751
    %8092 = vmatpush1.bf16.msra.mxu0 %v5750
    %8093 = vmatprep.subr.bf16.mxu0 %v5757
    %8094 = vmatpush1.bf16.msra.mxu0 %v5756
    %8095 = vmatprep.subr.bf16.mxu0 %v5763
    %8096 = vmatpush1.bf16.msra.mxu0 %v5762
    %8097 = vmatprep.subr.bf16.mxu0 %v5769
    %8098 = vmatpush1.bf16.msra.mxu0 %v5768
    %8099 = vmatprep.subr.bf16.mxu0 %v5775
    %8100 = vmatpush1.bf16.msra.mxu0 %v5774
    %8101 = vmatprep.subr.bf16.mxu0 %v5781
    %8102 = vmatpush1.bf16.msra.mxu0 %v5780
    %8103 = vmatprep.subr.bf16.mxu0 %v5787
    %8104 = vmatpush1.bf16.msra.mxu0 %v5786
    %8105 = vmatprep.subr.bf16.mxu0 %v5793
    %8106 = vmatpush1.bf16.msra.mxu0 %v5792
    %8107 = vmatprep.subr.bf16.mxu0 %v5799
    %8108 = vmatpush1.bf16.msra.mxu0 %v5798
    %8109 = vmatprep.subr.bf16.mxu0 %v5805
    %8110 = vmatpush1.bf16.msra.mxu0 %v5804
    %8111 = vmatprep.subr.bf16.mxu0 %v5811
    %8112 = vmatpush1.bf16.msra.mxu0 %v5810
    %8113 = vmatprep.subr.bf16.mxu0 %v5817
    %8114 = vmatpush1.bf16.msra.mxu0 %v5816
    %8115 = vmatprep.subr.bf16.mxu0 %v5823
    %8116 = vmatpush1.bf16.msra.mxu0 %v5822
    %8117 = vmatprep.subr.bf16.mxu0 %v5829
    %8118 = vmatpush1.bf16.msra.mxu0 %v5828
    %8119 = vmatprep.subr.bf16.mxu0 %v5835
    %8120 = vmatpush1.bf16.msra.mxu0 %v5834
    %8121 = vmatprep.subr.bf16.mxu0 %v5841
    %8122 = vmatpush1.bf16.msra.mxu0 %v5840
    %8123 = vmatprep.mubr.bf16.mxu0 %v1399
    %8124 = vmatmul.mubr.bf16.gmra.mrb[0].mxu0 %v1398
    %v8125 = vpop.f32.mrb[0].mxu0
    %v8126 = vadd.f32 %v8083, %v8125
    %v8127 = vpop.f32.mrb[0].mxu0
    %v8128 = vadd.f32 %v8085, %v8127
    %v8129 = vpop.f32.mrb[0].mxu0
    %v8130 = vadd.f32 %v8087, %v8129
    %v8131 = vpop.f32.mrb[0].mxu0
    %v8132 = vadd.f32 %v8089, %v8131
    %8133 = vdwg.mxu0
    %8134 = vmatprep.subr.bf16.mxu0 %v5847
    %8135 = vmatpush1.bf16.msra.mxu0 %v5846
    %8136 = vmatprep.subr.bf16.mxu0 %v5853
    %8137 = vmatpush1.bf16.msra.mxu0 %v5852
    %8138 = vmatprep.subr.bf16.mxu0 %v5859
    %8139 = vmatpush1.bf16.msra.mxu0 %v5858
    %8140 = vmatprep.subr.bf16.mxu0 %v5865
    %8141 = vmatpush1.bf16.msra.mxu0 %v5864
    %8142 = vmatprep.subr.bf16.mxu0 %v5871
    %8143 = vmatpush1.bf16.msra.mxu0 %v5870
    %8144 = vmatprep.subr.bf16.mxu0 %v5877
    %8145 = vmatpush1.bf16.msra.mxu0 %v5876
    %8146 = vmatprep.subr.bf16.mxu0 %v5883
    %8147 = vmatpush1.bf16.msra.mxu0 %v5882
    %8148 = vmatprep.subr.bf16.mxu0 %v5889
    %8149 = vmatpush1.bf16.msra.mxu0 %v5888
    %8150 = vmatprep.subr.bf16.mxu0 %v5895
    %8151 = vmatpush1.bf16.msra.mxu0 %v5894
    %8152 = vmatprep.subr.bf16.mxu0 %v5901
    %8153 = vmatpush1.bf16.msra.mxu0 %v5900
    %8154 = vmatprep.subr.bf16.mxu0 %v5907
    %8155 = vmatpush1.bf16.msra.mxu0 %v5906
    %8156 = vmatprep.subr.bf16.mxu0 %v5913
    %8157 = vmatpush1.bf16.msra.mxu0 %v5912
    %8158 = vmatprep.subr.bf16.mxu0 %v5919
    %8159 = vmatpush1.bf16.msra.mxu0 %v5918
    %8160 = vmatprep.subr.bf16.mxu0 %v5925
    %8161 = vmatpush1.bf16.msra.mxu0 %v5924
    %8162 = vmatprep.subr.bf16.mxu0 %v5931
    %8163 = vmatpush1.bf16.msra.mxu0 %v5930
    %8164 = vmatprep.subr.bf16.mxu0 %v5937
    %8165 = vmatpush1.bf16.msra.mxu0 %v5936
    %8166 = vmatprep.mubr.bf16.mxu0 %v1401
    %8167 = vmatmul.mubr.bf16.gmra.mrb[0].mxu0 %v1400
    %v8168 = vpop.f32.mrb[0].mxu0
    %v8169 = vadd.f32 %v8126, %v8168
    %v8170 = vpop.f32.mrb[0].mxu0
    %v8171 = vadd.f32 %v8128, %v8170
    %v8172 = vpop.f32.mrb[0].mxu0
    %v8173 = vadd.f32 %v8130, %v8172
    %v8174 = vpop.f32.mrb[0].mxu0
    %v8175 = vadd.f32 %v8132, %v8174
    %8176 = vdwg.mxu0
    %8177 = vmatprep.subr.bf16.mxu0 %v5943
    %8178 = vmatpush1.bf16.msra.mxu0 %v5942
    %8179 = vmatprep.subr.bf16.mxu0 %v5949
    %8180 = vmatpush1.bf16.msra.mxu0 %v5948
    %8181 = vmatprep.subr.bf16.mxu0 %v5955
    %8182 = vmatpush1.bf16.msra.mxu0 %v5954
    %8183 = vmatprep.subr.bf16.mxu0 %v5961
    %8184 = vmatpush1.bf16.msra.mxu0 %v5960
    %8185 = vmatprep.subr.bf16.mxu0 %v5967
    %8186 = vmatpush1.bf16.msra.mxu0 %v5966
    %8187 = vmatprep.subr.bf16.mxu0 %v5973
    %8188 = vmatpush1.bf16.msra.mxu0 %v5972
    %8189 = vmatprep.subr.bf16.mxu0 %v5979
    %8190 = vmatpush1.bf16.msra.mxu0 %v5978
    %8191 = vmatprep.subr.bf16.mxu0 %v5985
    %8192 = vmatpush1.bf16.msra.mxu0 %v5984
    %8193 = vmatprep.subr.bf16.mxu0 %v5991
    %8194 = vmatpush1.bf16.msra.mxu0 %v5990
    %8195 = vmatprep.subr.bf16.mxu0 %v5997
    %8196 = vmatpush1.bf16.msra.mxu0 %v5996
    %8197 = vmatprep.subr.bf16.mxu0 %v6003
    %8198 = vmatpush1.bf16.msra.mxu0 %v6002
    %8199 = vmatprep.subr.bf16.mxu0 %v6009
    %8200 = vmatpush1.bf16.msra.mxu0 %v6008
    %8201 = vmatprep.subr.bf16.mxu0 %v6015
    %8202 = vmatpush1.bf16.msra.mxu0 %v6014
    %8203 = vmatprep.subr.bf16.mxu0 %v6021
    %8204 = vmatpush1.bf16.msra.mxu0 %v6020
    %8205 = vmatprep.subr.bf16.mxu0 %v6027
    %8206 = vmatpush1.bf16.msra.mxu0 %v6026
    %8207 = vmatprep.subr.bf16.mxu0 %v6033
    %8208 = vmatpush1.bf16.msra.mxu0 %v6032
    %8209 = vmatprep.mubr.bf16.mxu0 %v1403
    %8210 = vmatmul.mubr.bf16.gmra.mrb[0].mxu0 %v1402
    %v8211 = vpop.f32.mrb[0].mxu0
    %v8212 = vadd.f32 %v8169, %v8211
    %v8213 = vpop.f32.mrb[0].mxu0
    %v8214 = vadd.f32 %v8171, %v8213
    %v8215 = vpop.f32.mrb[0].mxu0
    %v8216 = vadd.f32 %v8173, %v8215
    %v8217 = vpop.f32.mrb[0].mxu0
    %v8218 = vadd.f32 %v8175, %v8217
    %8219 = vdwg.mxu0
    %8220 = vmatprep.subr.bf16.mxu0 %v4889
    %8221 = vmatpush1.bf16.msra.mxu0 %v4888
    %8222 = vmatprep.subr.bf16.mxu0 %v4895
    %8223 = vmatpush1.bf16.msra.mxu0 %v4894
    %8224 = vmatprep.subr.bf16.mxu0 %v4901
    %8225 = vmatpush1.bf16.msra.mxu0 %v4900
    %8226 = vmatprep.subr.bf16.mxu0 %v4907
    %8227 = vmatpush1.bf16.msra.mxu0 %v4906
    %8228 = vmatprep.subr.bf16.mxu0 %v4913
    %8229 = vmatpush1.bf16.msra.mxu0 %v4912
    %8230 = vmatprep.subr.bf16.mxu0 %v4919
    %8231 = vmatpush1.bf16.msra.mxu0 %v4918
    %8232 = vmatprep.subr.bf16.mxu0 %v4925
    %8233 = vmatpush1.bf16.msra.mxu0 %v4924
    %8234 = vmatprep.subr.bf16.mxu0 %v4931
    %8235 = vmatpush1.bf16.msra.mxu0 %v4930
    %8236 = vmatprep.subr.bf16.mxu0 %v4937
    %8237 = vmatpush1.bf16.msra.mxu0 %v4936
    %8238 = vmatprep.subr.bf16.mxu0 %v4943
    %8239 = vmatpush1.bf16.msra.mxu0 %v4942
    %8240 = vmatprep.subr.bf16.mxu0 %v4949
    %8241 = vmatpush1.bf16.msra.mxu0 %v4948
    %8242 = vmatprep.subr.bf16.mxu0 %v4955
    %8243 = vmatpush1.bf16.msra.mxu0 %v4954
    %8244 = vmatprep.subr.bf16.mxu0 %v4961
    %8245 = vmatpush1.bf16.msra.mxu0 %v4960
    %8246 = vmatprep.subr.bf16.mxu0 %v4967
    %8247 = vmatpush1.bf16.msra.mxu0 %v4966
    %8248 = vmatprep.subr.bf16.mxu0 %v4973
    %8249 = vmatpush1.bf16.msra.mxu0 %v4972
    %8250 = vmatprep.subr.bf16.mxu0 %v4979
    %8251 = vmatpush1.bf16.msra.mxu0 %v4978
    %8252 = vmatprep.mubr.bf16.mxu0 %v1381
    %8253 = vmatmul.mubr.bf16.gmra.mrb[0].mxu0 %v1380
    %v8254 = vpop.f32.mrb[0].mxu0
    %v8255 = vadd.f32 %v1297, %v8254
    %v8256 = vpop.f32.mrb[0].mxu0
    %v8257 = vadd.f32 %v1301, %v8256
    %v8258 = vpop.f32.mrb[0].mxu0
    %v8259 = vadd.f32 %v1297, %v8258
    %v8260 = vpop.f32.mrb[0].mxu0
    %v8261 = vadd.f32 %v1301, %v8260
    %8262 = vdwg.mxu0
    %8263 = vmatprep.subr.bf16.mxu0 %v4985
    %8264 = vmatpush1.bf16.msra.mxu0 %v4984
    %8265 = vmatprep.subr.bf16.mxu0 %v4991
    %8266 = vmatpush1.bf16.msra.mxu0 %v4990
    %8267 = vmatprep.subr.bf16.mxu0 %v4997
    %8268 = vmatpush1.bf16.msra.mxu0 %v4996
    %8269 = vmatprep.subr.bf16.mxu0 %v5003
    %8270 = vmatpush1.bf16.msra.mxu0 %v5002
    %8271 = vmatprep.subr.bf16.mxu0 %v5009
    %8272 = vmatpush1.bf16.msra.mxu0 %v5008
    %8273 = vmatprep.subr.bf16.mxu0 %v5015
    %8274 = vmatpush1.bf16.msra.mxu0 %v5014
    %8275 = vmatprep.subr.bf16.mxu0 %v5021
    %8276 = vmatpush1.bf16.msra.mxu0 %v5020
    %8277 = vmatprep.subr.bf16.mxu0 %v5027
    %8278 = vmatpush1.bf16.msra.mxu0 %v5026
    %8279 = vmatprep.subr.bf16.mxu0 %v5033
    %8280 = vmatpush1.bf16.msra.mxu0 %v5032
    %8281 = vmatprep.subr.bf16.mxu0 %v5039
    %8282 = vmatpush1.bf16.msra.mxu0 %v5038
    %8283 = vmatprep.subr.bf16.mxu0 %v5045
    %8284 = vmatpush1.bf16.msra.mxu0 %v5044
    %8285 = vmatprep.subr.bf16.mxu0 %v5051
    %8286 = vmatpush1.bf16.msra.mxu0 %v5050
    %8287 = vmatprep.subr.bf16.mxu0 %v5057
    %8288 = vmatpush1.bf16.msra.mxu0 %v5056
    %8289 = vmatprep.subr.bf16.mxu0 %v5063
    %8290 = vmatpush1.bf16.msra.mxu0 %v5062
    %8291 = vmatprep.subr.bf16.mxu0 %v5069
    %8292 = vmatpush1.bf16.msra.mxu0 %v5068
    %8293 = vmatprep.subr.bf16.mxu0 %v5075
    %8294 = vmatpush1.bf16.msra.mxu0 %v5074
    %8295 = vmatprep.mubr.bf16.mxu0 %v1383
    %8296 = vmatmul.mubr.bf16.gmra.mrb[0].mxu0 %v1382
    %v8297 = vpop.f32.mrb[0].mxu0
    %v8298 = vadd.f32 %v8255, %v8297
    %v8299 = vpop.f32.mrb[0].mxu0
    %v8300 = vadd.f32 %v8257, %v8299
    %v8301 = vpop.f32.mrb[0].mxu0
    %v8302 = vadd.f32 %v8259, %v8301
    %v8303 = vpop.f32.mrb[0].mxu0
    %v8304 = vadd.f32 %v8261, %v8303
    %8305 = vdwg.mxu0
    %8306 = vmatprep.subr.bf16.mxu0 %v5081
    %8307 = vmatpush1.bf16.msra.mxu0 %v5080
    %8308 = vmatprep.subr.bf16.mxu0 %v5087
    %8309 = vmatpush1.bf16.msra.mxu0 %v5086
    %8310 = vmatprep.subr.bf16.mxu0 %v5093
    %8311 = vmatpush1.bf16.msra.mxu0 %v5092
    %8312 = vmatprep.subr.bf16.mxu0 %v5099
    %8313 = vmatpush1.bf16.msra.mxu0 %v5098
    %8314 = vmatprep.subr.bf16.mxu0 %v5105
    %8315 = vmatpush1.bf16.msra.mxu0 %v5104
    %8316 = vmatprep.subr.bf16.mxu0 %v5111
    %8317 = vmatpush1.bf16.msra.mxu0 %v5110
    %8318 = vmatprep.subr.bf16.mxu0 %v5117
    %8319 = vmatpush1.bf16.msra.mxu0 %v5116
    %8320 = vmatprep.subr.bf16.mxu0 %v5123
    %8321 = vmatpush1.bf16.msra.mxu0 %v5122
    %8322 = vmatprep.subr.bf16.mxu0 %v5129
    %8323 = vmatpush1.bf16.msra.mxu0 %v5128
    %8324 = vmatprep.subr.bf16.mxu0 %v5135
    %8325 = vmatpush1.bf16.msra.mxu0 %v5134
    %8326 = vmatprep.subr.bf16.mxu0 %v5141
    %8327 = vmatpush1.bf16.msra.mxu0 %v5140
    %8328 = vmatprep.subr.bf16.mxu0 %v5147
    %8329 = vmatpush1.bf16.msra.mxu0 %v5146
    %8330 = vmatprep.subr.bf16.mxu0 %v5153
    %8331 = vmatpush1.bf16.msra.mxu0 %v5152
    %8332 = vmatprep.subr.bf16.mxu0 %v5159
    %8333 = vmatpush1.bf16.msra.mxu0 %v5158
    %8334 = vmatprep.subr.bf16.mxu0 %v5165
    %8335 = vmatpush1.bf16.msra.mxu0 %v5164
    %8336 = vmatprep.subr.bf16.mxu0 %v5171
    %8337 = vmatpush1.bf16.msra.mxu0 %v5170
    %8338 = vmatprep.mubr.bf16.mxu0 %v1385
    %8339 = vmatmul.mubr.bf16.gmra.mrb[0].mxu0 %v1384
    %v8340 = vpop.f32.mrb[0].mxu0
    %v8341 = vadd.f32 %v8298, %v8340
    %v8342 = vpop.f32.mrb[0].mxu0
    %v8343 = vadd.f32 %v8300, %v8342
    %v8344 = vpop.f32.mrb[0].mxu0
    %v8345 = vadd.f32 %v8302, %v8344
    %v8346 = vpop.f32.mrb[0].mxu0
    %v8347 = vadd.f32 %v8304, %v8346
    %8348 = vdwg.mxu0
    %8349 = vmatprep.subr.bf16.mxu0 %v5177
    %8350 = vmatpush1.bf16.msra.mxu0 %v5176
    %8351 = vmatprep.subr.bf16.mxu0 %v5183
    %8352 = vmatpush1.bf16.msra.mxu0 %v5182
    %8353 = vmatprep.subr.bf16.mxu0 %v5189
    %8354 = vmatpush1.bf16.msra.mxu0 %v5188
    %8355 = vmatprep.subr.bf16.mxu0 %v5195
    %8356 = vmatpush1.bf16.msra.mxu0 %v5194
    %8357 = vmatprep.subr.bf16.mxu0 %v5201
    %8358 = vmatpush1.bf16.msra.mxu0 %v5200
    %8359 = vmatprep.subr.bf16.mxu0 %v5207
    %8360 = vmatpush1.bf16.msra.mxu0 %v5206
    %8361 = vmatprep.subr.bf16.mxu0 %v5213
    %8362 = vmatpush1.bf16.msra.mxu0 %v5212
    %8363 = vmatprep.subr.bf16.mxu0 %v5219
    %8364 = vmatpush1.bf16.msra.mxu0 %v5218
    %8365 = vmatprep.subr.bf16.mxu0 %v5225
    %8366 = vmatpush1.bf16.msra.mxu0 %v5224
    %8367 = vmatprep.subr.bf16.mxu0 %v5231
    %8368 = vmatpush1.bf16.msra.mxu0 %v5230
    %8369 = vmatprep.subr.bf16.mxu0 %v5237
    %8370 = vmatpush1.bf16.msra.mxu0 %v5236
    %8371 = vmatprep.subr.bf16.mxu0 %v5243
    %8372 = vmatpush1.bf16.msra.mxu0 %v5242
    %8373 = vmatprep.subr.bf16.mxu0 %v5249
    %8374 = vmatpush1.bf16.msra.mxu0 %v5248
    %8375 = vmatprep.subr.bf16.mxu0 %v5255
    %8376 = vmatpush1.bf16.msra.mxu0 %v5254
    %8377 = vmatprep.subr.bf16.mxu0 %v5261
    %8378 = vmatpush1.bf16.msra.mxu0 %v5260
    %8379 = vmatprep.subr.bf16.mxu0 %v5267
    %8380 = vmatpush1.bf16.msra.mxu0 %v5266
    %8381 = vmatprep.mubr.bf16.mxu0 %v1387
    %8382 = vmatmul.mubr.bf16.gmra.mrb[0].mxu0 %v1386
    %v8383 = vpop.f32.mrb[0].mxu0
    %v8384 = vadd.f32 %v8341, %v8383
    %v8385 = vpop.f32.mrb[0].mxu0
    %v8386 = vadd.f32 %v8343, %v8385
    %v8387 = vpop.f32.mrb[0].mxu0
    %v8388 = vadd.f32 %v8345, %v8387
    %v8389 = vpop.f32.mrb[0].mxu0
    %v8390 = vadd.f32 %v8347, %v8389
    %8391 = vdwg.mxu0
    %8392 = vmatprep.subr.bf16.mxu0 %v5273
    %8393 = vmatpush1.bf16.msra.mxu0 %v5272
    %8394 = vmatprep.subr.bf16.mxu0 %v5279
    %8395 = vmatpush1.bf16.msra.mxu0 %v5278
    %8396 = vmatprep.subr.bf16.mxu0 %v5285
    %8397 = vmatpush1.bf16.msra.mxu0 %v5284
    %8398 = vmatprep.subr.bf16.mxu0 %v5291
    %8399 = vmatpush1.bf16.msra.mxu0 %v5290
    %8400 = vmatprep.subr.bf16.mxu0 %v5297
    %8401 = vmatpush1.bf16.msra.mxu0 %v5296
    %8402 = vmatprep.subr.bf16.mxu0 %v5303
    %8403 = vmatpush1.bf16.msra.mxu0 %v5302
    %8404 = vmatprep.subr.bf16.mxu0 %v5309
    %8405 = vmatpush1.bf16.msra.mxu0 %v5308
    %8406 = vmatprep.subr.bf16.mxu0 %v5315
    %8407 = vmatpush1.bf16.msra.mxu0 %v5314
    %8408 = vmatprep.subr.bf16.mxu0 %v5321
    %8409 = vmatpush1.bf16.msra.mxu0 %v5320
    %8410 = vmatprep.subr.bf16.mxu0 %v5327
    %8411 = vmatpush1.bf16.msra.mxu0 %v5326
    %8412 = vmatprep.subr.bf16.mxu0 %v5333
    %8413 = vmatpush1.bf16.msra.mxu0 %v5332
    %8414 = vmatprep.subr.bf16.mxu0 %v5339
    %8415 = vmatpush1.bf16.msra.mxu0 %v5338
    %8416 = vmatprep.subr.bf16.mxu0 %v5345
    %8417 = vmatpush1.bf16.msra.mxu0 %v5344
    %8418 = vmatprep.subr.bf16.mxu0 %v5351
    %8419 = vmatpush1.bf16.msra.mxu0 %v5350
    %8420 = vmatprep.subr.bf16.mxu0 %v5357
    %8421 = vmatpush1.bf16.msra.mxu0 %v5356
    %8422 = vmatprep.subr.bf16.mxu0 %v5363
    %8423 = vmatpush1.bf16.msra.mxu0 %v5362
    %8424 = vmatprep.mubr.bf16.mxu0 %v1389
    %8425 = vmatmul.mubr.bf16.gmra.mrb[0].mxu0 %v1388
    %v8426 = vpop.f32.mrb[0].mxu0
    %v8427 = vadd.f32 %v8384, %v8426
    %v8428 = vpop.f32.mrb[0].mxu0
    %v8429 = vadd.f32 %v8386, %v8428
    %v8430 = vpop.f32.mrb[0].mxu0
    %v8431 = vadd.f32 %v8388, %v8430
    %v8432 = vpop.f32.mrb[0].mxu0
    %v8433 = vadd.f32 %v8390, %v8432
    %8434 = vdwg.mxu0
    %8435 = vmatprep.subr.bf16.mxu0 %v5369
    %8436 = vmatpush1.bf16.msra.mxu0 %v5368
    %8437 = vmatprep.subr.bf16.mxu0 %v5375
    %8438 = vmatpush1.bf16.msra.mxu0 %v5374
    %8439 = vmatprep.subr.bf16.mxu0 %v5381
    %8440 = vmatpush1.bf16.msra.mxu0 %v5380
    %8441 = vmatprep.subr.bf16.mxu0 %v5387
    %8442 = vmatpush1.bf16.msra.mxu0 %v5386
    %8443 = vmatprep.subr.bf16.mxu0 %v5393
    %8444 = vmatpush1.bf16.msra.mxu0 %v5392
    %8445 = vmatprep.subr.bf16.mxu0 %v5399
    %8446 = vmatpush1.bf16.msra.mxu0 %v5398
    %8447 = vmatprep.subr.bf16.mxu0 %v5405
    %8448 = vmatpush1.bf16.msra.mxu0 %v5404
    %8449 = vmatprep.subr.bf16.mxu0 %v5411
    %8450 = vmatpush1.bf16.msra.mxu0 %v5410
    %8451 = vmatprep.subr.bf16.mxu0 %v5417
    %8452 = vmatpush1.bf16.msra.mxu0 %v5416
    %8453 = vmatprep.subr.bf16.mxu0 %v5423
    %8454 = vmatpush1.bf16.msra.mxu0 %v5422
    %8455 = vmatprep.subr.bf16.mxu0 %v5429
    %8456 = vmatpush1.bf16.msra.mxu0 %v5428
    %8457 = vmatprep.subr.bf16.mxu0 %v5435
    %8458 = vmatpush1.bf16.msra.mxu0 %v5434
    %8459 = vmatprep.subr.bf16.mxu0 %v5441
    %8460 = vmatpush1.bf16.msra.mxu0 %v5440
    %8461 = vmatprep.subr.bf16.mxu0 %v5447
    %8462 = vmatpush1.bf16.msra.mxu0 %v5446
    %8463 = vmatprep.subr.bf16.mxu0 %v5453
    %8464 = vmatpush1.bf16.msra.mxu0 %v5452
    %8465 = vmatprep.subr.bf16.mxu0 %v5459
    %8466 = vmatpush1.bf16.msra.mxu0 %v5458
    %8467 = vmatprep.mubr.bf16.mxu0 %v1391
    %8468 = vmatmul.mubr.bf16.gmra.mrb[0].mxu0 %v1390
    %v8469 = vpop.f32.mrb[0].mxu0
    %v8470 = vadd.f32 %v8427, %v8469
    %v8471 = vpop.f32.mrb[0].mxu0
    %v8472 = vadd.f32 %v8429, %v8471
    %v8473 = vpop.f32.mrb[0].mxu0
    %v8474 = vadd.f32 %v8431, %v8473
    %v8475 = vpop.f32.mrb[0].mxu0
    %v8476 = vadd.f32 %v8433, %v8475
    %8477 = vdwg.mxu0
    %8478 = vmatprep.subr.bf16.mxu0 %v5465
    %8479 = vmatpush1.bf16.msra.mxu0 %v5464
    %8480 = vmatprep.subr.bf16.mxu0 %v5471
    %8481 = vmatpush1.bf16.msra.mxu0 %v5470
    %8482 = vmatprep.subr.bf16.mxu0 %v5477
    %8483 = vmatpush1.bf16.msra.mxu0 %v5476
    %8484 = vmatprep.subr.bf16.mxu0 %v5483
    %8485 = vmatpush1.bf16.msra.mxu0 %v5482
    %8486 = vmatprep.subr.bf16.mxu0 %v5489
    %8487 = vmatpush1.bf16.msra.mxu0 %v5488
    %8488 = vmatprep.subr.bf16.mxu0 %v5495
    %8489 = vmatpush1.bf16.msra.mxu0 %v5494
    %8490 = vmatprep.subr.bf16.mxu0 %v5501
    %8491 = vmatpush1.bf16.msra.mxu0 %v5500
    %8492 = vmatprep.subr.bf16.mxu0 %v5507
    %8493 = vmatpush1.bf16.msra.mxu0 %v5506
    %8494 = vmatprep.subr.bf16.mxu0 %v5513
    %8495 = vmatpush1.bf16.msra.mxu0 %v5512
    %8496 = vmatprep.subr.bf16.mxu0 %v5519
    %8497 = vmatpush1.bf16.msra.mxu0 %v5518
    %8498 = vmatprep.subr.bf16.mxu0 %v5525
    %8499 = vmatpush1.bf16.msra.mxu0 %v5524
    %8500 = vmatprep.subr.bf16.mxu0 %v5531
    %8501 = vmatpush1.bf16.msra.mxu0 %v5530
    %8502 = vmatprep.subr.bf16.mxu0 %v5537
    %8503 = vmatpush1.bf16.msra.mxu0 %v5536
    %8504 = vmatprep.subr.bf16.mxu0 %v5543
    %8505 = vmatpush1.bf16.msra.mxu0 %v5542
    %8506 = vmatprep.subr.bf16.mxu0 %v5549
    %8507 = vmatpush1.bf16.msra.mxu0 %v5548
    %8508 = vmatprep.subr.bf16.mxu0 %v5555
    %8509 = vmatpush1.bf16.msra.mxu0 %v5554
    %8510 = vmatprep.mubr.bf16.mxu0 %v1393
    %8511 = vmatmul.mubr.bf16.gmra.mrb[0].mxu0 %v1392
    %v8512 = vpop.f32.mrb[0].mxu0
    %v8513 = vadd.f32 %v8470, %v8512
    %v8514 = vpop.f32.mrb[0].mxu0
    %v8515 = vadd.f32 %v8472, %v8514
    %v8516 = vpop.f32.mrb[0].mxu0
    %v8517 = vadd.f32 %v8474, %v8516
    %v8518 = vpop.f32.mrb[0].mxu0
    %v8519 = vadd.f32 %v8476, %v8518
    %8520 = vdwg.mxu0
    %8521 = vmatprep.subr.bf16.mxu0 %v5561
    %8522 = vmatpush1.bf16.msra.mxu0 %v5560
    %8523 = vmatprep.subr.bf16.mxu0 %v5567
    %8524 = vmatpush1.bf16.msra.mxu0 %v5566
    %8525 = vmatprep.subr.bf16.mxu0 %v5573
    %8526 = vmatpush1.bf16.msra.mxu0 %v5572
    %8527 = vmatprep.subr.bf16.mxu0 %v5579
    %8528 = vmatpush1.bf16.msra.mxu0 %v5578
    %8529 = vmatprep.subr.bf16.mxu0 %v5585
    %8530 = vmatpush1.bf16.msra.mxu0 %v5584
    %8531 = vmatprep.subr.bf16.mxu0 %v5591
    %8532 = vmatpush1.bf16.msra.mxu0 %v5590
    %8533 = vmatprep.subr.bf16.mxu0 %v5597
    %8534 = vmatpush1.bf16.msra.mxu0 %v5596
    %8535 = vmatprep.subr.bf16.mxu0 %v5603
    %8536 = vmatpush1.bf16.msra.mxu0 %v5602
    %8537 = vmatprep.subr.bf16.mxu0 %v5609
    %8538 = vmatpush1.bf16.msra.mxu0 %v5608
    %8539 = vmatprep.subr.bf16.mxu0 %v5615
    %8540 = vmatpush1.bf16.msra.mxu0 %v5614
    %8541 = vmatprep.subr.bf16.mxu0 %v5621
    %8542 = vmatpush1.bf16.msra.mxu0 %v5620
    %8543 = vmatprep.subr.bf16.mxu0 %v5627
    %8544 = vmatpush1.bf16.msra.mxu0 %v5626
    %8545 = vmatprep.subr.bf16.mxu0 %v5633
    %8546 = vmatpush1.bf16.msra.mxu0 %v5632
    %8547 = vmatprep.subr.bf16.mxu0 %v5639
    %8548 = vmatpush1.bf16.msra.mxu0 %v5638
    %8549 = vmatprep.subr.bf16.mxu0 %v5645
    %8550 = vmatpush1.bf16.msra.mxu0 %v5644
    %8551 = vmatprep.subr.bf16.mxu0 %v5651
    %8552 = vmatpush1.bf16.msra.mxu0 %v5650
    %8553 = vmatprep.mubr.bf16.mxu0 %v1395
    %8554 = vmatmul.mubr.bf16.gmra.mrb[0].mxu0 %v1394
    %v8555 = vpop.f32.mrb[0].mxu0
    %v8556 = vadd.f32 %v8513, %v8555
    %v8557 = vpop.f32.mrb[0].mxu0
    %v8558 = vadd.f32 %v8515, %v8557
    %v8559 = vpop.f32.mrb[0].mxu0
    %v8560 = vadd.f32 %v8517, %v8559
    %v8561 = vpop.f32.mrb[0].mxu0
    %v8562 = vadd.f32 %v8519, %v8561
    %8563 = vdwg.mxu0
    %8564 = vmatprep.subr.bf16.mxu0 %v5657
    %8565 = vmatpush1.bf16.msra.mxu0 %v5656
    %8566 = vmatprep.subr.bf16.mxu0 %v5663
    %8567 = vmatpush1.bf16.msra.mxu0 %v5662
    %8568 = vmatprep.subr.bf16.mxu0 %v5669
    %8569 = vmatpush1.bf16.msra.mxu0 %v5668
    %8570 = vmatprep.subr.bf16.mxu0 %v5675
    %8571 = vmatpush1.bf16.msra.mxu0 %v5674
    %8572 = vmatprep.subr.bf16.mxu0 %v5681
    %8573 = vmatpush1.bf16.msra.mxu0 %v5680
    %8574 = vmatprep.subr.bf16.mxu0 %v5687
    %8575 = vmatpush1.bf16.msra.mxu0 %v5686
    %8576 = vmatprep.subr.bf16.mxu0 %v5693
    %8577 = vmatpush1.bf16.msra.mxu0 %v5692
    %8578 = vmatprep.subr.bf16.mxu0 %v5699
    %8579 = vmatpush1.bf16.msra.mxu0 %v5698
    %8580 = vmatprep.subr.bf16.mxu0 %v5705
    %8581 = vmatpush1.bf16.msra.mxu0 %v5704
    %8582 = vmatprep.subr.bf16.mxu0 %v5711
    %8583 = vmatpush1.bf16.msra.mxu0 %v5710
    %8584 = vmatprep.subr.bf16.mxu0 %v5717
    %8585 = vmatpush1.bf16.msra.mxu0 %v5716
    %8586 = vmatprep.subr.bf16.mxu0 %v5723
    %8587 = vmatpush1.bf16.msra.mxu0 %v5722
    %8588 = vmatprep.subr.bf16.mxu0 %v5729
    %8589 = vmatpush1.bf16.msra.mxu0 %v5728
    %8590 = vmatprep.subr.bf16.mxu0 %v5735
    %8591 = vmatpush1.bf16.msra.mxu0 %v5734
    %8592 = vmatprep.subr.bf16.mxu0 %v5741
    %8593 = vmatpush1.bf16.msra.mxu0 %v5740
    %8594 = vmatprep.subr.bf16.mxu0 %v5747
    %8595 = vmatpush1.bf16.msra.mxu0 %v5746
    %8596 = vmatprep.mubr.bf16.mxu0 %v1397
    %8597 = vmatmul.mubr.bf16.gmra.mrb[0].mxu0 %v1396
    %v8598 = vpop.f32.mrb[0].mxu0
    %v8599 = vadd.f32 %v8556, %v8598
    %v8600 = vpop.f32.mrb[0].mxu0
    %v8601 = vadd.f32 %v8558, %v8600
    %v8602 = vpop.f32.mrb[0].mxu0
    %v8603 = vadd.f32 %v8560, %v8602
    %v8604 = vpop.f32.mrb[0].mxu0
    %v8605 = vadd.f32 %v8562, %v8604
    %8606 = vdwg.mxu0
    %8607 = vmatprep.subr.bf16.mxu0 %v5753
    %8608 = vmatpush1.bf16.msra.mxu0 %v5752
    %8609 = vmatprep.subr.bf16.mxu0 %v5759
    %8610 = vmatpush1.bf16.msra.mxu0 %v5758
    %8611 = vmatprep.subr.bf16.mxu0 %v5765
    %8612 = vmatpush1.bf16.msra.mxu0 %v5764
    %8613 = vmatprep.subr.bf16.mxu0 %v5771
    %8614 = vmatpush1.bf16.msra.mxu0 %v5770
    %8615 = vmatprep.subr.bf16.mxu0 %v5777
    %8616 = vmatpush1.bf16.msra.mxu0 %v5776
    %8617 = vmatprep.subr.bf16.mxu0 %v5783
    %8618 = vmatpush1.bf16.msra.mxu0 %v5782
    %8619 = vmatprep.subr.bf16.mxu0 %v5789
    %8620 = vmatpush1.bf16.msra.mxu0 %v5788
    %8621 = vmatprep.subr.bf16.mxu0 %v5795
    %8622 = vmatpush1.bf16.msra.mxu0 %v5794
    %8623 = vmatprep.subr.bf16.mxu0 %v5801
    %8624 = vmatpush1.bf16.msra.mxu0 %v5800
    %8625 = vmatprep.subr.bf16.mxu0 %v5807
    %8626 = vmatpush1.bf16.msra.mxu0 %v5806
    %8627 = vmatprep.subr.bf16.mxu0 %v5813
    %8628 = vmatpush1.bf16.msra.mxu0 %v5812
    %8629 = vmatprep.subr.bf16.mxu0 %v5819
    %8630 = vmatpush1.bf16.msra.mxu0 %v5818
    %8631 = vmatprep.subr.bf16.mxu0 %v5825
    %8632 = vmatpush1.bf16.msra.mxu0 %v5824
    %8633 = vmatprep.subr.bf16.mxu0 %v5831
    %8634 = vmatpush1.bf16.msra.mxu0 %v5830
    %8635 = vmatprep.subr.bf16.mxu0 %v5837
    %8636 = vmatpush1.bf16.msra.mxu0 %v5836
    %8637 = vmatprep.subr.bf16.mxu0 %v5843
    %8638 = vmatpush1.bf16.msra.mxu0 %v5842
    %8639 = vmatprep.mubr.bf16.mxu0 %v1399
    %8640 = vmatmul.mubr.bf16.gmra.mrb[0].mxu0 %v1398
    %v8641 = vpop.f32.mrb[0].mxu0
    %v8642 = vadd.f32 %v8599, %v8641
    %v8643 = vpop.f32.mrb[0].mxu0
    %v8644 = vadd.f32 %v8601, %v8643
    %v8645 = vpop.f32.mrb[0].mxu0
    %v8646 = vadd.f32 %v8603, %v8645
    %v8647 = vpop.f32.mrb[0].mxu0
    %v8648 = vadd.f32 %v8605, %v8647
    %8649 = vdwg.mxu0
    %8650 = vmatprep.subr.bf16.mxu0 %v5849
    %8651 = vmatpush1.bf16.msra.mxu0 %v5848
    %8652 = vmatprep.subr.bf16.mxu0 %v5855
    %8653 = vmatpush1.bf16.msra.mxu0 %v5854
    %8654 = vmatprep.subr.bf16.mxu0 %v5861
    %8655 = vmatpush1.bf16.msra.mxu0 %v5860
    %8656 = vmatprep.subr.bf16.mxu0 %v5867
    %8657 = vmatpush1.bf16.msra.mxu0 %v5866
    %8658 = vmatprep.subr.bf16.mxu0 %v5873
    %8659 = vmatpush1.bf16.msra.mxu0 %v5872
    %8660 = vmatprep.subr.bf16.mxu0 %v5879
    %8661 = vmatpush1.bf16.msra.mxu0 %v5878
    %8662 = vmatprep.subr.bf16.mxu0 %v5885
    %8663 = vmatpush1.bf16.msra.mxu0 %v5884
    %8664 = vmatprep.subr.bf16.mxu0 %v5891
    %8665 = vmatpush1.bf16.msra.mxu0 %v5890
    %8666 = vmatprep.subr.bf16.mxu0 %v5897
    %8667 = vmatpush1.bf16.msra.mxu0 %v5896
    %8668 = vmatprep.subr.bf16.mxu0 %v5903
    %8669 = vmatpush1.bf16.msra.mxu0 %v5902
    %8670 = vmatprep.subr.bf16.mxu0 %v5909
    %8671 = vmatpush1.bf16.msra.mxu0 %v5908
    %8672 = vmatprep.subr.bf16.mxu0 %v5915
    %8673 = vmatpush1.bf16.msra.mxu0 %v5914
    %8674 = vmatprep.subr.bf16.mxu0 %v5921
    %8675 = vmatpush1.bf16.msra.mxu0 %v5920
    %8676 = vmatprep.subr.bf16.mxu0 %v5927
    %8677 = vmatpush1.bf16.msra.mxu0 %v5926
    %8678 = vmatprep.subr.bf16.mxu0 %v5933
    %8679 = vmatpush1.bf16.msra.mxu0 %v5932
    %8680 = vmatprep.subr.bf16.mxu0 %v5939
    %8681 = vmatpush1.bf16.msra.mxu0 %v5938
    %8682 = vmatprep.mubr.bf16.mxu0 %v1401
    %8683 = vmatmul.mubr.bf16.gmra.mrb[0].mxu0 %v1400
    %v8684 = vpop.f32.mrb[0].mxu0
    %v8685 = vadd.f32 %v8642, %v8684
    %v8686 = vpop.f32.mrb[0].mxu0
    %v8687 = vadd.f32 %v8644, %v8686
    %v8688 = vpop.f32.mrb[0].mxu0
    %v8689 = vadd.f32 %v8646, %v8688
    %v8690 = vpop.f32.mrb[0].mxu0
    %v8691 = vadd.f32 %v8648, %v8690
    %8692 = vdwg.mxu0
    %8693 = vmatprep.subr.bf16.mxu0 %v5945
    %8694 = vmatpush1.bf16.msra.mxu0 %v5944
    %8695 = vmatprep.subr.bf16.mxu0 %v5951
    %8696 = vmatpush1.bf16.msra.mxu0 %v5950
    %8697 = vmatprep.subr.bf16.mxu0 %v5957
    %8698 = vmatpush1.bf16.msra.mxu0 %v5956
    %8699 = vmatprep.subr.bf16.mxu0 %v5963
    %8700 = vmatpush1.bf16.msra.mxu0 %v5962
    %8701 = vmatprep.subr.bf16.mxu0 %v5969
    %8702 = vmatpush1.bf16.msra.mxu0 %v5968
    %8703 = vmatprep.subr.bf16.mxu0 %v5975
    %8704 = vmatpush1.bf16.msra.mxu0 %v5974
    %8705 = vmatprep.subr.bf16.mxu0 %v5981
    %8706 = vmatpush1.bf16.msra.mxu0 %v5980
    %8707 = vmatprep.subr.bf16.mxu0 %v5987
    %8708 = vmatpush1.bf16.msra.mxu0 %v5986
    %8709 = vmatprep.subr.bf16.mxu0 %v5993
    %8710 = vmatpush1.bf16.msra.mxu0 %v5992
    %8711 = vmatprep.subr.bf16.mxu0 %v5999
    %8712 = vmatpush1.bf16.msra.mxu0 %v5998
    %8713 = vmatprep.subr.bf16.mxu0 %v6005
    %8714 = vmatpush1.bf16.msra.mxu0 %v6004
    %8715 = vmatprep.subr.bf16.mxu0 %v6011
    %8716 = vmatpush1.bf16.msra.mxu0 %v6010
    %8717 = vmatprep.subr.bf16.mxu0 %v6017
    %8718 = vmatpush1.bf16.msra.mxu0 %v6016
    %8719 = vmatprep.subr.bf16.mxu0 %v6023
    %8720 = vmatpush1.bf16.msra.mxu0 %v6022
    %8721 = vmatprep.subr.bf16.mxu0 %v6029
    %8722 = vmatpush1.bf16.msra.mxu0 %v6028
    %8723 = vmatprep.subr.bf16.mxu0 %v6035
    %8724 = vmatpush1.bf16.msra.mxu0 %v6034
    %8725 = vmatprep.mubr.bf16.mxu0 %v1403
    %8726 = vmatmul.mubr.bf16.gmra.mrb[0].mxu0 %v1402
    %v8727 = vpop.f32.mrb[0].mxu0
    %v8728 = vadd.f32 %v8685, %v8727
    %v8729 = vpop.f32.mrb[0].mxu0
    %v8730 = vadd.f32 %v8687, %v8729
    %v8731 = vpop.f32.mrb[0].mxu0
    %v8732 = vadd.f32 %v8689, %v8731
    %v8733 = vpop.f32.mrb[0].mxu0
    %v8734 = vadd.f32 %v8691, %v8733
    %8735 = vdwg.mxu0
    %v8736 = vld [vmem:[#allocation8] sm:$0xff]
    %v8737 = vld [vmem:[#allocation8 + $0x8] sm:$0xff]
    %v8738 = vld [vmem:[#allocation8 + $0x10] sm:$0xff]
    %v8739 = vld [vmem:[#allocation8 + $0x18] sm:$0xff]
    %v8740 = vld [vmem:[#allocation8 + $0x20] sm:$0xff]
    %v8741 = vld [vmem:[#allocation8 + $0x28] sm:$0xff]
    %v8742 = vld [vmem:[#allocation8 + $0x30] sm:$0xff]
    %v8743 = vld [vmem:[#allocation8 + $0x38] sm:$0xff]
    %v8744 = vld [vmem:[#allocation8 + $0x40] sm:$0xff]
    %v8745 = vld [vmem:[#allocation8 + $0x48] sm:$0xff]
    %v8746 = vld [vmem:[#allocation8 + $0x50] sm:$0xff]
    %v8747 = vld [vmem:[#allocation8 + $0x58] sm:$0xff]
    %v8748 = vadd.f32 %v7696, %v8736
    %v8749 = vadd.f32 %v7698, %v8737
    %v8750 = vadd.f32 %v8212, %v8738
    %v8751 = vadd.f32 %v8214, %v8739
    %v8752 = vadd.f32 %v8728, %v8740
    %v8753 = vadd.f32 %v8730, %v8741
    %v8754 = vadd.f32 %v7700, %v8742
    %v8755 = vadd.f32 %v7702, %v8743
    %v8756 = vadd.f32 %v8216, %v8744
    %v8757 = vadd.f32 %v8218, %v8745
    %v8758 = vadd.f32 %v8732, %v8746
    %v8759 = vadd.f32 %v8734, %v8747
    %v8760 = vadd.f32 %v8748, %v8749
    %v8761 = vadd.f32 %v8760, %v8750
    %v8762 = vadd.f32 %v8761, %v8751
    %v8763 = vadd.f32 %v8762, %v8752
    %v8764 = vadd.f32 %v8763, %v8753
    %8765 = vadd.xlane.f32.xlu0 %v8764
    %v8766 = vpop.xlane.xlu0 %8765
    %v8767 = vadd.f32 %v8754, %v8755
    %v8768 = vadd.f32 %v8767, %v8756
    %v8769 = vadd.f32 %v8768, %v8757
    %v8770 = vadd.f32 %v8769, %v8758
    %v8771 = vadd.f32 %v8770, %v8759
    %8772 = vadd.xlane.f32.xlu0 %v8771
    %v8773 = vpop.xlane.xlu0 %8772
    %v8774 = vrcp.pop 768.0
    %v8775 = vmul.f32 %v8766, %v8774
    %v8776 = vmul.f32 %v8773, %v8774
    %v8777 = vsub.f32 %v8748, %v8775
    %v8778 = vsub.f32 %v8749, %v8775
    %v8779 = vsub.f32 %v8750, %v8775
    %v8780 = vsub.f32 %v8751, %v8775
    %v8781 = vsub.f32 %v8752, %v8775
    %v8782 = vsub.f32 %v8753, %v8775
    %v8783 = vsub.f32 %v8754, %v8776
    %v8784 = vsub.f32 %v8755, %v8776
    %v8785 = vsub.f32 %v8756, %v8776
    %v8786 = vsub.f32 %v8757, %v8776
    %v8787 = vsub.f32 %v8758, %v8776
    %v8788 = vsub.f32 %v8759, %v8776
    %v8789 = vmul.f32 %v8777, %v8777
    %v8790 = vmul.f32 %v8778, %v8778
    %v8791 = vmul.f32 %v8779, %v8779
    %v8792 = vmul.f32 %v8780, %v8780
    %v8793 = vmul.f32 %v8781, %v8781
    %v8794 = vmul.f32 %v8782, %v8782
    %v8795 = vmul.f32 %v8783, %v8783
    %v8796 = vmul.f32 %v8784, %v8784
    %v8797 = vmul.f32 %v8785, %v8785
    %v8798 = vmul.f32 %v8786, %v8786
    %v8799 = vmul.f32 %v8787, %v8787
    %v8800 = vmul.f32 %v8788, %v8788
    %v8801 = vadd.f32 %v8789, %v8790
    %v8802 = vadd.f32 %v8801, %v8791
    %v8803 = vadd.f32 %v8802, %v8792
    %v8804 = vadd.f32 %v8803, %v8793
    %v8805 = vadd.f32 %v8804, %v8794
    %8806 = vadd.xlane.f32.xlu0 %v8805
    %v8807 = vpop.xlane.xlu0 %8806
    %v8808 = vadd.f32 %v8795, %v8796
    %v8809 = vadd.f32 %v8808, %v8797
    %v8810 = vadd.f32 %v8809, %v8798
    %v8811 = vadd.f32 %v8810, %v8799
    %v8812 = vadd.f32 %v8811, %v8800
    %8813 = vadd.xlane.f32.xlu0 %v8812
    %v8814 = vpop.xlane.xlu0 %8813
    %v8815 = vmul.f32 %v8807, %v8774
    %v8816 = vmul.f32 %v8814, %v8774
    %v8817 = vld [vmem:[#allocation10] sm:$0x3f]
    %v8818 = vadd.f32 %v8815, 1e-12
    %v8819 = vadd.f32 %v8816, 1e-12
    %v8820 = vrsqrt.pop %v8818
    %v8821 = vrsqrt.pop %v8819
    %v8823 = vlaneseq
    %v8824 = vshrl.u32 %v8823, 7
    %v8825 = vsub.s32 0, %v8824
    %v8826 = vrot.slane %v8817, %v8825
    %v8827 = vlaneseq
    %v8828 = vshrl.u32 %v8827, 7
    %v8829 = vsub.s32 1, %v8828
    %v8830 = vrot.slane %v8817, %v8829
    %v8831 = vlaneseq
    %v8832 = vshrl.u32 %v8831, 7
    %v8833 = vsub.s32 2, %v8832
    %v8834 = vrot.slane %v8817, %v8833
    %v8835 = vlaneseq
    %v8836 = vshrl.u32 %v8835, 7
    %v8837 = vsub.s32 3, %v8836
    %v8838 = vrot.slane %v8817, %v8837
    %v8839 = vlaneseq
    %v8840 = vshrl.u32 %v8839, 7
    %v8841 = vsub.s32 4, %v8840
    %v8842 = vrot.slane %v8817, %v8841
    %v8843 = vlaneseq
    %v8844 = vshrl.u32 %v8843, 7
    %v8845 = vsub.s32 5, %v8844
    %v8846 = vrot.slane %v8817, %v8845
    %v8853 = vmul.f32 %v8826, %v8820
    %v8854 = vmul.f32 %v8830, %v8820
    %v8855 = vmul.f32 %v8834, %v8820
    %v8856 = vmul.f32 %v8838, %v8820
    %v8857 = vmul.f32 %v8842, %v8820
    %v8858 = vmul.f32 %v8846, %v8820
    %v8859 = vmul.f32 %v8826, %v8821
    %v8860 = vmul.f32 %v8830, %v8821
    %v8861 = vmul.f32 %v8834, %v8821
    %v8862 = vmul.f32 %v8838, %v8821
    %v8863 = vmul.f32 %v8842, %v8821
    %v8864 = vmul.f32 %v8846, %v8821
    %v8865 = vmul.f32 %v8777, %v8853
    %v8866 = vmul.f32 %v8778, %v8854
    %v8867 = vmul.f32 %v8779, %v8855
    %v8868 = vmul.f32 %v8780, %v8856
    %v8869 = vmul.f32 %v8781, %v8857
    %v8870 = vmul.f32 %v8782, %v8858
    %v8871 = vmul.f32 %v8783, %v8859
    %v8872 = vmul.f32 %v8784, %v8860
    %v8873 = vmul.f32 %v8785, %v8861
    %v8874 = vmul.f32 %v8786, %v8862
    %v8875 = vmul.f32 %v8787, %v8863
    %v8876 = vmul.f32 %v8788, %v8864
    %v8877 = vld [vmem:[#allocation11] sm:$0x3f]
    %v8879 = vlaneseq
    %v8880 = vshrl.u32 %v8879, 7
    %v8881 = vsub.s32 0, %v8880
    %v8882 = vrot.slane %v8877, %v8881
    %v8883 = vlaneseq
    %v8884 = vshrl.u32 %v8883, 7
    %v8885 = vsub.s32 1, %v8884
    %v8886 = vrot.slane %v8877, %v8885
    %v8887 = vlaneseq
    %v8888 = vshrl.u32 %v8887, 7
    %v8889 = vsub.s32 2, %v8888
    %v8890 = vrot.slane %v8877, %v8889
    %v8891 = vlaneseq
    %v8892 = vshrl.u32 %v8891, 7
    %v8893 = vsub.s32 3, %v8892
    %v8894 = vrot.slane %v8877, %v8893
    %v8895 = vlaneseq
    %v8896 = vshrl.u32 %v8895, 7
    %v8897 = vsub.s32 4, %v8896
    %v8898 = vrot.slane %v8877, %v8897
    %v8899 = vlaneseq
    %v8900 = vshrl.u32 %v8899, 7
    %v8901 = vsub.s32 5, %v8900
    %v8902 = vrot.slane %v8877, %v8901
    %v8909 = vadd.f32 %v8865, %v8882
    %v8910 = vadd.f32 %v8866, %v8886
    %v8911 = vadd.f32 %v8867, %v8890
    %v8912 = vadd.f32 %v8868, %v8894
    %v8913 = vadd.f32 %v8869, %v8898
    %v8914 = vadd.f32 %v8870, %v8902
    %v8915 = vadd.f32 %v8871, %v8882
    %v8916 = vadd.f32 %v8872, %v8886
    %v8917 = vadd.f32 %v8873, %v8890
    %v8918 = vadd.f32 %v8874, %v8894
    %v8919 = vadd.f32 %v8875, %v8898
    %v8920 = vadd.f32 %v8876, %v8902
    %8921 = vst [vmem:[#allocation13] sm:$0xff] %v8909
    %8922 = vst [vmem:[#allocation13 + $0x8] sm:$0xff] %v8910
    %8923 = vst [vmem:[#allocation13 + $0x10] sm:$0xff] %v8911
    %8924 = vst [vmem:[#allocation13 + $0x18] sm:$0xff] %v8912
    %8925 = vst [vmem:[#allocation13 + $0x20] sm:$0xff] %v8913
    %8926 = vst [vmem:[#allocation13 + $0x28] sm:$0xff] %v8914
    %8927 = vst [vmem:[#allocation13 + $0x30] sm:$0xff] %v8915
    %8928 = vst [vmem:[#allocation13 + $0x38] sm:$0xff] %v8916
    %8929 = vst [vmem:[#allocation13 + $0x40] sm:$0xff] %v8917
    %8930 = vst [vmem:[#allocation13 + $0x48] sm:$0xff] %v8918
    %8931 = vst [vmem:[#allocation13 + $0x50] sm:$0xff] %v8919
    %8932 = vst [vmem:[#allocation13 + $0x58] sm:$0xff] %v8920
    // Predicated region
    $region50: #{tpu_custom_call.1} parent=1 // pred_check
      _
    $region51: #{tpu_custom_call.1} parent=1 // pred_check_branch
      %8934 = sbr.rel (0) target = $region53
    $region52: #{tpu_custom_call.1} parent=1 // pred_region
      %s8936 = ssub.s32 1536, 1536
      %8937 = vsyncadd [#allocation4], %s8936
      %s8938 = sshll.u32 [#allocation13], 4
      %s8939 = int_to_ptr.vmem [resolvable:$true] %s8938
      %8944 = dma.vmem_to_hbm [thread:$0]  %s8939, 1536, %s6, [#allocation4], 768, 768, 48
    $region53: #{tpu_custom_call.1} parent=1 // pred_fallthru
      _
    // Predicated region
    $region54: #{tpu_custom_call.1} parent=1 // pred_check
      _
    $region55: #{tpu_custom_call.1} parent=1 // pred_check_branch
      %8946 = sbr.rel (0) target = $region57
    $region56: #{tpu_custom_call.1} parent=1 // pred_region
      %8947 = dma.done [#allocation4], 1536
    $region57: #{tpu_custom_call.1} parent=1 // pred_fallthru
      _
    %8948 = vsyncpa [#allocation3], 1
    %8949 = vsyncpa [#allocation6], 1
    %8950 = vsyncpa [#allocation9], 1
    %8951 = vsyncpa [#allocation12], 1
    %8952 = vsyncpa [#allocation4], 1

</llo_original>
